<compile_context>
chip_gen: v6e
topology: v6e:2x2x1
jax: 0.10.0
libtpu: 0.0.40
codegen_flags: <defaults>
</compile_context>

<pallas_src>
import jax
import jax.numpy as jnp
from jax.experimental import pallas as pl
from jax.experimental.pallas import tpu as pltpu

# ----------------------- model config (scaled-down BERT) -----------------------
VOCAB = 100
MAX_POS = 32
HIDDEN = 64          # bert-base uses 768; scaled down
NUM_HEADS = 4
HEAD_DIM = HIDDEN // NUM_HEADS
NUM_LAYERS = 2       # bert-base uses 12; scaled down
INTERMEDIATE = 128
NUM_LABELS = 3
FC_DIM = 100
FC_PAD = 128         # lane-dense padding for the MLP head (100 -> 128, 3 -> 128)
LN_EPS = 1e-12
ATT_SCALE = 1.0 / (HEAD_DIM ** 0.5)

BATCH = 2
SEQ = 8

_WEIGHT_ORDER = [
    "emb_ln_g", "emb_ln_b",
    "wq", "bq", "wk", "bk", "wv", "bv",
    "wo", "bo", "ln1_g", "ln1_b",
    "wi", "bi", "wf", "bf", "ln2_g", "ln2_b",
    "fc1_w", "fc1_b", "fc2_w", "fc2_b", "fc3_w", "fc3_b",
]


# ------------------------------ in-kernel helpers -------------------------------
def _layer_norm(x, g, b):
    mu = jnp.mean(x, axis=-1, keepdims=True)
    var = jnp.mean(jnp.square(x - mu), axis=-1, keepdims=True)
    return (x - mu) * jax.lax.rsqrt(var + LN_EPS) * g + b


def _gelu(x):
    # TODO(synk): HF BERT default is exact erf GELU; tanh approximation used in-kernel.
    return 0.5 * x * (1.0 + jnp.tanh(0.7978845608028654 * (x + 0.044715 * x * x * x)))


# --------------------------- the single fused kernel ----------------------------
def _ihd_kernel(
    tok_ref, pt_ref, mask_ref, embg_ref, embb_ref,
    wq_ref, bq_ref, wk_ref, bk_ref, wv_ref, bv_ref,
    wo_ref, bo_ref, ln1g_ref, ln1b_ref,
    wi_ref, bi_ref, wf_ref, bf_ref, ln2g_ref, ln2b_ref,
    fc1w_ref, fc1b_ref, fc2w_ref, fc2b_ref, fc3w_ref, fc3b_ref,
    out_ref,
):
    f32 = jnp.float32

    # --- embeddings (+ pos/type already summed) -> LayerNorm, no fake residual ---
    h = _layer_norm(tok_ref[0] + pt_ref[...], embg_ref[...], embb_ref[...])   # (S, D)
    mask = mask_ref[...]                                                      # (1, 1, S)

    for l in range(NUM_LAYERS):
        # ---- multi-head self-attention, all heads batched in one einsum chain ----
        hb = jnp.broadcast_to(h[None, :, :], (NUM_HEADS, SEQ, HIDDEN))        # (H, S, D)
        q = jnp.einsum("hsd,hde->hse", hb, wq_ref[l],
                       preferred_element_type=f32) + bq_ref[l]                # (H, S, Dh)
        k = jnp.einsum("hsd,hde->hse", hb, wk_ref[l],
                       preferred_element_type=f32) + bk_ref[l]
        v = jnp.einsum("hsd,hde->hse", hb, wv_ref[l],
                       preferred_element_type=f32) + bv_ref[l]

        s = jnp.einsum("hqd,hkd->hqk", q, k,
                       preferred_element_type=f32) * ATT_SCALE + mask         # (H, S, S)
        s = s - jnp.max(s, axis=-1, keepdims=True)
        p = jnp.exp(s)
        p = p * pl.reciprocal(jnp.sum(p, axis=-1, keepdims=True), approx=True)
        ctx = jnp.einsum("hqk,hkd->hqd", p, v, preferred_element_type=f32)    # (H, S, Dh)

        # output projection: accumulate per-head (Dh, D) slabs -> no concat/transpose
        attn = jnp.dot(ctx[0], wo_ref[l, 0], preferred_element_type=f32)      # (S, D)
        for hh in range(1, NUM_HEADS):
            attn = attn + jnp.dot(ctx[hh], wo_ref[l, hh], preferred_element_type=f32)
        attn = attn + bo_ref[l]
        h = _layer_norm(attn + h, ln1g_ref[l], ln1b_ref[l])

        # ---- FFN: wi -> gelu -> wf fused; intermediate never leaves VMEM ----
        inter = _gelu(jnp.dot(h, wi_ref[l], preferred_element_type=f32) + bi_ref[l])
        ffn = jnp.dot(inter, wf_ref[l], preferred_element_type=f32) + bf_ref[l]
        h = _layer_norm(ffn + h, ln2g_ref[l], ln2b_ref[l])

    # ---- CLS head (lane-padded to 128): fc1 -> tanh -> fc2 -> tanh -> fc3 ----
    x = h[0:1, :]                                                             # (1, D)
    x = jnp.tanh(jnp.dot(x, fc1w_ref[...], preferred_element_type=f32) + fc1b_ref[...])
    x = jnp.tanh(jnp.dot(x, fc2w_ref[...], preferred_element_type=f32) + fc2b_ref[...])
    x = jnp.dot(x, fc3w_ref[...], preferred_element_type=f32) + fc3b_ref[...]
    out_ref[0] = x.astype(out_ref.dtype)


# ------------------------------ parameter init ---------------------------------
def init_params(key):
    def nrm(k, shape, std=0.02):
        return std * jax.random.normal(k, shape, jnp.float32)

    def pad2d(a, rows, cols):
        return jnp.zeros((rows, cols), jnp.float32).at[: a.shape[0], : a.shape[1]].set(a)

    keys = iter(jax.random.split(key, 64))
    L, H, D, Dh, I = NUM_LAYERS, NUM_HEADS, HIDDEN, HEAD_DIM, INTERMEDIATE

    p = {
        "word_emb": nrm(next(keys), (VOCAB, D)),
        "pos_emb": nrm(next(keys), (MAX_POS, D)),
        "type_emb": nrm(next(keys), (2, D)),
        "emb_ln_g": jnp.ones((1, D), jnp.float32),
        "emb_ln_b": jnp.zeros((1, D), jnp.float32),
        # attention weights pre-stacked per layer & head (kernel-friendly layout)
        "wq": nrm(next(keys), (L, H, D, Dh)), "bq": jnp.zeros((L, H, 1, Dh), jnp.float32),
        "wk": nrm(next(keys), (L, H, D, Dh)), "bk": jnp.zeros((L, H, 1, Dh), jnp.float32),
        "wv": nrm(next(keys), (L, H, D, Dh)), "bv": jnp.zeros((L, H, 1, Dh), jnp.float32),
        "wo": nrm(next(keys), (L, H, Dh, D)), "bo": jnp.zeros((L, 1, D), jnp.float32),
        "ln1_g": jnp.ones((L, 1, D), jnp.float32), "ln1_b": jnp.zeros((L, 1, D), jnp.float32),
        "wi": nrm(next(keys), (L, D, I)), "bi": jnp.zeros((L, 1, I), jnp.float32),
        "wf": nrm(next(keys), (L, I, D)), "bf": jnp.zeros((L, 1, D), jnp.float32),
        "ln2_g": jnp.ones((L, 1, D), jnp.float32), "ln2_b": jnp.zeros((L, 1, D), jnp.float32),
        # classification head (768->100, 100->100, 100->num_labels), zero-padded to 128 lanes
        "fc1_w": pad2d(nrm(next(keys), (D, FC_DIM)), D, FC_PAD),
        "fc1_b": jnp.zeros((1, FC_PAD), jnp.float32),
        "fc2_w": pad2d(nrm(next(keys), (FC_DIM, FC_DIM)), FC_PAD, FC_PAD),
        "fc2_b": jnp.zeros((1, FC_PAD), jnp.float32),
        "fc3_w": pad2d(nrm(next(keys), (FC_DIM, NUM_LABELS)), FC_PAD, FC_PAD),
        "fc3_b": jnp.zeros((1, FC_PAD), jnp.float32),
    }
    return p


# --------------------------------- forward -------------------------------------
def ihd_forward(params, input_ids, attention_mask):
    B, S = input_ids.shape

    # glue (gather + tiny adds) stays in XLA; everything else runs in one Pallas kernel
    tok = jnp.take(params["word_emb"], input_ids, axis=0)                     # (B, S, D)
    pos_type = params["pos_emb"][:S] + params["type_emb"][0][None, :]         # (S, D)
    mask_bias = ((1.0 - attention_mask.astype(jnp.float32)) * -10000.0)[:, None, :]  # (B,1,S)

    weights = [params[k] for k in _WEIGHT_ORDER]

    def const_spec(a):
        n = a.ndim
        return pl.BlockSpec(a.shape, lambda b, n=n: (0,) * n)

    out = pl.pallas_call(
        _ihd_kernel,
        out_shape=jax.ShapeDtypeStruct((B, 1, FC_PAD), jnp.float32),
        grid=(B,),
        in_specs=[
            pl.BlockSpec((1, S, HIDDEN), lambda b: (b, 0, 0)),   # token embeddings (per batch)
            pl.BlockSpec((S, HIDDEN), lambda b: (0, 0)),         # pos + type embeddings
            pl.BlockSpec((1, 1, S), lambda b: (b, 0, 0)),        # additive attention mask
        ] + [const_spec(w) for w in weights],
        out_specs=pl.BlockSpec((1, 1, FC_PAD), lambda b: (b, 0, 0)),
        compiler_params=pltpu.CompilerParams(dimension_semantics=("parallel",)),
    )(tok, pos_type, mask_bias, *weights)

    return out[:, 0, :NUM_LABELS]                                             # (B, NUM_LABELS)


# ----------------------------------- main ---------------------------------------
if __name__ == "__main__":
    key = jax.random.PRNGKey(0)
    k_param, k_ids = jax.random.split(key)

    params = init_params(k_param)
    input_ids = jax.random.randint(k_ids, (BATCH, SEQ), 0, VOCAB, dtype=jnp.int32)
    # last two tokens of the second example are padding
    attention_mask = jnp.array([[1] * SEQ, [1] * (SEQ - 2) + [0, 0]], dtype=jnp.int32)

    logits = jax.jit(ihd_forward)(params, input_ids, attention_mask)
    jax.block_until_ready(logits)

    assert logits.shape == (BATCH, NUM_LABELS)
    print("KERNEL_OK")
</pallas_src>

<mosaic_0001>
module attributes {stable_mosaic.version = 11 : i64} {
  func.func @_ihd_kernel(%arg0: i32, %arg1: memref<1x8x64xf32, #tpu.memory_space<vmem>>, %arg2: memref<8x64xf32, #tpu.memory_space<vmem>>, %arg3: memref<1x1x8xf32, #tpu.memory_space<vmem>>, %arg4: memref<1x64xf32, #tpu.memory_space<vmem>>, %arg5: memref<1x64xf32, #tpu.memory_space<vmem>>, %arg6: memref<2x4x64x16xf32, #tpu.memory_space<vmem>>, %arg7: memref<2x4x1x16xf32, #tpu.memory_space<vmem>>, %arg8: memref<2x4x64x16xf32, #tpu.memory_space<vmem>>, %arg9: memref<2x4x1x16xf32, #tpu.memory_space<vmem>>, %arg10: memref<2x4x64x16xf32, #tpu.memory_space<vmem>>, %arg11: memref<2x4x1x16xf32, #tpu.memory_space<vmem>>, %arg12: memref<2x4x16x64xf32, #tpu.memory_space<vmem>>, %arg13: memref<2x1x64xf32, #tpu.memory_space<vmem>>, %arg14: memref<2x1x64xf32, #tpu.memory_space<vmem>>, %arg15: memref<2x1x64xf32, #tpu.memory_space<vmem>>, %arg16: memref<2x64x128xf32, #tpu.memory_space<vmem>>, %arg17: memref<2x1x128xf32, #tpu.memory_space<vmem>>, %arg18: memref<2x128x64xf32, #tpu.memory_space<vmem>>, %arg19: memref<2x1x64xf32, #tpu.memory_space<vmem>>, %arg20: memref<2x1x64xf32, #tpu.memory_space<vmem>>, %arg21: memref<2x1x64xf32, #tpu.memory_space<vmem>>, %arg22: memref<64x128xf32, #tpu.memory_space<vmem>>, %arg23: memref<1x128xf32, #tpu.memory_space<vmem>>, %arg24: memref<128x128xf32, #tpu.memory_space<vmem>>, %arg25: memref<1x128xf32, #tpu.memory_space<vmem>>, %arg26: memref<128x128xf32, #tpu.memory_space<vmem>>, %arg27: memref<1x128xf32, #tpu.memory_space<vmem>>, %arg28: memref<1x1x128xf32, #tpu.memory_space<vmem>>) attributes {dimension_semantics = [#tpu.dimension_semantics<parallel>], iteration_bounds = array<i64: 2>, scalar_prefetch = 0 : i64, scratch_operands = 0 : i64, tpu.core_type = #tpu.core_type<tc>, window_params = [{transform_indices = @transform_0, window_bounds = array<i64: 1, 8, 64>}, {pipeline_mode = #tpu.pipeline_mode<synchronous>, transform_indices = @transform_1, window_bounds = array<i64: 8, 64>}, {transform_indices = @transform_2, window_bounds = array<i64: 1, 1, 8>}, {pipeline_mode = #tpu.pipeline_mode<synchronous>, transform_indices = @transform_3, window_bounds = array<i64: 1, 64>}, {pipeline_mode = #tpu.pipeline_mode<synchronous>, transform_indices = @transform_4, window_bounds = array<i64: 1, 64>}, {pipeline_mode = #tpu.pipeline_mode<synchronous>, transform_indices = @transform_5, window_bounds = array<i64: 2, 4, 64, 16>}, {pipeline_mode = #tpu.pipeline_mode<synchronous>, transform_indices = @transform_6, window_bounds = array<i64: 2, 4, 1, 16>}, {pipeline_mode = #tpu.pipeline_mode<synchronous>, transform_indices = @transform_7, window_bounds = array<i64: 2, 4, 64, 16>}, {pipeline_mode = #tpu.pipeline_mode<synchronous>, transform_indices = @transform_8, window_bounds = array<i64: 2, 4, 1, 16>}, {pipeline_mode = #tpu.pipeline_mode<synchronous>, transform_indices = @transform_9, window_bounds = array<i64: 2, 4, 64, 16>}, {pipeline_mode = #tpu.pipeline_mode<synchronous>, transform_indices = @transform_10, window_bounds = array<i64: 2, 4, 1, 16>}, {pipeline_mode = #tpu.pipeline_mode<synchronous>, transform_indices = @transform_11, window_bounds = array<i64: 2, 4, 16, 64>}, {pipeline_mode = #tpu.pipeline_mode<synchronous>, transform_indices = @transform_12, window_bounds = array<i64: 2, 1, 64>}, {pipeline_mode = #tpu.pipeline_mode<synchronous>, transform_indices = @transform_13, window_bounds = array<i64: 2, 1, 64>}, {pipeline_mode = #tpu.pipeline_mode<synchronous>, transform_indices = @transform_14, window_bounds = array<i64: 2, 1, 64>}, {pipeline_mode = #tpu.pipeline_mode<synchronous>, transform_indices = @transform_15, window_bounds = array<i64: 2, 64, 128>}, {pipeline_mode = #tpu.pipeline_mode<synchronous>, transform_indices = @transform_16, window_bounds = array<i64: 2, 1, 128>}, {pipeline_mode = #tpu.pipeline_mode<synchronous>, transform_indices = @transform_17, window_bounds = array<i64: 2, 128, 64>}, {pipeline_mode = #tpu.pipeline_mode<synchronous>, transform_indices = @transform_18, window_bounds = array<i64: 2, 1, 64>}, {pipeline_mode = #tpu.pipeline_mode<synchronous>, transform_indices = @transform_19, window_bounds = array<i64: 2, 1, 64>}, {pipeline_mode = #tpu.pipeline_mode<synchronous>, transform_indices = @transform_20, window_bounds = array<i64: 2, 1, 64>}, {pipeline_mode = #tpu.pipeline_mode<synchronous>, transform_indices = @transform_21, window_bounds = array<i64: 64, 128>}, {pipeline_mode = #tpu.pipeline_mode<synchronous>, transform_indices = @transform_22, window_bounds = array<i64: 1, 128>}, {pipeline_mode = #tpu.pipeline_mode<synchronous>, transform_indices = @transform_23, window_bounds = array<i64: 128, 128>}, {pipeline_mode = #tpu.pipeline_mode<synchronous>, transform_indices = @transform_24, window_bounds = array<i64: 1, 128>}, {pipeline_mode = #tpu.pipeline_mode<synchronous>, transform_indices = @transform_25, window_bounds = array<i64: 128, 128>}, {pipeline_mode = #tpu.pipeline_mode<synchronous>, transform_indices = @transform_26, window_bounds = array<i64: 1, 128>}, {transform_indices = @transform_27, window_bounds = array<i64: 1, 1, 128>}]} {
    %c0 = arith.constant 0 : index
    %c0_0 = arith.constant 0 : index
    %c0_1 = arith.constant 0 : index
    %0 = vector.load %arg1[%c0, %c0_0, %c0_1] : memref<1x8x64xf32, #tpu.memory_space<vmem>>, vector<1x8x64xf32>
    %1 = vector.shape_cast %0 : vector<1x8x64xf32> to vector<8x64xf32>
    %c0_2 = arith.constant 0 : index
    %c0_3 = arith.constant 0 : index
    %2 = vector.load %arg2[%c0_2, %c0_3] : memref<8x64xf32, #tpu.memory_space<vmem>>, vector<8x64xf32>
    %3 = arith.addf %1, %2 : vector<8x64xf32>
    %c0_4 = arith.constant 0 : index
    %c0_5 = arith.constant 0 : index
    %4 = vector.load %arg4[%c0_4, %c0_5] : memref<1x64xf32, #tpu.memory_space<vmem>>, vector<1x64xf32>
    %c0_6 = arith.constant 0 : index
    %c0_7 = arith.constant 0 : index
    %5 = vector.load %arg5[%c0_6, %c0_7] : memref<1x64xf32, #tpu.memory_space<vmem>>, vector<1x64xf32>
    %cst = arith.constant dense<0.000000e+00> : vector<8xf32>
    %6 = vector.multi_reduction <add>, %3, %cst [1] : vector<8x64xf32> to vector<8xf32>
    %7 = vector.shape_cast %6 : vector<8xf32> to vector<8x1xf32>
    %cst_8 = arith.constant 6.400000e+01 : f32
    %8 = vector.broadcast %cst_8 : f32 to vector<8x1xf32>
    %9 = arith.divf %7, %8 : vector<8x1xf32>
    %10 = vector.broadcast %9 : vector<8x1xf32> to vector<8x64xf32>
    %11 = arith.subf %3, %10 : vector<8x64xf32>
    %12 = arith.mulf %11, %11 : vector<8x64xf32>
    %cst_9 = arith.constant dense<0.000000e+00> : vector<8xf32>
    %13 = vector.multi_reduction <add>, %12, %cst_9 [1] : vector<8x64xf32> to vector<8xf32>
    %14 = vector.shape_cast %13 : vector<8xf32> to vector<8x1xf32>
    %cst_10 = arith.constant 6.400000e+01 : f32
    %15 = vector.broadcast %cst_10 : f32 to vector<8x1xf32>
    %16 = arith.divf %14, %15 : vector<8x1xf32>
    %17 = vector.broadcast %9 : vector<8x1xf32> to vector<8x64xf32>
    %18 = arith.subf %3, %17 : vector<8x64xf32>
    %cst_11 = arith.constant 9.99999996E-13 : f32
    %19 = vector.broadcast %cst_11 : f32 to vector<8x1xf32>
    %20 = arith.addf %16, %19 : vector<8x1xf32>
    %21 = math.rsqrt %20 : vector<8x1xf32>
    %22 = vector.broadcast %21 : vector<8x1xf32> to vector<8x64xf32>
    %23 = arith.mulf %18, %22 : vector<8x64xf32>
    %24 = vector.broadcast %4 : vector<1x64xf32> to vector<8x64xf32>
    %25 = arith.mulf %23, %24 : vector<8x64xf32>
    %26 = vector.broadcast %5 : vector<1x64xf32> to vector<8x64xf32>
    %27 = arith.addf %25, %26 : vector<8x64xf32>
    %c0_12 = arith.constant 0 : index
    %c0_13 = arith.constant 0 : index
    %c0_14 = arith.constant 0 : index
    %28 = vector.load %arg3[%c0_12, %c0_13, %c0_14] : memref<1x1x8xf32, #tpu.memory_space<vmem>>, vector<1x1x8xf32>
    %29 = vector.shape_cast %27 : vector<8x64xf32> to vector<1x8x64xf32>
    %30 = vector.shape_cast %29 : vector<1x8x64xf32> to vector<1x8x64xf32>
    %31 = vector.broadcast %30 : vector<1x8x64xf32> to vector<4x8x64xf32>
    %c0_15 = arith.constant 0 : index
    %c0_16 = arith.constant 0 : index
    %c0_17 = arith.constant 0 : index
    %c0_18 = arith.constant 0 : index
    %32 = vector.load %arg6[%c0_15, %c0_16, %c0_17, %c0_18] : memref<2x4x64x16xf32, #tpu.memory_space<vmem>>, vector<1x4x64x16xf32>
    %33 = vector.shape_cast %32 : vector<1x4x64x16xf32> to vector<4x64x16xf32>
    "tpu.trace_start"() <{level = 10 : i32, message = "hsd,hde->hse"}> : () -> ()
    %cst_19 = arith.constant dense<0.000000e+00> : vector<4x8x16xf32>
    %34 = tpu.matmul %31, %33, %cst_19 {dimension_numbers = #tpu.dot_dimension_numbers<[2], [1], [1], [2], [0, 0, 0, 1, 1, 2], [0], [0]>} : vector<4x8x64xf32>, vector<4x64x16xf32>, vector<4x8x16xf32> -> vector<4x8x16xf32>
    "tpu.trace_stop"() : () -> ()
    %c0_20 = arith.constant 0 : index
    %c0_21 = arith.constant 0 : index
    %c0_22 = arith.constant 0 : index
    %c0_23 = arith.constant 0 : index
    %35 = vector.load %arg7[%c0_20, %c0_21, %c0_22, %c0_23] : memref<2x4x1x16xf32, #tpu.memory_space<vmem>>, vector<1x4x1x16xf32>
    %36 = vector.shape_cast %35 : vector<1x4x1x16xf32> to vector<4x1x16xf32>
    %37 = vector.broadcast %36 : vector<4x1x16xf32> to vector<4x8x16xf32>
    %38 = arith.addf %34, %37 : vector<4x8x16xf32>
    %c0_24 = arith.constant 0 : index
    %c0_25 = arith.constant 0 : index
    %c0_26 = arith.constant 0 : index
    %c0_27 = arith.constant 0 : index
    %39 = vector.load %arg8[%c0_24, %c0_25, %c0_26, %c0_27] : memref<2x4x64x16xf32, #tpu.memory_space<vmem>>, vector<1x4x64x16xf32>
    %40 = vector.shape_cast %39 : vector<1x4x64x16xf32> to vector<4x64x16xf32>
    "tpu.trace_start"() <{level = 10 : i32, message = "hsd,hde->hse"}> : () -> ()
    %cst_28 = arith.constant dense<0.000000e+00> : vector<4x8x16xf32>
    %41 = tpu.matmul %31, %40, %cst_28 {dimension_numbers = #tpu.dot_dimension_numbers<[2], [1], [1], [2], [0, 0, 0, 1, 1, 2], [0], [0]>} : vector<4x8x64xf32>, vector<4x64x16xf32>, vector<4x8x16xf32> -> vector<4x8x16xf32>
    "tpu.trace_stop"() : () -> ()
    %c0_29 = arith.constant 0 : index
    %c0_30 = arith.constant 0 : index
    %c0_31 = arith.constant 0 : index
    %c0_32 = arith.constant 0 : index
    %42 = vector.load %arg9[%c0_29, %c0_30, %c0_31, %c0_32] : memref<2x4x1x16xf32, #tpu.memory_space<vmem>>, vector<1x4x1x16xf32>
    %43 = vector.shape_cast %42 : vector<1x4x1x16xf32> to vector<4x1x16xf32>
    %44 = vector.broadcast %43 : vector<4x1x16xf32> to vector<4x8x16xf32>
    %45 = arith.addf %41, %44 : vector<4x8x16xf32>
    %c0_33 = arith.constant 0 : index
    %c0_34 = arith.constant 0 : index
    %c0_35 = arith.constant 0 : index
    %c0_36 = arith.constant 0 : index
    %46 = vector.load %arg10[%c0_33, %c0_34, %c0_35, %c0_36] : memref<2x4x64x16xf32, #tpu.memory_space<vmem>>, vector<1x4x64x16xf32>
    %47 = vector.shape_cast %46 : vector<1x4x64x16xf32> to vector<4x64x16xf32>
    "tpu.trace_start"() <{level = 10 : i32, message = "hsd,hde->hse"}> : () -> ()
    %cst_37 = arith.constant dense<0.000000e+00> : vector<4x8x16xf32>
    %48 = tpu.matmul %31, %47, %cst_37 {dimension_numbers = #tpu.dot_dimension_numbers<[2], [1], [1], [2], [0, 0, 0, 1, 1, 2], [0], [0]>} : vector<4x8x64xf32>, vector<4x64x16xf32>, vector<4x8x16xf32> -> vector<4x8x16xf32>
    "tpu.trace_stop"() : () -> ()
    %c0_38 = arith.constant 0 : index
    %c0_39 = arith.constant 0 : index
    %c0_40 = arith.constant 0 : index
    %c0_41 = arith.constant 0 : index
    %49 = vector.load %arg11[%c0_38, %c0_39, %c0_40, %c0_41] : memref<2x4x1x16xf32, #tpu.memory_space<vmem>>, vector<1x4x1x16xf32>
    %50 = vector.shape_cast %49 : vector<1x4x1x16xf32> to vector<4x1x16xf32>
    %51 = vector.broadcast %50 : vector<4x1x16xf32> to vector<4x8x16xf32>
    %52 = arith.addf %48, %51 : vector<4x8x16xf32>
    "tpu.trace_start"() <{level = 10 : i32, message = "hqd,hkd->hqk"}> : () -> ()
    %cst_42 = arith.constant dense<0.000000e+00> : vector<4x8x8xf32>
    %53 = tpu.matmul %38, %45, %cst_42 {dimension_numbers = #tpu.dot_dimension_numbers<[2], [2], [1], [1], [0, 0, 0, 1, 1, 1], [0], [0]>} : vector<4x8x16xf32>, vector<4x8x16xf32>, vector<4x8x8xf32> -> vector<4x8x8xf32>
    "tpu.trace_stop"() : () -> ()
    %cst_43 = arith.constant 2.500000e-01 : f32
    %54 = vector.broadcast %cst_43 : f32 to vector<4x8x8xf32>
    %55 = arith.mulf %53, %54 : vector<4x8x8xf32>
    %56 = vector.broadcast %28 : vector<1x1x8xf32> to vector<4x8x8xf32>
    %57 = arith.addf %55, %56 : vector<4x8x8xf32>
    %cst_44 = arith.constant dense<0xFF800000> : vector<4x8xf32>
    %58 = vector.multi_reduction <maximumf>, %57, %cst_44 [2] : vector<4x8x8xf32> to vector<4x8xf32>
    %59 = vector.shape_cast %58 : vector<4x8xf32> to vector<4x8x1xf32>
    %60 = vector.broadcast %59 : vector<4x8x1xf32> to vector<4x8x8xf32>
    %61 = arith.subf %57, %60 : vector<4x8x8xf32>
    %62 = math.exp %61 : vector<4x8x8xf32>
    %cst_45 = arith.constant dense<0.000000e+00> : vector<4x8xf32>
    %63 = vector.multi_reduction <add>, %62, %cst_45 [2] : vector<4x8x8xf32> to vector<4x8xf32>
    %64 = vector.shape_cast %63 : vector<4x8xf32> to vector<4x8x1xf32>
    %65 = tpu.reciprocal %64 {approx = true} : vector<4x8x1xf32> -> vector<4x8x1xf32>
    %66 = vector.broadcast %65 : vector<4x8x1xf32> to vector<4x8x8xf32>
    %67 = arith.mulf %62, %66 : vector<4x8x8xf32>
    "tpu.trace_start"() <{level = 10 : i32, message = "hqk,hkd->hqd"}> : () -> ()
    %cst_46 = arith.constant dense<0.000000e+00> : vector<4x8x16xf32>
    %68 = tpu.matmul %67, %52, %cst_46 {dimension_numbers = #tpu.dot_dimension_numbers<[2], [1], [1], [2], [0, 0, 0, 1, 1, 2], [0], [0]>} : vector<4x8x8xf32>, vector<4x8x16xf32>, vector<4x8x16xf32> -> vector<4x8x16xf32>
    "tpu.trace_stop"() : () -> ()
    %69 = vector.extract_strided_slice %68 {offsets = [0, 0, 0], sizes = [1, 8, 16], strides = [1, 1, 1]} : vector<4x8x16xf32> to vector<1x8x16xf32>
    %70 = vector.shape_cast %69 : vector<1x8x16xf32> to vector<8x16xf32>
    %c0_47 = arith.constant 0 : index
    %c0_48 = arith.constant 0 : index
    %c0_49 = arith.constant 0 : index
    %c0_50 = arith.constant 0 : index
    %71 = vector.load %arg12[%c0_47, %c0_48, %c0_49, %c0_50] : memref<2x4x16x64xf32, #tpu.memory_space<vmem>>, vector<1x1x16x64xf32>
    %72 = vector.shape_cast %71 : vector<1x1x16x64xf32> to vector<16x64xf32>
    %cst_51 = arith.constant dense<0.000000e+00> : vector<8x64xf32>
    %73 = tpu.matmul %70, %72, %cst_51 {dimension_numbers = #tpu.dot_dimension_numbers<[1], [0], [0], [1], [0, 0, 1, 1], [], []>} : vector<8x16xf32>, vector<16x64xf32>, vector<8x64xf32> -> vector<8x64xf32>
    %74 = vector.extract_strided_slice %68 {offsets = [1, 0, 0], sizes = [1, 8, 16], strides = [1, 1, 1]} : vector<4x8x16xf32> to vector<1x8x16xf32>
    %75 = vector.shape_cast %74 : vector<1x8x16xf32> to vector<8x16xf32>
    %c0_52 = arith.constant 0 : index
    %c1 = arith.constant 1 : index
    %c0_53 = arith.constant 0 : index
    %c0_54 = arith.constant 0 : index
    %76 = vector.load %arg12[%c0_52, %c1, %c0_53, %c0_54] : memref<2x4x16x64xf32, #tpu.memory_space<vmem>>, vector<1x1x16x64xf32>
    %77 = vector.shape_cast %76 : vector<1x1x16x64xf32> to vector<16x64xf32>
    %cst_55 = arith.constant dense<0.000000e+00> : vector<8x64xf32>
    %78 = tpu.matmul %75, %77, %cst_55 {dimension_numbers = #tpu.dot_dimension_numbers<[1], [0], [0], [1], [0, 0, 1, 1], [], []>} : vector<8x16xf32>, vector<16x64xf32>, vector<8x64xf32> -> vector<8x64xf32>
    %79 = arith.addf %73, %78 : vector<8x64xf32>
    %80 = vector.extract_strided_slice %68 {offsets = [2, 0, 0], sizes = [1, 8, 16], strides = [1, 1, 1]} : vector<4x8x16xf32> to vector<1x8x16xf32>
    %81 = vector.shape_cast %80 : vector<1x8x16xf32> to vector<8x16xf32>
    %c0_56 = arith.constant 0 : index
    %c2 = arith.constant 2 : index
    %c0_57 = arith.constant 0 : index
    %c0_58 = arith.constant 0 : index
    %82 = vector.load %arg12[%c0_56, %c2, %c0_57, %c0_58] : memref<2x4x16x64xf32, #tpu.memory_space<vmem>>, vector<1x1x16x64xf32>
    %83 = vector.shape_cast %82 : vector<1x1x16x64xf32> to vector<16x64xf32>
    %cst_59 = arith.constant dense<0.000000e+00> : vector<8x64xf32>
    %84 = tpu.matmul %81, %83, %cst_59 {dimension_numbers = #tpu.dot_dimension_numbers<[1], [0], [0], [1], [0, 0, 1, 1], [], []>} : vector<8x16xf32>, vector<16x64xf32>, vector<8x64xf32> -> vector<8x64xf32>
    %85 = arith.addf %79, %84 : vector<8x64xf32>
    %86 = vector.extract_strided_slice %68 {offsets = [3, 0, 0], sizes = [1, 8, 16], strides = [1, 1, 1]} : vector<4x8x16xf32> to vector<1x8x16xf32>
    %87 = vector.shape_cast %86 : vector<1x8x16xf32> to vector<8x16xf32>
    %c0_60 = arith.constant 0 : index
    %c3 = arith.constant 3 : index
    %c0_61 = arith.constant 0 : index
    %c0_62 = arith.constant 0 : index
    %88 = vector.load %arg12[%c0_60, %c3, %c0_61, %c0_62] : memref<2x4x16x64xf32, #tpu.memory_space<vmem>>, vector<1x1x16x64xf32>
    %89 = vector.shape_cast %88 : vector<1x1x16x64xf32> to vector<16x64xf32>
    %cst_63 = arith.constant dense<0.000000e+00> : vector<8x64xf32>
    %90 = tpu.matmul %87, %89, %cst_63 {dimension_numbers = #tpu.dot_dimension_numbers<[1], [0], [0], [1], [0, 0, 1, 1], [], []>} : vector<8x16xf32>, vector<16x64xf32>, vector<8x64xf32> -> vector<8x64xf32>
    %91 = arith.addf %85, %90 : vector<8x64xf32>
    %c0_64 = arith.constant 0 : index
    %c0_65 = arith.constant 0 : index
    %c0_66 = arith.constant 0 : index
    %92 = vector.load %arg13[%c0_64, %c0_65, %c0_66] : memref<2x1x64xf32, #tpu.memory_space<vmem>>, vector<1x1x64xf32>
    %93 = vector.shape_cast %92 : vector<1x1x64xf32> to vector<1x64xf32>
    %94 = vector.broadcast %93 : vector<1x64xf32> to vector<8x64xf32>
    %95 = arith.addf %91, %94 : vector<8x64xf32>
    %96 = arith.addf %95, %27 : vector<8x64xf32>
    %c0_67 = arith.constant 0 : index
    %c0_68 = arith.constant 0 : index
    %c0_69 = arith.constant 0 : index
    %97 = vector.load %arg14[%c0_67, %c0_68, %c0_69] : memref<2x1x64xf32, #tpu.memory_space<vmem>>, vector<1x1x64xf32>
    %98 = vector.shape_cast %97 : vector<1x1x64xf32> to vector<1x64xf32>
    %c0_70 = arith.constant 0 : index
    %c0_71 = arith.constant 0 : index
    %c0_72 = arith.constant 0 : index
    %99 = vector.load %arg15[%c0_70, %c0_71, %c0_72] : memref<2x1x64xf32, #tpu.memory_space<vmem>>, vector<1x1x64xf32>
    %100 = vector.shape_cast %99 : vector<1x1x64xf32> to vector<1x64xf32>
    %cst_73 = arith.constant dense<0.000000e+00> : vector<8xf32>
    %101 = vector.multi_reduction <add>, %96, %cst_73 [1] : vector<8x64xf32> to vector<8xf32>
    %102 = vector.shape_cast %101 : vector<8xf32> to vector<8x1xf32>
    %cst_74 = arith.constant 6.400000e+01 : f32
    %103 = vector.broadcast %cst_74 : f32 to vector<8x1xf32>
    %104 = arith.divf %102, %103 : vector<8x1xf32>
    %105 = vector.broadcast %104 : vector<8x1xf32> to vector<8x64xf32>
    %106 = arith.subf %96, %105 : vector<8x64xf32>
    %107 = arith.mulf %106, %106 : vector<8x64xf32>
    %cst_75 = arith.constant dense<0.000000e+00> : vector<8xf32>
    %108 = vector.multi_reduction <add>, %107, %cst_75 [1] : vector<8x64xf32> to vector<8xf32>
    %109 = vector.shape_cast %108 : vector<8xf32> to vector<8x1xf32>
    %cst_76 = arith.constant 6.400000e+01 : f32
    %110 = vector.broadcast %cst_76 : f32 to vector<8x1xf32>
    %111 = arith.divf %109, %110 : vector<8x1xf32>
    %112 = vector.broadcast %104 : vector<8x1xf32> to vector<8x64xf32>
    %113 = arith.subf %96, %112 : vector<8x64xf32>
    %cst_77 = arith.constant 9.99999996E-13 : f32
    %114 = vector.broadcast %cst_77 : f32 to vector<8x1xf32>
    %115 = arith.addf %111, %114 : vector<8x1xf32>
    %116 = math.rsqrt %115 : vector<8x1xf32>
    %117 = vector.broadcast %116 : vector<8x1xf32> to vector<8x64xf32>
    %118 = arith.mulf %113, %117 : vector<8x64xf32>
    %119 = vector.broadcast %98 : vector<1x64xf32> to vector<8x64xf32>
    %120 = arith.mulf %118, %119 : vector<8x64xf32>
    %121 = vector.broadcast %100 : vector<1x64xf32> to vector<8x64xf32>
    %122 = arith.addf %120, %121 : vector<8x64xf32>
    %c0_78 = arith.constant 0 : index
    %c0_79 = arith.constant 0 : index
    %c0_80 = arith.constant 0 : index
    %123 = vector.load %arg16[%c0_78, %c0_79, %c0_80] : memref<2x64x128xf32, #tpu.memory_space<vmem>>, vector<1x64x128xf32>
    %124 = vector.shape_cast %123 : vector<1x64x128xf32> to vector<64x128xf32>
    %cst_81 = arith.constant dense<0.000000e+00> : vector<8x128xf32>
    %125 = tpu.matmul %122, %124, %cst_81 {dimension_numbers = #tpu.dot_dimension_numbers<[1], [0], [0], [1], [0, 0, 1, 1], [], []>} : vector<8x64xf32>, vector<64x128xf32>, vector<8x128xf32> -> vector<8x128xf32>
    %c0_82 = arith.constant 0 : index
    %c0_83 = arith.constant 0 : index
    %c0_84 = arith.constant 0 : index
    %126 = vector.load %arg17[%c0_82, %c0_83, %c0_84] : memref<2x1x128xf32, #tpu.memory_space<vmem>>, vector<1x1x128xf32>
    %127 = vector.shape_cast %126 : vector<1x1x128xf32> to vector<1x128xf32>
    %128 = vector.broadcast %127 : vector<1x128xf32> to vector<8x128xf32>
    %129 = arith.addf %125, %128 : vector<8x128xf32>
    %cst_85 = arith.constant 5.000000e-01 : f32
    %130 = vector.broadcast %cst_85 : f32 to vector<8x128xf32>
    %131 = arith.mulf %130, %129 : vector<8x128xf32>
    %cst_86 = arith.constant 4.471500e-02 : f32
    %132 = vector.broadcast %cst_86 : f32 to vector<8x128xf32>
    %133 = arith.mulf %132, %129 : vector<8x128xf32>
    %134 = arith.mulf %133, %129 : vector<8x128xf32>
    %135 = arith.mulf %134, %129 : vector<8x128xf32>
    %136 = arith.addf %129, %135 : vector<8x128xf32>
    %cst_87 = arith.constant 0.797884583 : f32
    %137 = vector.broadcast %cst_87 : f32 to vector<8x128xf32>
    %138 = arith.mulf %137, %136 : vector<8x128xf32>
    %139 = math.tanh %138 : vector<8x128xf32>
    %cst_88 = arith.constant 1.000000e+00 : f32
    %140 = vector.broadcast %cst_88 : f32 to vector<8x128xf32>
    %141 = arith.addf %140, %139 : vector<8x128xf32>
    %142 = arith.mulf %131, %141 : vector<8x128xf32>
    %c0_89 = arith.constant 0 : index
    %c0_90 = arith.constant 0 : index
    %c0_91 = arith.constant 0 : index
    %143 = vector.load %arg18[%c0_89, %c0_90, %c0_91] : memref<2x128x64xf32, #tpu.memory_space<vmem>>, vector<1x128x64xf32>
    %144 = vector.shape_cast %143 : vector<1x128x64xf32> to vector<128x64xf32>
    %cst_92 = arith.constant dense<0.000000e+00> : vector<8x64xf32>
    %145 = tpu.matmul %142, %144, %cst_92 {dimension_numbers = #tpu.dot_dimension_numbers<[1], [0], [0], [1], [0, 0, 1, 1], [], []>} : vector<8x128xf32>, vector<128x64xf32>, vector<8x64xf32> -> vector<8x64xf32>
    %c0_93 = arith.constant 0 : index
    %c0_94 = arith.constant 0 : index
    %c0_95 = arith.constant 0 : index
    %146 = vector.load %arg19[%c0_93, %c0_94, %c0_95] : memref<2x1x64xf32, #tpu.memory_space<vmem>>, vector<1x1x64xf32>
    %147 = vector.shape_cast %146 : vector<1x1x64xf32> to vector<1x64xf32>
    %148 = vector.broadcast %147 : vector<1x64xf32> to vector<8x64xf32>
    %149 = arith.addf %145, %148 : vector<8x64xf32>
    %150 = arith.addf %149, %122 : vector<8x64xf32>
    %c0_96 = arith.constant 0 : index
    %c0_97 = arith.constant 0 : index
    %c0_98 = arith.constant 0 : index
    %151 = vector.load %arg20[%c0_96, %c0_97, %c0_98] : memref<2x1x64xf32, #tpu.memory_space<vmem>>, vector<1x1x64xf32>
    %152 = vector.shape_cast %151 : vector<1x1x64xf32> to vector<1x64xf32>
    %c0_99 = arith.constant 0 : index
    %c0_100 = arith.constant 0 : index
    %c0_101 = arith.constant 0 : index
    %153 = vector.load %arg21[%c0_99, %c0_100, %c0_101] : memref<2x1x64xf32, #tpu.memory_space<vmem>>, vector<1x1x64xf32>
    %154 = vector.shape_cast %153 : vector<1x1x64xf32> to vector<1x64xf32>
    %cst_102 = arith.constant dense<0.000000e+00> : vector<8xf32>
    %155 = vector.multi_reduction <add>, %150, %cst_102 [1] : vector<8x64xf32> to vector<8xf32>
    %156 = vector.shape_cast %155 : vector<8xf32> to vector<8x1xf32>
    %cst_103 = arith.constant 6.400000e+01 : f32
    %157 = vector.broadcast %cst_103 : f32 to vector<8x1xf32>
    %158 = arith.divf %156, %157 : vector<8x1xf32>
    %159 = vector.broadcast %158 : vector<8x1xf32> to vector<8x64xf32>
    %160 = arith.subf %150, %159 : vector<8x64xf32>
    %161 = arith.mulf %160, %160 : vector<8x64xf32>
    %cst_104 = arith.constant dense<0.000000e+00> : vector<8xf32>
    %162 = vector.multi_reduction <add>, %161, %cst_104 [1] : vector<8x64xf32> to vector<8xf32>
    %163 = vector.shape_cast %162 : vector<8xf32> to vector<8x1xf32>
    %cst_105 = arith.constant 6.400000e+01 : f32
    %164 = vector.broadcast %cst_105 : f32 to vector<8x1xf32>
    %165 = arith.divf %163, %164 : vector<8x1xf32>
    %166 = vector.broadcast %158 : vector<8x1xf32> to vector<8x64xf32>
    %167 = arith.subf %150, %166 : vector<8x64xf32>
    %cst_106 = arith.constant 9.99999996E-13 : f32
    %168 = vector.broadcast %cst_106 : f32 to vector<8x1xf32>
    %169 = arith.addf %165, %168 : vector<8x1xf32>
    %170 = math.rsqrt %169 : vector<8x1xf32>
    %171 = vector.broadcast %170 : vector<8x1xf32> to vector<8x64xf32>
    %172 = arith.mulf %167, %171 : vector<8x64xf32>
    %173 = vector.broadcast %152 : vector<1x64xf32> to vector<8x64xf32>
    %174 = arith.mulf %172, %173 : vector<8x64xf32>
    %175 = vector.broadcast %154 : vector<1x64xf32> to vector<8x64xf32>
    %176 = arith.addf %174, %175 : vector<8x64xf32>
    %177 = vector.shape_cast %176 : vector<8x64xf32> to vector<1x8x64xf32>
    %178 = vector.shape_cast %177 : vector<1x8x64xf32> to vector<1x8x64xf32>
    %179 = vector.broadcast %178 : vector<1x8x64xf32> to vector<4x8x64xf32>
    %c1_107 = arith.constant 1 : index
    %c0_108 = arith.constant 0 : index
    %c0_109 = arith.constant 0 : index
    %c0_110 = arith.constant 0 : index
    %180 = vector.load %arg6[%c1_107, %c0_108, %c0_109, %c0_110] : memref<2x4x64x16xf32, #tpu.memory_space<vmem>>, vector<1x4x64x16xf32>
    %181 = vector.shape_cast %180 : vector<1x4x64x16xf32> to vector<4x64x16xf32>
    "tpu.trace_start"() <{level = 10 : i32, message = "hsd,hde->hse"}> : () -> ()
    %cst_111 = arith.constant dense<0.000000e+00> : vector<4x8x16xf32>
    %182 = tpu.matmul %179, %181, %cst_111 {dimension_numbers = #tpu.dot_dimension_numbers<[2], [1], [1], [2], [0, 0, 0, 1, 1, 2], [0], [0]>} : vector<4x8x64xf32>, vector<4x64x16xf32>, vector<4x8x16xf32> -> vector<4x8x16xf32>
    "tpu.trace_stop"() : () -> ()
    %c1_112 = arith.constant 1 : index
    %c0_113 = arith.constant 0 : index
    %c0_114 = arith.constant 0 : index
    %c0_115 = arith.constant 0 : index
    %183 = vector.load %arg7[%c1_112, %c0_113, %c0_114, %c0_115] : memref<2x4x1x16xf32, #tpu.memory_space<vmem>>, vector<1x4x1x16xf32>
    %184 = vector.shape_cast %183 : vector<1x4x1x16xf32> to vector<4x1x16xf32>
    %185 = vector.broadcast %184 : vector<4x1x16xf32> to vector<4x8x16xf32>
    %186 = arith.addf %182, %185 : vector<4x8x16xf32>
    %c1_116 = arith.constant 1 : index
    %c0_117 = arith.constant 0 : index
    %c0_118 = arith.constant 0 : index
    %c0_119 = arith.constant 0 : index
    %187 = vector.load %arg8[%c1_116, %c0_117, %c0_118, %c0_119] : memref<2x4x64x16xf32, #tpu.memory_space<vmem>>, vector<1x4x64x16xf32>
    %188 = vector.shape_cast %187 : vector<1x4x64x16xf32> to vector<4x64x16xf32>
    "tpu.trace_start"() <{level = 10 : i32, message = "hsd,hde->hse"}> : () -> ()
    %cst_120 = arith.constant dense<0.000000e+00> : vector<4x8x16xf32>
    %189 = tpu.matmul %179, %188, %cst_120 {dimension_numbers = #tpu.dot_dimension_numbers<[2], [1], [1], [2], [0, 0, 0, 1, 1, 2], [0], [0]>} : vector<4x8x64xf32>, vector<4x64x16xf32>, vector<4x8x16xf32> -> vector<4x8x16xf32>
    "tpu.trace_stop"() : () -> ()
    %c1_121 = arith.constant 1 : index
    %c0_122 = arith.constant 0 : index
    %c0_123 = arith.constant 0 : index
    %c0_124 = arith.constant 0 : index
    %190 = vector.load %arg9[%c1_121, %c0_122, %c0_123, %c0_124] : memref<2x4x1x16xf32, #tpu.memory_space<vmem>>, vector<1x4x1x16xf32>
    %191 = vector.shape_cast %190 : vector<1x4x1x16xf32> to vector<4x1x16xf32>
    %192 = vector.broadcast %191 : vector<4x1x16xf32> to vector<4x8x16xf32>
    %193 = arith.addf %189, %192 : vector<4x8x16xf32>
    %c1_125 = arith.constant 1 : index
    %c0_126 = arith.constant 0 : index
    %c0_127 = arith.constant 0 : index
    %c0_128 = arith.constant 0 : index
    %194 = vector.load %arg10[%c1_125, %c0_126, %c0_127, %c0_128] : memref<2x4x64x16xf32, #tpu.memory_space<vmem>>, vector<1x4x64x16xf32>
    %195 = vector.shape_cast %194 : vector<1x4x64x16xf32> to vector<4x64x16xf32>
    "tpu.trace_start"() <{level = 10 : i32, message = "hsd,hde->hse"}> : () -> ()
    %cst_129 = arith.constant dense<0.000000e+00> : vector<4x8x16xf32>
    %196 = tpu.matmul %179, %195, %cst_129 {dimension_numbers = #tpu.dot_dimension_numbers<[2], [1], [1], [2], [0, 0, 0, 1, 1, 2], [0], [0]>} : vector<4x8x64xf32>, vector<4x64x16xf32>, vector<4x8x16xf32> -> vector<4x8x16xf32>
    "tpu.trace_stop"() : () -> ()
    %c1_130 = arith.constant 1 : index
    %c0_131 = arith.constant 0 : index
    %c0_132 = arith.constant 0 : index
    %c0_133 = arith.constant 0 : index
    %197 = vector.load %arg11[%c1_130, %c0_131, %c0_132, %c0_133] : memref<2x4x1x16xf32, #tpu.memory_space<vmem>>, vector<1x4x1x16xf32>
    %198 = vector.shape_cast %197 : vector<1x4x1x16xf32> to vector<4x1x16xf32>
    %199 = vector.broadcast %198 : vector<4x1x16xf32> to vector<4x8x16xf32>
    %200 = arith.addf %196, %199 : vector<4x8x16xf32>
    "tpu.trace_start"() <{level = 10 : i32, message = "hqd,hkd->hqk"}> : () -> ()
    %cst_134 = arith.constant dense<0.000000e+00> : vector<4x8x8xf32>
    %201 = tpu.matmul %186, %193, %cst_134 {dimension_numbers = #tpu.dot_dimension_numbers<[2], [2], [1], [1], [0, 0, 0, 1, 1, 1], [0], [0]>} : vector<4x8x16xf32>, vector<4x8x16xf32>, vector<4x8x8xf32> -> vector<4x8x8xf32>
    "tpu.trace_stop"() : () -> ()
    %cst_135 = arith.constant 2.500000e-01 : f32
    %202 = vector.broadcast %cst_135 : f32 to vector<4x8x8xf32>
    %203 = arith.mulf %201, %202 : vector<4x8x8xf32>
    %204 = vector.broadcast %28 : vector<1x1x8xf32> to vector<4x8x8xf32>
    %205 = arith.addf %203, %204 : vector<4x8x8xf32>
    %cst_136 = arith.constant dense<0xFF800000> : vector<4x8xf32>
    %206 = vector.multi_reduction <maximumf>, %205, %cst_136 [2] : vector<4x8x8xf32> to vector<4x8xf32>
    %207 = vector.shape_cast %206 : vector<4x8xf32> to vector<4x8x1xf32>
    %208 = vector.broadcast %207 : vector<4x8x1xf32> to vector<4x8x8xf32>
    %209 = arith.subf %205, %208 : vector<4x8x8xf32>
    %210 = math.exp %209 : vector<4x8x8xf32>
    %cst_137 = arith.constant dense<0.000000e+00> : vector<4x8xf32>
    %211 = vector.multi_reduction <add>, %210, %cst_137 [2] : vector<4x8x8xf32> to vector<4x8xf32>
    %212 = vector.shape_cast %211 : vector<4x8xf32> to vector<4x8x1xf32>
    %213 = tpu.reciprocal %212 {approx = true} : vector<4x8x1xf32> -> vector<4x8x1xf32>
    %214 = vector.broadcast %213 : vector<4x8x1xf32> to vector<4x8x8xf32>
    %215 = arith.mulf %210, %214 : vector<4x8x8xf32>
    "tpu.trace_start"() <{level = 10 : i32, message = "hqk,hkd->hqd"}> : () -> ()
    %cst_138 = arith.constant dense<0.000000e+00> : vector<4x8x16xf32>
    %216 = tpu.matmul %215, %200, %cst_138 {dimension_numbers = #tpu.dot_dimension_numbers<[2], [1], [1], [2], [0, 0, 0, 1, 1, 2], [0], [0]>} : vector<4x8x8xf32>, vector<4x8x16xf32>, vector<4x8x16xf32> -> vector<4x8x16xf32>
    "tpu.trace_stop"() : () -> ()
    %217 = vector.extract_strided_slice %216 {offsets = [0, 0, 0], sizes = [1, 8, 16], strides = [1, 1, 1]} : vector<4x8x16xf32> to vector<1x8x16xf32>
    %218 = vector.shape_cast %217 : vector<1x8x16xf32> to vector<8x16xf32>
    %c1_139 = arith.constant 1 : index
    %c0_140 = arith.constant 0 : index
    %c0_141 = arith.constant 0 : index
    %c0_142 = arith.constant 0 : index
    %219 = vector.load %arg12[%c1_139, %c0_140, %c0_141, %c0_142] : memref<2x4x16x64xf32, #tpu.memory_space<vmem>>, vector<1x1x16x64xf32>
    %220 = vector.shape_cast %219 : vector<1x1x16x64xf32> to vector<16x64xf32>
    %cst_143 = arith.constant dense<0.000000e+00> : vector<8x64xf32>
    %221 = tpu.matmul %218, %220, %cst_143 {dimension_numbers = #tpu.dot_dimension_numbers<[1], [0], [0], [1], [0, 0, 1, 1], [], []>} : vector<8x16xf32>, vector<16x64xf32>, vector<8x64xf32> -> vector<8x64xf32>
    %222 = vector.extract_strided_slice %216 {offsets = [1, 0, 0], sizes = [1, 8, 16], strides = [1, 1, 1]} : vector<4x8x16xf32> to vector<1x8x16xf32>
    %223 = vector.shape_cast %222 : vector<1x8x16xf32> to vector<8x16xf32>
    %c1_144 = arith.constant 1 : index
    %c1_145 = arith.constant 1 : index
    %c0_146 = arith.constant 0 : index
    %c0_147 = arith.constant 0 : index
    %224 = vector.load %arg12[%c1_144, %c1_145, %c0_146, %c0_147] : memref<2x4x16x64xf32, #tpu.memory_space<vmem>>, vector<1x1x16x64xf32>
    %225 = vector.shape_cast %224 : vector<1x1x16x64xf32> to vector<16x64xf32>
    %cst_148 = arith.constant dense<0.000000e+00> : vector<8x64xf32>
    %226 = tpu.matmul %223, %225, %cst_148 {dimension_numbers = #tpu.dot_dimension_numbers<[1], [0], [0], [1], [0, 0, 1, 1], [], []>} : vector<8x16xf32>, vector<16x64xf32>, vector<8x64xf32> -> vector<8x64xf32>
    %227 = arith.addf %221, %226 : vector<8x64xf32>
    %228 = vector.extract_strided_slice %216 {offsets = [2, 0, 0], sizes = [1, 8, 16], strides = [1, 1, 1]} : vector<4x8x16xf32> to vector<1x8x16xf32>
    %229 = vector.shape_cast %228 : vector<1x8x16xf32> to vector<8x16xf32>
    %c1_149 = arith.constant 1 : index
    %c2_150 = arith.constant 2 : index
    %c0_151 = arith.constant 0 : index
    %c0_152 = arith.constant 0 : index
    %230 = vector.load %arg12[%c1_149, %c2_150, %c0_151, %c0_152] : memref<2x4x16x64xf32, #tpu.memory_space<vmem>>, vector<1x1x16x64xf32>
    %231 = vector.shape_cast %230 : vector<1x1x16x64xf32> to vector<16x64xf32>
    %cst_153 = arith.constant dense<0.000000e+00> : vector<8x64xf32>
    %232 = tpu.matmul %229, %231, %cst_153 {dimension_numbers = #tpu.dot_dimension_numbers<[1], [0], [0], [1], [0, 0, 1, 1], [], []>} : vector<8x16xf32>, vector<16x64xf32>, vector<8x64xf32> -> vector<8x64xf32>
    %233 = arith.addf %227, %232 : vector<8x64xf32>
    %234 = vector.extract_strided_slice %216 {offsets = [3, 0, 0], sizes = [1, 8, 16], strides = [1, 1, 1]} : vector<4x8x16xf32> to vector<1x8x16xf32>
    %235 = vector.shape_cast %234 : vector<1x8x16xf32> to vector<8x16xf32>
    %c1_154 = arith.constant 1 : index
    %c3_155 = arith.constant 3 : index
    %c0_156 = arith.constant 0 : index
    %c0_157 = arith.constant 0 : index
    %236 = vector.load %arg12[%c1_154, %c3_155, %c0_156, %c0_157] : memref<2x4x16x64xf32, #tpu.memory_space<vmem>>, vector<1x1x16x64xf32>
    %237 = vector.shape_cast %236 : vector<1x1x16x64xf32> to vector<16x64xf32>
    %cst_158 = arith.constant dense<0.000000e+00> : vector<8x64xf32>
    %238 = tpu.matmul %235, %237, %cst_158 {dimension_numbers = #tpu.dot_dimension_numbers<[1], [0], [0], [1], [0, 0, 1, 1], [], []>} : vector<8x16xf32>, vector<16x64xf32>, vector<8x64xf32> -> vector<8x64xf32>
    %239 = arith.addf %233, %238 : vector<8x64xf32>
    %c1_159 = arith.constant 1 : index
    %c0_160 = arith.constant 0 : index
    %c0_161 = arith.constant 0 : index
    %240 = vector.load %arg13[%c1_159, %c0_160, %c0_161] : memref<2x1x64xf32, #tpu.memory_space<vmem>>, vector<1x1x64xf32>
    %241 = vector.shape_cast %240 : vector<1x1x64xf32> to vector<1x64xf32>
    %242 = vector.broadcast %241 : vector<1x64xf32> to vector<8x64xf32>
    %243 = arith.addf %239, %242 : vector<8x64xf32>
    %244 = arith.addf %243, %176 : vector<8x64xf32>
    %c1_162 = arith.constant 1 : index
    %c0_163 = arith.constant 0 : index
    %c0_164 = arith.constant 0 : index
    %245 = vector.load %arg14[%c1_162, %c0_163, %c0_164] : memref<2x1x64xf32, #tpu.memory_space<vmem>>, vector<1x1x64xf32>
    %246 = vector.shape_cast %245 : vector<1x1x64xf32> to vector<1x64xf32>
    %c1_165 = arith.constant 1 : index
    %c0_166 = arith.constant 0 : index
    %c0_167 = arith.constant 0 : index
    %247 = vector.load %arg15[%c1_165, %c0_166, %c0_167] : memref<2x1x64xf32, #tpu.memory_space<vmem>>, vector<1x1x64xf32>
    %248 = vector.shape_cast %247 : vector<1x1x64xf32> to vector<1x64xf32>
    %cst_168 = arith.constant dense<0.000000e+00> : vector<8xf32>
    %249 = vector.multi_reduction <add>, %244, %cst_168 [1] : vector<8x64xf32> to vector<8xf32>
    %250 = vector.shape_cast %249 : vector<8xf32> to vector<8x1xf32>
    %cst_169 = arith.constant 6.400000e+01 : f32
    %251 = vector.broadcast %cst_169 : f32 to vector<8x1xf32>
    %252 = arith.divf %250, %251 : vector<8x1xf32>
    %253 = vector.broadcast %252 : vector<8x1xf32> to vector<8x64xf32>
    %254 = arith.subf %244, %253 : vector<8x64xf32>
    %255 = arith.mulf %254, %254 : vector<8x64xf32>
    %cst_170 = arith.constant dense<0.000000e+00> : vector<8xf32>
    %256 = vector.multi_reduction <add>, %255, %cst_170 [1] : vector<8x64xf32> to vector<8xf32>
    %257 = vector.shape_cast %256 : vector<8xf32> to vector<8x1xf32>
    %cst_171 = arith.constant 6.400000e+01 : f32
    %258 = vector.broadcast %cst_171 : f32 to vector<8x1xf32>
    %259 = arith.divf %257, %258 : vector<8x1xf32>
    %260 = vector.broadcast %252 : vector<8x1xf32> to vector<8x64xf32>
    %261 = arith.subf %244, %260 : vector<8x64xf32>
    %cst_172 = arith.constant 9.99999996E-13 : f32
    %262 = vector.broadcast %cst_172 : f32 to vector<8x1xf32>
    %263 = arith.addf %259, %262 : vector<8x1xf32>
    %264 = math.rsqrt %263 : vector<8x1xf32>
    %265 = vector.broadcast %264 : vector<8x1xf32> to vector<8x64xf32>
    %266 = arith.mulf %261, %265 : vector<8x64xf32>
    %267 = vector.broadcast %246 : vector<1x64xf32> to vector<8x64xf32>
    %268 = arith.mulf %266, %267 : vector<8x64xf32>
    %269 = vector.broadcast %248 : vector<1x64xf32> to vector<8x64xf32>
    %270 = arith.addf %268, %269 : vector<8x64xf32>
    %c1_173 = arith.constant 1 : index
    %c0_174 = arith.constant 0 : index
    %c0_175 = arith.constant 0 : index
    %271 = vector.load %arg16[%c1_173, %c0_174, %c0_175] : memref<2x64x128xf32, #tpu.memory_space<vmem>>, vector<1x64x128xf32>
    %272 = vector.shape_cast %271 : vector<1x64x128xf32> to vector<64x128xf32>
    %cst_176 = arith.constant dense<0.000000e+00> : vector<8x128xf32>
    %273 = tpu.matmul %270, %272, %cst_176 {dimension_numbers = #tpu.dot_dimension_numbers<[1], [0], [0], [1], [0, 0, 1, 1], [], []>} : vector<8x64xf32>, vector<64x128xf32>, vector<8x128xf32> -> vector<8x128xf32>
    %c1_177 = arith.constant 1 : index
    %c0_178 = arith.constant 0 : index
    %c0_179 = arith.constant 0 : index
    %274 = vector.load %arg17[%c1_177, %c0_178, %c0_179] : memref<2x1x128xf32, #tpu.memory_space<vmem>>, vector<1x1x128xf32>
    %275 = vector.shape_cast %274 : vector<1x1x128xf32> to vector<1x128xf32>
    %276 = vector.broadcast %275 : vector<1x128xf32> to vector<8x128xf32>
    %277 = arith.addf %273, %276 : vector<8x128xf32>
    %cst_180 = arith.constant 5.000000e-01 : f32
    %278 = vector.broadcast %cst_180 : f32 to vector<8x128xf32>
    %279 = arith.mulf %278, %277 : vector<8x128xf32>
    %cst_181 = arith.constant 4.471500e-02 : f32
    %280 = vector.broadcast %cst_181 : f32 to vector<8x128xf32>
    %281 = arith.mulf %280, %277 : vector<8x128xf32>
    %282 = arith.mulf %281, %277 : vector<8x128xf32>
    %283 = arith.mulf %282, %277 : vector<8x128xf32>
    %284 = arith.addf %277, %283 : vector<8x128xf32>
    %cst_182 = arith.constant 0.797884583 : f32
    %285 = vector.broadcast %cst_182 : f32 to vector<8x128xf32>
    %286 = arith.mulf %285, %284 : vector<8x128xf32>
    %287 = math.tanh %286 : vector<8x128xf32>
    %cst_183 = arith.constant 1.000000e+00 : f32
    %288 = vector.broadcast %cst_183 : f32 to vector<8x128xf32>
    %289 = arith.addf %288, %287 : vector<8x128xf32>
    %290 = arith.mulf %279, %289 : vector<8x128xf32>
    %c1_184 = arith.constant 1 : index
    %c0_185 = arith.constant 0 : index
    %c0_186 = arith.constant 0 : index
    %291 = vector.load %arg18[%c1_184, %c0_185, %c0_186] : memref<2x128x64xf32, #tpu.memory_space<vmem>>, vector<1x128x64xf32>
    %292 = vector.shape_cast %291 : vector<1x128x64xf32> to vector<128x64xf32>
    %cst_187 = arith.constant dense<0.000000e+00> : vector<8x64xf32>
    %293 = tpu.matmul %290, %292, %cst_187 {dimension_numbers = #tpu.dot_dimension_numbers<[1], [0], [0], [1], [0, 0, 1, 1], [], []>} : vector<8x128xf32>, vector<128x64xf32>, vector<8x64xf32> -> vector<8x64xf32>
    %c1_188 = arith.constant 1 : index
    %c0_189 = arith.constant 0 : index
    %c0_190 = arith.constant 0 : index
    %294 = vector.load %arg19[%c1_188, %c0_189, %c0_190] : memref<2x1x64xf32, #tpu.memory_space<vmem>>, vector<1x1x64xf32>
    %295 = vector.shape_cast %294 : vector<1x1x64xf32> to vector<1x64xf32>
    %296 = vector.broadcast %295 : vector<1x64xf32> to vector<8x64xf32>
    %297 = arith.addf %293, %296 : vector<8x64xf32>
    %298 = arith.addf %297, %270 : vector<8x64xf32>
    %c1_191 = arith.constant 1 : index
    %c0_192 = arith.constant 0 : index
    %c0_193 = arith.constant 0 : index
    %299 = vector.load %arg20[%c1_191, %c0_192, %c0_193] : memref<2x1x64xf32, #tpu.memory_space<vmem>>, vector<1x1x64xf32>
    %300 = vector.shape_cast %299 : vector<1x1x64xf32> to vector<1x64xf32>
    %c1_194 = arith.constant 1 : index
    %c0_195 = arith.constant 0 : index
    %c0_196 = arith.constant 0 : index
    %301 = vector.load %arg21[%c1_194, %c0_195, %c0_196] : memref<2x1x64xf32, #tpu.memory_space<vmem>>, vector<1x1x64xf32>
    %302 = vector.shape_cast %301 : vector<1x1x64xf32> to vector<1x64xf32>
    %cst_197 = arith.constant dense<0.000000e+00> : vector<8xf32>
    %303 = vector.multi_reduction <add>, %298, %cst_197 [1] : vector<8x64xf32> to vector<8xf32>
    %304 = vector.shape_cast %303 : vector<8xf32> to vector<8x1xf32>
    %cst_198 = arith.constant 6.400000e+01 : f32
    %305 = vector.broadcast %cst_198 : f32 to vector<8x1xf32>
    %306 = arith.divf %304, %305 : vector<8x1xf32>
    %307 = vector.broadcast %306 : vector<8x1xf32> to vector<8x64xf32>
    %308 = arith.subf %298, %307 : vector<8x64xf32>
    %309 = arith.mulf %308, %308 : vector<8x64xf32>
    %cst_199 = arith.constant dense<0.000000e+00> : vector<8xf32>
    %310 = vector.multi_reduction <add>, %309, %cst_199 [1] : vector<8x64xf32> to vector<8xf32>
    %311 = vector.shape_cast %310 : vector<8xf32> to vector<8x1xf32>
    %cst_200 = arith.constant 6.400000e+01 : f32
    %312 = vector.broadcast %cst_200 : f32 to vector<8x1xf32>
    %313 = arith.divf %311, %312 : vector<8x1xf32>
    %314 = vector.broadcast %306 : vector<8x1xf32> to vector<8x64xf32>
    %315 = arith.subf %298, %314 : vector<8x64xf32>
    %cst_201 = arith.constant 9.99999996E-13 : f32
    %316 = vector.broadcast %cst_201 : f32 to vector<8x1xf32>
    %317 = arith.addf %313, %316 : vector<8x1xf32>
    %318 = math.rsqrt %317 : vector<8x1xf32>
    %319 = vector.broadcast %318 : vector<8x1xf32> to vector<8x64xf32>
    %320 = arith.mulf %315, %319 : vector<8x64xf32>
    %321 = vector.broadcast %300 : vector<1x64xf32> to vector<8x64xf32>
    %322 = arith.mulf %320, %321 : vector<8x64xf32>
    %323 = vector.broadcast %302 : vector<1x64xf32> to vector<8x64xf32>
    %324 = arith.addf %322, %323 : vector<8x64xf32>
    %325 = vector.extract_strided_slice %324 {offsets = [0, 0], sizes = [1, 64], strides = [1, 1]} : vector<8x64xf32> to vector<1x64xf32>
    %c0_202 = arith.constant 0 : index
    %c0_203 = arith.constant 0 : index
    %326 = vector.load %arg22[%c0_202, %c0_203] : memref<64x128xf32, #tpu.memory_space<vmem>>, vector<64x128xf32>
    %cst_204 = arith.constant dense<0.000000e+00> : vector<1x128xf32>
    %327 = tpu.matmul %325, %326, %cst_204 {dimension_numbers = #tpu.dot_dimension_numbers<[1], [0], [0], [1], [0, 0, 1, 1], [], []>} : vector<1x64xf32>, vector<64x128xf32>, vector<1x128xf32> -> vector<1x128xf32>
    %c0_205 = arith.constant 0 : index
    %c0_206 = arith.constant 0 : index
    %328 = vector.load %arg23[%c0_205, %c0_206] : memref<1x128xf32, #tpu.memory_space<vmem>>, vector<1x128xf32>
    %329 = arith.addf %327, %328 : vector<1x128xf32>
    %330 = math.tanh %329 : vector<1x128xf32>
    %c0_207 = arith.constant 0 : index
    %c0_208 = arith.constant 0 : index
    %331 = vector.load %arg24[%c0_207, %c0_208] : memref<128x128xf32, #tpu.memory_space<vmem>>, vector<128x128xf32>
    %cst_209 = arith.constant dense<0.000000e+00> : vector<1x128xf32>
    %332 = tpu.matmul %330, %331, %cst_209 {dimension_numbers = #tpu.dot_dimension_numbers<[1], [0], [0], [1], [0, 0, 1, 1], [], []>} : vector<1x128xf32>, vector<128x128xf32>, vector<1x128xf32> -> vector<1x128xf32>
    %c0_210 = arith.constant 0 : index
    %c0_211 = arith.constant 0 : index
    %333 = vector.load %arg25[%c0_210, %c0_211] : memref<1x128xf32, #tpu.memory_space<vmem>>, vector<1x128xf32>
    %334 = arith.addf %332, %333 : vector<1x128xf32>
    %335 = math.tanh %334 : vector<1x128xf32>
    %c0_212 = arith.constant 0 : index
    %c0_213 = arith.constant 0 : index
    %336 = vector.load %arg26[%c0_212, %c0_213] : memref<128x128xf32, #tpu.memory_space<vmem>>, vector<128x128xf32>
    %cst_214 = arith.constant dense<0.000000e+00> : vector<1x128xf32>
    %337 = tpu.matmul %335, %336, %cst_214 {dimension_numbers = #tpu.dot_dimension_numbers<[1], [0], [0], [1], [0, 0, 1, 1], [], []>} : vector<1x128xf32>, vector<128x128xf32>, vector<1x128xf32> -> vector<1x128xf32>
    %c0_215 = arith.constant 0 : index
    %c0_216 = arith.constant 0 : index
    %338 = vector.load %arg27[%c0_215, %c0_216] : memref<1x128xf32, #tpu.memory_space<vmem>>, vector<1x128xf32>
    %339 = arith.addf %337, %338 : vector<1x128xf32>
    %c0_217 = arith.constant 0 : index
    %c0_218 = arith.constant 0 : index
    %c0_219 = arith.constant 0 : index
    %340 = vector.load %arg28[%c0_217, %c0_218, %c0_219] : memref<1x1x128xf32, #tpu.memory_space<vmem>>, vector<1x1x128xf32>
    %341 = vector.shape_cast %340 : vector<1x1x128xf32> to vector<1x128xf32>
    %342 = vector.shape_cast %339 : vector<1x128xf32> to vector<1x1x128xf32>
    tpu.vector_store %arg28[%c0_217, %c0_218, %c0_219], %342 {strides = array<i32>} : memref<1x1x128xf32, #tpu.memory_space<vmem>>, vector<1x1x128xf32>,
    return
  }
  func.func @transform_0(%arg0: i32) -> (i32, i32, i32) {
    %c0_i32 = arith.constant 0 : i32
    %c0_i32_0 = arith.constant 0 : i32
    %c0_i32_1 = arith.constant 0 : i32
    return %arg0, %c0_i32, %c0_i32_0 : i32, i32, i32
  }
  func.func @transform_1(%arg0: i32) -> (i32, i32) {
    %c0_i32 = arith.constant 0 : i32
    %c0_i32_0 = arith.constant 0 : i32
    %c0_i32_1 = arith.constant 0 : i32
    return %c0_i32, %c0_i32_0 : i32, i32
  }
  func.func @transform_2(%arg0: i32) -> (i32, i32, i32) {
    %c0_i32 = arith.constant 0 : i32
    %c0_i32_0 = arith.constant 0 : i32
    %c0_i32_1 = arith.constant 0 : i32
    return %arg0, %c0_i32, %c0_i32_0 : i32, i32, i32
  }
  func.func @transform_3(%arg0: i32) -> (i32, i32) {
    %c0_i32 = arith.constant 0 : i32
    %c0_i32_0 = arith.constant 0 : i32
    %c0_i32_1 = arith.constant 0 : i32
    return %c0_i32, %c0_i32_0 : i32, i32
  }
  func.func @transform_4(%arg0: i32) -> (i32, i32) {
    %c0_i32 = arith.constant 0 : i32
    %c0_i32_0 = arith.constant 0 : i32
    %c0_i32_1 = arith.constant 0 : i32
    return %c0_i32, %c0_i32_0 : i32, i32
  }
  func.func @transform_5(%arg0: i32) -> (i32, i32, i32, i32) {
    %c0_i32 = arith.constant 0 : i32
    %c0_i32_0 = arith.constant 0 : i32
    %c0_i32_1 = arith.constant 0 : i32
    %c0_i32_2 = arith.constant 0 : i32
    %c0_i32_3 = arith.constant 0 : i32
    return %c0_i32, %c0_i32_0, %c0_i32_1, %c0_i32_2 : i32, i32, i32, i32
  }
  func.func @transform_6(%arg0: i32) -> (i32, i32, i32, i32) {
    %c0_i32 = arith.constant 0 : i32
    %c0_i32_0 = arith.constant 0 : i32
    %c0_i32_1 = arith.constant 0 : i32
    %c0_i32_2 = arith.constant 0 : i32
    %c0_i32_3 = arith.constant 0 : i32
    return %c0_i32, %c0_i32_0, %c0_i32_1, %c0_i32_2 : i32, i32, i32, i32
  }
  func.func @transform_7(%arg0: i32) -> (i32, i32, i32, i32) {
    %c0_i32 = arith.constant 0 : i32
    %c0_i32_0 = arith.constant 0 : i32
    %c0_i32_1 = arith.constant 0 : i32
    %c0_i32_2 = arith.constant 0 : i32
    %c0_i32_3 = arith.constant 0 : i32
    return %c0_i32, %c0_i32_0, %c0_i32_1, %c0_i32_2 : i32, i32, i32, i32
  }
  func.func @transform_8(%arg0: i32) -> (i32, i32, i32, i32) {
    %c0_i32 = arith.constant 0 : i32
    %c0_i32_0 = arith.constant 0 : i32
    %c0_i32_1 = arith.constant 0 : i32
    %c0_i32_2 = arith.constant 0 : i32
    %c0_i32_3 = arith.constant 0 : i32
    return %c0_i32, %c0_i32_0, %c0_i32_1, %c0_i32_2 : i32, i32, i32, i32
  }
  func.func @transform_9(%arg0: i32) -> (i32, i32, i32, i32) {
    %c0_i32 = arith.constant 0 : i32
    %c0_i32_0 = arith.constant 0 : i32
    %c0_i32_1 = arith.constant 0 : i32
    %c0_i32_2 = arith.constant 0 : i32
    %c0_i32_3 = arith.constant 0 : i32
    return %c0_i32, %c0_i32_0, %c0_i32_1, %c0_i32_2 : i32, i32, i32, i32
  }
  func.func @transform_10(%arg0: i32) -> (i32, i32, i32, i32) {
    %c0_i32 = arith.constant 0 : i32
    %c0_i32_0 = arith.constant 0 : i32
    %c0_i32_1 = arith.constant 0 : i32
    %c0_i32_2 = arith.constant 0 : i32
    %c0_i32_3 = arith.constant 0 : i32
    return %c0_i32, %c0_i32_0, %c0_i32_1, %c0_i32_2 : i32, i32, i32, i32
  }
  func.func @transform_11(%arg0: i32) -> (i32, i32, i32, i32) {
    %c0_i32 = arith.constant 0 : i32
    %c0_i32_0 = arith.constant 0 : i32
    %c0_i32_1 = arith.constant 0 : i32
    %c0_i32_2 = arith.constant 0 : i32
    %c0_i32_3 = arith.constant 0 : i32
    return %c0_i32, %c0_i32_0, %c0_i32_1, %c0_i32_2 : i32, i32, i32, i32
  }
  func.func @transform_12(%arg0: i32) -> (i32, i32, i32) {
    %c0_i32 = arith.constant 0 : i32
    %c0_i32_0 = arith.constant 0 : i32
    %c0_i32_1 = arith.constant 0 : i32
    %c0_i32_2 = arith.constant 0 : i32
    return %c0_i32, %c0_i32_0, %c0_i32_1 : i32, i32, i32
  }
  func.func @transform_13(%arg0: i32) -> (i32, i32, i32) {
    %c0_i32 = arith.constant 0 : i32
    %c0_i32_0 = arith.constant 0 : i32
    %c0_i32_1 = arith.constant 0 : i32
    %c0_i32_2 = arith.constant 0 : i32
    return %c0_i32, %c0_i32_0, %c0_i32_1 : i32, i32, i32
  }
  func.func @transform_14(%arg0: i32) -> (i32, i32, i32) {
    %c0_i32 = arith.constant 0 : i32
    %c0_i32_0 = arith.constant 0 : i32
    %c0_i32_1 = arith.constant 0 : i32
    %c0_i32_2 = arith.constant 0 : i32
    return %c0_i32, %c0_i32_0, %c0_i32_1 : i32, i32, i32
  }
  func.func @transform_15(%arg0: i32) -> (i32, i32, i32) {
    %c0_i32 = arith.constant 0 : i32
    %c0_i32_0 = arith.constant 0 : i32
    %c0_i32_1 = arith.constant 0 : i32
    %c0_i32_2 = arith.constant 0 : i32
    return %c0_i32, %c0_i32_0, %c0_i32_1 : i32, i32, i32
  }
  func.func @transform_16(%arg0: i32) -> (i32, i32, i32) {
    %c0_i32 = arith.constant 0 : i32
    %c0_i32_0 = arith.constant 0 : i32
    %c0_i32_1 = arith.constant 0 : i32
    %c0_i32_2 = arith.constant 0 : i32
    return %c0_i32, %c0_i32_0, %c0_i32_1 : i32, i32, i32
  }
  func.func @transform_17(%arg0: i32) -> (i32, i32, i32) {
    %c0_i32 = arith.constant 0 : i32
    %c0_i32_0 = arith.constant 0 : i32
    %c0_i32_1 = arith.constant 0 : i32
    %c0_i32_2 = arith.constant 0 : i32
    return %c0_i32, %c0_i32_0, %c0_i32_1 : i32, i32, i32
  }
  func.func @transform_18(%arg0: i32) -> (i32, i32, i32) {
    %c0_i32 = arith.constant 0 : i32
    %c0_i32_0 = arith.constant 0 : i32
    %c0_i32_1 = arith.constant 0 : i32
    %c0_i32_2 = arith.constant 0 : i32
    return %c0_i32, %c0_i32_0, %c0_i32_1 : i32, i32, i32
  }
  func.func @transform_19(%arg0: i32) -> (i32, i32, i32) {
    %c0_i32 = arith.constant 0 : i32
    %c0_i32_0 = arith.constant 0 : i32
    %c0_i32_1 = arith.constant 0 : i32
    %c0_i32_2 = arith.constant 0 : i32
    return %c0_i32, %c0_i32_0, %c0_i32_1 : i32, i32, i32
  }
  func.func @transform_20(%arg0: i32) -> (i32, i32, i32) {
    %c0_i32 = arith.constant 0 : i32
    %c0_i32_0 = arith.constant 0 : i32
    %c0_i32_1 = arith.constant 0 : i32
    %c0_i32_2 = arith.constant 0 : i32
    return %c0_i32, %c0_i32_0, %c0_i32_1 : i32, i32, i32
  }
  func.func @transform_21(%arg0: i32) -> (i32, i32) {
    %c0_i32 = arith.constant 0 : i32
    %c0_i32_0 = arith.constant 0 : i32
    %c0_i32_1 = arith.constant 0 : i32
    return %c0_i32, %c0_i32_0 : i32, i32
  }
  func.func @transform_22(%arg0: i32) -> (i32, i32) {
    %c0_i32 = arith.constant 0 : i32
    %c0_i32_0 = arith.constant 0 : i32
    %c0_i32_1 = arith.constant 0 : i32
    return %c0_i32, %c0_i32_0 : i32, i32
  }
  func.func @transform_23(%arg0: i32) -> (i32, i32) {
    %c0_i32 = arith.constant 0 : i32
    %c0_i32_0 = arith.constant 0 : i32
    %c0_i32_1 = arith.constant 0 : i32
    return %c0_i32, %c0_i32_0 : i32, i32
  }
  func.func @transform_24(%arg0: i32) -> (i32, i32) {
    %c0_i32 = arith.constant 0 : i32
    %c0_i32_0 = arith.constant 0 : i32
    %c0_i32_1 = arith.constant 0 : i32
    return %c0_i32, %c0_i32_0 : i32, i32
  }
  func.func @transform_25(%arg0: i32) -> (i32, i32) {
    %c0_i32 = arith.constant 0 : i32
    %c0_i32_0 = arith.constant 0 : i32
    %c0_i32_1 = arith.constant 0 : i32
    return %c0_i32, %c0_i32_0 : i32, i32
  }
  func.func @transform_26(%arg0: i32) -> (i32, i32) {
    %c0_i32 = arith.constant 0 : i32
    %c0_i32_0 = arith.constant 0 : i32
    %c0_i32_1 = arith.constant 0 : i32
    return %c0_i32, %c0_i32_0 : i32, i32
  }
  func.func @transform_27(%arg0: i32) -> (i32, i32, i32) {
    %c0_i32 = arith.constant 0 : i32
    %c0_i32_0 = arith.constant 0 : i32
    %c0_i32_1 = arith.constant 0 : i32
    return %arg0, %c0_i32, %c0_i32_0 : i32, i32, i32
  }
}

</mosaic_0001>

<llo_original>
// kernel: ihd_forward.1
$region0: #{ihd_forward.1}
  #allocation0 [shape = 'u32[]', space=smem, size = 0x4, offset = 0x4, fixed_abs, tag = 'smem constant byte address 0x4 - core index']
  #allocation1 [shape = 'u32[144,128]{1,0:T(1,128)}', space=vmem, size = 0x12000, scoped, tag = 'internal scratch']
  %s0 = inlined_call_operand.vmem [shape: f32[2,8,64], index: 0, kind: input, shape index: {}]
  %s1 = inlined_call_operand.vmem [shape: f32[8,64], index: 1, kind: input, shape index: {}]
  %s2 = inlined_call_operand.vmem [shape: f32[2,1,8], index: 2, kind: input, shape index: {}]
  %s3 = inlined_call_operand.vmem [shape: f32[1,64], index: 3, kind: input, shape index: {}]
  %s4 = inlined_call_operand.vmem [shape: f32[1,64], index: 4, kind: input, shape index: {}]
  %s5 = inlined_call_operand.vmem [shape: f32[2,4,64,16], index: 5, kind: input, shape index: {}]
  %s6 = inlined_call_operand.vmem [shape: f32[2,4,1,16], index: 6, kind: input, shape index: {}]
  %s7 = inlined_call_operand.vmem [shape: f32[2,4,64,16], index: 7, kind: input, shape index: {}]
  %s8 = inlined_call_operand.vmem [shape: f32[2,4,1,16], index: 8, kind: input, shape index: {}]
  %s9 = inlined_call_operand.vmem [shape: f32[2,4,64,16], index: 9, kind: input, shape index: {}]
  %s10 = inlined_call_operand.vmem [shape: f32[2,4,1,16], index: 10, kind: input, shape index: {}]
  %s11 = inlined_call_operand.vmem [shape: f32[2,4,16,64], index: 11, kind: input, shape index: {}]
  %s12 = inlined_call_operand.vmem [shape: f32[2,1,64], index: 12, kind: input, shape index: {}]
  %s13 = inlined_call_operand.vmem [shape: f32[2,1,64], index: 13, kind: input, shape index: {}]
  %s14 = inlined_call_operand.vmem [shape: f32[2,1,64], index: 14, kind: input, shape index: {}]
  %s15 = inlined_call_operand.vmem [shape: f32[2,64,128], index: 15, kind: input, shape index: {}]
  %s16 = inlined_call_operand.vmem [shape: f32[2,1,128], index: 16, kind: input, shape index: {}]
  %s17 = inlined_call_operand.vmem [shape: f32[2,128,64], index: 17, kind: input, shape index: {}]
  %s18 = inlined_call_operand.vmem [shape: f32[2,1,64], index: 18, kind: input, shape index: {}]
  %s19 = inlined_call_operand.vmem [shape: f32[2,1,64], index: 19, kind: input, shape index: {}]
  %s20 = inlined_call_operand.vmem [shape: f32[2,1,64], index: 20, kind: input, shape index: {}]
  %s21 = inlined_call_operand.vmem [shape: f32[64,128], index: 21, kind: input, shape index: {}]
  %s22 = inlined_call_operand.vmem [shape: f32[1,128], index: 22, kind: input, shape index: {}]
  %s23 = inlined_call_operand.vmem [shape: f32[128,128], index: 23, kind: input, shape index: {}]
  %s24 = inlined_call_operand.vmem [shape: f32[1,128], index: 24, kind: input, shape index: {}]
  %s25 = inlined_call_operand.vmem [shape: f32[128,128], index: 25, kind: input, shape index: {}]
  %s26 = inlined_call_operand.vmem [shape: f32[1,128], index: 26, kind: input, shape index: {}]
  %s27 = inlined_call_operand.hbm [shape: f32[2,1,128], index: 27, kind: output, shape index: {}]
  %s28 = sld [smem:[#allocation0]]
  $region141: #{ihd_forward.1} parent=0
    _
  %s30 = ssub.s32 1, %s28
  %s31 = scalar_select 0, %s30, %s28
  $region1: #{ihd_forward.1} parent=0
    #allocation2 [shape = 'u8[1024]{0}', space=vmem, size = 0x400, scoped, tag = 'output window, operand 0']
    #allocation3 [shape = 's32[2]{0}', space=sflag, size = 0x8, scoped, tag = 'scoped memory for ihd_forward.1']
    %32 = vsyncpa [#allocation3], 0
    %s33 = scalar_lea.sflag [#allocation3], 1
    %34 = vsyncpa %s33, 0
    loop: start=0, step=1, limit=4
    $region2: #{ihd_forward.1} parent=1 // loop_pre_header
      _
    $region3: #{ihd_forward.1} parent=1 // loop_header
      %s36 = sphi 0, %s40
      %p37 = scmp.ge.s32.totalorder %s36, 4
      %s46 = sphi 0, %s48
      %s49 = sphi 0, %s46
      %s50 = sphi 0, %s49
      %s66 = sphi 0, %s50
      %s70 = sphi 0, %s70
      %s72 = sphi 0, %s70
      %s73 = sphi 0, %s72
      %s87 = sphi 0, %s73
      %s93 = sphi 0, %s95
      %s96 = sphi 0, %s93
      %s97 = sphi 0, %s96
      %s113 = sphi 0, %s97
      %s117 = sphi 0, %s117
      %s119 = sphi 0, %s117
      %s120 = sphi 0, %s119
      %s134 = sphi 0, %s120
      %s138 = sphi 0, %s138
      %s140 = sphi 0, %s138
      %s141 = sphi 0, %s140
      %s155 = sphi 0, %s141
      %s159 = sphi 0, %s159
      %s161 = sphi 0, %s159
      %s162 = sphi 0, %s161
      %s176 = sphi 0, %s162
      %s180 = sphi 0, %s180
      %s182 = sphi 0, %s180
      %s183 = sphi 0, %s182
      %s197 = sphi 0, %s183
      %s201 = sphi 0, %s201
      %s203 = sphi 0, %s201
      %s204 = sphi 0, %s203
      %s218 = sphi 0, %s204
      %s222 = sphi 0, %s222
      %s224 = sphi 0, %s222
      %s225 = sphi 0, %s224
      %s239 = sphi 0, %s225
      %s243 = sphi 0, %s243
      %s245 = sphi 0, %s243
      %s246 = sphi 0, %s245
      %s260 = sphi 0, %s246
      %s264 = sphi 0, %s264
      %s266 = sphi 0, %s264
      %s267 = sphi 0, %s266
      %s281 = sphi 0, %s267
      %s285 = sphi 0, %s285
      %s287 = sphi 0, %s285
      %s288 = sphi 0, %s287
      %s302 = sphi 0, %s288
      %s306 = sphi 0, %s306
      %s308 = sphi 0, %s306
      %s309 = sphi 0, %s308
      %s323 = sphi 0, %s309
      %s327 = sphi 0, %s327
      %s329 = sphi 0, %s327
      %s330 = sphi 0, %s329
      %s344 = sphi 0, %s330
      %s348 = sphi 0, %s348
      %s350 = sphi 0, %s348
      %s351 = sphi 0, %s350
      %s365 = sphi 0, %s351
      %s369 = sphi 0, %s369
      %s371 = sphi 0, %s369
      %s372 = sphi 0, %s371
      %s386 = sphi 0, %s372
      %s390 = sphi 0, %s390
      %s392 = sphi 0, %s390
      %s393 = sphi 0, %s392
      %s407 = sphi 0, %s393
      %s411 = sphi 0, %s411
      %s413 = sphi 0, %s411
      %s414 = sphi 0, %s413
      %s428 = sphi 0, %s414
      %s432 = sphi 0, %s432
      %s434 = sphi 0, %s432
      %s435 = sphi 0, %s434
      %s449 = sphi 0, %s435
      %s453 = sphi 0, %s453
      %s455 = sphi 0, %s453
      %s456 = sphi 0, %s455
      %s470 = sphi 0, %s456
      %s474 = sphi 0, %s474
      %s476 = sphi 0, %s474
      %s477 = sphi 0, %s476
      %s491 = sphi 0, %s477
      %s495 = sphi 0, %s495
      %s497 = sphi 0, %s495
      %s498 = sphi 0, %s497
      %s512 = sphi 0, %s498
      %s516 = sphi 0, %s516
      %s518 = sphi 0, %s516
      %s519 = sphi 0, %s518
      %s533 = sphi 0, %s519
      %s537 = sphi 0, %s537
      %s539 = sphi 0, %s537
      %s540 = sphi 0, %s539
      %s554 = sphi 0, %s540
      %s558 = sphi 0, %s558
      %s560 = sphi 0, %s558
      %s561 = sphi 0, %s560
      %s575 = sphi 0, %s561
      %s579 = sphi 0, %s579
      %s581 = sphi 0, %s579
      %s582 = sphi 0, %s581
      %s596 = sphi 0, %s582
      %s600 = sphi 0, %s600
      %s602 = sphi 0, %s600
      %s603 = sphi 0, %s602
      %s617 = sphi 0, %s603
      %s623 = sphi 0, %s625
      %s626 = sphi 0, %s623
      %s627 = sphi 0, %s626
      %s643 = sphi 0, %s627
    $region4: #{ihd_forward.1} parent=1 // loop_header_branch
      %39 = sbr.rel (%p37) target = $region8
    $region5: #{ihd_forward.1} parent=1 // loop_body
      %s41 = ssub.s32 %s36, 1
      %s42 = ssub.s32 %s36, 2
      %s43 = sadd.s32 %s36, 1
      %s44 = ssub.s32 %s36, %s43
      %p45 = scmp.eq.s32.totalorder %s44, 0
      %s47 = sadd.s32 %s46, 1
      %s48 = scalar_select %p45, %s46, %s47
      %p51 = pneg %p45
      %p52 = scmp.eq.s32.totalorder %s36, 1
      %p53 = por %p51, %p52
      %p54 = scmp.ne.s32.totalorder %s46, %s49
      %p55 = scmp.eq.s32.totalorder %s36, 0
      %p56 = por %p54, %p55
      %p57 = scmp.ne.s32.totalorder %s46, %s49
      %p58 = scmp.eq.s32.totalorder %s41, 1
      %p59 = por %p57, %p58
      %p60 = scmp.ne.s32.totalorder %s49, %s50
      %p61 = scmp.eq.s32.totalorder %s41, 0
      %p62 = por %p60, %p61
      %p63 = scmp.ne.s32.totalorder %s49, %s50
      %p64 = scmp.eq.s32.totalorder %s42, 1
      %p65 = por %p63, %p64
      %p67 = scmp.ne.s32.totalorder %s50, %s66
      %p68 = scmp.eq.s32.totalorder %s42, 0
      %p69 = por %p67, %p68
      %s71 = sadd.s32 %s70, 1
      %p74 = scmp.eq.s32.totalorder %s36, 1
      %p75 = scmp.ne.s32.totalorder %s70, %s72
      %p76 = scmp.eq.s32.totalorder %s36, 0
      %p77 = por %p75, %p76
      %p78 = scmp.ne.s32.totalorder %s70, %s72
      %p79 = scmp.eq.s32.totalorder %s41, 1
      %p80 = por %p78, %p79
      %p81 = scmp.ne.s32.totalorder %s72, %s73
      %p82 = scmp.eq.s32.totalorder %s41, 0
      %p83 = por %p81, %p82
      %p84 = scmp.ne.s32.totalorder %s72, %s73
      %p85 = scmp.eq.s32.totalorder %s42, 1
      %p86 = por %p84, %p85
      %p88 = scmp.ne.s32.totalorder %s73, %s87
      %p89 = scmp.eq.s32.totalorder %s42, 0
      %p90 = por %p88, %p89
      %s91 = ssub.s32 %s36, %s43
      %p92 = scmp.eq.s32.totalorder %s91, 0
      %s94 = sadd.s32 %s93, 1
      %s95 = scalar_select %p92, %s93, %s94
      %p98 = pneg %p92
      %p99 = scmp.eq.s32.totalorder %s36, 1
      %p100 = por %p98, %p99
      %p101 = scmp.ne.s32.totalorder %s93, %s96
      %p102 = scmp.eq.s32.totalorder %s36, 0
      %p103 = por %p101, %p102
      %p104 = scmp.ne.s32.totalorder %s93, %s96
      %p105 = scmp.eq.s32.totalorder %s41, 1
      %p106 = por %p104, %p105
      %p107 = scmp.ne.s32.totalorder %s96, %s97
      %p108 = scmp.eq.s32.totalorder %s41, 0
      %p109 = por %p107, %p108
      %p110 = scmp.ne.s32.totalorder %s96, %s97
      %p111 = scmp.eq.s32.totalorder %s42, 1
      %p112 = por %p110, %p111
      %p114 = scmp.ne.s32.totalorder %s97, %s113
      %p115 = scmp.eq.s32.totalorder %s42, 0
      %p116 = por %p114, %p115
      %s118 = sadd.s32 %s117, 1
      %p121 = scmp.eq.s32.totalorder %s36, 1
      %p122 = scmp.ne.s32.totalorder %s117, %s119
      %p123 = scmp.eq.s32.totalorder %s36, 0
      %p124 = por %p122, %p123
      %p125 = scmp.ne.s32.totalorder %s117, %s119
      %p126 = scmp.eq.s32.totalorder %s41, 1
      %p127 = por %p125, %p126
      %p128 = scmp.ne.s32.totalorder %s119, %s120
      %p129 = scmp.eq.s32.totalorder %s41, 0
      %p130 = por %p128, %p129
      %p131 = scmp.ne.s32.totalorder %s119, %s120
      %p132 = scmp.eq.s32.totalorder %s42, 1
      %p133 = por %p131, %p132
      %p135 = scmp.ne.s32.totalorder %s120, %s134
      %p136 = scmp.eq.s32.totalorder %s42, 0
      %p137 = por %p135, %p136
      %s139 = sadd.s32 %s138, 1
      %p142 = scmp.eq.s32.totalorder %s36, 1
      %p143 = scmp.ne.s32.totalorder %s138, %s140
      %p144 = scmp.eq.s32.totalorder %s36, 0
      %p145 = por %p143, %p144
      %p146 = scmp.ne.s32.totalorder %s138, %s140
      %p147 = scmp.eq.s32.totalorder %s41, 1
      %p148 = por %p146, %p147
      %p149 = scmp.ne.s32.totalorder %s140, %s141
      %p150 = scmp.eq.s32.totalorder %s41, 0
      %p151 = por %p149, %p150
      %p152 = scmp.ne.s32.totalorder %s140, %s141
      %p153 = scmp.eq.s32.totalorder %s42, 1
      %p154 = por %p152, %p153
      %p156 = scmp.ne.s32.totalorder %s141, %s155
      %p157 = scmp.eq.s32.totalorder %s42, 0
      %p158 = por %p156, %p157
      %s160 = sadd.s32 %s159, 1
      %p163 = scmp.eq.s32.totalorder %s36, 1
      %p164 = scmp.ne.s32.totalorder %s159, %s161
      %p165 = scmp.eq.s32.totalorder %s36, 0
      %p166 = por %p164, %p165
      %p167 = scmp.ne.s32.totalorder %s159, %s161
      %p168 = scmp.eq.s32.totalorder %s41, 1
      %p169 = por %p167, %p168
      %p170 = scmp.ne.s32.totalorder %s161, %s162
      %p171 = scmp.eq.s32.totalorder %s41, 0
      %p172 = por %p170, %p171
      %p173 = scmp.ne.s32.totalorder %s161, %s162
      %p174 = scmp.eq.s32.totalorder %s42, 1
      %p175 = por %p173, %p174
      %p177 = scmp.ne.s32.totalorder %s162, %s176
      %p178 = scmp.eq.s32.totalorder %s42, 0
      %p179 = por %p177, %p178
      %s181 = sadd.s32 %s180, 1
      %p184 = scmp.eq.s32.totalorder %s36, 1
      %p185 = scmp.ne.s32.totalorder %s180, %s182
      %p186 = scmp.eq.s32.totalorder %s36, 0
      %p187 = por %p185, %p186
      %p188 = scmp.ne.s32.totalorder %s180, %s182
      %p189 = scmp.eq.s32.totalorder %s41, 1
      %p190 = por %p188, %p189
      %p191 = scmp.ne.s32.totalorder %s182, %s183
      %p192 = scmp.eq.s32.totalorder %s41, 0
      %p193 = por %p191, %p192
      %p194 = scmp.ne.s32.totalorder %s182, %s183
      %p195 = scmp.eq.s32.totalorder %s42, 1
      %p196 = por %p194, %p195
      %p198 = scmp.ne.s32.totalorder %s183, %s197
      %p199 = scmp.eq.s32.totalorder %s42, 0
      %p200 = por %p198, %p199
      %s202 = sadd.s32 %s201, 1
      %p205 = scmp.eq.s32.totalorder %s36, 1
      %p206 = scmp.ne.s32.totalorder %s201, %s203
      %p207 = scmp.eq.s32.totalorder %s36, 0
      %p208 = por %p206, %p207
      %p209 = scmp.ne.s32.totalorder %s201, %s203
      %p210 = scmp.eq.s32.totalorder %s41, 1
      %p211 = por %p209, %p210
      %p212 = scmp.ne.s32.totalorder %s203, %s204
      %p213 = scmp.eq.s32.totalorder %s41, 0
      %p214 = por %p212, %p213
      %p215 = scmp.ne.s32.totalorder %s203, %s204
      %p216 = scmp.eq.s32.totalorder %s42, 1
      %p217 = por %p215, %p216
      %p219 = scmp.ne.s32.totalorder %s204, %s218
      %p220 = scmp.eq.s32.totalorder %s42, 0
      %p221 = por %p219, %p220
      %s223 = sadd.s32 %s222, 1
      %p226 = scmp.eq.s32.totalorder %s36, 1
      %p227 = scmp.ne.s32.totalorder %s222, %s224
      %p228 = scmp.eq.s32.totalorder %s36, 0
      %p229 = por %p227, %p228
      %p230 = scmp.ne.s32.totalorder %s222, %s224
      %p231 = scmp.eq.s32.totalorder %s41, 1
      %p232 = por %p230, %p231
      %p233 = scmp.ne.s32.totalorder %s224, %s225
      %p234 = scmp.eq.s32.totalorder %s41, 0
      %p235 = por %p233, %p234
      %p236 = scmp.ne.s32.totalorder %s224, %s225
      %p237 = scmp.eq.s32.totalorder %s42, 1
      %p238 = por %p236, %p237
      %p240 = scmp.ne.s32.totalorder %s225, %s239
      %p241 = scmp.eq.s32.totalorder %s42, 0
      %p242 = por %p240, %p241
      %s244 = sadd.s32 %s243, 1
      %p247 = scmp.eq.s32.totalorder %s36, 1
      %p248 = scmp.ne.s32.totalorder %s243, %s245
      %p249 = scmp.eq.s32.totalorder %s36, 0
      %p250 = por %p248, %p249
      %p251 = scmp.ne.s32.totalorder %s243, %s245
      %p252 = scmp.eq.s32.totalorder %s41, 1
      %p253 = por %p251, %p252
      %p254 = scmp.ne.s32.totalorder %s245, %s246
      %p255 = scmp.eq.s32.totalorder %s41, 0
      %p256 = por %p254, %p255
      %p257 = scmp.ne.s32.totalorder %s245, %s246
      %p258 = scmp.eq.s32.totalorder %s42, 1
      %p259 = por %p257, %p258
      %p261 = scmp.ne.s32.totalorder %s246, %s260
      %p262 = scmp.eq.s32.totalorder %s42, 0
      %p263 = por %p261, %p262
      %s265 = sadd.s32 %s264, 1
      %p268 = scmp.eq.s32.totalorder %s36, 1
      %p269 = scmp.ne.s32.totalorder %s264, %s266
      %p270 = scmp.eq.s32.totalorder %s36, 0
      %p271 = por %p269, %p270
      %p272 = scmp.ne.s32.totalorder %s264, %s266
      %p273 = scmp.eq.s32.totalorder %s41, 1
      %p274 = por %p272, %p273
      %p275 = scmp.ne.s32.totalorder %s266, %s267
      %p276 = scmp.eq.s32.totalorder %s41, 0
      %p277 = por %p275, %p276
      %p278 = scmp.ne.s32.totalorder %s266, %s267
      %p279 = scmp.eq.s32.totalorder %s42, 1
      %p280 = por %p278, %p279
      %p282 = scmp.ne.s32.totalorder %s267, %s281
      %p283 = scmp.eq.s32.totalorder %s42, 0
      %p284 = por %p282, %p283
      %s286 = sadd.s32 %s285, 1
      %p289 = scmp.eq.s32.totalorder %s36, 1
      %p290 = scmp.ne.s32.totalorder %s285, %s287
      %p291 = scmp.eq.s32.totalorder %s36, 0
      %p292 = por %p290, %p291
      %p293 = scmp.ne.s32.totalorder %s285, %s287
      %p294 = scmp.eq.s32.totalorder %s41, 1
      %p295 = por %p293, %p294
      %p296 = scmp.ne.s32.totalorder %s287, %s288
      %p297 = scmp.eq.s32.totalorder %s41, 0
      %p298 = por %p296, %p297
      %p299 = scmp.ne.s32.totalorder %s287, %s288
      %p300 = scmp.eq.s32.totalorder %s42, 1
      %p301 = por %p299, %p300
      %p303 = scmp.ne.s32.totalorder %s288, %s302
      %p304 = scmp.eq.s32.totalorder %s42, 0
      %p305 = por %p303, %p304
      %s307 = sadd.s32 %s306, 1
      %p310 = scmp.eq.s32.totalorder %s36, 1
      %p311 = scmp.ne.s32.totalorder %s306, %s308
      %p312 = scmp.eq.s32.totalorder %s36, 0
      %p313 = por %p311, %p312
      %p314 = scmp.ne.s32.totalorder %s306, %s308
      %p315 = scmp.eq.s32.totalorder %s41, 1
      %p316 = por %p314, %p315
      %p317 = scmp.ne.s32.totalorder %s308, %s309
      %p318 = scmp.eq.s32.totalorder %s41, 0
      %p319 = por %p317, %p318
      %p320 = scmp.ne.s32.totalorder %s308, %s309
      %p321 = scmp.eq.s32.totalorder %s42, 1
      %p322 = por %p320, %p321
      %p324 = scmp.ne.s32.totalorder %s309, %s323
      %p325 = scmp.eq.s32.totalorder %s42, 0
      %p326 = por %p324, %p325
      %s328 = sadd.s32 %s327, 1
      %p331 = scmp.eq.s32.totalorder %s36, 1
      %p332 = scmp.ne.s32.totalorder %s327, %s329
      %p333 = scmp.eq.s32.totalorder %s36, 0
      %p334 = por %p332, %p333
      %p335 = scmp.ne.s32.totalorder %s327, %s329
      %p336 = scmp.eq.s32.totalorder %s41, 1
      %p337 = por %p335, %p336
      %p338 = scmp.ne.s32.totalorder %s329, %s330
      %p339 = scmp.eq.s32.totalorder %s41, 0
      %p340 = por %p338, %p339
      %p341 = scmp.ne.s32.totalorder %s329, %s330
      %p342 = scmp.eq.s32.totalorder %s42, 1
      %p343 = por %p341, %p342
      %p345 = scmp.ne.s32.totalorder %s330, %s344
      %p346 = scmp.eq.s32.totalorder %s42, 0
      %p347 = por %p345, %p346
      %s349 = sadd.s32 %s348, 1
      %p352 = scmp.eq.s32.totalorder %s36, 1
      %p353 = scmp.ne.s32.totalorder %s348, %s350
      %p354 = scmp.eq.s32.totalorder %s36, 0
      %p355 = por %p353, %p354
      %p356 = scmp.ne.s32.totalorder %s348, %s350
      %p357 = scmp.eq.s32.totalorder %s41, 1
      %p358 = por %p356, %p357
      %p359 = scmp.ne.s32.totalorder %s350, %s351
      %p360 = scmp.eq.s32.totalorder %s41, 0
      %p361 = por %p359, %p360
      %p362 = scmp.ne.s32.totalorder %s350, %s351
      %p363 = scmp.eq.s32.totalorder %s42, 1
      %p364 = por %p362, %p363
      %p366 = scmp.ne.s32.totalorder %s351, %s365
      %p367 = scmp.eq.s32.totalorder %s42, 0
      %p368 = por %p366, %p367
      %s370 = sadd.s32 %s369, 1
      %p373 = scmp.eq.s32.totalorder %s36, 1
      %p374 = scmp.ne.s32.totalorder %s369, %s371
      %p375 = scmp.eq.s32.totalorder %s36, 0
      %p376 = por %p374, %p375
      %p377 = scmp.ne.s32.totalorder %s369, %s371
      %p378 = scmp.eq.s32.totalorder %s41, 1
      %p379 = por %p377, %p378
      %p380 = scmp.ne.s32.totalorder %s371, %s372
      %p381 = scmp.eq.s32.totalorder %s41, 0
      %p382 = por %p380, %p381
      %p383 = scmp.ne.s32.totalorder %s371, %s372
      %p384 = scmp.eq.s32.totalorder %s42, 1
      %p385 = por %p383, %p384
      %p387 = scmp.ne.s32.totalorder %s372, %s386
      %p388 = scmp.eq.s32.totalorder %s42, 0
      %p389 = por %p387, %p388
      %s391 = sadd.s32 %s390, 1
      %p394 = scmp.eq.s32.totalorder %s36, 1
      %p395 = scmp.ne.s32.totalorder %s390, %s392
      %p396 = scmp.eq.s32.totalorder %s36, 0
      %p397 = por %p395, %p396
      %p398 = scmp.ne.s32.totalorder %s390, %s392
      %p399 = scmp.eq.s32.totalorder %s41, 1
      %p400 = por %p398, %p399
      %p401 = scmp.ne.s32.totalorder %s392, %s393
      %p402 = scmp.eq.s32.totalorder %s41, 0
      %p403 = por %p401, %p402
      %p404 = scmp.ne.s32.totalorder %s392, %s393
      %p405 = scmp.eq.s32.totalorder %s42, 1
      %p406 = por %p404, %p405
      %p408 = scmp.ne.s32.totalorder %s393, %s407
      %p409 = scmp.eq.s32.totalorder %s42, 0
      %p410 = por %p408, %p409
      %s412 = sadd.s32 %s411, 1
      %p415 = scmp.eq.s32.totalorder %s36, 1
      %p416 = scmp.ne.s32.totalorder %s411, %s413
      %p417 = scmp.eq.s32.totalorder %s36, 0
      %p418 = por %p416, %p417
      %p419 = scmp.ne.s32.totalorder %s411, %s413
      %p420 = scmp.eq.s32.totalorder %s41, 1
      %p421 = por %p419, %p420
      %p422 = scmp.ne.s32.totalorder %s413, %s414
      %p423 = scmp.eq.s32.totalorder %s41, 0
      %p424 = por %p422, %p423
      %p425 = scmp.ne.s32.totalorder %s413, %s414
      %p426 = scmp.eq.s32.totalorder %s42, 1
      %p427 = por %p425, %p426
      %p429 = scmp.ne.s32.totalorder %s414, %s428
      %p430 = scmp.eq.s32.totalorder %s42, 0
      %p431 = por %p429, %p430
      %s433 = sadd.s32 %s432, 1
      %p436 = scmp.eq.s32.totalorder %s36, 1
      %p437 = scmp.ne.s32.totalorder %s432, %s434
      %p438 = scmp.eq.s32.totalorder %s36, 0
      %p439 = por %p437, %p438
      %p440 = scmp.ne.s32.totalorder %s432, %s434
      %p441 = scmp.eq.s32.totalorder %s41, 1
      %p442 = por %p440, %p441
      %p443 = scmp.ne.s32.totalorder %s434, %s435
      %p444 = scmp.eq.s32.totalorder %s41, 0
      %p445 = por %p443, %p444
      %p446 = scmp.ne.s32.totalorder %s434, %s435
      %p447 = scmp.eq.s32.totalorder %s42, 1
      %p448 = por %p446, %p447
      %p450 = scmp.ne.s32.totalorder %s435, %s449
      %p451 = scmp.eq.s32.totalorder %s42, 0
      %p452 = por %p450, %p451
      %s454 = sadd.s32 %s453, 1
      %p457 = scmp.eq.s32.totalorder %s36, 1
      %p458 = scmp.ne.s32.totalorder %s453, %s455
      %p459 = scmp.eq.s32.totalorder %s36, 0
      %p460 = por %p458, %p459
      %p461 = scmp.ne.s32.totalorder %s453, %s455
      %p462 = scmp.eq.s32.totalorder %s41, 1
      %p463 = por %p461, %p462
      %p464 = scmp.ne.s32.totalorder %s455, %s456
      %p465 = scmp.eq.s32.totalorder %s41, 0
      %p466 = por %p464, %p465
      %p467 = scmp.ne.s32.totalorder %s455, %s456
      %p468 = scmp.eq.s32.totalorder %s42, 1
      %p469 = por %p467, %p468
      %p471 = scmp.ne.s32.totalorder %s456, %s470
      %p472 = scmp.eq.s32.totalorder %s42, 0
      %p473 = por %p471, %p472
      %s475 = sadd.s32 %s474, 1
      %p478 = scmp.eq.s32.totalorder %s36, 1
      %p479 = scmp.ne.s32.totalorder %s474, %s476
      %p480 = scmp.eq.s32.totalorder %s36, 0
      %p481 = por %p479, %p480
      %p482 = scmp.ne.s32.totalorder %s474, %s476
      %p483 = scmp.eq.s32.totalorder %s41, 1
      %p484 = por %p482, %p483
      %p485 = scmp.ne.s32.totalorder %s476, %s477
      %p486 = scmp.eq.s32.totalorder %s41, 0
      %p487 = por %p485, %p486
      %p488 = scmp.ne.s32.totalorder %s476, %s477
      %p489 = scmp.eq.s32.totalorder %s42, 1
      %p490 = por %p488, %p489
      %p492 = scmp.ne.s32.totalorder %s477, %s491
      %p493 = scmp.eq.s32.totalorder %s42, 0
      %p494 = por %p492, %p493
      %s496 = sadd.s32 %s495, 1
      %p499 = scmp.eq.s32.totalorder %s36, 1
      %p500 = scmp.ne.s32.totalorder %s495, %s497
      %p501 = scmp.eq.s32.totalorder %s36, 0
      %p502 = por %p500, %p501
      %p503 = scmp.ne.s32.totalorder %s495, %s497
      %p504 = scmp.eq.s32.totalorder %s41, 1
      %p505 = por %p503, %p504
      %p506 = scmp.ne.s32.totalorder %s497, %s498
      %p507 = scmp.eq.s32.totalorder %s41, 0
      %p508 = por %p506, %p507
      %p509 = scmp.ne.s32.totalorder %s497, %s498
      %p510 = scmp.eq.s32.totalorder %s42, 1
      %p511 = por %p509, %p510
      %p513 = scmp.ne.s32.totalorder %s498, %s512
      %p514 = scmp.eq.s32.totalorder %s42, 0
      %p515 = por %p513, %p514
      %s517 = sadd.s32 %s516, 1
      %p520 = scmp.eq.s32.totalorder %s36, 1
      %p521 = scmp.ne.s32.totalorder %s516, %s518
      %p522 = scmp.eq.s32.totalorder %s36, 0
      %p523 = por %p521, %p522
      %p524 = scmp.ne.s32.totalorder %s516, %s518
      %p525 = scmp.eq.s32.totalorder %s41, 1
      %p526 = por %p524, %p525
      %p527 = scmp.ne.s32.totalorder %s518, %s519
      %p528 = scmp.eq.s32.totalorder %s41, 0
      %p529 = por %p527, %p528
      %p530 = scmp.ne.s32.totalorder %s518, %s519
      %p531 = scmp.eq.s32.totalorder %s42, 1
      %p532 = por %p530, %p531
      %p534 = scmp.ne.s32.totalorder %s519, %s533
      %p535 = scmp.eq.s32.totalorder %s42, 0
      %p536 = por %p534, %p535
      %s538 = sadd.s32 %s537, 1
      %p541 = scmp.eq.s32.totalorder %s36, 1
      %p542 = scmp.ne.s32.totalorder %s537, %s539
      %p543 = scmp.eq.s32.totalorder %s36, 0
      %p544 = por %p542, %p543
      %p545 = scmp.ne.s32.totalorder %s537, %s539
      %p546 = scmp.eq.s32.totalorder %s41, 1
      %p547 = por %p545, %p546
      %p548 = scmp.ne.s32.totalorder %s539, %s540
      %p549 = scmp.eq.s32.totalorder %s41, 0
      %p550 = por %p548, %p549
      %p551 = scmp.ne.s32.totalorder %s539, %s540
      %p552 = scmp.eq.s32.totalorder %s42, 1
      %p553 = por %p551, %p552
      %p555 = scmp.ne.s32.totalorder %s540, %s554
      %p556 = scmp.eq.s32.totalorder %s42, 0
      %p557 = por %p555, %p556
      %s559 = sadd.s32 %s558, 1
      %p562 = scmp.eq.s32.totalorder %s36, 1
      %p563 = scmp.ne.s32.totalorder %s558, %s560
      %p564 = scmp.eq.s32.totalorder %s36, 0
      %p565 = por %p563, %p564
      %p566 = scmp.ne.s32.totalorder %s558, %s560
      %p567 = scmp.eq.s32.totalorder %s41, 1
      %p568 = por %p566, %p567
      %p569 = scmp.ne.s32.totalorder %s560, %s561
      %p570 = scmp.eq.s32.totalorder %s41, 0
      %p571 = por %p569, %p570
      %p572 = scmp.ne.s32.totalorder %s560, %s561
      %p573 = scmp.eq.s32.totalorder %s42, 1
      %p574 = por %p572, %p573
      %p576 = scmp.ne.s32.totalorder %s561, %s575
      %p577 = scmp.eq.s32.totalorder %s42, 0
      %p578 = por %p576, %p577
      %s580 = sadd.s32 %s579, 1
      %p583 = scmp.eq.s32.totalorder %s36, 1
      %p584 = scmp.ne.s32.totalorder %s579, %s581
      %p585 = scmp.eq.s32.totalorder %s36, 0
      %p586 = por %p584, %p585
      %p587 = scmp.ne.s32.totalorder %s579, %s581
      %p588 = scmp.eq.s32.totalorder %s41, 1
      %p589 = por %p587, %p588
      %p590 = scmp.ne.s32.totalorder %s581, %s582
      %p591 = scmp.eq.s32.totalorder %s41, 0
      %p592 = por %p590, %p591
      %p593 = scmp.ne.s32.totalorder %s581, %s582
      %p594 = scmp.eq.s32.totalorder %s42, 1
      %p595 = por %p593, %p594
      %p597 = scmp.ne.s32.totalorder %s582, %s596
      %p598 = scmp.eq.s32.totalorder %s42, 0
      %p599 = por %p597, %p598
      %s601 = sadd.s32 %s600, 1
      %p604 = scmp.eq.s32.totalorder %s36, 1
      %p605 = scmp.ne.s32.totalorder %s600, %s602
      %p606 = scmp.eq.s32.totalorder %s36, 0
      %p607 = por %p605, %p606
      %p608 = scmp.ne.s32.totalorder %s600, %s602
      %p609 = scmp.eq.s32.totalorder %s41, 1
      %p610 = por %p608, %p609
      %p611 = scmp.ne.s32.totalorder %s602, %s603
      %p612 = scmp.eq.s32.totalorder %s41, 0
      %p613 = por %p611, %p612
      %p614 = scmp.ne.s32.totalorder %s602, %s603
      %p615 = scmp.eq.s32.totalorder %s42, 1
      %p616 = por %p614, %p615
      %p618 = scmp.ne.s32.totalorder %s603, %s617
      %p619 = scmp.eq.s32.totalorder %s42, 0
      %p620 = por %p618, %p619
      %s621 = ssub.s32 %s36, %s43
      %p622 = scmp.eq.s32.totalorder %s621, 0
      %s624 = sadd.s32 %s623, 1
      %s625 = scalar_select %p622, %s623, %s624
      %p628 = pneg %p622
      %p629 = scmp.eq.s32.totalorder %s36, 1
      %p630 = por %p628, %p629
      %p631 = scmp.ne.s32.totalorder %s623, %s626
      %p632 = scmp.eq.s32.totalorder %s36, 0
      %p633 = por %p631, %p632
      %p634 = scmp.ne.s32.totalorder %s623, %s626
      %p635 = scmp.eq.s32.totalorder %s41, 1
      %p636 = por %p634, %p635
      %p637 = scmp.ne.s32.totalorder %s626, %s627
      %p638 = scmp.eq.s32.totalorder %s41, 0
      %p639 = por %p637, %p638
      %p640 = scmp.ne.s32.totalorder %s626, %s627
      %p641 = scmp.eq.s32.totalorder %s42, 1
      %p642 = por %p640, %p641
      %p644 = scmp.ne.s32.totalorder %s627, %s643
      %p645 = scmp.eq.s32.totalorder %s42, 0
      %p646 = por %p644, %p645
      %p647 = scmp.le.s32.totalorder 1, %s36
      %p648 = scmp.lt.s32.totalorder %s36, 3
      %p649 = pnand %p647, %p648
      %p650 = pneg %p649
      // Predicated region
      $region9: #{ihd_forward.1} parent=5 // pred_check
        _
      $region10: #{ihd_forward.1} parent=5 // pred_check_branch
        %652 = sbr.rel (%p649) target = $region12
      $region11: #{ihd_forward.1} parent=5 // pred_region
        %s653 = ssub.s32 %s36, 1
        // Predicated region
        $region13: #{ihd_forward.1} parent=11 // pred_check
          %p654 = pneg %p83
        $region14: #{ihd_forward.1} parent=11 // pred_check_branch
          %656 = sbr.rel (%p654) target = $region16
        $region15: #{ihd_forward.1} parent=11 // pred_region
          _
        $region16: #{ihd_forward.1} parent=11 // pred_fallthru
          _
        // Predicated region
        $region17: #{ihd_forward.1} parent=11 // pred_check
          %p657 = pneg %p130
        $region18: #{ihd_forward.1} parent=11 // pred_check_branch
          %659 = sbr.rel (%p657) target = $region20
        $region19: #{ihd_forward.1} parent=11 // pred_region
          _
        $region20: #{ihd_forward.1} parent=11 // pred_fallthru
          _
        // Predicated region
        $region21: #{ihd_forward.1} parent=11 // pred_check
          %p660 = pneg %p151
        $region22: #{ihd_forward.1} parent=11 // pred_check_branch
          %662 = sbr.rel (%p660) target = $region24
        $region23: #{ihd_forward.1} parent=11 // pred_region
          _
        $region24: #{ihd_forward.1} parent=11 // pred_fallthru
          _
        // Predicated region
        $region25: #{ihd_forward.1} parent=11 // pred_check
          %p663 = pneg %p172
        $region26: #{ihd_forward.1} parent=11 // pred_check_branch
          %665 = sbr.rel (%p663) target = $region28
        $region27: #{ihd_forward.1} parent=11 // pred_region
          _
        $region28: #{ihd_forward.1} parent=11 // pred_fallthru
          _
        // Predicated region
        $region29: #{ihd_forward.1} parent=11 // pred_check
          %p666 = pneg %p193
        $region30: #{ihd_forward.1} parent=11 // pred_check_branch
          %668 = sbr.rel (%p666) target = $region32
        $region31: #{ihd_forward.1} parent=11 // pred_region
          _
        $region32: #{ihd_forward.1} parent=11 // pred_fallthru
          _
        // Predicated region
        $region33: #{ihd_forward.1} parent=11 // pred_check
          %p669 = pneg %p214
        $region34: #{ihd_forward.1} parent=11 // pred_check_branch
          %671 = sbr.rel (%p669) target = $region36
        $region35: #{ihd_forward.1} parent=11 // pred_region
          _
        $region36: #{ihd_forward.1} parent=11 // pred_fallthru
          _
        // Predicated region
        $region37: #{ihd_forward.1} parent=11 // pred_check
          %p672 = pneg %p235
        $region38: #{ihd_forward.1} parent=11 // pred_check_branch
          %674 = sbr.rel (%p672) target = $region40
        $region39: #{ihd_forward.1} parent=11 // pred_region
          _
        $region40: #{ihd_forward.1} parent=11 // pred_fallthru
          _
        // Predicated region
        $region41: #{ihd_forward.1} parent=11 // pred_check
          %p675 = pneg %p256
        $region42: #{ihd_forward.1} parent=11 // pred_check_branch
          %677 = sbr.rel (%p675) target = $region44
        $region43: #{ihd_forward.1} parent=11 // pred_region
          _
        $region44: #{ihd_forward.1} parent=11 // pred_fallthru
          _
        // Predicated region
        $region45: #{ihd_forward.1} parent=11 // pred_check
          %p678 = pneg %p277
        $region46: #{ihd_forward.1} parent=11 // pred_check_branch
          %680 = sbr.rel (%p678) target = $region48
        $region47: #{ihd_forward.1} parent=11 // pred_region
          _
        $region48: #{ihd_forward.1} parent=11 // pred_fallthru
          _
        // Predicated region
        $region49: #{ihd_forward.1} parent=11 // pred_check
          %p681 = pneg %p298
        $region50: #{ihd_forward.1} parent=11 // pred_check_branch
          %683 = sbr.rel (%p681) target = $region52
        $region51: #{ihd_forward.1} parent=11 // pred_region
          _
        $region52: #{ihd_forward.1} parent=11 // pred_fallthru
          _
        // Predicated region
        $region53: #{ihd_forward.1} parent=11 // pred_check
          %p684 = pneg %p319
        $region54: #{ihd_forward.1} parent=11 // pred_check_branch
          %686 = sbr.rel (%p684) target = $region56
        $region55: #{ihd_forward.1} parent=11 // pred_region
          _
        $region56: #{ihd_forward.1} parent=11 // pred_fallthru
          _
        // Predicated region
        $region57: #{ihd_forward.1} parent=11 // pred_check
          %p687 = pneg %p340
        $region58: #{ihd_forward.1} parent=11 // pred_check_branch
          %689 = sbr.rel (%p687) target = $region60
        $region59: #{ihd_forward.1} parent=11 // pred_region
          _
        $region60: #{ihd_forward.1} parent=11 // pred_fallthru
          _
        // Predicated region
        $region61: #{ihd_forward.1} parent=11 // pred_check
          %p690 = pneg %p361
        $region62: #{ihd_forward.1} parent=11 // pred_check_branch
          %692 = sbr.rel (%p690) target = $region64
        $region63: #{ihd_forward.1} parent=11 // pred_region
          _
        $region64: #{ihd_forward.1} parent=11 // pred_fallthru
          _
        // Predicated region
        $region65: #{ihd_forward.1} parent=11 // pred_check
          %p693 = pneg %p382
        $region66: #{ihd_forward.1} parent=11 // pred_check_branch
          %695 = sbr.rel (%p693) target = $region68
        $region67: #{ihd_forward.1} parent=11 // pred_region
          _
        $region68: #{ihd_forward.1} parent=11 // pred_fallthru
          _
        // Predicated region
        $region69: #{ihd_forward.1} parent=11 // pred_check
          %p696 = pneg %p403
        $region70: #{ihd_forward.1} parent=11 // pred_check_branch
          %698 = sbr.rel (%p696) target = $region72
        $region71: #{ihd_forward.1} parent=11 // pred_region
          _
        $region72: #{ihd_forward.1} parent=11 // pred_fallthru
          _
        // Predicated region
        $region73: #{ihd_forward.1} parent=11 // pred_check
          %p699 = pneg %p424
        $region74: #{ihd_forward.1} parent=11 // pred_check_branch
          %701 = sbr.rel (%p699) target = $region76
        $region75: #{ihd_forward.1} parent=11 // pred_region
          _
        $region76: #{ihd_forward.1} parent=11 // pred_fallthru
          _
        // Predicated region
        $region77: #{ihd_forward.1} parent=11 // pred_check
          %p702 = pneg %p445
        $region78: #{ihd_forward.1} parent=11 // pred_check_branch
          %704 = sbr.rel (%p702) target = $region80
        $region79: #{ihd_forward.1} parent=11 // pred_region
          _
        $region80: #{ihd_forward.1} parent=11 // pred_fallthru
          _
        // Predicated region
        $region81: #{ihd_forward.1} parent=11 // pred_check
          %p705 = pneg %p466
        $region82: #{ihd_forward.1} parent=11 // pred_check_branch
          %707 = sbr.rel (%p705) target = $region84
        $region83: #{ihd_forward.1} parent=11 // pred_region
          _
        $region84: #{ihd_forward.1} parent=11 // pred_fallthru
          _
        // Predicated region
        $region85: #{ihd_forward.1} parent=11 // pred_check
          %p708 = pneg %p487
        $region86: #{ihd_forward.1} parent=11 // pred_check_branch
          %710 = sbr.rel (%p708) target = $region88
        $region87: #{ihd_forward.1} parent=11 // pred_region
          _
        $region88: #{ihd_forward.1} parent=11 // pred_fallthru
          _
        // Predicated region
        $region89: #{ihd_forward.1} parent=11 // pred_check
          %p711 = pneg %p508
        $region90: #{ihd_forward.1} parent=11 // pred_check_branch
          %713 = sbr.rel (%p711) target = $region92
        $region91: #{ihd_forward.1} parent=11 // pred_region
          _
        $region92: #{ihd_forward.1} parent=11 // pred_fallthru
          _
        // Predicated region
        $region93: #{ihd_forward.1} parent=11 // pred_check
          %p714 = pneg %p529
        $region94: #{ihd_forward.1} parent=11 // pred_check_branch
          %716 = sbr.rel (%p714) target = $region96
        $region95: #{ihd_forward.1} parent=11 // pred_region
          _
        $region96: #{ihd_forward.1} parent=11 // pred_fallthru
          _
        // Predicated region
        $region97: #{ihd_forward.1} parent=11 // pred_check
          %p717 = pneg %p550
        $region98: #{ihd_forward.1} parent=11 // pred_check_branch
          %719 = sbr.rel (%p717) target = $region100
        $region99: #{ihd_forward.1} parent=11 // pred_region
          _
        $region100: #{ihd_forward.1} parent=11 // pred_fallthru
          _
        // Predicated region
        $region101: #{ihd_forward.1} parent=11 // pred_check
          %p720 = pneg %p571
        $region102: #{ihd_forward.1} parent=11 // pred_check_branch
          %722 = sbr.rel (%p720) target = $region104
        $region103: #{ihd_forward.1} parent=11 // pred_region
          _
        $region104: #{ihd_forward.1} parent=11 // pred_fallthru
          _
        // Predicated region
        $region105: #{ihd_forward.1} parent=11 // pred_check
          %p723 = pneg %p592
        $region106: #{ihd_forward.1} parent=11 // pred_check_branch
          %725 = sbr.rel (%p723) target = $region108
        $region107: #{ihd_forward.1} parent=11 // pred_region
          _
        $region108: #{ihd_forward.1} parent=11 // pred_fallthru
          _
        // Predicated region
        $region109: #{ihd_forward.1} parent=11 // pred_check
          %p726 = pneg %p613
        $region110: #{ihd_forward.1} parent=11 // pred_check_branch
          %728 = sbr.rel (%p726) target = $region112
        $region111: #{ihd_forward.1} parent=11 // pred_region
          _
        $region112: #{ihd_forward.1} parent=11 // pred_fallthru
          _
      $region12: #{ihd_forward.1} parent=5 // pred_fallthru
        _
      %p729 = scmp.lt.s32.totalorder %s36, 2
      // Predicated region
      $region113: #{ihd_forward.1} parent=5 // pred_check
        %p730 = pneg %p729
      $region114: #{ihd_forward.1} parent=5 // pred_check_branch
        %732 = sbr.rel (%p730) target = $region116
      $region115: #{ihd_forward.1} parent=5 // pred_region
        // Predicated region
        $region117: #{ihd_forward.1} parent=115 // pred_check
          %p733 = pneg %p56
        $region118: #{ihd_forward.1} parent=115 // pred_check_branch
          %735 = sbr.rel (%p733) target = $region120
        $region119: #{ihd_forward.1} parent=115 // pred_region
          %p736 = scmp.lt.s32.totalorder %s36, 1
          %s737 = scalar_select %p736, %s36, 1
          %s738 = smul.addr %s737, 8
          %s739 = scalar_lea.vmem %s0, %s738
        $region120: #{ihd_forward.1} parent=115 // pred_fallthru
          _
        // Predicated region
        $region121: #{ihd_forward.1} parent=115 // pred_check
          %p740 = pneg %p103
        $region122: #{ihd_forward.1} parent=115 // pred_check_branch
          %742 = sbr.rel (%p740) target = $region124
        $region123: #{ihd_forward.1} parent=115 // pred_region
          %p743 = scmp.lt.s32.totalorder %s36, 1
          %s744 = scalar_select %p743, %s36, 1
          %s745 = scalar_lea.vmem %s2, %s744
        $region124: #{ihd_forward.1} parent=115 // pred_fallthru
          _
      $region116: #{ihd_forward.1} parent=5 // pred_fallthru
        _
      %p746 = scmp.le.s32.totalorder 1, %s36
      %p747 = scmp.lt.s32.totalorder %s36, 3
      %p748 = pnand %p746, %p747
      %p749 = pneg %p748
      // Predicated region
      $region125: #{ihd_forward.1} parent=5 // pred_check
        _
      $region126: #{ihd_forward.1} parent=5 // pred_check_branch
        %751 = sbr.rel (%p748) target = $region128
      $region127: #{ihd_forward.1} parent=5 // pred_region
        %s752 = ssub.s32 %s36, 1
        %p753 = scmp.lt.s32.totalorder %s41, 1
        %s754 = scalar_select %p753, %s41, 1
        %s755 = smul.addr %s754, 8
        %s756 = scalar_lea.vmem %s0, %s755
        %p757 = pneg %p62
        %p758 = pneg %p59
        %p759 = pneg %p83
        %p760 = pneg %p80
        %p761 = scmp.lt.s32.totalorder %s41, 1
        %s762 = scalar_select %p761, %s41, 1
        %s763 = scalar_lea.vmem %s2, %s762
        %p764 = pneg %p109
        %p765 = pneg %p106
        %p766 = pneg %p130
        %p767 = pneg %p127
        %p768 = pneg %p151
        %p769 = pneg %p148
        %p770 = pneg %p172
        %p771 = pneg %p169
        %p772 = pneg %p193
        %p773 = pneg %p190
        %p774 = pneg %p214
        %p775 = pneg %p211
        %p776 = pneg %p235
        %p777 = pneg %p232
        %p778 = pneg %p256
        %p779 = pneg %p253
        %p780 = pneg %p277
        %p781 = pneg %p274
        %p782 = pneg %p298
        %p783 = pneg %p295
        %p784 = pneg %p319
        %p785 = pneg %p316
        %p786 = pneg %p340
        %p787 = pneg %p337
        %p788 = pneg %p361
        %p789 = pneg %p358
        %p790 = pneg %p382
        %p791 = pneg %p379
        %p792 = pneg %p403
        %p793 = pneg %p400
        %p794 = pneg %p424
        %p795 = pneg %p421
        %p796 = pneg %p445
        %p797 = pneg %p442
        %p798 = pneg %p466
        %p799 = pneg %p463
        %p800 = pneg %p487
        %p801 = pneg %p484
        %p802 = pneg %p508
        %p803 = pneg %p505
        %p804 = pneg %p529
        %p805 = pneg %p526
        %p806 = pneg %p550
        %p807 = pneg %p547
        %p808 = pneg %p571
        %p809 = pneg %p568
        %p810 = pneg %p592
        %p811 = pneg %p589
        %p812 = pneg %p613
        %p813 = pneg %p610
        %p814 = pneg %p639
        %p815 = pneg %p636
        %s816 = sand.u32 %s626, 1
        %s817 = scalar_lea.sflag [#allocation3], %s816
        %s818 = sand.u32 %s626, 1
        %s819 = scalar_lea.vmem [#allocation2], %s818
        %p820 = scmp.lt.s32.totalorder %s41, 1
        %s821 = scalar_select %p820, %s41, 1
        %s822 = smul.addr %s821, 8
        %s823 = scalar_lea.vmem %s0, %s822
        %p824 = scmp.lt.s32.totalorder %s41, 1
        %s825 = scalar_select %p824, %s41, 1
        %s826 = scalar_lea.vmem %s2, %s825
        %v827 = vld [vmem:[%s823] sm:$0xff]
        %v828 = vld [vmem:[%s1] sm:$0xff]
        %v829 = vadd.f32 %v827, %v828
        %v830 = vld [vmem:[%s3] sm:$0x1]
        %v831 = vld [vmem:[%s4] sm:$0x1]
        %vm832 = vcmask 523264
        %v833 = vsel %vm832, %v829, 0.0
        %834 = vadd.xlane.f32.xlu0 %v833
        %v835 = vpop.xlane.xlu0 %834
        %v836 = vrcp.pop 64.0
        %v837 = vmul.f32 %v835, %v836
        %v838 = vsub.f32 %v829, %v837
        %v839 = vmul.f32 %v838, %v838
        %v840 = vsel %vm832, %v839, 0.0
        %841 = vadd.xlane.f32.xlu0 %v840
        %v842 = vpop.xlane.xlu0 %841
        %v843 = vmul.f32 %v842, %v836
        %v844 = vadd.f32 %v843, 1e-12
        %v845 = vrsqrt.pop %v844
        %v846 = vmul.f32 %v838, %v845
        %v848 = vlaneseq
        %v849 = vshrl.u32 %v848, 7
        %v850 = vsub.s32 0, %v849
        %v851 = vrot.slane %v830, %v850
        %v853 = vmul.f32 %v846, %v851
        %v855 = vlaneseq
        %v856 = vshrl.u32 %v855, 7
        %v857 = vsub.s32 0, %v856
        %v858 = vrot.slane %v831, %v857
        %v860 = vadd.f32 %v853, %v858
        %v861 = vld [vmem:[%s826] sm:$0x1]
        %v862 = vld [vmem:[%s5] sm:$0xff]
        %v863 = vld [vmem:[%s5 + $0x8] sm:$0xff]
        %v864 = vld [vmem:[%s5 + $0x10] sm:$0xff]
        %v865 = vld [vmem:[%s5 + $0x18] sm:$0xff]
        %v866 = vld [vmem:[%s5 + $0x20] sm:$0xff]
        %v867 = vld [vmem:[%s5 + $0x28] sm:$0xff]
        %v868 = vld [vmem:[%s5 + $0x30] sm:$0xff]
        %v869 = vld [vmem:[%s5 + $0x38] sm:$0xff]
        %v870 = vld [vmem:[%s5 + $0x40] sm:$0xff]
        %v871 = vld [vmem:[%s5 + $0x48] sm:$0xff]
        %v872 = vld [vmem:[%s5 + $0x50] sm:$0xff]
        %v873 = vld [vmem:[%s5 + $0x58] sm:$0xff]
        %v874 = vld [vmem:[%s5 + $0x60] sm:$0xff]
        %v875 = vld [vmem:[%s5 + $0x68] sm:$0xff]
        %v876 = vld [vmem:[%s5 + $0x70] sm:$0xff]
        %v877 = vld [vmem:[%s5 + $0x78] sm:$0xff]
        %v878 = vld [vmem:[%s5 + $0x80] sm:$0xff]
        %v879 = vld [vmem:[%s5 + $0x88] sm:$0xff]
        %v880 = vld [vmem:[%s5 + $0x90] sm:$0xff]
        %v881 = vld [vmem:[%s5 + $0x98] sm:$0xff]
        %v882 = vld [vmem:[%s5 + $0xa0] sm:$0xff]
        %v883 = vld [vmem:[%s5 + $0xa8] sm:$0xff]
        %v884 = vld [vmem:[%s5 + $0xb0] sm:$0xff]
        %v885 = vld [vmem:[%s5 + $0xb8] sm:$0xff]
        %v886 = vld [vmem:[%s5 + $0xc0] sm:$0xff]
        %v887 = vld [vmem:[%s5 + $0xc8] sm:$0xff]
        %v888 = vld [vmem:[%s5 + $0xd0] sm:$0xff]
        %v889 = vld [vmem:[%s5 + $0xd8] sm:$0xff]
        %v890 = vld [vmem:[%s5 + $0xe0] sm:$0xff]
        %v891 = vld [vmem:[%s5 + $0xe8] sm:$0xff]
        %v892 = vld [vmem:[%s5 + $0xf0] sm:$0xff]
        %v893 = vld [vmem:[%s5 + $0xf8] sm:$0xff]
        %v894 = vld [vmem:[%s6] sm:$0x1]
        %v895 = vld [vmem:[%s6 + $0x1] sm:$0x1]
        %v896 = vld [vmem:[%s6 + $0x2] sm:$0x1]
        %v897 = vld [vmem:[%s6 + $0x3] sm:$0x1]
        %v902 = vlaneseq
        %v903 = vshrl.u32 %v902, 7
        %v904 = vsub.s32 0, %v903
        %v905 = vrot.slane %v894, %v904
        %v906 = vlaneseq
        %v907 = vshrl.u32 %v906, 7
        %v908 = vsub.s32 0, %v907
        %v909 = vrot.slane %v895, %v908
        %v910 = vlaneseq
        %v911 = vshrl.u32 %v910, 7
        %v912 = vsub.s32 0, %v911
        %v913 = vrot.slane %v896, %v912
        %v914 = vlaneseq
        %v915 = vshrl.u32 %v914, 7
        %v916 = vsub.s32 0, %v915
        %v917 = vrot.slane %v897, %v916
        %v923 = vsel %vm832, %v860, 0
        %925 = vmatprep.subr.mxu0 0.0
        %926 = vmatpush1.msra.mxu0 0.0
        %927 = vmatprep.subr.mxu0 0.0
        %928 = vmatpush1.msra.mxu0 0.0
        %929 = vmatprep.subr.mxu0 0.0
        %930 = vmatpush1.msra.mxu0 0.0
        %931 = vmatprep.subr.mxu0 0.0
        %932 = vmatpush1.msra.mxu0 0.0
        %933 = vmatprep.subr.mxu0 0.0
        %934 = vmatpush1.msra.mxu0 0.0
        %935 = vmatprep.subr.mxu0 0.0
        %936 = vmatpush1.msra.mxu0 0.0
        %937 = vmatprep.subr.mxu0 0.0
        %938 = vmatpush1.msra.mxu0 0.0
        %939 = vmatprep.subr.mxu0 0.0
        %940 = vmatpush1.msra.mxu0 0.0
        %941 = vmatprep.subr.mxu0 0.0
        %942 = vmatpush1.msra.mxu0 %v869
        %943 = vmatprep.subr.mxu0 0.0
        %944 = vmatpush1.msra.mxu0 %v868
        %945 = vmatprep.subr.mxu0 0.0
        %946 = vmatpush1.msra.mxu0 %v867
        %947 = vmatprep.subr.mxu0 0.0
        %948 = vmatpush1.msra.mxu0 %v866
        %949 = vmatprep.subr.mxu0 0.0
        %950 = vmatpush1.msra.mxu0 %v865
        %951 = vmatprep.subr.mxu0 0.0
        %952 = vmatpush1.msra.mxu0 %v864
        %953 = vmatprep.subr.mxu0 0.0
        %954 = vmatpush1.msra.mxu0 %v863
        %955 = vmatprep.subr.mxu0 0.0
        %956 = vmatpush1.msra.mxu0 %v862
        %957 = vmatprep.subr.mxu0 0.0
        %958 = vmatpush2.msra.mxu0 0.0
        %959 = vmatprep.subr.mxu0 0.0
        %960 = vmatpush2.msra.mxu0 0.0
        %961 = vmatprep.subr.mxu0 0.0
        %962 = vmatpush2.msra.mxu0 0.0
        %963 = vmatprep.subr.mxu0 0.0
        %964 = vmatpush2.msra.mxu0 0.0
        %965 = vmatprep.subr.mxu0 0.0
        %966 = vmatpush2.msra.mxu0 0.0
        %967 = vmatprep.subr.mxu0 0.0
        %968 = vmatpush2.msra.mxu0 0.0
        %969 = vmatprep.subr.mxu0 0.0
        %970 = vmatpush2.msra.mxu0 0.0
        %971 = vmatprep.subr.mxu0 0.0
        %972 = vmatpush2.msra.mxu0 0.0
        %973 = vmatprep.subr.mxu0 0.0
        %974 = vmatpush2.msra.mxu0 0.0
        %975 = vmatprep.subr.mxu0 0.0
        %976 = vmatpush2.msra.mxu0 0.0
        %977 = vmatprep.subr.mxu0 0.0
        %978 = vmatpush2.msra.mxu0 0.0
        %979 = vmatprep.subr.mxu0 0.0
        %980 = vmatpush2.msra.mxu0 0.0
        %981 = vmatprep.subr.mxu0 0.0
        %982 = vmatpush2.msra.mxu0 0.0
        %983 = vmatprep.subr.mxu0 0.0
        %984 = vmatpush2.msra.mxu0 0.0
        %985 = vmatprep.subr.mxu0 0.0
        %986 = vmatpush2.msra.mxu0 0.0
        %987 = vmatprep.subr.mxu0 0.0
        %988 = vmatpush2.msra.mxu0 0.0
        %989 = vmatprep.mubr.f32.mxu0 0.0
        %990 = vmatmul.mubr.f32.gmra.mxu0 %v923
        %v991 = vpop.f32.mrf.mxu0
        %v992 = vadd.f32 %v905, %v991
        %v993 = vpop.f32.mrf.mxu0
        %994 = vdwg.mxu0
        %995 = vmatprep.subr.mxu0 0.0
        %996 = vmatpush1.msra.mxu0 0.0
        %997 = vmatprep.subr.mxu0 0.0
        %998 = vmatpush1.msra.mxu0 0.0
        %999 = vmatprep.subr.mxu0 0.0
        %1000 = vmatpush1.msra.mxu0 0.0
        %1001 = vmatprep.subr.mxu0 0.0
        %1002 = vmatpush1.msra.mxu0 0.0
        %1003 = vmatprep.subr.mxu0 0.0
        %1004 = vmatpush1.msra.mxu0 0.0
        %1005 = vmatprep.subr.mxu0 0.0
        %1006 = vmatpush1.msra.mxu0 0.0
        %1007 = vmatprep.subr.mxu0 0.0
        %1008 = vmatpush1.msra.mxu0 0.0
        %1009 = vmatprep.subr.mxu0 0.0
        %1010 = vmatpush1.msra.mxu0 0.0
        %1011 = vmatprep.subr.mxu0 0.0
        %1012 = vmatpush1.msra.mxu0 %v877
        %1013 = vmatprep.subr.mxu0 0.0
        %1014 = vmatpush1.msra.mxu0 %v876
        %1015 = vmatprep.subr.mxu0 0.0
        %1016 = vmatpush1.msra.mxu0 %v875
        %1017 = vmatprep.subr.mxu0 0.0
        %1018 = vmatpush1.msra.mxu0 %v874
        %1019 = vmatprep.subr.mxu0 0.0
        %1020 = vmatpush1.msra.mxu0 %v873
        %1021 = vmatprep.subr.mxu0 0.0
        %1022 = vmatpush1.msra.mxu0 %v872
        %1023 = vmatprep.subr.mxu0 0.0
        %1024 = vmatpush1.msra.mxu0 %v871
        %1025 = vmatprep.subr.mxu0 0.0
        %1026 = vmatpush1.msra.mxu0 %v870
        %1027 = vmatprep.subr.mxu0 0.0
        %1028 = vmatpush2.msra.mxu0 0.0
        %1029 = vmatprep.subr.mxu0 0.0
        %1030 = vmatpush2.msra.mxu0 0.0
        %1031 = vmatprep.subr.mxu0 0.0
        %1032 = vmatpush2.msra.mxu0 0.0
        %1033 = vmatprep.subr.mxu0 0.0
        %1034 = vmatpush2.msra.mxu0 0.0
        %1035 = vmatprep.subr.mxu0 0.0
        %1036 = vmatpush2.msra.mxu0 0.0
        %1037 = vmatprep.subr.mxu0 0.0
        %1038 = vmatpush2.msra.mxu0 0.0
        %1039 = vmatprep.subr.mxu0 0.0
        %1040 = vmatpush2.msra.mxu0 0.0
        %1041 = vmatprep.subr.mxu0 0.0
        %1042 = vmatpush2.msra.mxu0 0.0
        %1043 = vmatprep.subr.mxu0 0.0
        %1044 = vmatpush2.msra.mxu0 0.0
        %1045 = vmatprep.subr.mxu0 0.0
        %1046 = vmatpush2.msra.mxu0 0.0
        %1047 = vmatprep.subr.mxu0 0.0
        %1048 = vmatpush2.msra.mxu0 0.0
        %1049 = vmatprep.subr.mxu0 0.0
        %1050 = vmatpush2.msra.mxu0 0.0
        %1051 = vmatprep.subr.mxu0 0.0
        %1052 = vmatpush2.msra.mxu0 0.0
        %1053 = vmatprep.subr.mxu0 0.0
        %1054 = vmatpush2.msra.mxu0 0.0
        %1055 = vmatprep.subr.mxu0 0.0
        %1056 = vmatpush2.msra.mxu0 0.0
        %1057 = vmatprep.subr.mxu0 0.0
        %1058 = vmatpush2.msra.mxu0 0.0
        %1059 = vmatprep.mubr.f32.mxu0 0.0
        %1060 = vmatmul.mubr.f32.gmra.mxu0 %v923
        %v1061 = vpop.f32.mrf.mxu0
        %v1062 = vadd.f32 %v909, %v1061
        %v1063 = vpop.f32.mrf.mxu0
        %1064 = vdwg.mxu0
        %1065 = vmatprep.subr.mxu0 0.0
        %1066 = vmatpush1.msra.mxu0 0.0
        %1067 = vmatprep.subr.mxu0 0.0
        %1068 = vmatpush1.msra.mxu0 0.0
        %1069 = vmatprep.subr.mxu0 0.0
        %1070 = vmatpush1.msra.mxu0 0.0
        %1071 = vmatprep.subr.mxu0 0.0
        %1072 = vmatpush1.msra.mxu0 0.0
        %1073 = vmatprep.subr.mxu0 0.0
        %1074 = vmatpush1.msra.mxu0 0.0
        %1075 = vmatprep.subr.mxu0 0.0
        %1076 = vmatpush1.msra.mxu0 0.0
        %1077 = vmatprep.subr.mxu0 0.0
        %1078 = vmatpush1.msra.mxu0 0.0
        %1079 = vmatprep.subr.mxu0 0.0
        %1080 = vmatpush1.msra.mxu0 0.0
        %1081 = vmatprep.subr.mxu0 0.0
        %1082 = vmatpush1.msra.mxu0 %v885
        %1083 = vmatprep.subr.mxu0 0.0
        %1084 = vmatpush1.msra.mxu0 %v884
        %1085 = vmatprep.subr.mxu0 0.0
        %1086 = vmatpush1.msra.mxu0 %v883
        %1087 = vmatprep.subr.mxu0 0.0
        %1088 = vmatpush1.msra.mxu0 %v882
        %1089 = vmatprep.subr.mxu0 0.0
        %1090 = vmatpush1.msra.mxu0 %v881
        %1091 = vmatprep.subr.mxu0 0.0
        %1092 = vmatpush1.msra.mxu0 %v880
        %1093 = vmatprep.subr.mxu0 0.0
        %1094 = vmatpush1.msra.mxu0 %v879
        %1095 = vmatprep.subr.mxu0 0.0
        %1096 = vmatpush1.msra.mxu0 %v878
        %1097 = vmatprep.subr.mxu0 0.0
        %1098 = vmatpush2.msra.mxu0 0.0
        %1099 = vmatprep.subr.mxu0 0.0
        %1100 = vmatpush2.msra.mxu0 0.0
        %1101 = vmatprep.subr.mxu0 0.0
        %1102 = vmatpush2.msra.mxu0 0.0
        %1103 = vmatprep.subr.mxu0 0.0
        %1104 = vmatpush2.msra.mxu0 0.0
        %1105 = vmatprep.subr.mxu0 0.0
        %1106 = vmatpush2.msra.mxu0 0.0
        %1107 = vmatprep.subr.mxu0 0.0
        %1108 = vmatpush2.msra.mxu0 0.0
        %1109 = vmatprep.subr.mxu0 0.0
        %1110 = vmatpush2.msra.mxu0 0.0
        %1111 = vmatprep.subr.mxu0 0.0
        %1112 = vmatpush2.msra.mxu0 0.0
        %1113 = vmatprep.subr.mxu0 0.0
        %1114 = vmatpush2.msra.mxu0 0.0
        %1115 = vmatprep.subr.mxu0 0.0
        %1116 = vmatpush2.msra.mxu0 0.0
        %1117 = vmatprep.subr.mxu0 0.0
        %1118 = vmatpush2.msra.mxu0 0.0
        %1119 = vmatprep.subr.mxu0 0.0
        %1120 = vmatpush2.msra.mxu0 0.0
        %1121 = vmatprep.subr.mxu0 0.0
        %1122 = vmatpush2.msra.mxu0 0.0
        %1123 = vmatprep.subr.mxu0 0.0
        %1124 = vmatpush2.msra.mxu0 0.0
        %1125 = vmatprep.subr.mxu0 0.0
        %1126 = vmatpush2.msra.mxu0 0.0
        %1127 = vmatprep.subr.mxu0 0.0
        %1128 = vmatpush2.msra.mxu0 0.0
        %1129 = vmatprep.mubr.f32.mxu0 0.0
        %1130 = vmatmul.mubr.f32.gmra.mxu0 %v923
        %v1131 = vpop.f32.mrf.mxu0
        %v1132 = vadd.f32 %v913, %v1131
        %v1133 = vpop.f32.mrf.mxu0
        %1134 = vdwg.mxu0
        %1135 = vmatprep.subr.mxu0 0.0
        %1136 = vmatpush1.msra.mxu0 0.0
        %1137 = vmatprep.subr.mxu0 0.0
        %1138 = vmatpush1.msra.mxu0 0.0
        %1139 = vmatprep.subr.mxu0 0.0
        %1140 = vmatpush1.msra.mxu0 0.0
        %1141 = vmatprep.subr.mxu0 0.0
        %1142 = vmatpush1.msra.mxu0 0.0
        %1143 = vmatprep.subr.mxu0 0.0
        %1144 = vmatpush1.msra.mxu0 0.0
        %1145 = vmatprep.subr.mxu0 0.0
        %1146 = vmatpush1.msra.mxu0 0.0
        %1147 = vmatprep.subr.mxu0 0.0
        %1148 = vmatpush1.msra.mxu0 0.0
        %1149 = vmatprep.subr.mxu0 0.0
        %1150 = vmatpush1.msra.mxu0 0.0
        %1151 = vmatprep.subr.mxu0 0.0
        %1152 = vmatpush1.msra.mxu0 %v893
        %1153 = vmatprep.subr.mxu0 0.0
        %1154 = vmatpush1.msra.mxu0 %v892
        %1155 = vmatprep.subr.mxu0 0.0
        %1156 = vmatpush1.msra.mxu0 %v891
        %1157 = vmatprep.subr.mxu0 0.0
        %1158 = vmatpush1.msra.mxu0 %v890
        %1159 = vmatprep.subr.mxu0 0.0
        %1160 = vmatpush1.msra.mxu0 %v889
        %1161 = vmatprep.subr.mxu0 0.0
        %1162 = vmatpush1.msra.mxu0 %v888
        %1163 = vmatprep.subr.mxu0 0.0
        %1164 = vmatpush1.msra.mxu0 %v887
        %1165 = vmatprep.subr.mxu0 0.0
        %1166 = vmatpush1.msra.mxu0 %v886
        %1167 = vmatprep.subr.mxu0 0.0
        %1168 = vmatpush2.msra.mxu0 0.0
        %1169 = vmatprep.subr.mxu0 0.0
        %1170 = vmatpush2.msra.mxu0 0.0
        %1171 = vmatprep.subr.mxu0 0.0
        %1172 = vmatpush2.msra.mxu0 0.0
        %1173 = vmatprep.subr.mxu0 0.0
        %1174 = vmatpush2.msra.mxu0 0.0
        %1175 = vmatprep.subr.mxu0 0.0
        %1176 = vmatpush2.msra.mxu0 0.0
        %1177 = vmatprep.subr.mxu0 0.0
        %1178 = vmatpush2.msra.mxu0 0.0
        %1179 = vmatprep.subr.mxu0 0.0
        %1180 = vmatpush2.msra.mxu0 0.0
        %1181 = vmatprep.subr.mxu0 0.0
        %1182 = vmatpush2.msra.mxu0 0.0
        %1183 = vmatprep.subr.mxu0 0.0
        %1184 = vmatpush2.msra.mxu0 0.0
        %1185 = vmatprep.subr.mxu0 0.0
        %1186 = vmatpush2.msra.mxu0 0.0
        %1187 = vmatprep.subr.mxu0 0.0
        %1188 = vmatpush2.msra.mxu0 0.0
        %1189 = vmatprep.subr.mxu0 0.0
        %1190 = vmatpush2.msra.mxu0 0.0
        %1191 = vmatprep.subr.mxu0 0.0
        %1192 = vmatpush2.msra.mxu0 0.0
        %1193 = vmatprep.subr.mxu0 0.0
        %1194 = vmatpush2.msra.mxu0 0.0
        %1195 = vmatprep.subr.mxu0 0.0
        %1196 = vmatpush2.msra.mxu0 0.0
        %1197 = vmatprep.subr.mxu0 0.0
        %1198 = vmatpush2.msra.mxu0 0.0
        %1199 = vmatprep.mubr.f32.mxu0 0.0
        %1200 = vmatmul.mubr.f32.gmra.mxu0 %v923
        %v1201 = vpop.f32.mrf.mxu0
        %v1202 = vadd.f32 %v917, %v1201
        %v1203 = vpop.f32.mrf.mxu0
        %1204 = vdwg.mxu0
        %v1205 = vld [vmem:[%s7] sm:$0xff]
        %v1206 = vld [vmem:[%s7 + $0x8] sm:$0xff]
        %v1207 = vld [vmem:[%s7 + $0x10] sm:$0xff]
        %v1208 = vld [vmem:[%s7 + $0x18] sm:$0xff]
        %v1209 = vld [vmem:[%s7 + $0x20] sm:$0xff]
        %v1210 = vld [vmem:[%s7 + $0x28] sm:$0xff]
        %v1211 = vld [vmem:[%s7 + $0x30] sm:$0xff]
        %v1212 = vld [vmem:[%s7 + $0x38] sm:$0xff]
        %v1213 = vld [vmem:[%s7 + $0x40] sm:$0xff]
        %v1214 = vld [vmem:[%s7 + $0x48] sm:$0xff]
        %v1215 = vld [vmem:[%s7 + $0x50] sm:$0xff]
        %v1216 = vld [vmem:[%s7 + $0x58] sm:$0xff]
        %v1217 = vld [vmem:[%s7 + $0x60] sm:$0xff]
        %v1218 = vld [vmem:[%s7 + $0x68] sm:$0xff]
        %v1219 = vld [vmem:[%s7 + $0x70] sm:$0xff]
        %v1220 = vld [vmem:[%s7 + $0x78] sm:$0xff]
        %v1221 = vld [vmem:[%s7 + $0x80] sm:$0xff]
        %v1222 = vld [vmem:[%s7 + $0x88] sm:$0xff]
        %v1223 = vld [vmem:[%s7 + $0x90] sm:$0xff]
        %v1224 = vld [vmem:[%s7 + $0x98] sm:$0xff]
        %v1225 = vld [vmem:[%s7 + $0xa0] sm:$0xff]
        %v1226 = vld [vmem:[%s7 + $0xa8] sm:$0xff]
        %v1227 = vld [vmem:[%s7 + $0xb0] sm:$0xff]
        %v1228 = vld [vmem:[%s7 + $0xb8] sm:$0xff]
        %v1229 = vld [vmem:[%s7 + $0xc0] sm:$0xff]
        %v1230 = vld [vmem:[%s7 + $0xc8] sm:$0xff]
        %v1231 = vld [vmem:[%s7 + $0xd0] sm:$0xff]
        %v1232 = vld [vmem:[%s7 + $0xd8] sm:$0xff]
        %v1233 = vld [vmem:[%s7 + $0xe0] sm:$0xff]
        %v1234 = vld [vmem:[%s7 + $0xe8] sm:$0xff]
        %v1235 = vld [vmem:[%s7 + $0xf0] sm:$0xff]
        %v1236 = vld [vmem:[%s7 + $0xf8] sm:$0xff]
        %v1237 = vld [vmem:[%s8] sm:$0x1]
        %v1238 = vld [vmem:[%s8 + $0x1] sm:$0x1]
        %v1239 = vld [vmem:[%s8 + $0x2] sm:$0x1]
        %v1240 = vld [vmem:[%s8 + $0x3] sm:$0x1]
        %v1245 = vlaneseq
        %v1246 = vshrl.u32 %v1245, 7
        %v1247 = vsub.s32 0, %v1246
        %v1248 = vrot.slane %v1237, %v1247
        %v1249 = vlaneseq
        %v1250 = vshrl.u32 %v1249, 7
        %v1251 = vsub.s32 0, %v1250
        %v1252 = vrot.slane %v1238, %v1251
        %v1253 = vlaneseq
        %v1254 = vshrl.u32 %v1253, 7
        %v1255 = vsub.s32 0, %v1254
        %v1256 = vrot.slane %v1239, %v1255
        %v1257 = vlaneseq
        %v1258 = vshrl.u32 %v1257, 7
        %v1259 = vsub.s32 0, %v1258
        %v1260 = vrot.slane %v1240, %v1259
        %1265 = vmatprep.subr.mxu0 0.0
        %1266 = vmatpush1.msra.mxu0 0.0
        %1267 = vmatprep.subr.mxu0 0.0
        %1268 = vmatpush1.msra.mxu0 0.0
        %1269 = vmatprep.subr.mxu0 0.0
        %1270 = vmatpush1.msra.mxu0 0.0
        %1271 = vmatprep.subr.mxu0 0.0
        %1272 = vmatpush1.msra.mxu0 0.0
        %1273 = vmatprep.subr.mxu0 0.0
        %1274 = vmatpush1.msra.mxu0 0.0
        %1275 = vmatprep.subr.mxu0 0.0
        %1276 = vmatpush1.msra.mxu0 0.0
        %1277 = vmatprep.subr.mxu0 0.0
        %1278 = vmatpush1.msra.mxu0 0.0
        %1279 = vmatprep.subr.mxu0 0.0
        %1280 = vmatpush1.msra.mxu0 0.0
        %1281 = vmatprep.subr.mxu0 0.0
        %1282 = vmatpush1.msra.mxu0 %v1212
        %1283 = vmatprep.subr.mxu0 0.0
        %1284 = vmatpush1.msra.mxu0 %v1211
        %1285 = vmatprep.subr.mxu0 0.0
        %1286 = vmatpush1.msra.mxu0 %v1210
        %1287 = vmatprep.subr.mxu0 0.0
        %1288 = vmatpush1.msra.mxu0 %v1209
        %1289 = vmatprep.subr.mxu0 0.0
        %1290 = vmatpush1.msra.mxu0 %v1208
        %1291 = vmatprep.subr.mxu0 0.0
        %1292 = vmatpush1.msra.mxu0 %v1207
        %1293 = vmatprep.subr.mxu0 0.0
        %1294 = vmatpush1.msra.mxu0 %v1206
        %1295 = vmatprep.subr.mxu0 0.0
        %1296 = vmatpush1.msra.mxu0 %v1205
        %1297 = vmatprep.subr.mxu0 0.0
        %1298 = vmatpush2.msra.mxu0 0.0
        %1299 = vmatprep.subr.mxu0 0.0
        %1300 = vmatpush2.msra.mxu0 0.0
        %1301 = vmatprep.subr.mxu0 0.0
        %1302 = vmatpush2.msra.mxu0 0.0
        %1303 = vmatprep.subr.mxu0 0.0
        %1304 = vmatpush2.msra.mxu0 0.0
        %1305 = vmatprep.subr.mxu0 0.0
        %1306 = vmatpush2.msra.mxu0 0.0
        %1307 = vmatprep.subr.mxu0 0.0
        %1308 = vmatpush2.msra.mxu0 0.0
        %1309 = vmatprep.subr.mxu0 0.0
        %1310 = vmatpush2.msra.mxu0 0.0
        %1311 = vmatprep.subr.mxu0 0.0
        %1312 = vmatpush2.msra.mxu0 0.0
        %1313 = vmatprep.subr.mxu0 0.0
        %1314 = vmatpush2.msra.mxu0 0.0
        %1315 = vmatprep.subr.mxu0 0.0
        %1316 = vmatpush2.msra.mxu0 0.0
        %1317 = vmatprep.subr.mxu0 0.0
        %1318 = vmatpush2.msra.mxu0 0.0
        %1319 = vmatprep.subr.mxu0 0.0
        %1320 = vmatpush2.msra.mxu0 0.0
        %1321 = vmatprep.subr.mxu0 0.0
        %1322 = vmatpush2.msra.mxu0 0.0
        %1323 = vmatprep.subr.mxu0 0.0
        %1324 = vmatpush2.msra.mxu0 0.0
        %1325 = vmatprep.subr.mxu0 0.0
        %1326 = vmatpush2.msra.mxu0 0.0
        %1327 = vmatprep.subr.mxu0 0.0
        %1328 = vmatpush2.msra.mxu0 0.0
        %1329 = vmatprep.mubr.f32.mxu0 0.0
        %1330 = vmatmul.mubr.f32.gmra.mxu0 %v923
        %v1331 = vpop.f32.mrf.mxu0
        %v1332 = vadd.f32 %v1248, %v1331
        %v1333 = vpop.f32.mrf.mxu0
        %1334 = vdwg.mxu0
        %1335 = vmatprep.subr.mxu0 0.0
        %1336 = vmatpush1.msra.mxu0 0.0
        %1337 = vmatprep.subr.mxu0 0.0
        %1338 = vmatpush1.msra.mxu0 0.0
        %1339 = vmatprep.subr.mxu0 0.0
        %1340 = vmatpush1.msra.mxu0 0.0
        %1341 = vmatprep.subr.mxu0 0.0
        %1342 = vmatpush1.msra.mxu0 0.0
        %1343 = vmatprep.subr.mxu0 0.0
        %1344 = vmatpush1.msra.mxu0 0.0
        %1345 = vmatprep.subr.mxu0 0.0
        %1346 = vmatpush1.msra.mxu0 0.0
        %1347 = vmatprep.subr.mxu0 0.0
        %1348 = vmatpush1.msra.mxu0 0.0
        %1349 = vmatprep.subr.mxu0 0.0
        %1350 = vmatpush1.msra.mxu0 0.0
        %1351 = vmatprep.subr.mxu0 0.0
        %1352 = vmatpush1.msra.mxu0 %v1220
        %1353 = vmatprep.subr.mxu0 0.0
        %1354 = vmatpush1.msra.mxu0 %v1219
        %1355 = vmatprep.subr.mxu0 0.0
        %1356 = vmatpush1.msra.mxu0 %v1218
        %1357 = vmatprep.subr.mxu0 0.0
        %1358 = vmatpush1.msra.mxu0 %v1217
        %1359 = vmatprep.subr.mxu0 0.0
        %1360 = vmatpush1.msra.mxu0 %v1216
        %1361 = vmatprep.subr.mxu0 0.0
        %1362 = vmatpush1.msra.mxu0 %v1215
        %1363 = vmatprep.subr.mxu0 0.0
        %1364 = vmatpush1.msra.mxu0 %v1214
        %1365 = vmatprep.subr.mxu0 0.0
        %1366 = vmatpush1.msra.mxu0 %v1213
        %1367 = vmatprep.subr.mxu0 0.0
        %1368 = vmatpush2.msra.mxu0 0.0
        %1369 = vmatprep.subr.mxu0 0.0
        %1370 = vmatpush2.msra.mxu0 0.0
        %1371 = vmatprep.subr.mxu0 0.0
        %1372 = vmatpush2.msra.mxu0 0.0
        %1373 = vmatprep.subr.mxu0 0.0
        %1374 = vmatpush2.msra.mxu0 0.0
        %1375 = vmatprep.subr.mxu0 0.0
        %1376 = vmatpush2.msra.mxu0 0.0
        %1377 = vmatprep.subr.mxu0 0.0
        %1378 = vmatpush2.msra.mxu0 0.0
        %1379 = vmatprep.subr.mxu0 0.0
        %1380 = vmatpush2.msra.mxu0 0.0
        %1381 = vmatprep.subr.mxu0 0.0
        %1382 = vmatpush2.msra.mxu0 0.0
        %1383 = vmatprep.subr.mxu0 0.0
        %1384 = vmatpush2.msra.mxu0 0.0
        %1385 = vmatprep.subr.mxu0 0.0
        %1386 = vmatpush2.msra.mxu0 0.0
        %1387 = vmatprep.subr.mxu0 0.0
        %1388 = vmatpush2.msra.mxu0 0.0
        %1389 = vmatprep.subr.mxu0 0.0
        %1390 = vmatpush2.msra.mxu0 0.0
        %1391 = vmatprep.subr.mxu0 0.0
        %1392 = vmatpush2.msra.mxu0 0.0
        %1393 = vmatprep.subr.mxu0 0.0
        %1394 = vmatpush2.msra.mxu0 0.0
        %1395 = vmatprep.subr.mxu0 0.0
        %1396 = vmatpush2.msra.mxu0 0.0
        %1397 = vmatprep.subr.mxu0 0.0
        %1398 = vmatpush2.msra.mxu0 0.0
        %1399 = vmatprep.mubr.f32.mxu0 0.0
        %1400 = vmatmul.mubr.f32.gmra.mxu0 %v923
        %v1401 = vpop.f32.mrf.mxu0
        %v1402 = vadd.f32 %v1252, %v1401
        %v1403 = vpop.f32.mrf.mxu0
        %1404 = vdwg.mxu0
        %1405 = vmatprep.subr.mxu0 0.0
        %1406 = vmatpush1.msra.mxu0 0.0
        %1407 = vmatprep.subr.mxu0 0.0
        %1408 = vmatpush1.msra.mxu0 0.0
        %1409 = vmatprep.subr.mxu0 0.0
        %1410 = vmatpush1.msra.mxu0 0.0
        %1411 = vmatprep.subr.mxu0 0.0
        %1412 = vmatpush1.msra.mxu0 0.0
        %1413 = vmatprep.subr.mxu0 0.0
        %1414 = vmatpush1.msra.mxu0 0.0
        %1415 = vmatprep.subr.mxu0 0.0
        %1416 = vmatpush1.msra.mxu0 0.0
        %1417 = vmatprep.subr.mxu0 0.0
        %1418 = vmatpush1.msra.mxu0 0.0
        %1419 = vmatprep.subr.mxu0 0.0
        %1420 = vmatpush1.msra.mxu0 0.0
        %1421 = vmatprep.subr.mxu0 0.0
        %1422 = vmatpush1.msra.mxu0 %v1228
        %1423 = vmatprep.subr.mxu0 0.0
        %1424 = vmatpush1.msra.mxu0 %v1227
        %1425 = vmatprep.subr.mxu0 0.0
        %1426 = vmatpush1.msra.mxu0 %v1226
        %1427 = vmatprep.subr.mxu0 0.0
        %1428 = vmatpush1.msra.mxu0 %v1225
        %1429 = vmatprep.subr.mxu0 0.0
        %1430 = vmatpush1.msra.mxu0 %v1224
        %1431 = vmatprep.subr.mxu0 0.0
        %1432 = vmatpush1.msra.mxu0 %v1223
        %1433 = vmatprep.subr.mxu0 0.0
        %1434 = vmatpush1.msra.mxu0 %v1222
        %1435 = vmatprep.subr.mxu0 0.0
        %1436 = vmatpush1.msra.mxu0 %v1221
        %1437 = vmatprep.subr.mxu0 0.0
        %1438 = vmatpush2.msra.mxu0 0.0
        %1439 = vmatprep.subr.mxu0 0.0
        %1440 = vmatpush2.msra.mxu0 0.0
        %1441 = vmatprep.subr.mxu0 0.0
        %1442 = vmatpush2.msra.mxu0 0.0
        %1443 = vmatprep.subr.mxu0 0.0
        %1444 = vmatpush2.msra.mxu0 0.0
        %1445 = vmatprep.subr.mxu0 0.0
        %1446 = vmatpush2.msra.mxu0 0.0
        %1447 = vmatprep.subr.mxu0 0.0
        %1448 = vmatpush2.msra.mxu0 0.0
        %1449 = vmatprep.subr.mxu0 0.0
        %1450 = vmatpush2.msra.mxu0 0.0
        %1451 = vmatprep.subr.mxu0 0.0
        %1452 = vmatpush2.msra.mxu0 0.0
        %1453 = vmatprep.subr.mxu0 0.0
        %1454 = vmatpush2.msra.mxu0 0.0
        %1455 = vmatprep.subr.mxu0 0.0
        %1456 = vmatpush2.msra.mxu0 0.0
        %1457 = vmatprep.subr.mxu0 0.0
        %1458 = vmatpush2.msra.mxu0 0.0
        %1459 = vmatprep.subr.mxu0 0.0
        %1460 = vmatpush2.msra.mxu0 0.0
        %1461 = vmatprep.subr.mxu0 0.0
        %1462 = vmatpush2.msra.mxu0 0.0
        %1463 = vmatprep.subr.mxu0 0.0
        %1464 = vmatpush2.msra.mxu0 0.0
        %1465 = vmatprep.subr.mxu0 0.0
        %1466 = vmatpush2.msra.mxu0 0.0
        %1467 = vmatprep.subr.mxu0 0.0
        %1468 = vmatpush2.msra.mxu0 0.0
        %1469 = vmatprep.mubr.f32.mxu0 0.0
        %1470 = vmatmul.mubr.f32.gmra.mxu0 %v923
        %v1471 = vpop.f32.mrf.mxu0
        %v1472 = vadd.f32 %v1256, %v1471
        %v1473 = vpop.f32.mrf.mxu0
        %1474 = vdwg.mxu0
        %1475 = vmatprep.subr.mxu0 0.0
        %1476 = vmatpush1.msra.mxu0 0.0
        %1477 = vmatprep.subr.mxu0 0.0
        %1478 = vmatpush1.msra.mxu0 0.0
        %1479 = vmatprep.subr.mxu0 0.0
        %1480 = vmatpush1.msra.mxu0 0.0
        %1481 = vmatprep.subr.mxu0 0.0
        %1482 = vmatpush1.msra.mxu0 0.0
        %1483 = vmatprep.subr.mxu0 0.0
        %1484 = vmatpush1.msra.mxu0 0.0
        %1485 = vmatprep.subr.mxu0 0.0
        %1486 = vmatpush1.msra.mxu0 0.0
        %1487 = vmatprep.subr.mxu0 0.0
        %1488 = vmatpush1.msra.mxu0 0.0
        %1489 = vmatprep.subr.mxu0 0.0
        %1490 = vmatpush1.msra.mxu0 0.0
        %1491 = vmatprep.subr.mxu0 0.0
        %1492 = vmatpush1.msra.mxu0 %v1236
        %1493 = vmatprep.subr.mxu0 0.0
        %1494 = vmatpush1.msra.mxu0 %v1235
        %1495 = vmatprep.subr.mxu0 0.0
        %1496 = vmatpush1.msra.mxu0 %v1234
        %1497 = vmatprep.subr.mxu0 0.0
        %1498 = vmatpush1.msra.mxu0 %v1233
        %1499 = vmatprep.subr.mxu0 0.0
        %1500 = vmatpush1.msra.mxu0 %v1232
        %1501 = vmatprep.subr.mxu0 0.0
        %1502 = vmatpush1.msra.mxu0 %v1231
        %1503 = vmatprep.subr.mxu0 0.0
        %1504 = vmatpush1.msra.mxu0 %v1230
        %1505 = vmatprep.subr.mxu0 0.0
        %1506 = vmatpush1.msra.mxu0 %v1229
        %1507 = vmatprep.subr.mxu0 0.0
        %1508 = vmatpush2.msra.mxu0 0.0
        %1509 = vmatprep.subr.mxu0 0.0
        %1510 = vmatpush2.msra.mxu0 0.0
        %1511 = vmatprep.subr.mxu0 0.0
        %1512 = vmatpush2.msra.mxu0 0.0
        %1513 = vmatprep.subr.mxu0 0.0
        %1514 = vmatpush2.msra.mxu0 0.0
        %1515 = vmatprep.subr.mxu0 0.0
        %1516 = vmatpush2.msra.mxu0 0.0
        %1517 = vmatprep.subr.mxu0 0.0
        %1518 = vmatpush2.msra.mxu0 0.0
        %1519 = vmatprep.subr.mxu0 0.0
        %1520 = vmatpush2.msra.mxu0 0.0
        %1521 = vmatprep.subr.mxu0 0.0
        %1522 = vmatpush2.msra.mxu0 0.0
        %1523 = vmatprep.subr.mxu0 0.0
        %1524 = vmatpush2.msra.mxu0 0.0
        %1525 = vmatprep.subr.mxu0 0.0
        %1526 = vmatpush2.msra.mxu0 0.0
        %1527 = vmatprep.subr.mxu0 0.0
        %1528 = vmatpush2.msra.mxu0 0.0
        %1529 = vmatprep.subr.mxu0 0.0
        %1530 = vmatpush2.msra.mxu0 0.0
        %1531 = vmatprep.subr.mxu0 0.0
        %1532 = vmatpush2.msra.mxu0 0.0
        %1533 = vmatprep.subr.mxu0 0.0
        %1534 = vmatpush2.msra.mxu0 0.0
        %1535 = vmatprep.subr.mxu0 0.0
        %1536 = vmatpush2.msra.mxu0 0.0
        %1537 = vmatprep.subr.mxu0 0.0
        %1538 = vmatpush2.msra.mxu0 0.0
        %1539 = vmatprep.mubr.f32.mxu0 0.0
        %1540 = vmatmul.mubr.f32.gmra.mxu0 %v923
        %v1541 = vpop.f32.mrf.mxu0
        %v1542 = vadd.f32 %v1260, %v1541
        %v1543 = vpop.f32.mrf.mxu0
        %1544 = vdwg.mxu0
        %v1545 = vld [vmem:[%s9] sm:$0xff]
        %v1546 = vld [vmem:[%s9 + $0x8] sm:$0xff]
        %v1547 = vld [vmem:[%s9 + $0x10] sm:$0xff]
        %v1548 = vld [vmem:[%s9 + $0x18] sm:$0xff]
        %v1549 = vld [vmem:[%s9 + $0x20] sm:$0xff]
        %v1550 = vld [vmem:[%s9 + $0x28] sm:$0xff]
        %v1551 = vld [vmem:[%s9 + $0x30] sm:$0xff]
        %v1552 = vld [vmem:[%s9 + $0x38] sm:$0xff]
        %v1553 = vld [vmem:[%s9 + $0x40] sm:$0xff]
        %v1554 = vld [vmem:[%s9 + $0x48] sm:$0xff]
        %v1555 = vld [vmem:[%s9 + $0x50] sm:$0xff]
        %v1556 = vld [vmem:[%s9 + $0x58] sm:$0xff]
        %v1557 = vld [vmem:[%s9 + $0x60] sm:$0xff]
        %v1558 = vld [vmem:[%s9 + $0x68] sm:$0xff]
        %v1559 = vld [vmem:[%s9 + $0x70] sm:$0xff]
        %v1560 = vld [vmem:[%s9 + $0x78] sm:$0xff]
        %v1561 = vld [vmem:[%s9 + $0x80] sm:$0xff]
        %v1562 = vld [vmem:[%s9 + $0x88] sm:$0xff]
        %v1563 = vld [vmem:[%s9 + $0x90] sm:$0xff]
        %v1564 = vld [vmem:[%s9 + $0x98] sm:$0xff]
        %v1565 = vld [vmem:[%s9 + $0xa0] sm:$0xff]
        %v1566 = vld [vmem:[%s9 + $0xa8] sm:$0xff]
        %v1567 = vld [vmem:[%s9 + $0xb0] sm:$0xff]
        %v1568 = vld [vmem:[%s9 + $0xb8] sm:$0xff]
        %v1569 = vld [vmem:[%s9 + $0xc0] sm:$0xff]
        %v1570 = vld [vmem:[%s9 + $0xc8] sm:$0xff]
        %v1571 = vld [vmem:[%s9 + $0xd0] sm:$0xff]
        %v1572 = vld [vmem:[%s9 + $0xd8] sm:$0xff]
        %v1573 = vld [vmem:[%s9 + $0xe0] sm:$0xff]
        %v1574 = vld [vmem:[%s9 + $0xe8] sm:$0xff]
        %v1575 = vld [vmem:[%s9 + $0xf0] sm:$0xff]
        %v1576 = vld [vmem:[%s9 + $0xf8] sm:$0xff]
        %v1577 = vld [vmem:[%s10] sm:$0x1]
        %v1578 = vld [vmem:[%s10 + $0x1] sm:$0x1]
        %v1579 = vld [vmem:[%s10 + $0x2] sm:$0x1]
        %v1580 = vld [vmem:[%s10 + $0x3] sm:$0x1]
        %v1585 = vlaneseq
        %v1586 = vshrl.u32 %v1585, 7
        %v1587 = vsub.s32 0, %v1586
        %v1588 = vrot.slane %v1577, %v1587
        %v1589 = vlaneseq
        %v1590 = vshrl.u32 %v1589, 7
        %v1591 = vsub.s32 0, %v1590
        %v1592 = vrot.slane %v1578, %v1591
        %v1593 = vlaneseq
        %v1594 = vshrl.u32 %v1593, 7
        %v1595 = vsub.s32 0, %v1594
        %v1596 = vrot.slane %v1579, %v1595
        %v1597 = vlaneseq
        %v1598 = vshrl.u32 %v1597, 7
        %v1599 = vsub.s32 0, %v1598
        %v1600 = vrot.slane %v1580, %v1599
        %1605 = vmatprep.subr.mxu0 0.0
        %1606 = vmatpush1.msra.mxu0 0.0
        %1607 = vmatprep.subr.mxu0 0.0
        %1608 = vmatpush1.msra.mxu0 0.0
        %1609 = vmatprep.subr.mxu0 0.0
        %1610 = vmatpush1.msra.mxu0 0.0
        %1611 = vmatprep.subr.mxu0 0.0
        %1612 = vmatpush1.msra.mxu0 0.0
        %1613 = vmatprep.subr.mxu0 0.0
        %1614 = vmatpush1.msra.mxu0 0.0
        %1615 = vmatprep.subr.mxu0 0.0
        %1616 = vmatpush1.msra.mxu0 0.0
        %1617 = vmatprep.subr.mxu0 0.0
        %1618 = vmatpush1.msra.mxu0 0.0
        %1619 = vmatprep.subr.mxu0 0.0
        %1620 = vmatpush1.msra.mxu0 0.0
        %1621 = vmatprep.subr.mxu0 0.0
        %1622 = vmatpush1.msra.mxu0 %v1552
        %1623 = vmatprep.subr.mxu0 0.0
        %1624 = vmatpush1.msra.mxu0 %v1551
        %1625 = vmatprep.subr.mxu0 0.0
        %1626 = vmatpush1.msra.mxu0 %v1550
        %1627 = vmatprep.subr.mxu0 0.0
        %1628 = vmatpush1.msra.mxu0 %v1549
        %1629 = vmatprep.subr.mxu0 0.0
        %1630 = vmatpush1.msra.mxu0 %v1548
        %1631 = vmatprep.subr.mxu0 0.0
        %1632 = vmatpush1.msra.mxu0 %v1547
        %1633 = vmatprep.subr.mxu0 0.0
        %1634 = vmatpush1.msra.mxu0 %v1546
        %1635 = vmatprep.subr.mxu0 0.0
        %1636 = vmatpush1.msra.mxu0 %v1545
        %1637 = vmatprep.subr.mxu0 0.0
        %1638 = vmatpush2.msra.mxu0 0.0
        %1639 = vmatprep.subr.mxu0 0.0
        %1640 = vmatpush2.msra.mxu0 0.0
        %1641 = vmatprep.subr.mxu0 0.0
        %1642 = vmatpush2.msra.mxu0 0.0
        %1643 = vmatprep.subr.mxu0 0.0
        %1644 = vmatpush2.msra.mxu0 0.0
        %1645 = vmatprep.subr.mxu0 0.0
        %1646 = vmatpush2.msra.mxu0 0.0
        %1647 = vmatprep.subr.mxu0 0.0
        %1648 = vmatpush2.msra.mxu0 0.0
        %1649 = vmatprep.subr.mxu0 0.0
        %1650 = vmatpush2.msra.mxu0 0.0
        %1651 = vmatprep.subr.mxu0 0.0
        %1652 = vmatpush2.msra.mxu0 0.0
        %1653 = vmatprep.subr.mxu0 0.0
        %1654 = vmatpush2.msra.mxu0 0.0
        %1655 = vmatprep.subr.mxu0 0.0
        %1656 = vmatpush2.msra.mxu0 0.0
        %1657 = vmatprep.subr.mxu0 0.0
        %1658 = vmatpush2.msra.mxu0 0.0
        %1659 = vmatprep.subr.mxu0 0.0
        %1660 = vmatpush2.msra.mxu0 0.0
        %1661 = vmatprep.subr.mxu0 0.0
        %1662 = vmatpush2.msra.mxu0 0.0
        %1663 = vmatprep.subr.mxu0 0.0
        %1664 = vmatpush2.msra.mxu0 0.0
        %1665 = vmatprep.subr.mxu0 0.0
        %1666 = vmatpush2.msra.mxu0 0.0
        %1667 = vmatprep.subr.mxu0 0.0
        %1668 = vmatpush2.msra.mxu0 0.0
        %1669 = vmatprep.mubr.f32.mxu0 0.0
        %1670 = vmatmul.mubr.f32.gmra.mxu0 %v923
        %v1671 = vpop.f32.mrf.mxu0
        %v1672 = vadd.f32 %v1588, %v1671
        %v1673 = vpop.f32.mrf.mxu0
        %1674 = vdwg.mxu0
        %1675 = vmatprep.subr.mxu0 0.0
        %1676 = vmatpush1.msra.mxu0 0.0
        %1677 = vmatprep.subr.mxu0 0.0
        %1678 = vmatpush1.msra.mxu0 0.0
        %1679 = vmatprep.subr.mxu0 0.0
        %1680 = vmatpush1.msra.mxu0 0.0
        %1681 = vmatprep.subr.mxu0 0.0
        %1682 = vmatpush1.msra.mxu0 0.0
        %1683 = vmatprep.subr.mxu0 0.0
        %1684 = vmatpush1.msra.mxu0 0.0
        %1685 = vmatprep.subr.mxu0 0.0
        %1686 = vmatpush1.msra.mxu0 0.0
        %1687 = vmatprep.subr.mxu0 0.0
        %1688 = vmatpush1.msra.mxu0 0.0
        %1689 = vmatprep.subr.mxu0 0.0
        %1690 = vmatpush1.msra.mxu0 0.0
        %1691 = vmatprep.subr.mxu0 0.0
        %1692 = vmatpush1.msra.mxu0 %v1560
        %1693 = vmatprep.subr.mxu0 0.0
        %1694 = vmatpush1.msra.mxu0 %v1559
        %1695 = vmatprep.subr.mxu0 0.0
        %1696 = vmatpush1.msra.mxu0 %v1558
        %1697 = vmatprep.subr.mxu0 0.0
        %1698 = vmatpush1.msra.mxu0 %v1557
        %1699 = vmatprep.subr.mxu0 0.0
        %1700 = vmatpush1.msra.mxu0 %v1556
        %1701 = vmatprep.subr.mxu0 0.0
        %1702 = vmatpush1.msra.mxu0 %v1555
        %1703 = vmatprep.subr.mxu0 0.0
        %1704 = vmatpush1.msra.mxu0 %v1554
        %1705 = vmatprep.subr.mxu0 0.0
        %1706 = vmatpush1.msra.mxu0 %v1553
        %1707 = vmatprep.subr.mxu0 0.0
        %1708 = vmatpush2.msra.mxu0 0.0
        %1709 = vmatprep.subr.mxu0 0.0
        %1710 = vmatpush2.msra.mxu0 0.0
        %1711 = vmatprep.subr.mxu0 0.0
        %1712 = vmatpush2.msra.mxu0 0.0
        %1713 = vmatprep.subr.mxu0 0.0
        %1714 = vmatpush2.msra.mxu0 0.0
        %1715 = vmatprep.subr.mxu0 0.0
        %1716 = vmatpush2.msra.mxu0 0.0
        %1717 = vmatprep.subr.mxu0 0.0
        %1718 = vmatpush2.msra.mxu0 0.0
        %1719 = vmatprep.subr.mxu0 0.0
        %1720 = vmatpush2.msra.mxu0 0.0
        %1721 = vmatprep.subr.mxu0 0.0
        %1722 = vmatpush2.msra.mxu0 0.0
        %1723 = vmatprep.subr.mxu0 0.0
        %1724 = vmatpush2.msra.mxu0 0.0
        %1725 = vmatprep.subr.mxu0 0.0
        %1726 = vmatpush2.msra.mxu0 0.0
        %1727 = vmatprep.subr.mxu0 0.0
        %1728 = vmatpush2.msra.mxu0 0.0
        %1729 = vmatprep.subr.mxu0 0.0
        %1730 = vmatpush2.msra.mxu0 0.0
        %1731 = vmatprep.subr.mxu0 0.0
        %1732 = vmatpush2.msra.mxu0 0.0
        %1733 = vmatprep.subr.mxu0 0.0
        %1734 = vmatpush2.msra.mxu0 0.0
        %1735 = vmatprep.subr.mxu0 0.0
        %1736 = vmatpush2.msra.mxu0 0.0
        %1737 = vmatprep.subr.mxu0 0.0
        %1738 = vmatpush2.msra.mxu0 0.0
        %1739 = vmatprep.mubr.f32.mxu0 0.0
        %1740 = vmatmul.mubr.f32.gmra.mxu0 %v923
        %v1741 = vpop.f32.mrf.mxu0
        %v1742 = vadd.f32 %v1592, %v1741
        %v1743 = vpop.f32.mrf.mxu0
        %1744 = vdwg.mxu0
        %1745 = vmatprep.subr.mxu0 0.0
        %1746 = vmatpush1.msra.mxu0 0.0
        %1747 = vmatprep.subr.mxu0 0.0
        %1748 = vmatpush1.msra.mxu0 0.0
        %1749 = vmatprep.subr.mxu0 0.0
        %1750 = vmatpush1.msra.mxu0 0.0
        %1751 = vmatprep.subr.mxu0 0.0
        %1752 = vmatpush1.msra.mxu0 0.0
        %1753 = vmatprep.subr.mxu0 0.0
        %1754 = vmatpush1.msra.mxu0 0.0
        %1755 = vmatprep.subr.mxu0 0.0
        %1756 = vmatpush1.msra.mxu0 0.0
        %1757 = vmatprep.subr.mxu0 0.0
        %1758 = vmatpush1.msra.mxu0 0.0
        %1759 = vmatprep.subr.mxu0 0.0
        %1760 = vmatpush1.msra.mxu0 0.0
        %1761 = vmatprep.subr.mxu0 0.0
        %1762 = vmatpush1.msra.mxu0 %v1568
        %1763 = vmatprep.subr.mxu0 0.0
        %1764 = vmatpush1.msra.mxu0 %v1567
        %1765 = vmatprep.subr.mxu0 0.0
        %1766 = vmatpush1.msra.mxu0 %v1566
        %1767 = vmatprep.subr.mxu0 0.0
        %1768 = vmatpush1.msra.mxu0 %v1565
        %1769 = vmatprep.subr.mxu0 0.0
        %1770 = vmatpush1.msra.mxu0 %v1564
        %1771 = vmatprep.subr.mxu0 0.0
        %1772 = vmatpush1.msra.mxu0 %v1563
        %1773 = vmatprep.subr.mxu0 0.0
        %1774 = vmatpush1.msra.mxu0 %v1562
        %1775 = vmatprep.subr.mxu0 0.0
        %1776 = vmatpush1.msra.mxu0 %v1561
        %1777 = vmatprep.subr.mxu0 0.0
        %1778 = vmatpush2.msra.mxu0 0.0
        %1779 = vmatprep.subr.mxu0 0.0
        %1780 = vmatpush2.msra.mxu0 0.0
        %1781 = vmatprep.subr.mxu0 0.0
        %1782 = vmatpush2.msra.mxu0 0.0
        %1783 = vmatprep.subr.mxu0 0.0
        %1784 = vmatpush2.msra.mxu0 0.0
        %1785 = vmatprep.subr.mxu0 0.0
        %1786 = vmatpush2.msra.mxu0 0.0
        %1787 = vmatprep.subr.mxu0 0.0
        %1788 = vmatpush2.msra.mxu0 0.0
        %1789 = vmatprep.subr.mxu0 0.0
        %1790 = vmatpush2.msra.mxu0 0.0
        %1791 = vmatprep.subr.mxu0 0.0
        %1792 = vmatpush2.msra.mxu0 0.0
        %1793 = vmatprep.subr.mxu0 0.0
        %1794 = vmatpush2.msra.mxu0 0.0
        %1795 = vmatprep.subr.mxu0 0.0
        %1796 = vmatpush2.msra.mxu0 0.0
        %1797 = vmatprep.subr.mxu0 0.0
        %1798 = vmatpush2.msra.mxu0 0.0
        %1799 = vmatprep.subr.mxu0 0.0
        %1800 = vmatpush2.msra.mxu0 0.0
        %1801 = vmatprep.subr.mxu0 0.0
        %1802 = vmatpush2.msra.mxu0 0.0
        %1803 = vmatprep.subr.mxu0 0.0
        %1804 = vmatpush2.msra.mxu0 0.0
        %1805 = vmatprep.subr.mxu0 0.0
        %1806 = vmatpush2.msra.mxu0 0.0
        %1807 = vmatprep.subr.mxu0 0.0
        %1808 = vmatpush2.msra.mxu0 0.0
        %1809 = vmatprep.mubr.f32.mxu0 0.0
        %1810 = vmatmul.mubr.f32.gmra.mxu0 %v923
        %v1811 = vpop.f32.mrf.mxu0
        %v1812 = vadd.f32 %v1596, %v1811
        %v1813 = vpop.f32.mrf.mxu0
        %1814 = vdwg.mxu0
        %1815 = vmatprep.subr.mxu0 0.0
        %1816 = vmatpush1.msra.mxu0 0.0
        %1817 = vmatprep.subr.mxu0 0.0
        %1818 = vmatpush1.msra.mxu0 0.0
        %1819 = vmatprep.subr.mxu0 0.0
        %1820 = vmatpush1.msra.mxu0 0.0
        %1821 = vmatprep.subr.mxu0 0.0
        %1822 = vmatpush1.msra.mxu0 0.0
        %1823 = vmatprep.subr.mxu0 0.0
        %1824 = vmatpush1.msra.mxu0 0.0
        %1825 = vmatprep.subr.mxu0 0.0
        %1826 = vmatpush1.msra.mxu0 0.0
        %1827 = vmatprep.subr.mxu0 0.0
        %1828 = vmatpush1.msra.mxu0 0.0
        %1829 = vmatprep.subr.mxu0 0.0
        %1830 = vmatpush1.msra.mxu0 0.0
        %1831 = vmatprep.subr.mxu0 0.0
        %1832 = vmatpush1.msra.mxu0 %v1576
        %1833 = vmatprep.subr.mxu0 0.0
        %1834 = vmatpush1.msra.mxu0 %v1575
        %1835 = vmatprep.subr.mxu0 0.0
        %1836 = vmatpush1.msra.mxu0 %v1574
        %1837 = vmatprep.subr.mxu0 0.0
        %1838 = vmatpush1.msra.mxu0 %v1573
        %1839 = vmatprep.subr.mxu0 0.0
        %1840 = vmatpush1.msra.mxu0 %v1572
        %1841 = vmatprep.subr.mxu0 0.0
        %1842 = vmatpush1.msra.mxu0 %v1571
        %1843 = vmatprep.subr.mxu0 0.0
        %1844 = vmatpush1.msra.mxu0 %v1570
        %1845 = vmatprep.subr.mxu0 0.0
        %1846 = vmatpush1.msra.mxu0 %v1569
        %1847 = vmatprep.subr.mxu0 0.0
        %1848 = vmatpush2.msra.mxu0 0.0
        %1849 = vmatprep.subr.mxu0 0.0
        %1850 = vmatpush2.msra.mxu0 0.0
        %1851 = vmatprep.subr.mxu0 0.0
        %1852 = vmatpush2.msra.mxu0 0.0
        %1853 = vmatprep.subr.mxu0 0.0
        %1854 = vmatpush2.msra.mxu0 0.0
        %1855 = vmatprep.subr.mxu0 0.0
        %1856 = vmatpush2.msra.mxu0 0.0
        %1857 = vmatprep.subr.mxu0 0.0
        %1858 = vmatpush2.msra.mxu0 0.0
        %1859 = vmatprep.subr.mxu0 0.0
        %1860 = vmatpush2.msra.mxu0 0.0
        %1861 = vmatprep.subr.mxu0 0.0
        %1862 = vmatpush2.msra.mxu0 0.0
        %1863 = vmatprep.subr.mxu0 0.0
        %1864 = vmatpush2.msra.mxu0 0.0
        %1865 = vmatprep.subr.mxu0 0.0
        %1866 = vmatpush2.msra.mxu0 0.0
        %1867 = vmatprep.subr.mxu0 0.0
        %1868 = vmatpush2.msra.mxu0 0.0
        %1869 = vmatprep.subr.mxu0 0.0
        %1870 = vmatpush2.msra.mxu0 0.0
        %1871 = vmatprep.subr.mxu0 0.0
        %1872 = vmatpush2.msra.mxu0 0.0
        %1873 = vmatprep.subr.mxu0 0.0
        %1874 = vmatpush2.msra.mxu0 0.0
        %1875 = vmatprep.subr.mxu0 0.0
        %1876 = vmatpush2.msra.mxu0 0.0
        %1877 = vmatprep.subr.mxu0 0.0
        %1878 = vmatpush2.msra.mxu0 0.0
        %1879 = vmatprep.mubr.f32.mxu0 0.0
        %1880 = vmatmul.mubr.f32.gmra.mxu0 %v923
        %v1881 = vpop.f32.mrf.mxu0
        %v1882 = vadd.f32 %v1600, %v1881
        %v1883 = vpop.f32.mrf.mxu0
        %1884 = vdwg.mxu0
        %vm1885 = vcmask 130048
        %v1887 = vsel %vm1885, %v992, 0
        %v1890 = vsel %vm1885, %v1332, 0
        %1892 = vmatprep.subr.mxu0 0.0
        %1893 = vmatpush1.xpose.msra.mxu0 0.0
        %1894 = vmatprep.subr.mxu0 0.0
        %1895 = vmatpush1.xpose.msra.mxu0 0.0
        %1896 = vmatprep.subr.mxu0 0.0
        %1897 = vmatpush1.xpose.msra.mxu0 0.0
        %1898 = vmatprep.subr.mxu0 0.0
        %1899 = vmatpush1.xpose.msra.mxu0 0.0
        %1900 = vmatprep.subr.mxu0 0.0
        %1901 = vmatpush1.xpose.msra.mxu0 0.0
        %1902 = vmatprep.subr.mxu0 0.0
        %1903 = vmatpush1.xpose.msra.mxu0 0.0
        %1904 = vmatprep.subr.mxu0 0.0
        %1905 = vmatpush1.xpose.msra.mxu0 0.0
        %1906 = vmatprep.subr.mxu0 0.0
        %1907 = vmatpush1.xpose.msra.mxu0 0.0
        %1908 = vmatprep.subr.mxu0 0.0
        %1909 = vmatpush1.xpose.msra.mxu0 0.0
        %1910 = vmatprep.subr.mxu0 0.0
        %1911 = vmatpush1.xpose.msra.mxu0 0.0
        %1912 = vmatprep.subr.mxu0 0.0
        %1913 = vmatpush1.xpose.msra.mxu0 0.0
        %1914 = vmatprep.subr.mxu0 0.0
        %1915 = vmatpush1.xpose.msra.mxu0 0.0
        %1916 = vmatprep.subr.mxu0 0.0
        %1917 = vmatpush1.xpose.msra.mxu0 0.0
        %1918 = vmatprep.subr.mxu0 0.0
        %1919 = vmatpush1.xpose.msra.mxu0 0.0
        %1920 = vmatprep.subr.mxu0 0.0
        %1921 = vmatpush1.xpose.msra.mxu0 0.0
        %1922 = vmatprep.subr.mxu0 0.0
        %1923 = vmatpush1.xpose.msra.mxu0 %v1890
        %1924 = vmatprep.subr.mxu0 0.0
        %1925 = vmatpush2.xpose.msra.mxu0 0.0
        %1926 = vmatprep.subr.mxu0 0.0
        %1927 = vmatpush2.xpose.msra.mxu0 0.0
        %1928 = vmatprep.subr.mxu0 0.0
        %1929 = vmatpush2.xpose.msra.mxu0 0.0
        %1930 = vmatprep.subr.mxu0 0.0
        %1931 = vmatpush2.xpose.msra.mxu0 0.0
        %1932 = vmatprep.subr.mxu0 0.0
        %1933 = vmatpush2.xpose.msra.mxu0 0.0
        %1934 = vmatprep.subr.mxu0 0.0
        %1935 = vmatpush2.xpose.msra.mxu0 0.0
        %1936 = vmatprep.subr.mxu0 0.0
        %1937 = vmatpush2.xpose.msra.mxu0 0.0
        %1938 = vmatprep.subr.mxu0 0.0
        %1939 = vmatpush2.xpose.msra.mxu0 0.0
        %1940 = vmatprep.subr.mxu0 0.0
        %1941 = vmatpush2.xpose.msra.mxu0 0.0
        %1942 = vmatprep.subr.mxu0 0.0
        %1943 = vmatpush2.xpose.msra.mxu0 0.0
        %1944 = vmatprep.subr.mxu0 0.0
        %1945 = vmatpush2.xpose.msra.mxu0 0.0
        %1946 = vmatprep.subr.mxu0 0.0
        %1947 = vmatpush2.xpose.msra.mxu0 0.0
        %1948 = vmatprep.subr.mxu0 0.0
        %1949 = vmatpush2.xpose.msra.mxu0 0.0
        %1950 = vmatprep.subr.mxu0 0.0
        %1951 = vmatpush2.xpose.msra.mxu0 0.0
        %1952 = vmatprep.subr.mxu0 0.0
        %1953 = vmatpush2.xpose.msra.mxu0 0.0
        %1954 = vmatprep.subr.mxu0 0.0
        %1955 = vmatpush2.xpose.msra.mxu0 0.0
        %1956 = vmatprep.mubr.f32.mxu0 0.0
        %1957 = vmatmul.mubr.f32.gmra.mxu0 %v1887
        %v1958 = vpop.f32.mrf.mxu0
        %v1959 = vadd.f32 0.0, %v1958
        %v1960 = vpop.f32.mrf.mxu0
        %1961 = vdwg.mxu0
        %v1963 = vsel %vm1885, %v1062, 0
        %v1966 = vsel %vm1885, %v1402, 0
        %1968 = vmatprep.subr.mxu0 0.0
        %1969 = vmatpush1.xpose.msra.mxu0 0.0
        %1970 = vmatprep.subr.mxu0 0.0
        %1971 = vmatpush1.xpose.msra.mxu0 0.0
        %1972 = vmatprep.subr.mxu0 0.0
        %1973 = vmatpush1.xpose.msra.mxu0 0.0
        %1974 = vmatprep.subr.mxu0 0.0
        %1975 = vmatpush1.xpose.msra.mxu0 0.0
        %1976 = vmatprep.subr.mxu0 0.0
        %1977 = vmatpush1.xpose.msra.mxu0 0.0
        %1978 = vmatprep.subr.mxu0 0.0
        %1979 = vmatpush1.xpose.msra.mxu0 0.0
        %1980 = vmatprep.subr.mxu0 0.0
        %1981 = vmatpush1.xpose.msra.mxu0 0.0
        %1982 = vmatprep.subr.mxu0 0.0
        %1983 = vmatpush1.xpose.msra.mxu0 0.0
        %1984 = vmatprep.subr.mxu0 0.0
        %1985 = vmatpush1.xpose.msra.mxu0 0.0
        %1986 = vmatprep.subr.mxu0 0.0
        %1987 = vmatpush1.xpose.msra.mxu0 0.0
        %1988 = vmatprep.subr.mxu0 0.0
        %1989 = vmatpush1.xpose.msra.mxu0 0.0
        %1990 = vmatprep.subr.mxu0 0.0
        %1991 = vmatpush1.xpose.msra.mxu0 0.0
        %1992 = vmatprep.subr.mxu0 0.0
        %1993 = vmatpush1.xpose.msra.mxu0 0.0
        %1994 = vmatprep.subr.mxu0 0.0
        %1995 = vmatpush1.xpose.msra.mxu0 0.0
        %1996 = vmatprep.subr.mxu0 0.0
        %1997 = vmatpush1.xpose.msra.mxu0 0.0
        %1998 = vmatprep.subr.mxu0 0.0
        %1999 = vmatpush1.xpose.msra.mxu0 %v1966
        %2000 = vmatprep.subr.mxu0 0.0
        %2001 = vmatpush2.xpose.msra.mxu0 0.0
        %2002 = vmatprep.subr.mxu0 0.0
        %2003 = vmatpush2.xpose.msra.mxu0 0.0
        %2004 = vmatprep.subr.mxu0 0.0
        %2005 = vmatpush2.xpose.msra.mxu0 0.0
        %2006 = vmatprep.subr.mxu0 0.0
        %2007 = vmatpush2.xpose.msra.mxu0 0.0
        %2008 = vmatprep.subr.mxu0 0.0
        %2009 = vmatpush2.xpose.msra.mxu0 0.0
        %2010 = vmatprep.subr.mxu0 0.0
        %2011 = vmatpush2.xpose.msra.mxu0 0.0
        %2012 = vmatprep.subr.mxu0 0.0
        %2013 = vmatpush2.xpose.msra.mxu0 0.0
        %2014 = vmatprep.subr.mxu0 0.0
        %2015 = vmatpush2.xpose.msra.mxu0 0.0
        %2016 = vmatprep.subr.mxu0 0.0
        %2017 = vmatpush2.xpose.msra.mxu0 0.0
        %2018 = vmatprep.subr.mxu0 0.0
        %2019 = vmatpush2.xpose.msra.mxu0 0.0
        %2020 = vmatprep.subr.mxu0 0.0
        %2021 = vmatpush2.xpose.msra.mxu0 0.0
        %2022 = vmatprep.subr.mxu0 0.0
        %2023 = vmatpush2.xpose.msra.mxu0 0.0
        %2024 = vmatprep.subr.mxu0 0.0
        %2025 = vmatpush2.xpose.msra.mxu0 0.0
        %2026 = vmatprep.subr.mxu0 0.0
        %2027 = vmatpush2.xpose.msra.mxu0 0.0
        %2028 = vmatprep.subr.mxu0 0.0
        %2029 = vmatpush2.xpose.msra.mxu0 0.0
        %2030 = vmatprep.subr.mxu0 0.0
        %2031 = vmatpush2.xpose.msra.mxu0 0.0
        %2032 = vmatprep.mubr.f32.mxu0 0.0
        %2033 = vmatmul.mubr.f32.gmra.mxu0 %v1963
        %v2034 = vpop.f32.mrf.mxu0
        %v2035 = vadd.f32 0.0, %v2034
        %v2036 = vpop.f32.mrf.mxu0
        %2037 = vdwg.mxu0
        %v2039 = vsel %vm1885, %v1132, 0
        %v2042 = vsel %vm1885, %v1472, 0
        %2044 = vmatprep.subr.mxu0 0.0
        %2045 = vmatpush1.xpose.msra.mxu0 0.0
        %2046 = vmatprep.subr.mxu0 0.0
        %2047 = vmatpush1.xpose.msra.mxu0 0.0
        %2048 = vmatprep.subr.mxu0 0.0
        %2049 = vmatpush1.xpose.msra.mxu0 0.0
        %2050 = vmatprep.subr.mxu0 0.0
        %2051 = vmatpush1.xpose.msra.mxu0 0.0
        %2052 = vmatprep.subr.mxu0 0.0
        %2053 = vmatpush1.xpose.msra.mxu0 0.0
        %2054 = vmatprep.subr.mxu0 0.0
        %2055 = vmatpush1.xpose.msra.mxu0 0.0
        %2056 = vmatprep.subr.mxu0 0.0
        %2057 = vmatpush1.xpose.msra.mxu0 0.0
        %2058 = vmatprep.subr.mxu0 0.0
        %2059 = vmatpush1.xpose.msra.mxu0 0.0
        %2060 = vmatprep.subr.mxu0 0.0
        %2061 = vmatpush1.xpose.msra.mxu0 0.0
        %2062 = vmatprep.subr.mxu0 0.0
        %2063 = vmatpush1.xpose.msra.mxu0 0.0
        %2064 = vmatprep.subr.mxu0 0.0
        %2065 = vmatpush1.xpose.msra.mxu0 0.0
        %2066 = vmatprep.subr.mxu0 0.0
        %2067 = vmatpush1.xpose.msra.mxu0 0.0
        %2068 = vmatprep.subr.mxu0 0.0
        %2069 = vmatpush1.xpose.msra.mxu0 0.0
        %2070 = vmatprep.subr.mxu0 0.0
        %2071 = vmatpush1.xpose.msra.mxu0 0.0
        %2072 = vmatprep.subr.mxu0 0.0
        %2073 = vmatpush1.xpose.msra.mxu0 0.0
        %2074 = vmatprep.subr.mxu0 0.0
        %2075 = vmatpush1.xpose.msra.mxu0 %v2042
        %2076 = vmatprep.subr.mxu0 0.0
        %2077 = vmatpush2.xpose.msra.mxu0 0.0
        %2078 = vmatprep.subr.mxu0 0.0
        %2079 = vmatpush2.xpose.msra.mxu0 0.0
        %2080 = vmatprep.subr.mxu0 0.0
        %2081 = vmatpush2.xpose.msra.mxu0 0.0
        %2082 = vmatprep.subr.mxu0 0.0
        %2083 = vmatpush2.xpose.msra.mxu0 0.0
        %2084 = vmatprep.subr.mxu0 0.0
        %2085 = vmatpush2.xpose.msra.mxu0 0.0
        %2086 = vmatprep.subr.mxu0 0.0
        %2087 = vmatpush2.xpose.msra.mxu0 0.0
        %2088 = vmatprep.subr.mxu0 0.0
        %2089 = vmatpush2.xpose.msra.mxu0 0.0
        %2090 = vmatprep.subr.mxu0 0.0
        %2091 = vmatpush2.xpose.msra.mxu0 0.0
        %2092 = vmatprep.subr.mxu0 0.0
        %2093 = vmatpush2.xpose.msra.mxu0 0.0
        %2094 = vmatprep.subr.mxu0 0.0
        %2095 = vmatpush2.xpose.msra.mxu0 0.0
        %2096 = vmatprep.subr.mxu0 0.0
        %2097 = vmatpush2.xpose.msra.mxu0 0.0
        %2098 = vmatprep.subr.mxu0 0.0
        %2099 = vmatpush2.xpose.msra.mxu0 0.0
        %2100 = vmatprep.subr.mxu0 0.0
        %2101 = vmatpush2.xpose.msra.mxu0 0.0
        %2102 = vmatprep.subr.mxu0 0.0
        %2103 = vmatpush2.xpose.msra.mxu0 0.0
        %2104 = vmatprep.subr.mxu0 0.0
        %2105 = vmatpush2.xpose.msra.mxu0 0.0
        %2106 = vmatprep.subr.mxu0 0.0
        %2107 = vmatpush2.xpose.msra.mxu0 0.0
        %2108 = vmatprep.mubr.f32.mxu0 0.0
        %2109 = vmatmul.mubr.f32.gmra.mxu0 %v2039
        %v2110 = vpop.f32.mrf.mxu0
        %v2111 = vadd.f32 0.0, %v2110
        %v2112 = vpop.f32.mrf.mxu0
        %2113 = vdwg.mxu0
        %v2115 = vsel %vm1885, %v1202, 0
        %v2118 = vsel %vm1885, %v1542, 0
        %2120 = vmatprep.subr.mxu0 0.0
        %2121 = vmatpush1.xpose.msra.mxu0 0.0
        %2122 = vmatprep.subr.mxu0 0.0
        %2123 = vmatpush1.xpose.msra.mxu0 0.0
        %2124 = vmatprep.subr.mxu0 0.0
        %2125 = vmatpush1.xpose.msra.mxu0 0.0
        %2126 = vmatprep.subr.mxu0 0.0
        %2127 = vmatpush1.xpose.msra.mxu0 0.0
        %2128 = vmatprep.subr.mxu0 0.0
        %2129 = vmatpush1.xpose.msra.mxu0 0.0
        %2130 = vmatprep.subr.mxu0 0.0
        %2131 = vmatpush1.xpose.msra.mxu0 0.0
        %2132 = vmatprep.subr.mxu0 0.0
        %2133 = vmatpush1.xpose.msra.mxu0 0.0
        %2134 = vmatprep.subr.mxu0 0.0
        %2135 = vmatpush1.xpose.msra.mxu0 0.0
        %2136 = vmatprep.subr.mxu0 0.0
        %2137 = vmatpush1.xpose.msra.mxu0 0.0
        %2138 = vmatprep.subr.mxu0 0.0
        %2139 = vmatpush1.xpose.msra.mxu0 0.0
        %2140 = vmatprep.subr.mxu0 0.0
        %2141 = vmatpush1.xpose.msra.mxu0 0.0
        %2142 = vmatprep.subr.mxu0 0.0
        %2143 = vmatpush1.xpose.msra.mxu0 0.0
        %2144 = vmatprep.subr.mxu0 0.0
        %2145 = vmatpush1.xpose.msra.mxu0 0.0
        %2146 = vmatprep.subr.mxu0 0.0
        %2147 = vmatpush1.xpose.msra.mxu0 0.0
        %2148 = vmatprep.subr.mxu0 0.0
        %2149 = vmatpush1.xpose.msra.mxu0 0.0
        %2150 = vmatprep.subr.mxu0 0.0
        %2151 = vmatpush1.xpose.msra.mxu0 %v2118
        %2152 = vmatprep.subr.mxu0 0.0
        %2153 = vmatpush2.xpose.msra.mxu0 0.0
        %2154 = vmatprep.subr.mxu0 0.0
        %2155 = vmatpush2.xpose.msra.mxu0 0.0
        %2156 = vmatprep.subr.mxu0 0.0
        %2157 = vmatpush2.xpose.msra.mxu0 0.0
        %2158 = vmatprep.subr.mxu0 0.0
        %2159 = vmatpush2.xpose.msra.mxu0 0.0
        %2160 = vmatprep.subr.mxu0 0.0
        %2161 = vmatpush2.xpose.msra.mxu0 0.0
        %2162 = vmatprep.subr.mxu0 0.0
        %2163 = vmatpush2.xpose.msra.mxu0 0.0
        %2164 = vmatprep.subr.mxu0 0.0
        %2165 = vmatpush2.xpose.msra.mxu0 0.0
        %2166 = vmatprep.subr.mxu0 0.0
        %2167 = vmatpush2.xpose.msra.mxu0 0.0
        %2168 = vmatprep.subr.mxu0 0.0
        %2169 = vmatpush2.xpose.msra.mxu0 0.0
        %2170 = vmatprep.subr.mxu0 0.0
        %2171 = vmatpush2.xpose.msra.mxu0 0.0
        %2172 = vmatprep.subr.mxu0 0.0
        %2173 = vmatpush2.xpose.msra.mxu0 0.0
        %2174 = vmatprep.subr.mxu0 0.0
        %2175 = vmatpush2.xpose.msra.mxu0 0.0
        %2176 = vmatprep.subr.mxu0 0.0
        %2177 = vmatpush2.xpose.msra.mxu0 0.0
        %2178 = vmatprep.subr.mxu0 0.0
        %2179 = vmatpush2.xpose.msra.mxu0 0.0
        %2180 = vmatprep.subr.mxu0 0.0
        %2181 = vmatpush2.xpose.msra.mxu0 0.0
        %2182 = vmatprep.subr.mxu0 0.0
        %2183 = vmatpush2.xpose.msra.mxu0 0.0
        %2184 = vmatprep.mubr.f32.mxu0 0.0
        %2185 = vmatmul.mubr.f32.gmra.mxu0 %v2115
        %v2186 = vpop.f32.mrf.mxu0
        %v2187 = vadd.f32 0.0, %v2186
        %v2188 = vpop.f32.mrf.mxu0
        %2189 = vdwg.mxu0
        %v2190 = vmul.f32 %v1959, 0.25
        %v2191 = vmul.f32 %v2035, 0.25
        %v2192 = vmul.f32 %v2111, 0.25
        %v2193 = vmul.f32 %v2187, 0.25
        %v2195 = vlaneseq
        %v2196 = vshrl.u32 %v2195, 7
        %v2197 = vsub.s32 0, %v2196
        %v2198 = vrot.slane %v861, %v2197
        %v2200 = vadd.f32 %v2190, %v2198
        %v2201 = vadd.f32 %v2191, %v2198
        %v2202 = vadd.f32 %v2192, %v2198
        %v2203 = vadd.f32 %v2193, %v2198
        %vm2204 = vcmask 64512
        %v2205 = vsel %vm2204, %v2200, -inf
        %2206 = vmax.xlane.f32.xlu0 %v2205
        %v2207 = vpop.xlane.xlu0 %2206
        %v2208 = vsel %vm2204, %v2201, -inf
        %2209 = vmax.xlane.f32.xlu0 %v2208
        %v2210 = vpop.xlane.xlu0 %2209
        %v2211 = vsel %vm2204, %v2202, -inf
        %2212 = vmax.xlane.f32.xlu0 %v2211
        %v2213 = vpop.xlane.xlu0 %2212
        %v2214 = vsel %vm2204, %v2203, -inf
        %2215 = vmax.xlane.f32.xlu0 %v2214
        %v2216 = vpop.xlane.xlu0 %2215
        %v2217 = vsub.f32 %v2200, %v2207
        %v2218 = vsub.f32 %v2201, %v2210
        %v2219 = vsub.f32 %v2202, %v2213
        %v2220 = vsub.f32 %v2203, %v2216
        %v2221 = vmul.f32 %v2217, 1.442695
        %v2222 = vpow.pop %v2221
        %v2223 = vmul.f32 %v2218, 1.442695
        %v2224 = vpow.pop %v2223
        %v2225 = vmul.f32 %v2219, 1.442695
        %v2226 = vpow.pop %v2225
        %v2227 = vmul.f32 %v2220, 1.442695
        %v2228 = vpow.pop %v2227
        %v2229 = vsel %vm2204, %v2222, 0.0
        %2230 = vadd.xlane.f32.xlu0 %v2229
        %v2231 = vpop.xlane.xlu0 %2230
        %v2232 = vsel %vm2204, %v2224, 0.0
        %2233 = vadd.xlane.f32.xlu0 %v2232
        %v2234 = vpop.xlane.xlu0 %2233
        %v2235 = vsel %vm2204, %v2226, 0.0
        %2236 = vadd.xlane.f32.xlu0 %v2235
        %v2237 = vpop.xlane.xlu0 %2236
        %v2238 = vsel %vm2204, %v2228, 0.0
        %2239 = vadd.xlane.f32.xlu0 %v2238
        %v2240 = vpop.xlane.xlu0 %2239
        %v2241 = vrcp.pop %v2231
        %v2242 = vrcp.pop %v2234
        %v2243 = vrcp.pop %v2237
        %v2244 = vrcp.pop %v2240
        %v2245 = vmul.f32 %v2222, %v2241
        %v2246 = vmul.f32 %v2224, %v2242
        %v2247 = vmul.f32 %v2226, %v2243
        %v2248 = vmul.f32 %v2228, %v2244
        %v2250 = vsel %vm2204, %v2245, 0
        %2252 = vmatprep.subr.mxu0 0.0
        %2253 = vmatpush1.msra.mxu0 0.0
        %2254 = vmatprep.subr.mxu0 0.0
        %2255 = vmatpush1.msra.mxu0 0.0
        %2256 = vmatprep.subr.mxu0 0.0
        %2257 = vmatpush1.msra.mxu0 0.0
        %2258 = vmatprep.subr.mxu0 0.0
        %2259 = vmatpush1.msra.mxu0 0.0
        %2260 = vmatprep.subr.mxu0 0.0
        %2261 = vmatpush1.msra.mxu0 0.0
        %2262 = vmatprep.subr.mxu0 0.0
        %2263 = vmatpush1.msra.mxu0 0.0
        %2264 = vmatprep.subr.mxu0 0.0
        %2265 = vmatpush1.msra.mxu0 0.0
        %2266 = vmatprep.subr.mxu0 0.0
        %2267 = vmatpush1.msra.mxu0 0.0
        %2268 = vmatprep.subr.mxu0 0.0
        %2269 = vmatpush1.msra.mxu0 0.0
        %2270 = vmatprep.subr.mxu0 0.0
        %2271 = vmatpush1.msra.mxu0 0.0
        %2272 = vmatprep.subr.mxu0 0.0
        %2273 = vmatpush1.msra.mxu0 0.0
        %2274 = vmatprep.subr.mxu0 0.0
        %2275 = vmatpush1.msra.mxu0 0.0
        %2276 = vmatprep.subr.mxu0 0.0
        %2277 = vmatpush1.msra.mxu0 0.0
        %2278 = vmatprep.subr.mxu0 0.0
        %2279 = vmatpush1.msra.mxu0 0.0
        %2280 = vmatprep.subr.mxu0 0.0
        %2281 = vmatpush1.msra.mxu0 0.0
        %2282 = vmatprep.subr.mxu0 0.0
        %2283 = vmatpush1.msra.mxu0 %v1672
        %2284 = vmatprep.subr.mxu0 0.0
        %2285 = vmatpush2.msra.mxu0 0.0
        %2286 = vmatprep.subr.mxu0 0.0
        %2287 = vmatpush2.msra.mxu0 0.0
        %2288 = vmatprep.subr.mxu0 0.0
        %2289 = vmatpush2.msra.mxu0 0.0
        %2290 = vmatprep.subr.mxu0 0.0
        %2291 = vmatpush2.msra.mxu0 0.0
        %2292 = vmatprep.subr.mxu0 0.0
        %2293 = vmatpush2.msra.mxu0 0.0
        %2294 = vmatprep.subr.mxu0 0.0
        %2295 = vmatpush2.msra.mxu0 0.0
        %2296 = vmatprep.subr.mxu0 0.0
        %2297 = vmatpush2.msra.mxu0 0.0
        %2298 = vmatprep.subr.mxu0 0.0
        %2299 = vmatpush2.msra.mxu0 0.0
        %2300 = vmatprep.subr.mxu0 0.0
        %2301 = vmatpush2.msra.mxu0 0.0
        %2302 = vmatprep.subr.mxu0 0.0
        %2303 = vmatpush2.msra.mxu0 0.0
        %2304 = vmatprep.subr.mxu0 0.0
        %2305 = vmatpush2.msra.mxu0 0.0
        %2306 = vmatprep.subr.mxu0 0.0
        %2307 = vmatpush2.msra.mxu0 0.0
        %2308 = vmatprep.subr.mxu0 0.0
        %2309 = vmatpush2.msra.mxu0 0.0
        %2310 = vmatprep.subr.mxu0 0.0
        %2311 = vmatpush2.msra.mxu0 0.0
        %2312 = vmatprep.subr.mxu0 0.0
        %2313 = vmatpush2.msra.mxu0 0.0
        %2314 = vmatprep.subr.mxu0 0.0
        %2315 = vmatpush2.msra.mxu0 0.0
        %2316 = vmatprep.mubr.f32.mxu0 0.0
        %2317 = vmatmul.mubr.f32.gmra.mxu0 %v2250
        %v2318 = vpop.f32.mrf.mxu0
        %v2319 = vadd.f32 0.0, %v2318
        %v2320 = vpop.f32.mrf.mxu0
        %2321 = vdwg.mxu0
        %v2323 = vsel %vm2204, %v2246, 0
        %2325 = vmatprep.subr.mxu0 0.0
        %2326 = vmatpush1.msra.mxu0 0.0
        %2327 = vmatprep.subr.mxu0 0.0
        %2328 = vmatpush1.msra.mxu0 0.0
        %2329 = vmatprep.subr.mxu0 0.0
        %2330 = vmatpush1.msra.mxu0 0.0
        %2331 = vmatprep.subr.mxu0 0.0
        %2332 = vmatpush1.msra.mxu0 0.0
        %2333 = vmatprep.subr.mxu0 0.0
        %2334 = vmatpush1.msra.mxu0 0.0
        %2335 = vmatprep.subr.mxu0 0.0
        %2336 = vmatpush1.msra.mxu0 0.0
        %2337 = vmatprep.subr.mxu0 0.0
        %2338 = vmatpush1.msra.mxu0 0.0
        %2339 = vmatprep.subr.mxu0 0.0
        %2340 = vmatpush1.msra.mxu0 0.0
        %2341 = vmatprep.subr.mxu0 0.0
        %2342 = vmatpush1.msra.mxu0 0.0
        %2343 = vmatprep.subr.mxu0 0.0
        %2344 = vmatpush1.msra.mxu0 0.0
        %2345 = vmatprep.subr.mxu0 0.0
        %2346 = vmatpush1.msra.mxu0 0.0
        %2347 = vmatprep.subr.mxu0 0.0
        %2348 = vmatpush1.msra.mxu0 0.0
        %2349 = vmatprep.subr.mxu0 0.0
        %2350 = vmatpush1.msra.mxu0 0.0
        %2351 = vmatprep.subr.mxu0 0.0
        %2352 = vmatpush1.msra.mxu0 0.0
        %2353 = vmatprep.subr.mxu0 0.0
        %2354 = vmatpush1.msra.mxu0 0.0
        %2355 = vmatprep.subr.mxu0 0.0
        %2356 = vmatpush1.msra.mxu0 %v1742
        %2357 = vmatprep.subr.mxu0 0.0
        %2358 = vmatpush2.msra.mxu0 0.0
        %2359 = vmatprep.subr.mxu0 0.0
        %2360 = vmatpush2.msra.mxu0 0.0
        %2361 = vmatprep.subr.mxu0 0.0
        %2362 = vmatpush2.msra.mxu0 0.0
        %2363 = vmatprep.subr.mxu0 0.0
        %2364 = vmatpush2.msra.mxu0 0.0
        %2365 = vmatprep.subr.mxu0 0.0
        %2366 = vmatpush2.msra.mxu0 0.0
        %2367 = vmatprep.subr.mxu0 0.0
        %2368 = vmatpush2.msra.mxu0 0.0
        %2369 = vmatprep.subr.mxu0 0.0
        %2370 = vmatpush2.msra.mxu0 0.0
        %2371 = vmatprep.subr.mxu0 0.0
        %2372 = vmatpush2.msra.mxu0 0.0
        %2373 = vmatprep.subr.mxu0 0.0
        %2374 = vmatpush2.msra.mxu0 0.0
        %2375 = vmatprep.subr.mxu0 0.0
        %2376 = vmatpush2.msra.mxu0 0.0
        %2377 = vmatprep.subr.mxu0 0.0
        %2378 = vmatpush2.msra.mxu0 0.0
        %2379 = vmatprep.subr.mxu0 0.0
        %2380 = vmatpush2.msra.mxu0 0.0
        %2381 = vmatprep.subr.mxu0 0.0
        %2382 = vmatpush2.msra.mxu0 0.0
        %2383 = vmatprep.subr.mxu0 0.0
        %2384 = vmatpush2.msra.mxu0 0.0
        %2385 = vmatprep.subr.mxu0 0.0
        %2386 = vmatpush2.msra.mxu0 0.0
        %2387 = vmatprep.subr.mxu0 0.0
        %2388 = vmatpush2.msra.mxu0 0.0
        %2389 = vmatprep.mubr.f32.mxu0 0.0
        %2390 = vmatmul.mubr.f32.gmra.mxu0 %v2323
        %v2391 = vpop.f32.mrf.mxu0
        %v2392 = vadd.f32 0.0, %v2391
        %v2393 = vpop.f32.mrf.mxu0
        %2394 = vdwg.mxu0
        %v2396 = vsel %vm2204, %v2247, 0
        %2398 = vmatprep.subr.mxu0 0.0
        %2399 = vmatpush1.msra.mxu0 0.0
        %2400 = vmatprep.subr.mxu0 0.0
        %2401 = vmatpush1.msra.mxu0 0.0
        %2402 = vmatprep.subr.mxu0 0.0
        %2403 = vmatpush1.msra.mxu0 0.0
        %2404 = vmatprep.subr.mxu0 0.0
        %2405 = vmatpush1.msra.mxu0 0.0
        %2406 = vmatprep.subr.mxu0 0.0
        %2407 = vmatpush1.msra.mxu0 0.0
        %2408 = vmatprep.subr.mxu0 0.0
        %2409 = vmatpush1.msra.mxu0 0.0
        %2410 = vmatprep.subr.mxu0 0.0
        %2411 = vmatpush1.msra.mxu0 0.0
        %2412 = vmatprep.subr.mxu0 0.0
        %2413 = vmatpush1.msra.mxu0 0.0
        %2414 = vmatprep.subr.mxu0 0.0
        %2415 = vmatpush1.msra.mxu0 0.0
        %2416 = vmatprep.subr.mxu0 0.0
        %2417 = vmatpush1.msra.mxu0 0.0
        %2418 = vmatprep.subr.mxu0 0.0
        %2419 = vmatpush1.msra.mxu0 0.0
        %2420 = vmatprep.subr.mxu0 0.0
        %2421 = vmatpush1.msra.mxu0 0.0
        %2422 = vmatprep.subr.mxu0 0.0
        %2423 = vmatpush1.msra.mxu0 0.0
        %2424 = vmatprep.subr.mxu0 0.0
        %2425 = vmatpush1.msra.mxu0 0.0
        %2426 = vmatprep.subr.mxu0 0.0
        %2427 = vmatpush1.msra.mxu0 0.0
        %2428 = vmatprep.subr.mxu0 0.0
        %2429 = vmatpush1.msra.mxu0 %v1812
        %2430 = vmatprep.subr.mxu0 0.0
        %2431 = vmatpush2.msra.mxu0 0.0
        %2432 = vmatprep.subr.mxu0 0.0
        %2433 = vmatpush2.msra.mxu0 0.0
        %2434 = vmatprep.subr.mxu0 0.0
        %2435 = vmatpush2.msra.mxu0 0.0
        %2436 = vmatprep.subr.mxu0 0.0
        %2437 = vmatpush2.msra.mxu0 0.0
        %2438 = vmatprep.subr.mxu0 0.0
        %2439 = vmatpush2.msra.mxu0 0.0
        %2440 = vmatprep.subr.mxu0 0.0
        %2441 = vmatpush2.msra.mxu0 0.0
        %2442 = vmatprep.subr.mxu0 0.0
        %2443 = vmatpush2.msra.mxu0 0.0
        %2444 = vmatprep.subr.mxu0 0.0
        %2445 = vmatpush2.msra.mxu0 0.0
        %2446 = vmatprep.subr.mxu0 0.0
        %2447 = vmatpush2.msra.mxu0 0.0
        %2448 = vmatprep.subr.mxu0 0.0
        %2449 = vmatpush2.msra.mxu0 0.0
        %2450 = vmatprep.subr.mxu0 0.0
        %2451 = vmatpush2.msra.mxu0 0.0
        %2452 = vmatprep.subr.mxu0 0.0
        %2453 = vmatpush2.msra.mxu0 0.0
        %2454 = vmatprep.subr.mxu0 0.0
        %2455 = vmatpush2.msra.mxu0 0.0
        %2456 = vmatprep.subr.mxu0 0.0
        %2457 = vmatpush2.msra.mxu0 0.0
        %2458 = vmatprep.subr.mxu0 0.0
        %2459 = vmatpush2.msra.mxu0 0.0
        %2460 = vmatprep.subr.mxu0 0.0
        %2461 = vmatpush2.msra.mxu0 0.0
        %2462 = vmatprep.mubr.f32.mxu0 0.0
        %2463 = vmatmul.mubr.f32.gmra.mxu0 %v2396
        %v2464 = vpop.f32.mrf.mxu0
        %v2465 = vadd.f32 0.0, %v2464
        %v2466 = vpop.f32.mrf.mxu0
        %2467 = vdwg.mxu0
        %v2469 = vsel %vm2204, %v2248, 0
        %2471 = vmatprep.subr.mxu0 0.0
        %2472 = vmatpush1.msra.mxu0 0.0
        %2473 = vmatprep.subr.mxu0 0.0
        %2474 = vmatpush1.msra.mxu0 0.0
        %2475 = vmatprep.subr.mxu0 0.0
        %2476 = vmatpush1.msra.mxu0 0.0
        %2477 = vmatprep.subr.mxu0 0.0
        %2478 = vmatpush1.msra.mxu0 0.0
        %2479 = vmatprep.subr.mxu0 0.0
        %2480 = vmatpush1.msra.mxu0 0.0
        %2481 = vmatprep.subr.mxu0 0.0
        %2482 = vmatpush1.msra.mxu0 0.0
        %2483 = vmatprep.subr.mxu0 0.0
        %2484 = vmatpush1.msra.mxu0 0.0
        %2485 = vmatprep.subr.mxu0 0.0
        %2486 = vmatpush1.msra.mxu0 0.0
        %2487 = vmatprep.subr.mxu0 0.0
        %2488 = vmatpush1.msra.mxu0 0.0
        %2489 = vmatprep.subr.mxu0 0.0
        %2490 = vmatpush1.msra.mxu0 0.0
        %2491 = vmatprep.subr.mxu0 0.0
        %2492 = vmatpush1.msra.mxu0 0.0
        %2493 = vmatprep.subr.mxu0 0.0
        %2494 = vmatpush1.msra.mxu0 0.0
        %2495 = vmatprep.subr.mxu0 0.0
        %2496 = vmatpush1.msra.mxu0 0.0
        %2497 = vmatprep.subr.mxu0 0.0
        %2498 = vmatpush1.msra.mxu0 0.0
        %2499 = vmatprep.subr.mxu0 0.0
        %2500 = vmatpush1.msra.mxu0 0.0
        %2501 = vmatprep.subr.mxu0 0.0
        %2502 = vmatpush1.msra.mxu0 %v1882
        %2503 = vmatprep.subr.mxu0 0.0
        %2504 = vmatpush2.msra.mxu0 0.0
        %2505 = vmatprep.subr.mxu0 0.0
        %2506 = vmatpush2.msra.mxu0 0.0
        %2507 = vmatprep.subr.mxu0 0.0
        %2508 = vmatpush2.msra.mxu0 0.0
        %2509 = vmatprep.subr.mxu0 0.0
        %2510 = vmatpush2.msra.mxu0 0.0
        %2511 = vmatprep.subr.mxu0 0.0
        %2512 = vmatpush2.msra.mxu0 0.0
        %2513 = vmatprep.subr.mxu0 0.0
        %2514 = vmatpush2.msra.mxu0 0.0
        %2515 = vmatprep.subr.mxu0 0.0
        %2516 = vmatpush2.msra.mxu0 0.0
        %2517 = vmatprep.subr.mxu0 0.0
        %2518 = vmatpush2.msra.mxu0 0.0
        %2519 = vmatprep.subr.mxu0 0.0
        %2520 = vmatpush2.msra.mxu0 0.0
        %2521 = vmatprep.subr.mxu0 0.0
        %2522 = vmatpush2.msra.mxu0 0.0
        %2523 = vmatprep.subr.mxu0 0.0
        %2524 = vmatpush2.msra.mxu0 0.0
        %2525 = vmatprep.subr.mxu0 0.0
        %2526 = vmatpush2.msra.mxu0 0.0
        %2527 = vmatprep.subr.mxu0 0.0
        %2528 = vmatpush2.msra.mxu0 0.0
        %2529 = vmatprep.subr.mxu0 0.0
        %2530 = vmatpush2.msra.mxu0 0.0
        %2531 = vmatprep.subr.mxu0 0.0
        %2532 = vmatpush2.msra.mxu0 0.0
        %2533 = vmatprep.subr.mxu0 0.0
        %2534 = vmatpush2.msra.mxu0 0.0
        %2535 = vmatprep.mubr.f32.mxu0 0.0
        %2536 = vmatmul.mubr.f32.gmra.mxu0 %v2469
        %v2537 = vpop.f32.mrf.mxu0
        %v2538 = vadd.f32 0.0, %v2537
        %v2539 = vpop.f32.mrf.mxu0
        %2540 = vdwg.mxu0
        %v2541 = vld [vmem:[%s11] sm:$0xff]
        %v2542 = vld [vmem:[%s11 + $0x8] sm:$0xff]
        %s2543 = scalar_lea.vmem %s11, 16
        %v2544 = vld [vmem:[%s2543] sm:$0xff]
        %v2545 = vld [vmem:[%s2543 + $0x8] sm:$0xff]
        %v2547 = vsel %vm1885, %v2392, 0
        %2549 = vmatprep.subr.mxu0 0.0
        %2550 = vmatpush1.msra.mxu0 0.0
        %2551 = vmatprep.subr.mxu0 0.0
        %2552 = vmatpush1.msra.mxu0 0.0
        %2553 = vmatprep.subr.mxu0 0.0
        %2554 = vmatpush1.msra.mxu0 0.0
        %2555 = vmatprep.subr.mxu0 0.0
        %2556 = vmatpush1.msra.mxu0 0.0
        %2557 = vmatprep.subr.mxu0 0.0
        %2558 = vmatpush1.msra.mxu0 0.0
        %2559 = vmatprep.subr.mxu0 0.0
        %2560 = vmatpush1.msra.mxu0 0.0
        %2561 = vmatprep.subr.mxu0 0.0
        %2562 = vmatpush1.msra.mxu0 0.0
        %2563 = vmatprep.subr.mxu0 0.0
        %2564 = vmatpush1.msra.mxu0 0.0
        %2565 = vmatprep.subr.mxu0 0.0
        %2566 = vmatpush1.msra.mxu0 0.0
        %2567 = vmatprep.subr.mxu0 0.0
        %2568 = vmatpush1.msra.mxu0 0.0
        %2569 = vmatprep.subr.mxu0 0.0
        %2570 = vmatpush1.msra.mxu0 0.0
        %2571 = vmatprep.subr.mxu0 0.0
        %2572 = vmatpush1.msra.mxu0 0.0
        %2573 = vmatprep.subr.mxu0 0.0
        %2574 = vmatpush1.msra.mxu0 0.0
        %2575 = vmatprep.subr.mxu0 0.0
        %2576 = vmatpush1.msra.mxu0 0.0
        %2577 = vmatprep.subr.mxu0 0.0
        %2578 = vmatpush1.msra.mxu0 %v2545
        %2579 = vmatprep.subr.mxu0 0.0
        %2580 = vmatpush1.msra.mxu0 %v2544
        %2581 = vmatprep.subr.mxu0 0.0
        %2582 = vmatpush2.msra.mxu0 0.0
        %2583 = vmatprep.subr.mxu0 0.0
        %2584 = vmatpush2.msra.mxu0 0.0
        %2585 = vmatprep.subr.mxu0 0.0
        %2586 = vmatpush2.msra.mxu0 0.0
        %2587 = vmatprep.subr.mxu0 0.0
        %2588 = vmatpush2.msra.mxu0 0.0
        %2589 = vmatprep.subr.mxu0 0.0
        %2590 = vmatpush2.msra.mxu0 0.0
        %2591 = vmatprep.subr.mxu0 0.0
        %2592 = vmatpush2.msra.mxu0 0.0
        %2593 = vmatprep.subr.mxu0 0.0
        %2594 = vmatpush2.msra.mxu0 0.0
        %2595 = vmatprep.subr.mxu0 0.0
        %2596 = vmatpush2.msra.mxu0 0.0
        %2597 = vmatprep.subr.mxu0 0.0
        %2598 = vmatpush2.msra.mxu0 0.0
        %2599 = vmatprep.subr.mxu0 0.0
        %2600 = vmatpush2.msra.mxu0 0.0
        %2601 = vmatprep.subr.mxu0 0.0
        %2602 = vmatpush2.msra.mxu0 0.0
        %2603 = vmatprep.subr.mxu0 0.0
        %2604 = vmatpush2.msra.mxu0 0.0
        %2605 = vmatprep.subr.mxu0 0.0
        %2606 = vmatpush2.msra.mxu0 0.0
        %2607 = vmatprep.subr.mxu0 0.0
        %2608 = vmatpush2.msra.mxu0 0.0
        %2609 = vmatprep.subr.mxu0 0.0
        %2610 = vmatpush2.msra.mxu0 0.0
        %2611 = vmatprep.subr.mxu0 0.0
        %2612 = vmatpush2.msra.mxu0 0.0
        %2613 = vmatprep.mubr.f32.mxu0 0.0
        %2614 = vmatmul.mubr.f32.gmra.mxu0 %v2547
        %v2615 = vpop.f32.mrf.mxu0
        %v2616 = vadd.f32 0.0, %v2615
        %v2617 = vpop.f32.mrf.mxu0
        %2618 = vdwg.mxu0
        %v2620 = vsel %vm1885, %v2319, 0
        %2622 = vmatprep.subr.mxu0 0.0
        %2623 = vmatpush1.msra.mxu0 0.0
        %2624 = vmatprep.subr.mxu0 0.0
        %2625 = vmatpush1.msra.mxu0 0.0
        %2626 = vmatprep.subr.mxu0 0.0
        %2627 = vmatpush1.msra.mxu0 0.0
        %2628 = vmatprep.subr.mxu0 0.0
        %2629 = vmatpush1.msra.mxu0 0.0
        %2630 = vmatprep.subr.mxu0 0.0
        %2631 = vmatpush1.msra.mxu0 0.0
        %2632 = vmatprep.subr.mxu0 0.0
        %2633 = vmatpush1.msra.mxu0 0.0
        %2634 = vmatprep.subr.mxu0 0.0
        %2635 = vmatpush1.msra.mxu0 0.0
        %2636 = vmatprep.subr.mxu0 0.0
        %2637 = vmatpush1.msra.mxu0 0.0
        %2638 = vmatprep.subr.mxu0 0.0
        %2639 = vmatpush1.msra.mxu0 0.0
        %2640 = vmatprep.subr.mxu0 0.0
        %2641 = vmatpush1.msra.mxu0 0.0
        %2642 = vmatprep.subr.mxu0 0.0
        %2643 = vmatpush1.msra.mxu0 0.0
        %2644 = vmatprep.subr.mxu0 0.0
        %2645 = vmatpush1.msra.mxu0 0.0
        %2646 = vmatprep.subr.mxu0 0.0
        %2647 = vmatpush1.msra.mxu0 0.0
        %2648 = vmatprep.subr.mxu0 0.0
        %2649 = vmatpush1.msra.mxu0 0.0
        %2650 = vmatprep.subr.mxu0 0.0
        %2651 = vmatpush1.msra.mxu0 %v2542
        %2652 = vmatprep.subr.mxu0 0.0
        %2653 = vmatpush1.msra.mxu0 %v2541
        %2654 = vmatprep.subr.mxu0 0.0
        %2655 = vmatpush2.msra.mxu0 0.0
        %2656 = vmatprep.subr.mxu0 0.0
        %2657 = vmatpush2.msra.mxu0 0.0
        %2658 = vmatprep.subr.mxu0 0.0
        %2659 = vmatpush2.msra.mxu0 0.0
        %2660 = vmatprep.subr.mxu0 0.0
        %2661 = vmatpush2.msra.mxu0 0.0
        %2662 = vmatprep.subr.mxu0 0.0
        %2663 = vmatpush2.msra.mxu0 0.0
        %2664 = vmatprep.subr.mxu0 0.0
        %2665 = vmatpush2.msra.mxu0 0.0
        %2666 = vmatprep.subr.mxu0 0.0
        %2667 = vmatpush2.msra.mxu0 0.0
        %2668 = vmatprep.subr.mxu0 0.0
        %2669 = vmatpush2.msra.mxu0 0.0
        %2670 = vmatprep.subr.mxu0 0.0
        %2671 = vmatpush2.msra.mxu0 0.0
        %2672 = vmatprep.subr.mxu0 0.0
        %2673 = vmatpush2.msra.mxu0 0.0
        %2674 = vmatprep.subr.mxu0 0.0
        %2675 = vmatpush2.msra.mxu0 0.0
        %2676 = vmatprep.subr.mxu0 0.0
        %2677 = vmatpush2.msra.mxu0 0.0
        %2678 = vmatprep.subr.mxu0 0.0
        %2679 = vmatpush2.msra.mxu0 0.0
        %2680 = vmatprep.subr.mxu0 0.0
        %2681 = vmatpush2.msra.mxu0 0.0
        %2682 = vmatprep.subr.mxu0 0.0
        %2683 = vmatpush2.msra.mxu0 0.0
        %2684 = vmatprep.subr.mxu0 0.0
        %2685 = vmatpush2.msra.mxu0 0.0
        %2686 = vmatprep.mubr.f32.mxu0 0.0
        %2687 = vmatmul.mubr.f32.gmra.mxu0 %v2620
        %v2688 = vpop.f32.mrf.mxu0
        %v2689 = vadd.f32 %v2616, %v2688
        %v2690 = vpop.f32.mrf.mxu0
        %2691 = vdwg.mxu0
        %s2692 = scalar_lea.vmem %s11, 32
        %v2693 = vld [vmem:[%s2692] sm:$0xff]
        %v2694 = vld [vmem:[%s2692 + $0x8] sm:$0xff]
        %v2696 = vsel %vm1885, %v2465, 0
        %2698 = vmatprep.subr.mxu0 0.0
        %2699 = vmatpush1.msra.mxu0 0.0
        %2700 = vmatprep.subr.mxu0 0.0
        %2701 = vmatpush1.msra.mxu0 0.0
        %2702 = vmatprep.subr.mxu0 0.0
        %2703 = vmatpush1.msra.mxu0 0.0
        %2704 = vmatprep.subr.mxu0 0.0
        %2705 = vmatpush1.msra.mxu0 0.0
        %2706 = vmatprep.subr.mxu0 0.0
        %2707 = vmatpush1.msra.mxu0 0.0
        %2708 = vmatprep.subr.mxu0 0.0
        %2709 = vmatpush1.msra.mxu0 0.0
        %2710 = vmatprep.subr.mxu0 0.0
        %2711 = vmatpush1.msra.mxu0 0.0
        %2712 = vmatprep.subr.mxu0 0.0
        %2713 = vmatpush1.msra.mxu0 0.0
        %2714 = vmatprep.subr.mxu0 0.0
        %2715 = vmatpush1.msra.mxu0 0.0
        %2716 = vmatprep.subr.mxu0 0.0
        %2717 = vmatpush1.msra.mxu0 0.0
        %2718 = vmatprep.subr.mxu0 0.0
        %2719 = vmatpush1.msra.mxu0 0.0
        %2720 = vmatprep.subr.mxu0 0.0
        %2721 = vmatpush1.msra.mxu0 0.0
        %2722 = vmatprep.subr.mxu0 0.0
        %2723 = vmatpush1.msra.mxu0 0.0
        %2724 = vmatprep.subr.mxu0 0.0
        %2725 = vmatpush1.msra.mxu0 0.0
        %2726 = vmatprep.subr.mxu0 0.0
        %2727 = vmatpush1.msra.mxu0 %v2694
        %2728 = vmatprep.subr.mxu0 0.0
        %2729 = vmatpush1.msra.mxu0 %v2693
        %2730 = vmatprep.subr.mxu0 0.0
        %2731 = vmatpush2.msra.mxu0 0.0
        %2732 = vmatprep.subr.mxu0 0.0
        %2733 = vmatpush2.msra.mxu0 0.0
        %2734 = vmatprep.subr.mxu0 0.0
        %2735 = vmatpush2.msra.mxu0 0.0
        %2736 = vmatprep.subr.mxu0 0.0
        %2737 = vmatpush2.msra.mxu0 0.0
        %2738 = vmatprep.subr.mxu0 0.0
        %2739 = vmatpush2.msra.mxu0 0.0
        %2740 = vmatprep.subr.mxu0 0.0
        %2741 = vmatpush2.msra.mxu0 0.0
        %2742 = vmatprep.subr.mxu0 0.0
        %2743 = vmatpush2.msra.mxu0 0.0
        %2744 = vmatprep.subr.mxu0 0.0
        %2745 = vmatpush2.msra.mxu0 0.0
        %2746 = vmatprep.subr.mxu0 0.0
        %2747 = vmatpush2.msra.mxu0 0.0
        %2748 = vmatprep.subr.mxu0 0.0
        %2749 = vmatpush2.msra.mxu0 0.0
        %2750 = vmatprep.subr.mxu0 0.0
        %2751 = vmatpush2.msra.mxu0 0.0
        %2752 = vmatprep.subr.mxu0 0.0
        %2753 = vmatpush2.msra.mxu0 0.0
        %2754 = vmatprep.subr.mxu0 0.0
        %2755 = vmatpush2.msra.mxu0 0.0
        %2756 = vmatprep.subr.mxu0 0.0
        %2757 = vmatpush2.msra.mxu0 0.0
        %2758 = vmatprep.subr.mxu0 0.0
        %2759 = vmatpush2.msra.mxu0 0.0
        %2760 = vmatprep.subr.mxu0 0.0
        %2761 = vmatpush2.msra.mxu0 0.0
        %2762 = vmatprep.mubr.f32.mxu0 0.0
        %2763 = vmatmul.mubr.f32.gmra.mxu0 %v2696
        %v2764 = vpop.f32.mrf.mxu0
        %v2765 = vadd.f32 0.0, %v2764
        %v2766 = vpop.f32.mrf.mxu0
        %2767 = vdwg.mxu0
        %v2768 = vadd.f32 %v2689, %v2765
        %s2769 = scalar_lea.vmem %s11, 48
        %v2770 = vld [vmem:[%s2769] sm:$0xff]
        %v2771 = vld [vmem:[%s2769 + $0x8] sm:$0xff]
        %v2773 = vsel %vm1885, %v2538, 0
        %2775 = vmatprep.subr.mxu0 0.0
        %2776 = vmatpush1.msra.mxu0 0.0
        %2777 = vmatprep.subr.mxu0 0.0
        %2778 = vmatpush1.msra.mxu0 0.0
        %2779 = vmatprep.subr.mxu0 0.0
        %2780 = vmatpush1.msra.mxu0 0.0
        %2781 = vmatprep.subr.mxu0 0.0
        %2782 = vmatpush1.msra.mxu0 0.0
        %2783 = vmatprep.subr.mxu0 0.0
        %2784 = vmatpush1.msra.mxu0 0.0
        %2785 = vmatprep.subr.mxu0 0.0
        %2786 = vmatpush1.msra.mxu0 0.0
        %2787 = vmatprep.subr.mxu0 0.0
        %2788 = vmatpush1.msra.mxu0 0.0
        %2789 = vmatprep.subr.mxu0 0.0
        %2790 = vmatpush1.msra.mxu0 0.0
        %2791 = vmatprep.subr.mxu0 0.0
        %2792 = vmatpush1.msra.mxu0 0.0
        %2793 = vmatprep.subr.mxu0 0.0
        %2794 = vmatpush1.msra.mxu0 0.0
        %2795 = vmatprep.subr.mxu0 0.0
        %2796 = vmatpush1.msra.mxu0 0.0
        %2797 = vmatprep.subr.mxu0 0.0
        %2798 = vmatpush1.msra.mxu0 0.0
        %2799 = vmatprep.subr.mxu0 0.0
        %2800 = vmatpush1.msra.mxu0 0.0
        %2801 = vmatprep.subr.mxu0 0.0
        %2802 = vmatpush1.msra.mxu0 0.0
        %2803 = vmatprep.subr.mxu0 0.0
        %2804 = vmatpush1.msra.mxu0 %v2771
        %2805 = vmatprep.subr.mxu0 0.0
        %2806 = vmatpush1.msra.mxu0 %v2770
        %2807 = vmatprep.subr.mxu0 0.0
        %2808 = vmatpush2.msra.mxu0 0.0
        %2809 = vmatprep.subr.mxu0 0.0
        %2810 = vmatpush2.msra.mxu0 0.0
        %2811 = vmatprep.subr.mxu0 0.0
        %2812 = vmatpush2.msra.mxu0 0.0
        %2813 = vmatprep.subr.mxu0 0.0
        %2814 = vmatpush2.msra.mxu0 0.0
        %2815 = vmatprep.subr.mxu0 0.0
        %2816 = vmatpush2.msra.mxu0 0.0
        %2817 = vmatprep.subr.mxu0 0.0
        %2818 = vmatpush2.msra.mxu0 0.0
        %2819 = vmatprep.subr.mxu0 0.0
        %2820 = vmatpush2.msra.mxu0 0.0
        %2821 = vmatprep.subr.mxu0 0.0
        %2822 = vmatpush2.msra.mxu0 0.0
        %2823 = vmatprep.subr.mxu0 0.0
        %2824 = vmatpush2.msra.mxu0 0.0
        %2825 = vmatprep.subr.mxu0 0.0
        %2826 = vmatpush2.msra.mxu0 0.0
        %2827 = vmatprep.subr.mxu0 0.0
        %2828 = vmatpush2.msra.mxu0 0.0
        %2829 = vmatprep.subr.mxu0 0.0
        %2830 = vmatpush2.msra.mxu0 0.0
        %2831 = vmatprep.subr.mxu0 0.0
        %2832 = vmatpush2.msra.mxu0 0.0
        %2833 = vmatprep.subr.mxu0 0.0
        %2834 = vmatpush2.msra.mxu0 0.0
        %2835 = vmatprep.subr.mxu0 0.0
        %2836 = vmatpush2.msra.mxu0 0.0
        %2837 = vmatprep.subr.mxu0 0.0
        %2838 = vmatpush2.msra.mxu0 0.0
        %2839 = vmatprep.mubr.f32.mxu0 0.0
        %2840 = vmatmul.mubr.f32.gmra.mxu0 %v2773
        %v2841 = vpop.f32.mrf.mxu0
        %v2842 = vadd.f32 0.0, %v2841
        %v2843 = vpop.f32.mrf.mxu0
        %2844 = vdwg.mxu0
        %v2845 = vadd.f32 %v2768, %v2842
        %v2846 = vld [vmem:[%s12] sm:$0x1]
        %v2848 = vlaneseq
        %v2849 = vshrl.u32 %v2848, 7
        %v2850 = vsub.s32 0, %v2849
        %v2851 = vrot.slane %v2846, %v2850
        %v2853 = vadd.f32 %v2845, %v2851
        %v2854 = vadd.f32 %v2853, %v860
        %v2855 = vld [vmem:[%s13] sm:$0x1]
        %v2856 = vld [vmem:[%s14] sm:$0x1]
        %v2857 = vsel %vm832, %v2854, 0.0
        %2858 = vadd.xlane.f32.xlu0 %v2857
        %v2859 = vpop.xlane.xlu0 %2858
        %v2860 = vmul.f32 %v2859, %v836
        %v2861 = vsub.f32 %v2854, %v2860
        %v2862 = vmul.f32 %v2861, %v2861
        %v2863 = vsel %vm832, %v2862, 0.0
        %2864 = vadd.xlane.f32.xlu0 %v2863
        %v2865 = vpop.xlane.xlu0 %2864
        %v2866 = vmul.f32 %v2865, %v836
        %v2867 = vadd.f32 %v2866, 1e-12
        %v2868 = vrsqrt.pop %v2867
        %v2869 = vmul.f32 %v2861, %v2868
        %v2871 = vlaneseq
        %v2872 = vshrl.u32 %v2871, 7
        %v2873 = vsub.s32 0, %v2872
        %v2874 = vrot.slane %v2855, %v2873
        %v2876 = vmul.f32 %v2869, %v2874
        %v2878 = vlaneseq
        %v2879 = vshrl.u32 %v2878, 7
        %v2880 = vsub.s32 0, %v2879
        %v2881 = vrot.slane %v2856, %v2880
        %v2883 = vadd.f32 %v2876, %v2881
        %v2884 = vld [vmem:[%s15] sm:$0xff]
        %v2885 = vld [vmem:[%s15 + $0x8] sm:$0xff]
        %v2886 = vld [vmem:[%s15 + $0x10] sm:$0xff]
        %v2887 = vld [vmem:[%s15 + $0x18] sm:$0xff]
        %v2888 = vld [vmem:[%s15 + $0x20] sm:$0xff]
        %v2889 = vld [vmem:[%s15 + $0x28] sm:$0xff]
        %v2890 = vld [vmem:[%s15 + $0x30] sm:$0xff]
        %v2891 = vld [vmem:[%s15 + $0x38] sm:$0xff]
        %v2892 = vld [vmem:[%s16] sm:$0x1]
        %v2894 = vlaneseq
        %v2895 = vshrl.u32 %v2894, 7
        %v2896 = vsub.s32 0, %v2895
        %v2897 = vrot.slane %v2892, %v2896
        %v2900 = vsel %vm832, %v2883, 0
        %2902 = vmatprep.subr.mxu0 0.0
        %2903 = vmatpush1.msra.mxu0 0.0
        %2904 = vmatprep.subr.mxu0 0.0
        %2905 = vmatpush1.msra.mxu0 0.0
        %2906 = vmatprep.subr.mxu0 0.0
        %2907 = vmatpush1.msra.mxu0 0.0
        %2908 = vmatprep.subr.mxu0 0.0
        %2909 = vmatpush1.msra.mxu0 0.0
        %2910 = vmatprep.subr.mxu0 0.0
        %2911 = vmatpush1.msra.mxu0 0.0
        %2912 = vmatprep.subr.mxu0 0.0
        %2913 = vmatpush1.msra.mxu0 0.0
        %2914 = vmatprep.subr.mxu0 0.0
        %2915 = vmatpush1.msra.mxu0 0.0
        %2916 = vmatprep.subr.mxu0 0.0
        %2917 = vmatpush1.msra.mxu0 0.0
        %2918 = vmatprep.subr.mxu0 0.0
        %2919 = vmatpush1.msra.mxu0 %v2891
        %2920 = vmatprep.subr.mxu0 0.0
        %2921 = vmatpush1.msra.mxu0 %v2890
        %2922 = vmatprep.subr.mxu0 0.0
        %2923 = vmatpush1.msra.mxu0 %v2889
        %2924 = vmatprep.subr.mxu0 0.0
        %2925 = vmatpush1.msra.mxu0 %v2888
        %2926 = vmatprep.subr.mxu0 0.0
        %2927 = vmatpush1.msra.mxu0 %v2887
        %2928 = vmatprep.subr.mxu0 0.0
        %2929 = vmatpush1.msra.mxu0 %v2886
        %2930 = vmatprep.subr.mxu0 0.0
        %2931 = vmatpush1.msra.mxu0 %v2885
        %2932 = vmatprep.subr.mxu0 0.0
        %2933 = vmatpush1.msra.mxu0 %v2884
        %2934 = vmatprep.subr.mxu0 0.0
        %2935 = vmatpush2.msra.mxu0 0.0
        %2936 = vmatprep.subr.mxu0 0.0
        %2937 = vmatpush2.msra.mxu0 0.0
        %2938 = vmatprep.subr.mxu0 0.0
        %2939 = vmatpush2.msra.mxu0 0.0
        %2940 = vmatprep.subr.mxu0 0.0
        %2941 = vmatpush2.msra.mxu0 0.0
        %2942 = vmatprep.subr.mxu0 0.0
        %2943 = vmatpush2.msra.mxu0 0.0
        %2944 = vmatprep.subr.mxu0 0.0
        %2945 = vmatpush2.msra.mxu0 0.0
        %2946 = vmatprep.subr.mxu0 0.0
        %2947 = vmatpush2.msra.mxu0 0.0
        %2948 = vmatprep.subr.mxu0 0.0
        %2949 = vmatpush2.msra.mxu0 0.0
        %2950 = vmatprep.subr.mxu0 0.0
        %2951 = vmatpush2.msra.mxu0 0.0
        %2952 = vmatprep.subr.mxu0 0.0
        %2953 = vmatpush2.msra.mxu0 0.0
        %2954 = vmatprep.subr.mxu0 0.0
        %2955 = vmatpush2.msra.mxu0 0.0
        %2956 = vmatprep.subr.mxu0 0.0
        %2957 = vmatpush2.msra.mxu0 0.0
        %2958 = vmatprep.subr.mxu0 0.0
        %2959 = vmatpush2.msra.mxu0 0.0
        %2960 = vmatprep.subr.mxu0 0.0
        %2961 = vmatpush2.msra.mxu0 0.0
        %2962 = vmatprep.subr.mxu0 0.0
        %2963 = vmatpush2.msra.mxu0 0.0
        %2964 = vmatprep.subr.mxu0 0.0
        %2965 = vmatpush2.msra.mxu0 0.0
        %2966 = vmatprep.mubr.f32.mxu0 0.0
        %2967 = vmatmul.mubr.f32.gmra.mxu0 %v2900
        %v2968 = vpop.f32.mrf.mxu0
        %v2969 = vadd.f32 %v2897, %v2968
        %v2970 = vpop.f32.mrf.mxu0
        %2971 = vdwg.mxu0
        %v2972 = vmul.f32 %v2969, 0.5
        %v2973 = vmul.f32 %v2969, 0.044715
        %v2974 = vmul.f32 %v2973, %v2969
        %v2975 = vmul.f32 %v2974, %v2969
        %v2976 = vadd.f32 %v2969, %v2975
        %v2977 = vmul.f32 %v2976, 0.7978846
        %v2978 = vtanh.pop %v2977
        %v2979 = vadd.f32 %v2978, 1.0
        %v2980 = vmul.f32 %v2972, %v2979
        %v2981 = vld [vmem:[%s17] sm:$0xff]
        %v2982 = vld [vmem:[%s17 + $0x8] sm:$0xff]
        %v2983 = vld [vmem:[%s17 + $0x10] sm:$0xff]
        %v2984 = vld [vmem:[%s17 + $0x18] sm:$0xff]
        %v2985 = vld [vmem:[%s17 + $0x20] sm:$0xff]
        %v2986 = vld [vmem:[%s17 + $0x28] sm:$0xff]
        %v2987 = vld [vmem:[%s17 + $0x30] sm:$0xff]
        %v2988 = vld [vmem:[%s17 + $0x38] sm:$0xff]
        %v2989 = vld [vmem:[%s17 + $0x40] sm:$0xff]
        %v2990 = vld [vmem:[%s17 + $0x48] sm:$0xff]
        %v2991 = vld [vmem:[%s17 + $0x50] sm:$0xff]
        %v2992 = vld [vmem:[%s17 + $0x58] sm:$0xff]
        %v2993 = vld [vmem:[%s17 + $0x60] sm:$0xff]
        %v2994 = vld [vmem:[%s17 + $0x68] sm:$0xff]
        %v2995 = vld [vmem:[%s17 + $0x70] sm:$0xff]
        %v2996 = vld [vmem:[%s17 + $0x78] sm:$0xff]
        %v2997 = vld [vmem:[%s18] sm:$0x1]
        %v2999 = vlaneseq
        %v3000 = vshrl.u32 %v2999, 7
        %v3001 = vsub.s32 0, %v3000
        %v3002 = vrot.slane %v2997, %v3001
        %3004 = vmatprep.subr.mxu0 0.0
        %3005 = vmatpush1.msra.mxu0 %v2996
        %3006 = vmatprep.subr.mxu0 0.0
        %3007 = vmatpush1.msra.mxu0 %v2995
        %3008 = vmatprep.subr.mxu0 0.0
        %3009 = vmatpush1.msra.mxu0 %v2994
        %3010 = vmatprep.subr.mxu0 0.0
        %3011 = vmatpush1.msra.mxu0 %v2993
        %3012 = vmatprep.subr.mxu0 0.0
        %3013 = vmatpush1.msra.mxu0 %v2992
        %3014 = vmatprep.subr.mxu0 0.0
        %3015 = vmatpush1.msra.mxu0 %v2991
        %3016 = vmatprep.subr.mxu0 0.0
        %3017 = vmatpush1.msra.mxu0 %v2990
        %3018 = vmatprep.subr.mxu0 0.0
        %3019 = vmatpush1.msra.mxu0 %v2989
        %3020 = vmatprep.subr.mxu0 0.0
        %3021 = vmatpush1.msra.mxu0 %v2988
        %3022 = vmatprep.subr.mxu0 0.0
        %3023 = vmatpush1.msra.mxu0 %v2987
        %3024 = vmatprep.subr.mxu0 0.0
        %3025 = vmatpush1.msra.mxu0 %v2986
        %3026 = vmatprep.subr.mxu0 0.0
        %3027 = vmatpush1.msra.mxu0 %v2985
        %3028 = vmatprep.subr.mxu0 0.0
        %3029 = vmatpush1.msra.mxu0 %v2984
        %3030 = vmatprep.subr.mxu0 0.0
        %3031 = vmatpush1.msra.mxu0 %v2983
        %3032 = vmatprep.subr.mxu0 0.0
        %3033 = vmatpush1.msra.mxu0 %v2982
        %3034 = vmatprep.subr.mxu0 0.0
        %3035 = vmatpush1.msra.mxu0 %v2981
        %3036 = vmatprep.subr.mxu0 0.0
        %3037 = vmatpush2.msra.mxu0 0.0
        %3038 = vmatprep.subr.mxu0 0.0
        %3039 = vmatpush2.msra.mxu0 0.0
        %3040 = vmatprep.subr.mxu0 0.0
        %3041 = vmatpush2.msra.mxu0 0.0
        %3042 = vmatprep.subr.mxu0 0.0
        %3043 = vmatpush2.msra.mxu0 0.0
        %3044 = vmatprep.subr.mxu0 0.0
        %3045 = vmatpush2.msra.mxu0 0.0
        %3046 = vmatprep.subr.mxu0 0.0
        %3047 = vmatpush2.msra.mxu0 0.0
        %3048 = vmatprep.subr.mxu0 0.0
        %3049 = vmatpush2.msra.mxu0 0.0
        %3050 = vmatprep.subr.mxu0 0.0
        %3051 = vmatpush2.msra.mxu0 0.0
        %3052 = vmatprep.subr.mxu0 0.0
        %3053 = vmatpush2.msra.mxu0 0.0
        %3054 = vmatprep.subr.mxu0 0.0
        %3055 = vmatpush2.msra.mxu0 0.0
        %3056 = vmatprep.subr.mxu0 0.0
        %3057 = vmatpush2.msra.mxu0 0.0
        %3058 = vmatprep.subr.mxu0 0.0
        %3059 = vmatpush2.msra.mxu0 0.0
        %3060 = vmatprep.subr.mxu0 0.0
        %3061 = vmatpush2.msra.mxu0 0.0
        %3062 = vmatprep.subr.mxu0 0.0
        %3063 = vmatpush2.msra.mxu0 0.0
        %3064 = vmatprep.subr.mxu0 0.0
        %3065 = vmatpush2.msra.mxu0 0.0
        %3066 = vmatprep.subr.mxu0 0.0
        %3067 = vmatpush2.msra.mxu0 0.0
        %3068 = vmatprep.mubr.f32.mxu0 0.0
        %3069 = vmatmul.mubr.f32.gmra.mxu0 %v2980
        %v3070 = vpop.f32.mrf.mxu0
        %v3071 = vadd.f32 %v3002, %v3070
        %v3072 = vpop.f32.mrf.mxu0
        %3073 = vdwg.mxu0
        %v3074 = vadd.f32 %v3071, %v2883
        %v3075 = vld [vmem:[%s19] sm:$0x1]
        %v3076 = vld [vmem:[%s20] sm:$0x1]
        %v3077 = vsel %vm832, %v3074, 0.0
        %3078 = vadd.xlane.f32.xlu0 %v3077
        %v3079 = vpop.xlane.xlu0 %3078
        %v3080 = vmul.f32 %v3079, %v836
        %v3081 = vsub.f32 %v3074, %v3080
        %v3082 = vmul.f32 %v3081, %v3081
        %v3083 = vsel %vm832, %v3082, 0.0
        %3084 = vadd.xlane.f32.xlu0 %v3083
        %v3085 = vpop.xlane.xlu0 %3084
        %v3086 = vmul.f32 %v3085, %v836
        %v3087 = vadd.f32 %v3086, 1e-12
        %v3088 = vrsqrt.pop %v3087
        %v3089 = vmul.f32 %v3081, %v3088
        %v3091 = vlaneseq
        %v3092 = vshrl.u32 %v3091, 7
        %v3093 = vsub.s32 0, %v3092
        %v3094 = vrot.slane %v3075, %v3093
        %v3096 = vmul.f32 %v3089, %v3094
        %v3098 = vlaneseq
        %v3099 = vshrl.u32 %v3098, 7
        %v3100 = vsub.s32 0, %v3099
        %v3101 = vrot.slane %v3076, %v3100
        %v3103 = vadd.f32 %v3096, %v3101
        %s3104 = scalar_lea.vmem %s5, 256
        %v3105 = vld [vmem:[%s3104] sm:$0xff]
        %v3106 = vld [vmem:[%s3104 + $0x8] sm:$0xff]
        %v3107 = vld [vmem:[%s3104 + $0x10] sm:$0xff]
        %v3108 = vld [vmem:[%s3104 + $0x18] sm:$0xff]
        %v3109 = vld [vmem:[%s3104 + $0x20] sm:$0xff]
        %v3110 = vld [vmem:[%s3104 + $0x28] sm:$0xff]
        %v3111 = vld [vmem:[%s3104 + $0x30] sm:$0xff]
        %v3112 = vld [vmem:[%s3104 + $0x38] sm:$0xff]
        %v3113 = vld [vmem:[%s3104 + $0x40] sm:$0xff]
        %v3114 = vld [vmem:[%s3104 + $0x48] sm:$0xff]
        %v3115 = vld [vmem:[%s3104 + $0x50] sm:$0xff]
        %v3116 = vld [vmem:[%s3104 + $0x58] sm:$0xff]
        %v3117 = vld [vmem:[%s3104 + $0x60] sm:$0xff]
        %v3118 = vld [vmem:[%s3104 + $0x68] sm:$0xff]
        %v3119 = vld [vmem:[%s3104 + $0x70] sm:$0xff]
        %v3120 = vld [vmem:[%s3104 + $0x78] sm:$0xff]
        %v3121 = vld [vmem:[%s3104 + $0x80] sm:$0xff]
        %v3122 = vld [vmem:[%s3104 + $0x88] sm:$0xff]
        %v3123 = vld [vmem:[%s3104 + $0x90] sm:$0xff]
        %v3124 = vld [vmem:[%s3104 + $0x98] sm:$0xff]
        %v3125 = vld [vmem:[%s3104 + $0xa0] sm:$0xff]
        %v3126 = vld [vmem:[%s3104 + $0xa8] sm:$0xff]
        %v3127 = vld [vmem:[%s3104 + $0xb0] sm:$0xff]
        %v3128 = vld [vmem:[%s3104 + $0xb8] sm:$0xff]
        %v3129 = vld [vmem:[%s3104 + $0xc0] sm:$0xff]
        %v3130 = vld [vmem:[%s3104 + $0xc8] sm:$0xff]
        %v3131 = vld [vmem:[%s3104 + $0xd0] sm:$0xff]
        %v3132 = vld [vmem:[%s3104 + $0xd8] sm:$0xff]
        %v3133 = vld [vmem:[%s3104 + $0xe0] sm:$0xff]
        %v3134 = vld [vmem:[%s3104 + $0xe8] sm:$0xff]
        %v3135 = vld [vmem:[%s3104 + $0xf0] sm:$0xff]
        %v3136 = vld [vmem:[%s3104 + $0xf8] sm:$0xff]
        %s3137 = scalar_lea.vmem %s6, 4
        %v3138 = vld [vmem:[%s3137] sm:$0x1]
        %v3139 = vld [vmem:[%s3137 + $0x1] sm:$0x1]
        %v3140 = vld [vmem:[%s3137 + $0x2] sm:$0x1]
        %v3141 = vld [vmem:[%s3137 + $0x3] sm:$0x1]
        %v3146 = vlaneseq
        %v3147 = vshrl.u32 %v3146, 7
        %v3148 = vsub.s32 0, %v3147
        %v3149 = vrot.slane %v3138, %v3148
        %v3150 = vlaneseq
        %v3151 = vshrl.u32 %v3150, 7
        %v3152 = vsub.s32 0, %v3151
        %v3153 = vrot.slane %v3139, %v3152
        %v3154 = vlaneseq
        %v3155 = vshrl.u32 %v3154, 7
        %v3156 = vsub.s32 0, %v3155
        %v3157 = vrot.slane %v3140, %v3156
        %v3158 = vlaneseq
        %v3159 = vshrl.u32 %v3158, 7
        %v3160 = vsub.s32 0, %v3159
        %v3161 = vrot.slane %v3141, %v3160
        %v3167 = vsel %vm832, %v3103, 0
        %3169 = vmatprep.subr.mxu0 0.0
        %3170 = vmatpush1.msra.mxu0 0.0
        %3171 = vmatprep.subr.mxu0 0.0
        %3172 = vmatpush1.msra.mxu0 0.0
        %3173 = vmatprep.subr.mxu0 0.0
        %3174 = vmatpush1.msra.mxu0 0.0
        %3175 = vmatprep.subr.mxu0 0.0
        %3176 = vmatpush1.msra.mxu0 0.0
        %3177 = vmatprep.subr.mxu0 0.0
        %3178 = vmatpush1.msra.mxu0 0.0
        %3179 = vmatprep.subr.mxu0 0.0
        %3180 = vmatpush1.msra.mxu0 0.0
        %3181 = vmatprep.subr.mxu0 0.0
        %3182 = vmatpush1.msra.mxu0 0.0
        %3183 = vmatprep.subr.mxu0 0.0
        %3184 = vmatpush1.msra.mxu0 0.0
        %3185 = vmatprep.subr.mxu0 0.0
        %3186 = vmatpush1.msra.mxu0 %v3112
        %3187 = vmatprep.subr.mxu0 0.0
        %3188 = vmatpush1.msra.mxu0 %v3111
        %3189 = vmatprep.subr.mxu0 0.0
        %3190 = vmatpush1.msra.mxu0 %v3110
        %3191 = vmatprep.subr.mxu0 0.0
        %3192 = vmatpush1.msra.mxu0 %v3109
        %3193 = vmatprep.subr.mxu0 0.0
        %3194 = vmatpush1.msra.mxu0 %v3108
        %3195 = vmatprep.subr.mxu0 0.0
        %3196 = vmatpush1.msra.mxu0 %v3107
        %3197 = vmatprep.subr.mxu0 0.0
        %3198 = vmatpush1.msra.mxu0 %v3106
        %3199 = vmatprep.subr.mxu0 0.0
        %3200 = vmatpush1.msra.mxu0 %v3105
        %3201 = vmatprep.subr.mxu0 0.0
        %3202 = vmatpush2.msra.mxu0 0.0
        %3203 = vmatprep.subr.mxu0 0.0
        %3204 = vmatpush2.msra.mxu0 0.0
        %3205 = vmatprep.subr.mxu0 0.0
        %3206 = vmatpush2.msra.mxu0 0.0
        %3207 = vmatprep.subr.mxu0 0.0
        %3208 = vmatpush2.msra.mxu0 0.0
        %3209 = vmatprep.subr.mxu0 0.0
        %3210 = vmatpush2.msra.mxu0 0.0
        %3211 = vmatprep.subr.mxu0 0.0
        %3212 = vmatpush2.msra.mxu0 0.0
        %3213 = vmatprep.subr.mxu0 0.0
        %3214 = vmatpush2.msra.mxu0 0.0
        %3215 = vmatprep.subr.mxu0 0.0
        %3216 = vmatpush2.msra.mxu0 0.0
        %3217 = vmatprep.subr.mxu0 0.0
        %3218 = vmatpush2.msra.mxu0 0.0
        %3219 = vmatprep.subr.mxu0 0.0
        %3220 = vmatpush2.msra.mxu0 0.0
        %3221 = vmatprep.subr.mxu0 0.0
        %3222 = vmatpush2.msra.mxu0 0.0
        %3223 = vmatprep.subr.mxu0 0.0
        %3224 = vmatpush2.msra.mxu0 0.0
        %3225 = vmatprep.subr.mxu0 0.0
        %3226 = vmatpush2.msra.mxu0 0.0
        %3227 = vmatprep.subr.mxu0 0.0
        %3228 = vmatpush2.msra.mxu0 0.0
        %3229 = vmatprep.subr.mxu0 0.0
        %3230 = vmatpush2.msra.mxu0 0.0
        %3231 = vmatprep.subr.mxu0 0.0
        %3232 = vmatpush2.msra.mxu0 0.0
        %3233 = vmatprep.mubr.f32.mxu0 0.0
        %3234 = vmatmul.mubr.f32.gmra.mxu0 %v3167
        %v3235 = vpop.f32.mrf.mxu0
        %v3236 = vadd.f32 %v3149, %v3235
        %v3237 = vpop.f32.mrf.mxu0
        %3238 = vdwg.mxu0
        %3239 = vmatprep.subr.mxu0 0.0
        %3240 = vmatpush1.msra.mxu0 0.0
        %3241 = vmatprep.subr.mxu0 0.0
        %3242 = vmatpush1.msra.mxu0 0.0
        %3243 = vmatprep.subr.mxu0 0.0
        %3244 = vmatpush1.msra.mxu0 0.0
        %3245 = vmatprep.subr.mxu0 0.0
        %3246 = vmatpush1.msra.mxu0 0.0
        %3247 = vmatprep.subr.mxu0 0.0
        %3248 = vmatpush1.msra.mxu0 0.0
        %3249 = vmatprep.subr.mxu0 0.0
        %3250 = vmatpush1.msra.mxu0 0.0
        %3251 = vmatprep.subr.mxu0 0.0
        %3252 = vmatpush1.msra.mxu0 0.0
        %3253 = vmatprep.subr.mxu0 0.0
        %3254 = vmatpush1.msra.mxu0 0.0
        %3255 = vmatprep.subr.mxu0 0.0
        %3256 = vmatpush1.msra.mxu0 %v3120
        %3257 = vmatprep.subr.mxu0 0.0
        %3258 = vmatpush1.msra.mxu0 %v3119
        %3259 = vmatprep.subr.mxu0 0.0
        %3260 = vmatpush1.msra.mxu0 %v3118
        %3261 = vmatprep.subr.mxu0 0.0
        %3262 = vmatpush1.msra.mxu0 %v3117
        %3263 = vmatprep.subr.mxu0 0.0
        %3264 = vmatpush1.msra.mxu0 %v3116
        %3265 = vmatprep.subr.mxu0 0.0
        %3266 = vmatpush1.msra.mxu0 %v3115
        %3267 = vmatprep.subr.mxu0 0.0
        %3268 = vmatpush1.msra.mxu0 %v3114
        %3269 = vmatprep.subr.mxu0 0.0
        %3270 = vmatpush1.msra.mxu0 %v3113
        %3271 = vmatprep.subr.mxu0 0.0
        %3272 = vmatpush2.msra.mxu0 0.0
        %3273 = vmatprep.subr.mxu0 0.0
        %3274 = vmatpush2.msra.mxu0 0.0
        %3275 = vmatprep.subr.mxu0 0.0
        %3276 = vmatpush2.msra.mxu0 0.0
        %3277 = vmatprep.subr.mxu0 0.0
        %3278 = vmatpush2.msra.mxu0 0.0
        %3279 = vmatprep.subr.mxu0 0.0
        %3280 = vmatpush2.msra.mxu0 0.0
        %3281 = vmatprep.subr.mxu0 0.0
        %3282 = vmatpush2.msra.mxu0 0.0
        %3283 = vmatprep.subr.mxu0 0.0
        %3284 = vmatpush2.msra.mxu0 0.0
        %3285 = vmatprep.subr.mxu0 0.0
        %3286 = vmatpush2.msra.mxu0 0.0
        %3287 = vmatprep.subr.mxu0 0.0
        %3288 = vmatpush2.msra.mxu0 0.0
        %3289 = vmatprep.subr.mxu0 0.0
        %3290 = vmatpush2.msra.mxu0 0.0
        %3291 = vmatprep.subr.mxu0 0.0
        %3292 = vmatpush2.msra.mxu0 0.0
        %3293 = vmatprep.subr.mxu0 0.0
        %3294 = vmatpush2.msra.mxu0 0.0
        %3295 = vmatprep.subr.mxu0 0.0
        %3296 = vmatpush2.msra.mxu0 0.0
        %3297 = vmatprep.subr.mxu0 0.0
        %3298 = vmatpush2.msra.mxu0 0.0
        %3299 = vmatprep.subr.mxu0 0.0
        %3300 = vmatpush2.msra.mxu0 0.0
        %3301 = vmatprep.subr.mxu0 0.0
        %3302 = vmatpush2.msra.mxu0 0.0
        %3303 = vmatprep.mubr.f32.mxu0 0.0
        %3304 = vmatmul.mubr.f32.gmra.mxu0 %v3167
        %v3305 = vpop.f32.mrf.mxu0
        %v3306 = vadd.f32 %v3153, %v3305
        %v3307 = vpop.f32.mrf.mxu0
        %3308 = vdwg.mxu0
        %3309 = vmatprep.subr.mxu0 0.0
        %3310 = vmatpush1.msra.mxu0 0.0
        %3311 = vmatprep.subr.mxu0 0.0
        %3312 = vmatpush1.msra.mxu0 0.0
        %3313 = vmatprep.subr.mxu0 0.0
        %3314 = vmatpush1.msra.mxu0 0.0
        %3315 = vmatprep.subr.mxu0 0.0
        %3316 = vmatpush1.msra.mxu0 0.0
        %3317 = vmatprep.subr.mxu0 0.0
        %3318 = vmatpush1.msra.mxu0 0.0
        %3319 = vmatprep.subr.mxu0 0.0
        %3320 = vmatpush1.msra.mxu0 0.0
        %3321 = vmatprep.subr.mxu0 0.0
        %3322 = vmatpush1.msra.mxu0 0.0
        %3323 = vmatprep.subr.mxu0 0.0
        %3324 = vmatpush1.msra.mxu0 0.0
        %3325 = vmatprep.subr.mxu0 0.0
        %3326 = vmatpush1.msra.mxu0 %v3128
        %3327 = vmatprep.subr.mxu0 0.0
        %3328 = vmatpush1.msra.mxu0 %v3127
        %3329 = vmatprep.subr.mxu0 0.0
        %3330 = vmatpush1.msra.mxu0 %v3126
        %3331 = vmatprep.subr.mxu0 0.0
        %3332 = vmatpush1.msra.mxu0 %v3125
        %3333 = vmatprep.subr.mxu0 0.0
        %3334 = vmatpush1.msra.mxu0 %v3124
        %3335 = vmatprep.subr.mxu0 0.0
        %3336 = vmatpush1.msra.mxu0 %v3123
        %3337 = vmatprep.subr.mxu0 0.0
        %3338 = vmatpush1.msra.mxu0 %v3122
        %3339 = vmatprep.subr.mxu0 0.0
        %3340 = vmatpush1.msra.mxu0 %v3121
        %3341 = vmatprep.subr.mxu0 0.0
        %3342 = vmatpush2.msra.mxu0 0.0
        %3343 = vmatprep.subr.mxu0 0.0
        %3344 = vmatpush2.msra.mxu0 0.0
        %3345 = vmatprep.subr.mxu0 0.0
        %3346 = vmatpush2.msra.mxu0 0.0
        %3347 = vmatprep.subr.mxu0 0.0
        %3348 = vmatpush2.msra.mxu0 0.0
        %3349 = vmatprep.subr.mxu0 0.0
        %3350 = vmatpush2.msra.mxu0 0.0
        %3351 = vmatprep.subr.mxu0 0.0
        %3352 = vmatpush2.msra.mxu0 0.0
        %3353 = vmatprep.subr.mxu0 0.0
        %3354 = vmatpush2.msra.mxu0 0.0
        %3355 = vmatprep.subr.mxu0 0.0
        %3356 = vmatpush2.msra.mxu0 0.0
        %3357 = vmatprep.subr.mxu0 0.0
        %3358 = vmatpush2.msra.mxu0 0.0
        %3359 = vmatprep.subr.mxu0 0.0
        %3360 = vmatpush2.msra.mxu0 0.0
        %3361 = vmatprep.subr.mxu0 0.0
        %3362 = vmatpush2.msra.mxu0 0.0
        %3363 = vmatprep.subr.mxu0 0.0
        %3364 = vmatpush2.msra.mxu0 0.0
        %3365 = vmatprep.subr.mxu0 0.0
        %3366 = vmatpush2.msra.mxu0 0.0
        %3367 = vmatprep.subr.mxu0 0.0
        %3368 = vmatpush2.msra.mxu0 0.0
        %3369 = vmatprep.subr.mxu0 0.0
        %3370 = vmatpush2.msra.mxu0 0.0
        %3371 = vmatprep.subr.mxu0 0.0
        %3372 = vmatpush2.msra.mxu0 0.0
        %3373 = vmatprep.mubr.f32.mxu0 0.0
        %3374 = vmatmul.mubr.f32.gmra.mxu0 %v3167
        %v3375 = vpop.f32.mrf.mxu0
        %v3376 = vadd.f32 %v3157, %v3375
        %v3377 = vpop.f32.mrf.mxu0
        %3378 = vdwg.mxu0
        %3379 = vmatprep.subr.mxu0 0.0
        %3380 = vmatpush1.msra.mxu0 0.0
        %3381 = vmatprep.subr.mxu0 0.0
        %3382 = vmatpush1.msra.mxu0 0.0
        %3383 = vmatprep.subr.mxu0 0.0
        %3384 = vmatpush1.msra.mxu0 0.0
        %3385 = vmatprep.subr.mxu0 0.0
        %3386 = vmatpush1.msra.mxu0 0.0
        %3387 = vmatprep.subr.mxu0 0.0
        %3388 = vmatpush1.msra.mxu0 0.0
        %3389 = vmatprep.subr.mxu0 0.0
        %3390 = vmatpush1.msra.mxu0 0.0
        %3391 = vmatprep.subr.mxu0 0.0
        %3392 = vmatpush1.msra.mxu0 0.0
        %3393 = vmatprep.subr.mxu0 0.0
        %3394 = vmatpush1.msra.mxu0 0.0
        %3395 = vmatprep.subr.mxu0 0.0
        %3396 = vmatpush1.msra.mxu0 %v3136
        %3397 = vmatprep.subr.mxu0 0.0
        %3398 = vmatpush1.msra.mxu0 %v3135
        %3399 = vmatprep.subr.mxu0 0.0
        %3400 = vmatpush1.msra.mxu0 %v3134
        %3401 = vmatprep.subr.mxu0 0.0
        %3402 = vmatpush1.msra.mxu0 %v3133
        %3403 = vmatprep.subr.mxu0 0.0
        %3404 = vmatpush1.msra.mxu0 %v3132
        %3405 = vmatprep.subr.mxu0 0.0
        %3406 = vmatpush1.msra.mxu0 %v3131
        %3407 = vmatprep.subr.mxu0 0.0
        %3408 = vmatpush1.msra.mxu0 %v3130
        %3409 = vmatprep.subr.mxu0 0.0
        %3410 = vmatpush1.msra.mxu0 %v3129
        %3411 = vmatprep.subr.mxu0 0.0
        %3412 = vmatpush2.msra.mxu0 0.0
        %3413 = vmatprep.subr.mxu0 0.0
        %3414 = vmatpush2.msra.mxu0 0.0
        %3415 = vmatprep.subr.mxu0 0.0
        %3416 = vmatpush2.msra.mxu0 0.0
        %3417 = vmatprep.subr.mxu0 0.0
        %3418 = vmatpush2.msra.mxu0 0.0
        %3419 = vmatprep.subr.mxu0 0.0
        %3420 = vmatpush2.msra.mxu0 0.0
        %3421 = vmatprep.subr.mxu0 0.0
        %3422 = vmatpush2.msra.mxu0 0.0
        %3423 = vmatprep.subr.mxu0 0.0
        %3424 = vmatpush2.msra.mxu0 0.0
        %3425 = vmatprep.subr.mxu0 0.0
        %3426 = vmatpush2.msra.mxu0 0.0
        %3427 = vmatprep.subr.mxu0 0.0
        %3428 = vmatpush2.msra.mxu0 0.0
        %3429 = vmatprep.subr.mxu0 0.0
        %3430 = vmatpush2.msra.mxu0 0.0
        %3431 = vmatprep.subr.mxu0 0.0
        %3432 = vmatpush2.msra.mxu0 0.0
        %3433 = vmatprep.subr.mxu0 0.0
        %3434 = vmatpush2.msra.mxu0 0.0
        %3435 = vmatprep.subr.mxu0 0.0
        %3436 = vmatpush2.msra.mxu0 0.0
        %3437 = vmatprep.subr.mxu0 0.0
        %3438 = vmatpush2.msra.mxu0 0.0
        %3439 = vmatprep.subr.mxu0 0.0
        %3440 = vmatpush2.msra.mxu0 0.0
        %3441 = vmatprep.subr.mxu0 0.0
        %3442 = vmatpush2.msra.mxu0 0.0
        %3443 = vmatprep.mubr.f32.mxu0 0.0
        %3444 = vmatmul.mubr.f32.gmra.mxu0 %v3167
        %v3445 = vpop.f32.mrf.mxu0
        %v3446 = vadd.f32 %v3161, %v3445
        %v3447 = vpop.f32.mrf.mxu0
        %3448 = vdwg.mxu0
        %s3449 = scalar_lea.vmem %s7, 256
        %v3450 = vld [vmem:[%s3449] sm:$0xff]
        %v3451 = vld [vmem:[%s3449 + $0x8] sm:$0xff]
        %v3452 = vld [vmem:[%s3449 + $0x10] sm:$0xff]
        %v3453 = vld [vmem:[%s3449 + $0x18] sm:$0xff]
        %v3454 = vld [vmem:[%s3449 + $0x20] sm:$0xff]
        %v3455 = vld [vmem:[%s3449 + $0x28] sm:$0xff]
        %v3456 = vld [vmem:[%s3449 + $0x30] sm:$0xff]
        %v3457 = vld [vmem:[%s3449 + $0x38] sm:$0xff]
        %v3458 = vld [vmem:[%s3449 + $0x40] sm:$0xff]
        %v3459 = vld [vmem:[%s3449 + $0x48] sm:$0xff]
        %v3460 = vld [vmem:[%s3449 + $0x50] sm:$0xff]
        %v3461 = vld [vmem:[%s3449 + $0x58] sm:$0xff]
        %v3462 = vld [vmem:[%s3449 + $0x60] sm:$0xff]
        %v3463 = vld [vmem:[%s3449 + $0x68] sm:$0xff]
        %v3464 = vld [vmem:[%s3449 + $0x70] sm:$0xff]
        %v3465 = vld [vmem:[%s3449 + $0x78] sm:$0xff]
        %v3466 = vld [vmem:[%s3449 + $0x80] sm:$0xff]
        %v3467 = vld [vmem:[%s3449 + $0x88] sm:$0xff]
        %v3468 = vld [vmem:[%s3449 + $0x90] sm:$0xff]
        %v3469 = vld [vmem:[%s3449 + $0x98] sm:$0xff]
        %v3470 = vld [vmem:[%s3449 + $0xa0] sm:$0xff]
        %v3471 = vld [vmem:[%s3449 + $0xa8] sm:$0xff]
        %v3472 = vld [vmem:[%s3449 + $0xb0] sm:$0xff]
        %v3473 = vld [vmem:[%s3449 + $0xb8] sm:$0xff]
        %v3474 = vld [vmem:[%s3449 + $0xc0] sm:$0xff]
        %v3475 = vld [vmem:[%s3449 + $0xc8] sm:$0xff]
        %v3476 = vld [vmem:[%s3449 + $0xd0] sm:$0xff]
        %v3477 = vld [vmem:[%s3449 + $0xd8] sm:$0xff]
        %v3478 = vld [vmem:[%s3449 + $0xe0] sm:$0xff]
        %v3479 = vld [vmem:[%s3449 + $0xe8] sm:$0xff]
        %v3480 = vld [vmem:[%s3449 + $0xf0] sm:$0xff]
        %v3481 = vld [vmem:[%s3449 + $0xf8] sm:$0xff]
        %s3482 = scalar_lea.vmem %s8, 4
        %v3483 = vld [vmem:[%s3482] sm:$0x1]
        %v3484 = vld [vmem:[%s3482 + $0x1] sm:$0x1]
        %v3485 = vld [vmem:[%s3482 + $0x2] sm:$0x1]
        %v3486 = vld [vmem:[%s3482 + $0x3] sm:$0x1]
        %v3491 = vlaneseq
        %v3492 = vshrl.u32 %v3491, 7
        %v3493 = vsub.s32 0, %v3492
        %v3494 = vrot.slane %v3483, %v3493
        %v3495 = vlaneseq
        %v3496 = vshrl.u32 %v3495, 7
        %v3497 = vsub.s32 0, %v3496
        %v3498 = vrot.slane %v3484, %v3497
        %v3499 = vlaneseq
        %v3500 = vshrl.u32 %v3499, 7
        %v3501 = vsub.s32 0, %v3500
        %v3502 = vrot.slane %v3485, %v3501
        %v3503 = vlaneseq
        %v3504 = vshrl.u32 %v3503, 7
        %v3505 = vsub.s32 0, %v3504
        %v3506 = vrot.slane %v3486, %v3505
        %3511 = vmatprep.subr.mxu0 0.0
        %3512 = vmatpush1.msra.mxu0 0.0
        %3513 = vmatprep.subr.mxu0 0.0
        %3514 = vmatpush1.msra.mxu0 0.0
        %3515 = vmatprep.subr.mxu0 0.0
        %3516 = vmatpush1.msra.mxu0 0.0
        %3517 = vmatprep.subr.mxu0 0.0
        %3518 = vmatpush1.msra.mxu0 0.0
        %3519 = vmatprep.subr.mxu0 0.0
        %3520 = vmatpush1.msra.mxu0 0.0
        %3521 = vmatprep.subr.mxu0 0.0
        %3522 = vmatpush1.msra.mxu0 0.0
        %3523 = vmatprep.subr.mxu0 0.0
        %3524 = vmatpush1.msra.mxu0 0.0
        %3525 = vmatprep.subr.mxu0 0.0
        %3526 = vmatpush1.msra.mxu0 0.0
        %3527 = vmatprep.subr.mxu0 0.0
        %3528 = vmatpush1.msra.mxu0 %v3457
        %3529 = vmatprep.subr.mxu0 0.0
        %3530 = vmatpush1.msra.mxu0 %v3456
        %3531 = vmatprep.subr.mxu0 0.0
        %3532 = vmatpush1.msra.mxu0 %v3455
        %3533 = vmatprep.subr.mxu0 0.0
        %3534 = vmatpush1.msra.mxu0 %v3454
        %3535 = vmatprep.subr.mxu0 0.0
        %3536 = vmatpush1.msra.mxu0 %v3453
        %3537 = vmatprep.subr.mxu0 0.0
        %3538 = vmatpush1.msra.mxu0 %v3452
        %3539 = vmatprep.subr.mxu0 0.0
        %3540 = vmatpush1.msra.mxu0 %v3451
        %3541 = vmatprep.subr.mxu0 0.0
        %3542 = vmatpush1.msra.mxu0 %v3450
        %3543 = vmatprep.subr.mxu0 0.0
        %3544 = vmatpush2.msra.mxu0 0.0
        %3545 = vmatprep.subr.mxu0 0.0
        %3546 = vmatpush2.msra.mxu0 0.0
        %3547 = vmatprep.subr.mxu0 0.0
        %3548 = vmatpush2.msra.mxu0 0.0
        %3549 = vmatprep.subr.mxu0 0.0
        %3550 = vmatpush2.msra.mxu0 0.0
        %3551 = vmatprep.subr.mxu0 0.0
        %3552 = vmatpush2.msra.mxu0 0.0
        %3553 = vmatprep.subr.mxu0 0.0
        %3554 = vmatpush2.msra.mxu0 0.0
        %3555 = vmatprep.subr.mxu0 0.0
        %3556 = vmatpush2.msra.mxu0 0.0
        %3557 = vmatprep.subr.mxu0 0.0
        %3558 = vmatpush2.msra.mxu0 0.0
        %3559 = vmatprep.subr.mxu0 0.0
        %3560 = vmatpush2.msra.mxu0 0.0
        %3561 = vmatprep.subr.mxu0 0.0
        %3562 = vmatpush2.msra.mxu0 0.0
        %3563 = vmatprep.subr.mxu0 0.0
        %3564 = vmatpush2.msra.mxu0 0.0
        %3565 = vmatprep.subr.mxu0 0.0
        %3566 = vmatpush2.msra.mxu0 0.0
        %3567 = vmatprep.subr.mxu0 0.0
        %3568 = vmatpush2.msra.mxu0 0.0
        %3569 = vmatprep.subr.mxu0 0.0
        %3570 = vmatpush2.msra.mxu0 0.0
        %3571 = vmatprep.subr.mxu0 0.0
        %3572 = vmatpush2.msra.mxu0 0.0
        %3573 = vmatprep.subr.mxu0 0.0
        %3574 = vmatpush2.msra.mxu0 0.0
        %3575 = vmatprep.mubr.f32.mxu0 0.0
        %3576 = vmatmul.mubr.f32.gmra.mxu0 %v3167
        %v3577 = vpop.f32.mrf.mxu0
        %v3578 = vadd.f32 %v3494, %v3577
        %v3579 = vpop.f32.mrf.mxu0
        %3580 = vdwg.mxu0
        %3581 = vmatprep.subr.mxu0 0.0
        %3582 = vmatpush1.msra.mxu0 0.0
        %3583 = vmatprep.subr.mxu0 0.0
        %3584 = vmatpush1.msra.mxu0 0.0
        %3585 = vmatprep.subr.mxu0 0.0
        %3586 = vmatpush1.msra.mxu0 0.0
        %3587 = vmatprep.subr.mxu0 0.0
        %3588 = vmatpush1.msra.mxu0 0.0
        %3589 = vmatprep.subr.mxu0 0.0
        %3590 = vmatpush1.msra.mxu0 0.0
        %3591 = vmatprep.subr.mxu0 0.0
        %3592 = vmatpush1.msra.mxu0 0.0
        %3593 = vmatprep.subr.mxu0 0.0
        %3594 = vmatpush1.msra.mxu0 0.0
        %3595 = vmatprep.subr.mxu0 0.0
        %3596 = vmatpush1.msra.mxu0 0.0
        %3597 = vmatprep.subr.mxu0 0.0
        %3598 = vmatpush1.msra.mxu0 %v3465
        %3599 = vmatprep.subr.mxu0 0.0
        %3600 = vmatpush1.msra.mxu0 %v3464
        %3601 = vmatprep.subr.mxu0 0.0
        %3602 = vmatpush1.msra.mxu0 %v3463
        %3603 = vmatprep.subr.mxu0 0.0
        %3604 = vmatpush1.msra.mxu0 %v3462
        %3605 = vmatprep.subr.mxu0 0.0
        %3606 = vmatpush1.msra.mxu0 %v3461
        %3607 = vmatprep.subr.mxu0 0.0
        %3608 = vmatpush1.msra.mxu0 %v3460
        %3609 = vmatprep.subr.mxu0 0.0
        %3610 = vmatpush1.msra.mxu0 %v3459
        %3611 = vmatprep.subr.mxu0 0.0
        %3612 = vmatpush1.msra.mxu0 %v3458
        %3613 = vmatprep.subr.mxu0 0.0
        %3614 = vmatpush2.msra.mxu0 0.0
        %3615 = vmatprep.subr.mxu0 0.0
        %3616 = vmatpush2.msra.mxu0 0.0
        %3617 = vmatprep.subr.mxu0 0.0
        %3618 = vmatpush2.msra.mxu0 0.0
        %3619 = vmatprep.subr.mxu0 0.0
        %3620 = vmatpush2.msra.mxu0 0.0
        %3621 = vmatprep.subr.mxu0 0.0
        %3622 = vmatpush2.msra.mxu0 0.0
        %3623 = vmatprep.subr.mxu0 0.0
        %3624 = vmatpush2.msra.mxu0 0.0
        %3625 = vmatprep.subr.mxu0 0.0
        %3626 = vmatpush2.msra.mxu0 0.0
        %3627 = vmatprep.subr.mxu0 0.0
        %3628 = vmatpush2.msra.mxu0 0.0
        %3629 = vmatprep.subr.mxu0 0.0
        %3630 = vmatpush2.msra.mxu0 0.0
        %3631 = vmatprep.subr.mxu0 0.0
        %3632 = vmatpush2.msra.mxu0 0.0
        %3633 = vmatprep.subr.mxu0 0.0
        %3634 = vmatpush2.msra.mxu0 0.0
        %3635 = vmatprep.subr.mxu0 0.0
        %3636 = vmatpush2.msra.mxu0 0.0
        %3637 = vmatprep.subr.mxu0 0.0
        %3638 = vmatpush2.msra.mxu0 0.0
        %3639 = vmatprep.subr.mxu0 0.0
        %3640 = vmatpush2.msra.mxu0 0.0
        %3641 = vmatprep.subr.mxu0 0.0
        %3642 = vmatpush2.msra.mxu0 0.0
        %3643 = vmatprep.subr.mxu0 0.0
        %3644 = vmatpush2.msra.mxu0 0.0
        %3645 = vmatprep.mubr.f32.mxu0 0.0
        %3646 = vmatmul.mubr.f32.gmra.mxu0 %v3167
        %v3647 = vpop.f32.mrf.mxu0
        %v3648 = vadd.f32 %v3498, %v3647
        %v3649 = vpop.f32.mrf.mxu0
        %3650 = vdwg.mxu0
        %3651 = vmatprep.subr.mxu0 0.0
        %3652 = vmatpush1.msra.mxu0 0.0
        %3653 = vmatprep.subr.mxu0 0.0
        %3654 = vmatpush1.msra.mxu0 0.0
        %3655 = vmatprep.subr.mxu0 0.0
        %3656 = vmatpush1.msra.mxu0 0.0
        %3657 = vmatprep.subr.mxu0 0.0
        %3658 = vmatpush1.msra.mxu0 0.0
        %3659 = vmatprep.subr.mxu0 0.0
        %3660 = vmatpush1.msra.mxu0 0.0
        %3661 = vmatprep.subr.mxu0 0.0
        %3662 = vmatpush1.msra.mxu0 0.0
        %3663 = vmatprep.subr.mxu0 0.0
        %3664 = vmatpush1.msra.mxu0 0.0
        %3665 = vmatprep.subr.mxu0 0.0
        %3666 = vmatpush1.msra.mxu0 0.0
        %3667 = vmatprep.subr.mxu0 0.0
        %3668 = vmatpush1.msra.mxu0 %v3473
        %3669 = vmatprep.subr.mxu0 0.0
        %3670 = vmatpush1.msra.mxu0 %v3472
        %3671 = vmatprep.subr.mxu0 0.0
        %3672 = vmatpush1.msra.mxu0 %v3471
        %3673 = vmatprep.subr.mxu0 0.0
        %3674 = vmatpush1.msra.mxu0 %v3470
        %3675 = vmatprep.subr.mxu0 0.0
        %3676 = vmatpush1.msra.mxu0 %v3469
        %3677 = vmatprep.subr.mxu0 0.0
        %3678 = vmatpush1.msra.mxu0 %v3468
        %3679 = vmatprep.subr.mxu0 0.0
        %3680 = vmatpush1.msra.mxu0 %v3467
        %3681 = vmatprep.subr.mxu0 0.0
        %3682 = vmatpush1.msra.mxu0 %v3466
        %3683 = vmatprep.subr.mxu0 0.0
        %3684 = vmatpush2.msra.mxu0 0.0
        %3685 = vmatprep.subr.mxu0 0.0
        %3686 = vmatpush2.msra.mxu0 0.0
        %3687 = vmatprep.subr.mxu0 0.0
        %3688 = vmatpush2.msra.mxu0 0.0
        %3689 = vmatprep.subr.mxu0 0.0
        %3690 = vmatpush2.msra.mxu0 0.0
        %3691 = vmatprep.subr.mxu0 0.0
        %3692 = vmatpush2.msra.mxu0 0.0
        %3693 = vmatprep.subr.mxu0 0.0
        %3694 = vmatpush2.msra.mxu0 0.0
        %3695 = vmatprep.subr.mxu0 0.0
        %3696 = vmatpush2.msra.mxu0 0.0
        %3697 = vmatprep.subr.mxu0 0.0
        %3698 = vmatpush2.msra.mxu0 0.0
        %3699 = vmatprep.subr.mxu0 0.0
        %3700 = vmatpush2.msra.mxu0 0.0
        %3701 = vmatprep.subr.mxu0 0.0
        %3702 = vmatpush2.msra.mxu0 0.0
        %3703 = vmatprep.subr.mxu0 0.0
        %3704 = vmatpush2.msra.mxu0 0.0
        %3705 = vmatprep.subr.mxu0 0.0
        %3706 = vmatpush2.msra.mxu0 0.0
        %3707 = vmatprep.subr.mxu0 0.0
        %3708 = vmatpush2.msra.mxu0 0.0
        %3709 = vmatprep.subr.mxu0 0.0
        %3710 = vmatpush2.msra.mxu0 0.0
        %3711 = vmatprep.subr.mxu0 0.0
        %3712 = vmatpush2.msra.mxu0 0.0
        %3713 = vmatprep.subr.mxu0 0.0
        %3714 = vmatpush2.msra.mxu0 0.0
        %3715 = vmatprep.mubr.f32.mxu0 0.0
        %3716 = vmatmul.mubr.f32.gmra.mxu0 %v3167
        %v3717 = vpop.f32.mrf.mxu0
        %v3718 = vadd.f32 %v3502, %v3717
        %v3719 = vpop.f32.mrf.mxu0
        %3720 = vdwg.mxu0
        %3721 = vmatprep.subr.mxu0 0.0
        %3722 = vmatpush1.msra.mxu0 0.0
        %3723 = vmatprep.subr.mxu0 0.0
        %3724 = vmatpush1.msra.mxu0 0.0
        %3725 = vmatprep.subr.mxu0 0.0
        %3726 = vmatpush1.msra.mxu0 0.0
        %3727 = vmatprep.subr.mxu0 0.0
        %3728 = vmatpush1.msra.mxu0 0.0
        %3729 = vmatprep.subr.mxu0 0.0
        %3730 = vmatpush1.msra.mxu0 0.0
        %3731 = vmatprep.subr.mxu0 0.0
        %3732 = vmatpush1.msra.mxu0 0.0
        %3733 = vmatprep.subr.mxu0 0.0
        %3734 = vmatpush1.msra.mxu0 0.0
        %3735 = vmatprep.subr.mxu0 0.0
        %3736 = vmatpush1.msra.mxu0 0.0
        %3737 = vmatprep.subr.mxu0 0.0
        %3738 = vmatpush1.msra.mxu0 %v3481
        %3739 = vmatprep.subr.mxu0 0.0
        %3740 = vmatpush1.msra.mxu0 %v3480
        %3741 = vmatprep.subr.mxu0 0.0
        %3742 = vmatpush1.msra.mxu0 %v3479
        %3743 = vmatprep.subr.mxu0 0.0
        %3744 = vmatpush1.msra.mxu0 %v3478
        %3745 = vmatprep.subr.mxu0 0.0
        %3746 = vmatpush1.msra.mxu0 %v3477
        %3747 = vmatprep.subr.mxu0 0.0
        %3748 = vmatpush1.msra.mxu0 %v3476
        %3749 = vmatprep.subr.mxu0 0.0
        %3750 = vmatpush1.msra.mxu0 %v3475
        %3751 = vmatprep.subr.mxu0 0.0
        %3752 = vmatpush1.msra.mxu0 %v3474
        %3753 = vmatprep.subr.mxu0 0.0
        %3754 = vmatpush2.msra.mxu0 0.0
        %3755 = vmatprep.subr.mxu0 0.0
        %3756 = vmatpush2.msra.mxu0 0.0
        %3757 = vmatprep.subr.mxu0 0.0
        %3758 = vmatpush2.msra.mxu0 0.0
        %3759 = vmatprep.subr.mxu0 0.0
        %3760 = vmatpush2.msra.mxu0 0.0
        %3761 = vmatprep.subr.mxu0 0.0
        %3762 = vmatpush2.msra.mxu0 0.0
        %3763 = vmatprep.subr.mxu0 0.0
        %3764 = vmatpush2.msra.mxu0 0.0
        %3765 = vmatprep.subr.mxu0 0.0
        %3766 = vmatpush2.msra.mxu0 0.0
        %3767 = vmatprep.subr.mxu0 0.0
        %3768 = vmatpush2.msra.mxu0 0.0
        %3769 = vmatprep.subr.mxu0 0.0
        %3770 = vmatpush2.msra.mxu0 0.0
        %3771 = vmatprep.subr.mxu0 0.0
        %3772 = vmatpush2.msra.mxu0 0.0
        %3773 = vmatprep.subr.mxu0 0.0
        %3774 = vmatpush2.msra.mxu0 0.0
        %3775 = vmatprep.subr.mxu0 0.0
        %3776 = vmatpush2.msra.mxu0 0.0
        %3777 = vmatprep.subr.mxu0 0.0
        %3778 = vmatpush2.msra.mxu0 0.0
        %3779 = vmatprep.subr.mxu0 0.0
        %3780 = vmatpush2.msra.mxu0 0.0
        %3781 = vmatprep.subr.mxu0 0.0
        %3782 = vmatpush2.msra.mxu0 0.0
        %3783 = vmatprep.subr.mxu0 0.0
        %3784 = vmatpush2.msra.mxu0 0.0
        %3785 = vmatprep.mubr.f32.mxu0 0.0
        %3786 = vmatmul.mubr.f32.gmra.mxu0 %v3167
        %v3787 = vpop.f32.mrf.mxu0
        %v3788 = vadd.f32 %v3506, %v3787
        %v3789 = vpop.f32.mrf.mxu0
        %3790 = vdwg.mxu0
        %s3791 = scalar_lea.vmem %s9, 256
        %v3792 = vld [vmem:[%s3791] sm:$0xff]
        %v3793 = vld [vmem:[%s3791 + $0x8] sm:$0xff]
        %v3794 = vld [vmem:[%s3791 + $0x10] sm:$0xff]
        %v3795 = vld [vmem:[%s3791 + $0x18] sm:$0xff]
        %v3796 = vld [vmem:[%s3791 + $0x20] sm:$0xff]
        %v3797 = vld [vmem:[%s3791 + $0x28] sm:$0xff]
        %v3798 = vld [vmem:[%s3791 + $0x30] sm:$0xff]
        %v3799 = vld [vmem:[%s3791 + $0x38] sm:$0xff]
        %v3800 = vld [vmem:[%s3791 + $0x40] sm:$0xff]
        %v3801 = vld [vmem:[%s3791 + $0x48] sm:$0xff]
        %v3802 = vld [vmem:[%s3791 + $0x50] sm:$0xff]
        %v3803 = vld [vmem:[%s3791 + $0x58] sm:$0xff]
        %v3804 = vld [vmem:[%s3791 + $0x60] sm:$0xff]
        %v3805 = vld [vmem:[%s3791 + $0x68] sm:$0xff]
        %v3806 = vld [vmem:[%s3791 + $0x70] sm:$0xff]
        %v3807 = vld [vmem:[%s3791 + $0x78] sm:$0xff]
        %v3808 = vld [vmem:[%s3791 + $0x80] sm:$0xff]
        %v3809 = vld [vmem:[%s3791 + $0x88] sm:$0xff]
        %v3810 = vld [vmem:[%s3791 + $0x90] sm:$0xff]
        %v3811 = vld [vmem:[%s3791 + $0x98] sm:$0xff]
        %v3812 = vld [vmem:[%s3791 + $0xa0] sm:$0xff]
        %v3813 = vld [vmem:[%s3791 + $0xa8] sm:$0xff]
        %v3814 = vld [vmem:[%s3791 + $0xb0] sm:$0xff]
        %v3815 = vld [vmem:[%s3791 + $0xb8] sm:$0xff]
        %v3816 = vld [vmem:[%s3791 + $0xc0] sm:$0xff]
        %v3817 = vld [vmem:[%s3791 + $0xc8] sm:$0xff]
        %v3818 = vld [vmem:[%s3791 + $0xd0] sm:$0xff]
        %v3819 = vld [vmem:[%s3791 + $0xd8] sm:$0xff]
        %v3820 = vld [vmem:[%s3791 + $0xe0] sm:$0xff]
        %v3821 = vld [vmem:[%s3791 + $0xe8] sm:$0xff]
        %v3822 = vld [vmem:[%s3791 + $0xf0] sm:$0xff]
        %v3823 = vld [vmem:[%s3791 + $0xf8] sm:$0xff]
        %s3824 = scalar_lea.vmem %s10, 4
        %v3825 = vld [vmem:[%s3824] sm:$0x1]
        %v3826 = vld [vmem:[%s3824 + $0x1] sm:$0x1]
        %v3827 = vld [vmem:[%s3824 + $0x2] sm:$0x1]
        %v3828 = vld [vmem:[%s3824 + $0x3] sm:$0x1]
        %v3833 = vlaneseq
        %v3834 = vshrl.u32 %v3833, 7
        %v3835 = vsub.s32 0, %v3834
        %v3836 = vrot.slane %v3825, %v3835
        %v3837 = vlaneseq
        %v3838 = vshrl.u32 %v3837, 7
        %v3839 = vsub.s32 0, %v3838
        %v3840 = vrot.slane %v3826, %v3839
        %v3841 = vlaneseq
        %v3842 = vshrl.u32 %v3841, 7
        %v3843 = vsub.s32 0, %v3842
        %v3844 = vrot.slane %v3827, %v3843
        %v3845 = vlaneseq
        %v3846 = vshrl.u32 %v3845, 7
        %v3847 = vsub.s32 0, %v3846
        %v3848 = vrot.slane %v3828, %v3847
        %3853 = vmatprep.subr.mxu0 0.0
        %3854 = vmatpush1.msra.mxu0 0.0
        %3855 = vmatprep.subr.mxu0 0.0
        %3856 = vmatpush1.msra.mxu0 0.0
        %3857 = vmatprep.subr.mxu0 0.0
        %3858 = vmatpush1.msra.mxu0 0.0
        %3859 = vmatprep.subr.mxu0 0.0
        %3860 = vmatpush1.msra.mxu0 0.0
        %3861 = vmatprep.subr.mxu0 0.0
        %3862 = vmatpush1.msra.mxu0 0.0
        %3863 = vmatprep.subr.mxu0 0.0
        %3864 = vmatpush1.msra.mxu0 0.0
        %3865 = vmatprep.subr.mxu0 0.0
        %3866 = vmatpush1.msra.mxu0 0.0
        %3867 = vmatprep.subr.mxu0 0.0
        %3868 = vmatpush1.msra.mxu0 0.0
        %3869 = vmatprep.subr.mxu0 0.0
        %3870 = vmatpush1.msra.mxu0 %v3799
        %3871 = vmatprep.subr.mxu0 0.0
        %3872 = vmatpush1.msra.mxu0 %v3798
        %3873 = vmatprep.subr.mxu0 0.0
        %3874 = vmatpush1.msra.mxu0 %v3797
        %3875 = vmatprep.subr.mxu0 0.0
        %3876 = vmatpush1.msra.mxu0 %v3796
        %3877 = vmatprep.subr.mxu0 0.0
        %3878 = vmatpush1.msra.mxu0 %v3795
        %3879 = vmatprep.subr.mxu0 0.0
        %3880 = vmatpush1.msra.mxu0 %v3794
        %3881 = vmatprep.subr.mxu0 0.0
        %3882 = vmatpush1.msra.mxu0 %v3793
        %3883 = vmatprep.subr.mxu0 0.0
        %3884 = vmatpush1.msra.mxu0 %v3792
        %3885 = vmatprep.subr.mxu0 0.0
        %3886 = vmatpush2.msra.mxu0 0.0
        %3887 = vmatprep.subr.mxu0 0.0
        %3888 = vmatpush2.msra.mxu0 0.0
        %3889 = vmatprep.subr.mxu0 0.0
        %3890 = vmatpush2.msra.mxu0 0.0
        %3891 = vmatprep.subr.mxu0 0.0
        %3892 = vmatpush2.msra.mxu0 0.0
        %3893 = vmatprep.subr.mxu0 0.0
        %3894 = vmatpush2.msra.mxu0 0.0
        %3895 = vmatprep.subr.mxu0 0.0
        %3896 = vmatpush2.msra.mxu0 0.0
        %3897 = vmatprep.subr.mxu0 0.0
        %3898 = vmatpush2.msra.mxu0 0.0
        %3899 = vmatprep.subr.mxu0 0.0
        %3900 = vmatpush2.msra.mxu0 0.0
        %3901 = vmatprep.subr.mxu0 0.0
        %3902 = vmatpush2.msra.mxu0 0.0
        %3903 = vmatprep.subr.mxu0 0.0
        %3904 = vmatpush2.msra.mxu0 0.0
        %3905 = vmatprep.subr.mxu0 0.0
        %3906 = vmatpush2.msra.mxu0 0.0
        %3907 = vmatprep.subr.mxu0 0.0
        %3908 = vmatpush2.msra.mxu0 0.0
        %3909 = vmatprep.subr.mxu0 0.0
        %3910 = vmatpush2.msra.mxu0 0.0
        %3911 = vmatprep.subr.mxu0 0.0
        %3912 = vmatpush2.msra.mxu0 0.0
        %3913 = vmatprep.subr.mxu0 0.0
        %3914 = vmatpush2.msra.mxu0 0.0
        %3915 = vmatprep.subr.mxu0 0.0
        %3916 = vmatpush2.msra.mxu0 0.0
        %3917 = vmatprep.mubr.f32.mxu0 0.0
        %3918 = vmatmul.mubr.f32.gmra.mxu0 %v3167
        %v3919 = vpop.f32.mrf.mxu0
        %v3920 = vadd.f32 %v3836, %v3919
        %v3921 = vpop.f32.mrf.mxu0
        %3922 = vdwg.mxu0
        %3923 = vmatprep.subr.mxu0 0.0
        %3924 = vmatpush1.msra.mxu0 0.0
        %3925 = vmatprep.subr.mxu0 0.0
        %3926 = vmatpush1.msra.mxu0 0.0
        %3927 = vmatprep.subr.mxu0 0.0
        %3928 = vmatpush1.msra.mxu0 0.0
        %3929 = vmatprep.subr.mxu0 0.0
        %3930 = vmatpush1.msra.mxu0 0.0
        %3931 = vmatprep.subr.mxu0 0.0
        %3932 = vmatpush1.msra.mxu0 0.0
        %3933 = vmatprep.subr.mxu0 0.0
        %3934 = vmatpush1.msra.mxu0 0.0
        %3935 = vmatprep.subr.mxu0 0.0
        %3936 = vmatpush1.msra.mxu0 0.0
        %3937 = vmatprep.subr.mxu0 0.0
        %3938 = vmatpush1.msra.mxu0 0.0
        %3939 = vmatprep.subr.mxu0 0.0
        %3940 = vmatpush1.msra.mxu0 %v3807
        %3941 = vmatprep.subr.mxu0 0.0
        %3942 = vmatpush1.msra.mxu0 %v3806
        %3943 = vmatprep.subr.mxu0 0.0
        %3944 = vmatpush1.msra.mxu0 %v3805
        %3945 = vmatprep.subr.mxu0 0.0
        %3946 = vmatpush1.msra.mxu0 %v3804
        %3947 = vmatprep.subr.mxu0 0.0
        %3948 = vmatpush1.msra.mxu0 %v3803
        %3949 = vmatprep.subr.mxu0 0.0
        %3950 = vmatpush1.msra.mxu0 %v3802
        %3951 = vmatprep.subr.mxu0 0.0
        %3952 = vmatpush1.msra.mxu0 %v3801
        %3953 = vmatprep.subr.mxu0 0.0
        %3954 = vmatpush1.msra.mxu0 %v3800
        %3955 = vmatprep.subr.mxu0 0.0
        %3956 = vmatpush2.msra.mxu0 0.0
        %3957 = vmatprep.subr.mxu0 0.0
        %3958 = vmatpush2.msra.mxu0 0.0
        %3959 = vmatprep.subr.mxu0 0.0
        %3960 = vmatpush2.msra.mxu0 0.0
        %3961 = vmatprep.subr.mxu0 0.0
        %3962 = vmatpush2.msra.mxu0 0.0
        %3963 = vmatprep.subr.mxu0 0.0
        %3964 = vmatpush2.msra.mxu0 0.0
        %3965 = vmatprep.subr.mxu0 0.0
        %3966 = vmatpush2.msra.mxu0 0.0
        %3967 = vmatprep.subr.mxu0 0.0
        %3968 = vmatpush2.msra.mxu0 0.0
        %3969 = vmatprep.subr.mxu0 0.0
        %3970 = vmatpush2.msra.mxu0 0.0
        %3971 = vmatprep.subr.mxu0 0.0
        %3972 = vmatpush2.msra.mxu0 0.0
        %3973 = vmatprep.subr.mxu0 0.0
        %3974 = vmatpush2.msra.mxu0 0.0
        %3975 = vmatprep.subr.mxu0 0.0
        %3976 = vmatpush2.msra.mxu0 0.0
        %3977 = vmatprep.subr.mxu0 0.0
        %3978 = vmatpush2.msra.mxu0 0.0
        %3979 = vmatprep.subr.mxu0 0.0
        %3980 = vmatpush2.msra.mxu0 0.0
        %3981 = vmatprep.subr.mxu0 0.0
        %3982 = vmatpush2.msra.mxu0 0.0
        %3983 = vmatprep.subr.mxu0 0.0
        %3984 = vmatpush2.msra.mxu0 0.0
        %3985 = vmatprep.subr.mxu0 0.0
        %3986 = vmatpush2.msra.mxu0 0.0
        %3987 = vmatprep.mubr.f32.mxu0 0.0
        %3988 = vmatmul.mubr.f32.gmra.mxu0 %v3167
        %v3989 = vpop.f32.mrf.mxu0
        %v3990 = vadd.f32 %v3840, %v3989
        %v3991 = vpop.f32.mrf.mxu0
        %3992 = vdwg.mxu0
        %3993 = vmatprep.subr.mxu0 0.0
        %3994 = vmatpush1.msra.mxu0 0.0
        %3995 = vmatprep.subr.mxu0 0.0
        %3996 = vmatpush1.msra.mxu0 0.0
        %3997 = vmatprep.subr.mxu0 0.0
        %3998 = vmatpush1.msra.mxu0 0.0
        %3999 = vmatprep.subr.mxu0 0.0
        %4000 = vmatpush1.msra.mxu0 0.0
        %4001 = vmatprep.subr.mxu0 0.0
        %4002 = vmatpush1.msra.mxu0 0.0
        %4003 = vmatprep.subr.mxu0 0.0
        %4004 = vmatpush1.msra.mxu0 0.0
        %4005 = vmatprep.subr.mxu0 0.0
        %4006 = vmatpush1.msra.mxu0 0.0
        %4007 = vmatprep.subr.mxu0 0.0
        %4008 = vmatpush1.msra.mxu0 0.0
        %4009 = vmatprep.subr.mxu0 0.0
        %4010 = vmatpush1.msra.mxu0 %v3815
        %4011 = vmatprep.subr.mxu0 0.0
        %4012 = vmatpush1.msra.mxu0 %v3814
        %4013 = vmatprep.subr.mxu0 0.0
        %4014 = vmatpush1.msra.mxu0 %v3813
        %4015 = vmatprep.subr.mxu0 0.0
        %4016 = vmatpush1.msra.mxu0 %v3812
        %4017 = vmatprep.subr.mxu0 0.0
        %4018 = vmatpush1.msra.mxu0 %v3811
        %4019 = vmatprep.subr.mxu0 0.0
        %4020 = vmatpush1.msra.mxu0 %v3810
        %4021 = vmatprep.subr.mxu0 0.0
        %4022 = vmatpush1.msra.mxu0 %v3809
        %4023 = vmatprep.subr.mxu0 0.0
        %4024 = vmatpush1.msra.mxu0 %v3808
        %4025 = vmatprep.subr.mxu0 0.0
        %4026 = vmatpush2.msra.mxu0 0.0
        %4027 = vmatprep.subr.mxu0 0.0
        %4028 = vmatpush2.msra.mxu0 0.0
        %4029 = vmatprep.subr.mxu0 0.0
        %4030 = vmatpush2.msra.mxu0 0.0
        %4031 = vmatprep.subr.mxu0 0.0
        %4032 = vmatpush2.msra.mxu0 0.0
        %4033 = vmatprep.subr.mxu0 0.0
        %4034 = vmatpush2.msra.mxu0 0.0
        %4035 = vmatprep.subr.mxu0 0.0
        %4036 = vmatpush2.msra.mxu0 0.0
        %4037 = vmatprep.subr.mxu0 0.0
        %4038 = vmatpush2.msra.mxu0 0.0
        %4039 = vmatprep.subr.mxu0 0.0
        %4040 = vmatpush2.msra.mxu0 0.0
        %4041 = vmatprep.subr.mxu0 0.0
        %4042 = vmatpush2.msra.mxu0 0.0
        %4043 = vmatprep.subr.mxu0 0.0
        %4044 = vmatpush2.msra.mxu0 0.0
        %4045 = vmatprep.subr.mxu0 0.0
        %4046 = vmatpush2.msra.mxu0 0.0
        %4047 = vmatprep.subr.mxu0 0.0
        %4048 = vmatpush2.msra.mxu0 0.0
        %4049 = vmatprep.subr.mxu0 0.0
        %4050 = vmatpush2.msra.mxu0 0.0
        %4051 = vmatprep.subr.mxu0 0.0
        %4052 = vmatpush2.msra.mxu0 0.0
        %4053 = vmatprep.subr.mxu0 0.0
        %4054 = vmatpush2.msra.mxu0 0.0
        %4055 = vmatprep.subr.mxu0 0.0
        %4056 = vmatpush2.msra.mxu0 0.0
        %4057 = vmatprep.mubr.f32.mxu0 0.0
        %4058 = vmatmul.mubr.f32.gmra.mxu0 %v3167
        %v4059 = vpop.f32.mrf.mxu0
        %v4060 = vadd.f32 %v3844, %v4059
        %v4061 = vpop.f32.mrf.mxu0
        %4062 = vdwg.mxu0
        %4063 = vmatprep.subr.mxu0 0.0
        %4064 = vmatpush1.msra.mxu0 0.0
        %4065 = vmatprep.subr.mxu0 0.0
        %4066 = vmatpush1.msra.mxu0 0.0
        %4067 = vmatprep.subr.mxu0 0.0
        %4068 = vmatpush1.msra.mxu0 0.0
        %4069 = vmatprep.subr.mxu0 0.0
        %4070 = vmatpush1.msra.mxu0 0.0
        %4071 = vmatprep.subr.mxu0 0.0
        %4072 = vmatpush1.msra.mxu0 0.0
        %4073 = vmatprep.subr.mxu0 0.0
        %4074 = vmatpush1.msra.mxu0 0.0
        %4075 = vmatprep.subr.mxu0 0.0
        %4076 = vmatpush1.msra.mxu0 0.0
        %4077 = vmatprep.subr.mxu0 0.0
        %4078 = vmatpush1.msra.mxu0 0.0
        %4079 = vmatprep.subr.mxu0 0.0
        %4080 = vmatpush1.msra.mxu0 %v3823
        %4081 = vmatprep.subr.mxu0 0.0
        %4082 = vmatpush1.msra.mxu0 %v3822
        %4083 = vmatprep.subr.mxu0 0.0
        %4084 = vmatpush1.msra.mxu0 %v3821
        %4085 = vmatprep.subr.mxu0 0.0
        %4086 = vmatpush1.msra.mxu0 %v3820
        %4087 = vmatprep.subr.mxu0 0.0
        %4088 = vmatpush1.msra.mxu0 %v3819
        %4089 = vmatprep.subr.mxu0 0.0
        %4090 = vmatpush1.msra.mxu0 %v3818
        %4091 = vmatprep.subr.mxu0 0.0
        %4092 = vmatpush1.msra.mxu0 %v3817
        %4093 = vmatprep.subr.mxu0 0.0
        %4094 = vmatpush1.msra.mxu0 %v3816
        %4095 = vmatprep.subr.mxu0 0.0
        %4096 = vmatpush2.msra.mxu0 0.0
        %4097 = vmatprep.subr.mxu0 0.0
        %4098 = vmatpush2.msra.mxu0 0.0
        %4099 = vmatprep.subr.mxu0 0.0
        %4100 = vmatpush2.msra.mxu0 0.0
        %4101 = vmatprep.subr.mxu0 0.0
        %4102 = vmatpush2.msra.mxu0 0.0
        %4103 = vmatprep.subr.mxu0 0.0
        %4104 = vmatpush2.msra.mxu0 0.0
        %4105 = vmatprep.subr.mxu0 0.0
        %4106 = vmatpush2.msra.mxu0 0.0
        %4107 = vmatprep.subr.mxu0 0.0
        %4108 = vmatpush2.msra.mxu0 0.0
        %4109 = vmatprep.subr.mxu0 0.0
        %4110 = vmatpush2.msra.mxu0 0.0
        %4111 = vmatprep.subr.mxu0 0.0
        %4112 = vmatpush2.msra.mxu0 0.0
        %4113 = vmatprep.subr.mxu0 0.0
        %4114 = vmatpush2.msra.mxu0 0.0
        %4115 = vmatprep.subr.mxu0 0.0
        %4116 = vmatpush2.msra.mxu0 0.0
        %4117 = vmatprep.subr.mxu0 0.0
        %4118 = vmatpush2.msra.mxu0 0.0
        %4119 = vmatprep.subr.mxu0 0.0
        %4120 = vmatpush2.msra.mxu0 0.0
        %4121 = vmatprep.subr.mxu0 0.0
        %4122 = vmatpush2.msra.mxu0 0.0
        %4123 = vmatprep.subr.mxu0 0.0
        %4124 = vmatpush2.msra.mxu0 0.0
        %4125 = vmatprep.subr.mxu0 0.0
        %4126 = vmatpush2.msra.mxu0 0.0
        %4127 = vmatprep.mubr.f32.mxu0 0.0
        %4128 = vmatmul.mubr.f32.gmra.mxu0 %v3167
        %v4129 = vpop.f32.mrf.mxu0
        %v4130 = vadd.f32 %v3848, %v4129
        %v4131 = vpop.f32.mrf.mxu0
        %4132 = vdwg.mxu0
        %v4134 = vsel %vm1885, %v3236, 0
        %v4137 = vsel %vm1885, %v3578, 0
        %4139 = vmatprep.subr.mxu0 0.0
        %4140 = vmatpush1.xpose.msra.mxu0 0.0
        %4141 = vmatprep.subr.mxu0 0.0
        %4142 = vmatpush1.xpose.msra.mxu0 0.0
        %4143 = vmatprep.subr.mxu0 0.0
        %4144 = vmatpush1.xpose.msra.mxu0 0.0
        %4145 = vmatprep.subr.mxu0 0.0
        %4146 = vmatpush1.xpose.msra.mxu0 0.0
        %4147 = vmatprep.subr.mxu0 0.0
        %4148 = vmatpush1.xpose.msra.mxu0 0.0
        %4149 = vmatprep.subr.mxu0 0.0
        %4150 = vmatpush1.xpose.msra.mxu0 0.0
        %4151 = vmatprep.subr.mxu0 0.0
        %4152 = vmatpush1.xpose.msra.mxu0 0.0
        %4153 = vmatprep.subr.mxu0 0.0
        %4154 = vmatpush1.xpose.msra.mxu0 0.0
        %4155 = vmatprep.subr.mxu0 0.0
        %4156 = vmatpush1.xpose.msra.mxu0 0.0
        %4157 = vmatprep.subr.mxu0 0.0
        %4158 = vmatpush1.xpose.msra.mxu0 0.0
        %4159 = vmatprep.subr.mxu0 0.0
        %4160 = vmatpush1.xpose.msra.mxu0 0.0
        %4161 = vmatprep.subr.mxu0 0.0
        %4162 = vmatpush1.xpose.msra.mxu0 0.0
        %4163 = vmatprep.subr.mxu0 0.0
        %4164 = vmatpush1.xpose.msra.mxu0 0.0
        %4165 = vmatprep.subr.mxu0 0.0
        %4166 = vmatpush1.xpose.msra.mxu0 0.0
        %4167 = vmatprep.subr.mxu0 0.0
        %4168 = vmatpush1.xpose.msra.mxu0 0.0
        %4169 = vmatprep.subr.mxu0 0.0
        %4170 = vmatpush1.xpose.msra.mxu0 %v4137
        %4171 = vmatprep.subr.mxu0 0.0
        %4172 = vmatpush2.xpose.msra.mxu0 0.0
        %4173 = vmatprep.subr.mxu0 0.0
        %4174 = vmatpush2.xpose.msra.mxu0 0.0
        %4175 = vmatprep.subr.mxu0 0.0
        %4176 = vmatpush2.xpose.msra.mxu0 0.0
        %4177 = vmatprep.subr.mxu0 0.0
        %4178 = vmatpush2.xpose.msra.mxu0 0.0
        %4179 = vmatprep.subr.mxu0 0.0
        %4180 = vmatpush2.xpose.msra.mxu0 0.0
        %4181 = vmatprep.subr.mxu0 0.0
        %4182 = vmatpush2.xpose.msra.mxu0 0.0
        %4183 = vmatprep.subr.mxu0 0.0
        %4184 = vmatpush2.xpose.msra.mxu0 0.0
        %4185 = vmatprep.subr.mxu0 0.0
        %4186 = vmatpush2.xpose.msra.mxu0 0.0
        %4187 = vmatprep.subr.mxu0 0.0
        %4188 = vmatpush2.xpose.msra.mxu0 0.0
        %4189 = vmatprep.subr.mxu0 0.0
        %4190 = vmatpush2.xpose.msra.mxu0 0.0
        %4191 = vmatprep.subr.mxu0 0.0
        %4192 = vmatpush2.xpose.msra.mxu0 0.0
        %4193 = vmatprep.subr.mxu0 0.0
        %4194 = vmatpush2.xpose.msra.mxu0 0.0
        %4195 = vmatprep.subr.mxu0 0.0
        %4196 = vmatpush2.xpose.msra.mxu0 0.0
        %4197 = vmatprep.subr.mxu0 0.0
        %4198 = vmatpush2.xpose.msra.mxu0 0.0
        %4199 = vmatprep.subr.mxu0 0.0
        %4200 = vmatpush2.xpose.msra.mxu0 0.0
        %4201 = vmatprep.subr.mxu0 0.0
        %4202 = vmatpush2.xpose.msra.mxu0 0.0
        %4203 = vmatprep.mubr.f32.mxu0 0.0
        %4204 = vmatmul.mubr.f32.gmra.mxu0 %v4134
        %v4205 = vpop.f32.mrf.mxu0
        %v4206 = vadd.f32 0.0, %v4205
        %v4207 = vpop.f32.mrf.mxu0
        %4208 = vdwg.mxu0
        %v4210 = vsel %vm1885, %v3306, 0
        %v4213 = vsel %vm1885, %v3648, 0
        %4215 = vmatprep.subr.mxu0 0.0
        %4216 = vmatpush1.xpose.msra.mxu0 0.0
        %4217 = vmatprep.subr.mxu0 0.0
        %4218 = vmatpush1.xpose.msra.mxu0 0.0
        %4219 = vmatprep.subr.mxu0 0.0
        %4220 = vmatpush1.xpose.msra.mxu0 0.0
        %4221 = vmatprep.subr.mxu0 0.0
        %4222 = vmatpush1.xpose.msra.mxu0 0.0
        %4223 = vmatprep.subr.mxu0 0.0
        %4224 = vmatpush1.xpose.msra.mxu0 0.0
        %4225 = vmatprep.subr.mxu0 0.0
        %4226 = vmatpush1.xpose.msra.mxu0 0.0
        %4227 = vmatprep.subr.mxu0 0.0
        %4228 = vmatpush1.xpose.msra.mxu0 0.0
        %4229 = vmatprep.subr.mxu0 0.0
        %4230 = vmatpush1.xpose.msra.mxu0 0.0
        %4231 = vmatprep.subr.mxu0 0.0
        %4232 = vmatpush1.xpose.msra.mxu0 0.0
        %4233 = vmatprep.subr.mxu0 0.0
        %4234 = vmatpush1.xpose.msra.mxu0 0.0
        %4235 = vmatprep.subr.mxu0 0.0
        %4236 = vmatpush1.xpose.msra.mxu0 0.0
        %4237 = vmatprep.subr.mxu0 0.0
        %4238 = vmatpush1.xpose.msra.mxu0 0.0
        %4239 = vmatprep.subr.mxu0 0.0
        %4240 = vmatpush1.xpose.msra.mxu0 0.0
        %4241 = vmatprep.subr.mxu0 0.0
        %4242 = vmatpush1.xpose.msra.mxu0 0.0
        %4243 = vmatprep.subr.mxu0 0.0
        %4244 = vmatpush1.xpose.msra.mxu0 0.0
        %4245 = vmatprep.subr.mxu0 0.0
        %4246 = vmatpush1.xpose.msra.mxu0 %v4213
        %4247 = vmatprep.subr.mxu0 0.0
        %4248 = vmatpush2.xpose.msra.mxu0 0.0
        %4249 = vmatprep.subr.mxu0 0.0
        %4250 = vmatpush2.xpose.msra.mxu0 0.0
        %4251 = vmatprep.subr.mxu0 0.0
        %4252 = vmatpush2.xpose.msra.mxu0 0.0
        %4253 = vmatprep.subr.mxu0 0.0
        %4254 = vmatpush2.xpose.msra.mxu0 0.0
        %4255 = vmatprep.subr.mxu0 0.0
        %4256 = vmatpush2.xpose.msra.mxu0 0.0
        %4257 = vmatprep.subr.mxu0 0.0
        %4258 = vmatpush2.xpose.msra.mxu0 0.0
        %4259 = vmatprep.subr.mxu0 0.0
        %4260 = vmatpush2.xpose.msra.mxu0 0.0
        %4261 = vmatprep.subr.mxu0 0.0
        %4262 = vmatpush2.xpose.msra.mxu0 0.0
        %4263 = vmatprep.subr.mxu0 0.0
        %4264 = vmatpush2.xpose.msra.mxu0 0.0
        %4265 = vmatprep.subr.mxu0 0.0
        %4266 = vmatpush2.xpose.msra.mxu0 0.0
        %4267 = vmatprep.subr.mxu0 0.0
        %4268 = vmatpush2.xpose.msra.mxu0 0.0
        %4269 = vmatprep.subr.mxu0 0.0
        %4270 = vmatpush2.xpose.msra.mxu0 0.0
        %4271 = vmatprep.subr.mxu0 0.0
        %4272 = vmatpush2.xpose.msra.mxu0 0.0
        %4273 = vmatprep.subr.mxu0 0.0
        %4274 = vmatpush2.xpose.msra.mxu0 0.0
        %4275 = vmatprep.subr.mxu0 0.0
        %4276 = vmatpush2.xpose.msra.mxu0 0.0
        %4277 = vmatprep.subr.mxu0 0.0
        %4278 = vmatpush2.xpose.msra.mxu0 0.0
        %4279 = vmatprep.mubr.f32.mxu0 0.0
        %4280 = vmatmul.mubr.f32.gmra.mxu0 %v4210
        %v4281 = vpop.f32.mrf.mxu0
        %v4282 = vadd.f32 0.0, %v4281
        %v4283 = vpop.f32.mrf.mxu0
        %4284 = vdwg.mxu0
        %v4286 = vsel %vm1885, %v3376, 0
        %v4289 = vsel %vm1885, %v3718, 0
        %4291 = vmatprep.subr.mxu0 0.0
        %4292 = vmatpush1.xpose.msra.mxu0 0.0
        %4293 = vmatprep.subr.mxu0 0.0
        %4294 = vmatpush1.xpose.msra.mxu0 0.0
        %4295 = vmatprep.subr.mxu0 0.0
        %4296 = vmatpush1.xpose.msra.mxu0 0.0
        %4297 = vmatprep.subr.mxu0 0.0
        %4298 = vmatpush1.xpose.msra.mxu0 0.0
        %4299 = vmatprep.subr.mxu0 0.0
        %4300 = vmatpush1.xpose.msra.mxu0 0.0
        %4301 = vmatprep.subr.mxu0 0.0
        %4302 = vmatpush1.xpose.msra.mxu0 0.0
        %4303 = vmatprep.subr.mxu0 0.0
        %4304 = vmatpush1.xpose.msra.mxu0 0.0
        %4305 = vmatprep.subr.mxu0 0.0
        %4306 = vmatpush1.xpose.msra.mxu0 0.0
        %4307 = vmatprep.subr.mxu0 0.0
        %4308 = vmatpush1.xpose.msra.mxu0 0.0
        %4309 = vmatprep.subr.mxu0 0.0
        %4310 = vmatpush1.xpose.msra.mxu0 0.0
        %4311 = vmatprep.subr.mxu0 0.0
        %4312 = vmatpush1.xpose.msra.mxu0 0.0
        %4313 = vmatprep.subr.mxu0 0.0
        %4314 = vmatpush1.xpose.msra.mxu0 0.0
        %4315 = vmatprep.subr.mxu0 0.0
        %4316 = vmatpush1.xpose.msra.mxu0 0.0
        %4317 = vmatprep.subr.mxu0 0.0
        %4318 = vmatpush1.xpose.msra.mxu0 0.0
        %4319 = vmatprep.subr.mxu0 0.0
        %4320 = vmatpush1.xpose.msra.mxu0 0.0
        %4321 = vmatprep.subr.mxu0 0.0
        %4322 = vmatpush1.xpose.msra.mxu0 %v4289
        %4323 = vmatprep.subr.mxu0 0.0
        %4324 = vmatpush2.xpose.msra.mxu0 0.0
        %4325 = vmatprep.subr.mxu0 0.0
        %4326 = vmatpush2.xpose.msra.mxu0 0.0
        %4327 = vmatprep.subr.mxu0 0.0
        %4328 = vmatpush2.xpose.msra.mxu0 0.0
        %4329 = vmatprep.subr.mxu0 0.0
        %4330 = vmatpush2.xpose.msra.mxu0 0.0
        %4331 = vmatprep.subr.mxu0 0.0
        %4332 = vmatpush2.xpose.msra.mxu0 0.0
        %4333 = vmatprep.subr.mxu0 0.0
        %4334 = vmatpush2.xpose.msra.mxu0 0.0
        %4335 = vmatprep.subr.mxu0 0.0
        %4336 = vmatpush2.xpose.msra.mxu0 0.0
        %4337 = vmatprep.subr.mxu0 0.0
        %4338 = vmatpush2.xpose.msra.mxu0 0.0
        %4339 = vmatprep.subr.mxu0 0.0
        %4340 = vmatpush2.xpose.msra.mxu0 0.0
        %4341 = vmatprep.subr.mxu0 0.0
        %4342 = vmatpush2.xpose.msra.mxu0 0.0
        %4343 = vmatprep.subr.mxu0 0.0
        %4344 = vmatpush2.xpose.msra.mxu0 0.0
        %4345 = vmatprep.subr.mxu0 0.0
        %4346 = vmatpush2.xpose.msra.mxu0 0.0
        %4347 = vmatprep.subr.mxu0 0.0
        %4348 = vmatpush2.xpose.msra.mxu0 0.0
        %4349 = vmatprep.subr.mxu0 0.0
        %4350 = vmatpush2.xpose.msra.mxu0 0.0
        %4351 = vmatprep.subr.mxu0 0.0
        %4352 = vmatpush2.xpose.msra.mxu0 0.0
        %4353 = vmatprep.subr.mxu0 0.0
        %4354 = vmatpush2.xpose.msra.mxu0 0.0
        %4355 = vmatprep.mubr.f32.mxu0 0.0
        %4356 = vmatmul.mubr.f32.gmra.mxu0 %v4286
        %v4357 = vpop.f32.mrf.mxu0
        %v4358 = vadd.f32 0.0, %v4357
        %v4359 = vpop.f32.mrf.mxu0
        %4360 = vdwg.mxu0
        %v4362 = vsel %vm1885, %v3446, 0
        %v4365 = vsel %vm1885, %v3788, 0
        %4367 = vmatprep.subr.mxu0 0.0
        %4368 = vmatpush1.xpose.msra.mxu0 0.0
        %4369 = vmatprep.subr.mxu0 0.0
        %4370 = vmatpush1.xpose.msra.mxu0 0.0
        %4371 = vmatprep.subr.mxu0 0.0
        %4372 = vmatpush1.xpose.msra.mxu0 0.0
        %4373 = vmatprep.subr.mxu0 0.0
        %4374 = vmatpush1.xpose.msra.mxu0 0.0
        %4375 = vmatprep.subr.mxu0 0.0
        %4376 = vmatpush1.xpose.msra.mxu0 0.0
        %4377 = vmatprep.subr.mxu0 0.0
        %4378 = vmatpush1.xpose.msra.mxu0 0.0
        %4379 = vmatprep.subr.mxu0 0.0
        %4380 = vmatpush1.xpose.msra.mxu0 0.0
        %4381 = vmatprep.subr.mxu0 0.0
        %4382 = vmatpush1.xpose.msra.mxu0 0.0
        %4383 = vmatprep.subr.mxu0 0.0
        %4384 = vmatpush1.xpose.msra.mxu0 0.0
        %4385 = vmatprep.subr.mxu0 0.0
        %4386 = vmatpush1.xpose.msra.mxu0 0.0
        %4387 = vmatprep.subr.mxu0 0.0
        %4388 = vmatpush1.xpose.msra.mxu0 0.0
        %4389 = vmatprep.subr.mxu0 0.0
        %4390 = vmatpush1.xpose.msra.mxu0 0.0
        %4391 = vmatprep.subr.mxu0 0.0
        %4392 = vmatpush1.xpose.msra.mxu0 0.0
        %4393 = vmatprep.subr.mxu0 0.0
        %4394 = vmatpush1.xpose.msra.mxu0 0.0
        %4395 = vmatprep.subr.mxu0 0.0
        %4396 = vmatpush1.xpose.msra.mxu0 0.0
        %4397 = vmatprep.subr.mxu0 0.0
        %4398 = vmatpush1.xpose.msra.mxu0 %v4365
        %4399 = vmatprep.subr.mxu0 0.0
        %4400 = vmatpush2.xpose.msra.mxu0 0.0
        %4401 = vmatprep.subr.mxu0 0.0
        %4402 = vmatpush2.xpose.msra.mxu0 0.0
        %4403 = vmatprep.subr.mxu0 0.0
        %4404 = vmatpush2.xpose.msra.mxu0 0.0
        %4405 = vmatprep.subr.mxu0 0.0
        %4406 = vmatpush2.xpose.msra.mxu0 0.0
        %4407 = vmatprep.subr.mxu0 0.0
        %4408 = vmatpush2.xpose.msra.mxu0 0.0
        %4409 = vmatprep.subr.mxu0 0.0
        %4410 = vmatpush2.xpose.msra.mxu0 0.0
        %4411 = vmatprep.subr.mxu0 0.0
        %4412 = vmatpush2.xpose.msra.mxu0 0.0
        %4413 = vmatprep.subr.mxu0 0.0
        %4414 = vmatpush2.xpose.msra.mxu0 0.0
        %4415 = vmatprep.subr.mxu0 0.0
        %4416 = vmatpush2.xpose.msra.mxu0 0.0
        %4417 = vmatprep.subr.mxu0 0.0
        %4418 = vmatpush2.xpose.msra.mxu0 0.0
        %4419 = vmatprep.subr.mxu0 0.0
        %4420 = vmatpush2.xpose.msra.mxu0 0.0
        %4421 = vmatprep.subr.mxu0 0.0
        %4422 = vmatpush2.xpose.msra.mxu0 0.0
        %4423 = vmatprep.subr.mxu0 0.0
        %4424 = vmatpush2.xpose.msra.mxu0 0.0
        %4425 = vmatprep.subr.mxu0 0.0
        %4426 = vmatpush2.xpose.msra.mxu0 0.0
        %4427 = vmatprep.subr.mxu0 0.0
        %4428 = vmatpush2.xpose.msra.mxu0 0.0
        %4429 = vmatprep.subr.mxu0 0.0
        %4430 = vmatpush2.xpose.msra.mxu0 0.0
        %4431 = vmatprep.mubr.f32.mxu0 0.0
        %4432 = vmatmul.mubr.f32.gmra.mxu0 %v4362
        %v4433 = vpop.f32.mrf.mxu0
        %v4434 = vadd.f32 0.0, %v4433
        %v4435 = vpop.f32.mrf.mxu0
        %4436 = vdwg.mxu0
        %v4437 = vmul.f32 %v4206, 0.25
        %v4438 = vmul.f32 %v4282, 0.25
        %v4439 = vmul.f32 %v4358, 0.25
        %v4440 = vmul.f32 %v4434, 0.25
        %v4441 = vadd.f32 %v4437, %v2198
        %v4442 = vadd.f32 %v4438, %v2198
        %v4443 = vadd.f32 %v4439, %v2198
        %v4444 = vadd.f32 %v4440, %v2198
        %v4445 = vsel %vm2204, %v4441, -inf
        %4446 = vmax.xlane.f32.xlu0 %v4445
        %v4447 = vpop.xlane.xlu0 %4446
        %v4448 = vsel %vm2204, %v4442, -inf
        %4449 = vmax.xlane.f32.xlu0 %v4448
        %v4450 = vpop.xlane.xlu0 %4449
        %v4451 = vsel %vm2204, %v4443, -inf
        %4452 = vmax.xlane.f32.xlu0 %v4451
        %v4453 = vpop.xlane.xlu0 %4452
        %v4454 = vsel %vm2204, %v4444, -inf
        %4455 = vmax.xlane.f32.xlu0 %v4454
        %v4456 = vpop.xlane.xlu0 %4455
        %v4457 = vsub.f32 %v4441, %v4447
        %v4458 = vsub.f32 %v4442, %v4450
        %v4459 = vsub.f32 %v4443, %v4453
        %v4460 = vsub.f32 %v4444, %v4456
        %v4461 = vmul.f32 %v4457, 1.442695
        %v4462 = vpow.pop %v4461
        %v4463 = vmul.f32 %v4458, 1.442695
        %v4464 = vpow.pop %v4463
        %v4465 = vmul.f32 %v4459, 1.442695
        %v4466 = vpow.pop %v4465
        %v4467 = vmul.f32 %v4460, 1.442695
        %v4468 = vpow.pop %v4467
        %v4469 = vsel %vm2204, %v4462, 0.0
        %4470 = vadd.xlane.f32.xlu0 %v4469
        %v4471 = vpop.xlane.xlu0 %4470
        %v4472 = vsel %vm2204, %v4464, 0.0
        %4473 = vadd.xlane.f32.xlu0 %v4472
        %v4474 = vpop.xlane.xlu0 %4473
        %v4475 = vsel %vm2204, %v4466, 0.0
        %4476 = vadd.xlane.f32.xlu0 %v4475
        %v4477 = vpop.xlane.xlu0 %4476
        %v4478 = vsel %vm2204, %v4468, 0.0
        %4479 = vadd.xlane.f32.xlu0 %v4478
        %v4480 = vpop.xlane.xlu0 %4479
        %v4481 = vrcp.pop %v4471
        %v4482 = vrcp.pop %v4474
        %v4483 = vrcp.pop %v4477
        %v4484 = vrcp.pop %v4480
        %v4485 = vmul.f32 %v4462, %v4481
        %v4486 = vmul.f32 %v4464, %v4482
        %v4487 = vmul.f32 %v4466, %v4483
        %v4488 = vmul.f32 %v4468, %v4484
        %v4490 = vsel %vm2204, %v4485, 0
        %4492 = vmatprep.subr.mxu0 0.0
        %4493 = vmatpush1.msra.mxu0 0.0
        %4494 = vmatprep.subr.mxu0 0.0
        %4495 = vmatpush1.msra.mxu0 0.0
        %4496 = vmatprep.subr.mxu0 0.0
        %4497 = vmatpush1.msra.mxu0 0.0
        %4498 = vmatprep.subr.mxu0 0.0
        %4499 = vmatpush1.msra.mxu0 0.0
        %4500 = vmatprep.subr.mxu0 0.0
        %4501 = vmatpush1.msra.mxu0 0.0
        %4502 = vmatprep.subr.mxu0 0.0
        %4503 = vmatpush1.msra.mxu0 0.0
        %4504 = vmatprep.subr.mxu0 0.0
        %4505 = vmatpush1.msra.mxu0 0.0
        %4506 = vmatprep.subr.mxu0 0.0
        %4507 = vmatpush1.msra.mxu0 0.0
        %4508 = vmatprep.subr.mxu0 0.0
        %4509 = vmatpush1.msra.mxu0 0.0
        %4510 = vmatprep.subr.mxu0 0.0
        %4511 = vmatpush1.msra.mxu0 0.0
        %4512 = vmatprep.subr.mxu0 0.0
        %4513 = vmatpush1.msra.mxu0 0.0
        %4514 = vmatprep.subr.mxu0 0.0
        %4515 = vmatpush1.msra.mxu0 0.0
        %4516 = vmatprep.subr.mxu0 0.0
        %4517 = vmatpush1.msra.mxu0 0.0
        %4518 = vmatprep.subr.mxu0 0.0
        %4519 = vmatpush1.msra.mxu0 0.0
        %4520 = vmatprep.subr.mxu0 0.0
        %4521 = vmatpush1.msra.mxu0 0.0
        %4522 = vmatprep.subr.mxu0 0.0
        %4523 = vmatpush1.msra.mxu0 %v3920
        %4524 = vmatprep.subr.mxu0 0.0
        %4525 = vmatpush2.msra.mxu0 0.0
        %4526 = vmatprep.subr.mxu0 0.0
        %4527 = vmatpush2.msra.mxu0 0.0
        %4528 = vmatprep.subr.mxu0 0.0
        %4529 = vmatpush2.msra.mxu0 0.0
        %4530 = vmatprep.subr.mxu0 0.0
        %4531 = vmatpush2.msra.mxu0 0.0
        %4532 = vmatprep.subr.mxu0 0.0
        %4533 = vmatpush2.msra.mxu0 0.0
        %4534 = vmatprep.subr.mxu0 0.0
        %4535 = vmatpush2.msra.mxu0 0.0
        %4536 = vmatprep.subr.mxu0 0.0
        %4537 = vmatpush2.msra.mxu0 0.0
        %4538 = vmatprep.subr.mxu0 0.0
        %4539 = vmatpush2.msra.mxu0 0.0
        %4540 = vmatprep.subr.mxu0 0.0
        %4541 = vmatpush2.msra.mxu0 0.0
        %4542 = vmatprep.subr.mxu0 0.0
        %4543 = vmatpush2.msra.mxu0 0.0
        %4544 = vmatprep.subr.mxu0 0.0
        %4545 = vmatpush2.msra.mxu0 0.0
        %4546 = vmatprep.subr.mxu0 0.0
        %4547 = vmatpush2.msra.mxu0 0.0
        %4548 = vmatprep.subr.mxu0 0.0
        %4549 = vmatpush2.msra.mxu0 0.0
        %4550 = vmatprep.subr.mxu0 0.0
        %4551 = vmatpush2.msra.mxu0 0.0
        %4552 = vmatprep.subr.mxu0 0.0
        %4553 = vmatpush2.msra.mxu0 0.0
        %4554 = vmatprep.subr.mxu0 0.0
        %4555 = vmatpush2.msra.mxu0 0.0
        %4556 = vmatprep.mubr.f32.mxu0 0.0
        %4557 = vmatmul.mubr.f32.gmra.mxu0 %v4490
        %v4558 = vpop.f32.mrf.mxu0
        %v4559 = vadd.f32 0.0, %v4558
        %v4560 = vpop.f32.mrf.mxu0
        %4561 = vdwg.mxu0
        %v4563 = vsel %vm2204, %v4486, 0
        %4565 = vmatprep.subr.mxu0 0.0
        %4566 = vmatpush1.msra.mxu0 0.0
        %4567 = vmatprep.subr.mxu0 0.0
        %4568 = vmatpush1.msra.mxu0 0.0
        %4569 = vmatprep.subr.mxu0 0.0
        %4570 = vmatpush1.msra.mxu0 0.0
        %4571 = vmatprep.subr.mxu0 0.0
        %4572 = vmatpush1.msra.mxu0 0.0
        %4573 = vmatprep.subr.mxu0 0.0
        %4574 = vmatpush1.msra.mxu0 0.0
        %4575 = vmatprep.subr.mxu0 0.0
        %4576 = vmatpush1.msra.mxu0 0.0
        %4577 = vmatprep.subr.mxu0 0.0
        %4578 = vmatpush1.msra.mxu0 0.0
        %4579 = vmatprep.subr.mxu0 0.0
        %4580 = vmatpush1.msra.mxu0 0.0
        %4581 = vmatprep.subr.mxu0 0.0
        %4582 = vmatpush1.msra.mxu0 0.0
        %4583 = vmatprep.subr.mxu0 0.0
        %4584 = vmatpush1.msra.mxu0 0.0
        %4585 = vmatprep.subr.mxu0 0.0
        %4586 = vmatpush1.msra.mxu0 0.0
        %4587 = vmatprep.subr.mxu0 0.0
        %4588 = vmatpush1.msra.mxu0 0.0
        %4589 = vmatprep.subr.mxu0 0.0
        %4590 = vmatpush1.msra.mxu0 0.0
        %4591 = vmatprep.subr.mxu0 0.0
        %4592 = vmatpush1.msra.mxu0 0.0
        %4593 = vmatprep.subr.mxu0 0.0
        %4594 = vmatpush1.msra.mxu0 0.0
        %4595 = vmatprep.subr.mxu0 0.0
        %4596 = vmatpush1.msra.mxu0 %v3990
        %4597 = vmatprep.subr.mxu0 0.0
        %4598 = vmatpush2.msra.mxu0 0.0
        %4599 = vmatprep.subr.mxu0 0.0
        %4600 = vmatpush2.msra.mxu0 0.0
        %4601 = vmatprep.subr.mxu0 0.0
        %4602 = vmatpush2.msra.mxu0 0.0
        %4603 = vmatprep.subr.mxu0 0.0
        %4604 = vmatpush2.msra.mxu0 0.0
        %4605 = vmatprep.subr.mxu0 0.0
        %4606 = vmatpush2.msra.mxu0 0.0
        %4607 = vmatprep.subr.mxu0 0.0
        %4608 = vmatpush2.msra.mxu0 0.0
        %4609 = vmatprep.subr.mxu0 0.0
        %4610 = vmatpush2.msra.mxu0 0.0
        %4611 = vmatprep.subr.mxu0 0.0
        %4612 = vmatpush2.msra.mxu0 0.0
        %4613 = vmatprep.subr.mxu0 0.0
        %4614 = vmatpush2.msra.mxu0 0.0
        %4615 = vmatprep.subr.mxu0 0.0
        %4616 = vmatpush2.msra.mxu0 0.0
        %4617 = vmatprep.subr.mxu0 0.0
        %4618 = vmatpush2.msra.mxu0 0.0
        %4619 = vmatprep.subr.mxu0 0.0
        %4620 = vmatpush2.msra.mxu0 0.0
        %4621 = vmatprep.subr.mxu0 0.0
        %4622 = vmatpush2.msra.mxu0 0.0
        %4623 = vmatprep.subr.mxu0 0.0
        %4624 = vmatpush2.msra.mxu0 0.0
        %4625 = vmatprep.subr.mxu0 0.0
        %4626 = vmatpush2.msra.mxu0 0.0
        %4627 = vmatprep.subr.mxu0 0.0
        %4628 = vmatpush2.msra.mxu0 0.0
        %4629 = vmatprep.mubr.f32.mxu0 0.0
        %4630 = vmatmul.mubr.f32.gmra.mxu0 %v4563
        %v4631 = vpop.f32.mrf.mxu0
        %v4632 = vadd.f32 0.0, %v4631
        %v4633 = vpop.f32.mrf.mxu0
        %4634 = vdwg.mxu0
        %v4636 = vsel %vm2204, %v4487, 0
        %4638 = vmatprep.subr.mxu0 0.0
        %4639 = vmatpush1.msra.mxu0 0.0
        %4640 = vmatprep.subr.mxu0 0.0
        %4641 = vmatpush1.msra.mxu0 0.0
        %4642 = vmatprep.subr.mxu0 0.0
        %4643 = vmatpush1.msra.mxu0 0.0
        %4644 = vmatprep.subr.mxu0 0.0
        %4645 = vmatpush1.msra.mxu0 0.0
        %4646 = vmatprep.subr.mxu0 0.0
        %4647 = vmatpush1.msra.mxu0 0.0
        %4648 = vmatprep.subr.mxu0 0.0
        %4649 = vmatpush1.msra.mxu0 0.0
        %4650 = vmatprep.subr.mxu0 0.0
        %4651 = vmatpush1.msra.mxu0 0.0
        %4652 = vmatprep.subr.mxu0 0.0
        %4653 = vmatpush1.msra.mxu0 0.0
        %4654 = vmatprep.subr.mxu0 0.0
        %4655 = vmatpush1.msra.mxu0 0.0
        %4656 = vmatprep.subr.mxu0 0.0
        %4657 = vmatpush1.msra.mxu0 0.0
        %4658 = vmatprep.subr.mxu0 0.0
        %4659 = vmatpush1.msra.mxu0 0.0
        %4660 = vmatprep.subr.mxu0 0.0
        %4661 = vmatpush1.msra.mxu0 0.0
        %4662 = vmatprep.subr.mxu0 0.0
        %4663 = vmatpush1.msra.mxu0 0.0
        %4664 = vmatprep.subr.mxu0 0.0
        %4665 = vmatpush1.msra.mxu0 0.0
        %4666 = vmatprep.subr.mxu0 0.0
        %4667 = vmatpush1.msra.mxu0 0.0
        %4668 = vmatprep.subr.mxu0 0.0
        %4669 = vmatpush1.msra.mxu0 %v4060
        %4670 = vmatprep.subr.mxu0 0.0
        %4671 = vmatpush2.msra.mxu0 0.0
        %4672 = vmatprep.subr.mxu0 0.0
        %4673 = vmatpush2.msra.mxu0 0.0
        %4674 = vmatprep.subr.mxu0 0.0
        %4675 = vmatpush2.msra.mxu0 0.0
        %4676 = vmatprep.subr.mxu0 0.0
        %4677 = vmatpush2.msra.mxu0 0.0
        %4678 = vmatprep.subr.mxu0 0.0
        %4679 = vmatpush2.msra.mxu0 0.0
        %4680 = vmatprep.subr.mxu0 0.0
        %4681 = vmatpush2.msra.mxu0 0.0
        %4682 = vmatprep.subr.mxu0 0.0
        %4683 = vmatpush2.msra.mxu0 0.0
        %4684 = vmatprep.subr.mxu0 0.0
        %4685 = vmatpush2.msra.mxu0 0.0
        %4686 = vmatprep.subr.mxu0 0.0
        %4687 = vmatpush2.msra.mxu0 0.0
        %4688 = vmatprep.subr.mxu0 0.0
        %4689 = vmatpush2.msra.mxu0 0.0
        %4690 = vmatprep.subr.mxu0 0.0
        %4691 = vmatpush2.msra.mxu0 0.0
        %4692 = vmatprep.subr.mxu0 0.0
        %4693 = vmatpush2.msra.mxu0 0.0
        %4694 = vmatprep.subr.mxu0 0.0
        %4695 = vmatpush2.msra.mxu0 0.0
        %4696 = vmatprep.subr.mxu0 0.0
        %4697 = vmatpush2.msra.mxu0 0.0
        %4698 = vmatprep.subr.mxu0 0.0
        %4699 = vmatpush2.msra.mxu0 0.0
        %4700 = vmatprep.subr.mxu0 0.0
        %4701 = vmatpush2.msra.mxu0 0.0
        %4702 = vmatprep.mubr.f32.mxu0 0.0
        %4703 = vmatmul.mubr.f32.gmra.mxu0 %v4636
        %v4704 = vpop.f32.mrf.mxu0
        %v4705 = vadd.f32 0.0, %v4704
        %v4706 = vpop.f32.mrf.mxu0
        %4707 = vdwg.mxu0
        %v4709 = vsel %vm2204, %v4488, 0
        %4711 = vmatprep.subr.mxu0 0.0
        %4712 = vmatpush1.msra.mxu0 0.0
        %4713 = vmatprep.subr.mxu0 0.0
        %4714 = vmatpush1.msra.mxu0 0.0
        %4715 = vmatprep.subr.mxu0 0.0
        %4716 = vmatpush1.msra.mxu0 0.0
        %4717 = vmatprep.subr.mxu0 0.0
        %4718 = vmatpush1.msra.mxu0 0.0
        %4719 = vmatprep.subr.mxu0 0.0
        %4720 = vmatpush1.msra.mxu0 0.0
        %4721 = vmatprep.subr.mxu0 0.0
        %4722 = vmatpush1.msra.mxu0 0.0
        %4723 = vmatprep.subr.mxu0 0.0
        %4724 = vmatpush1.msra.mxu0 0.0
        %4725 = vmatprep.subr.mxu0 0.0
        %4726 = vmatpush1.msra.mxu0 0.0
        %4727 = vmatprep.subr.mxu0 0.0
        %4728 = vmatpush1.msra.mxu0 0.0
        %4729 = vmatprep.subr.mxu0 0.0
        %4730 = vmatpush1.msra.mxu0 0.0
        %4731 = vmatprep.subr.mxu0 0.0
        %4732 = vmatpush1.msra.mxu0 0.0
        %4733 = vmatprep.subr.mxu0 0.0
        %4734 = vmatpush1.msra.mxu0 0.0
        %4735 = vmatprep.subr.mxu0 0.0
        %4736 = vmatpush1.msra.mxu0 0.0
        %4737 = vmatprep.subr.mxu0 0.0
        %4738 = vmatpush1.msra.mxu0 0.0
        %4739 = vmatprep.subr.mxu0 0.0
        %4740 = vmatpush1.msra.mxu0 0.0
        %4741 = vmatprep.subr.mxu0 0.0
        %4742 = vmatpush1.msra.mxu0 %v4130
        %4743 = vmatprep.subr.mxu0 0.0
        %4744 = vmatpush2.msra.mxu0 0.0
        %4745 = vmatprep.subr.mxu0 0.0
        %4746 = vmatpush2.msra.mxu0 0.0
        %4747 = vmatprep.subr.mxu0 0.0
        %4748 = vmatpush2.msra.mxu0 0.0
        %4749 = vmatprep.subr.mxu0 0.0
        %4750 = vmatpush2.msra.mxu0 0.0
        %4751 = vmatprep.subr.mxu0 0.0
        %4752 = vmatpush2.msra.mxu0 0.0
        %4753 = vmatprep.subr.mxu0 0.0
        %4754 = vmatpush2.msra.mxu0 0.0
        %4755 = vmatprep.subr.mxu0 0.0
        %4756 = vmatpush2.msra.mxu0 0.0
        %4757 = vmatprep.subr.mxu0 0.0
        %4758 = vmatpush2.msra.mxu0 0.0
        %4759 = vmatprep.subr.mxu0 0.0
        %4760 = vmatpush2.msra.mxu0 0.0
        %4761 = vmatprep.subr.mxu0 0.0
        %4762 = vmatpush2.msra.mxu0 0.0
        %4763 = vmatprep.subr.mxu0 0.0
        %4764 = vmatpush2.msra.mxu0 0.0
        %4765 = vmatprep.subr.mxu0 0.0
        %4766 = vmatpush2.msra.mxu0 0.0
        %4767 = vmatprep.subr.mxu0 0.0
        %4768 = vmatpush2.msra.mxu0 0.0
        %4769 = vmatprep.subr.mxu0 0.0
        %4770 = vmatpush2.msra.mxu0 0.0
        %4771 = vmatprep.subr.mxu0 0.0
        %4772 = vmatpush2.msra.mxu0 0.0
        %4773 = vmatprep.subr.mxu0 0.0
        %4774 = vmatpush2.msra.mxu0 0.0
        %4775 = vmatprep.mubr.f32.mxu0 0.0
        %4776 = vmatmul.mubr.f32.gmra.mxu0 %v4709
        %v4777 = vpop.f32.mrf.mxu0
        %v4778 = vadd.f32 0.0, %v4777
        %v4779 = vpop.f32.mrf.mxu0
        %4780 = vdwg.mxu0
        %s4781 = scalar_lea.vmem %s11, 64
        %v4782 = vld [vmem:[%s4781] sm:$0xff]
        %v4783 = vld [vmem:[%s4781 + $0x8] sm:$0xff]
        %s4784 = scalar_lea.vmem %s11, 80
        %v4785 = vld [vmem:[%s4784] sm:$0xff]
        %v4786 = vld [vmem:[%s4784 + $0x8] sm:$0xff]
        %v4788 = vsel %vm1885, %v4632, 0
        %4790 = vmatprep.subr.mxu0 0.0
        %4791 = vmatpush1.msra.mxu0 0.0
        %4792 = vmatprep.subr.mxu0 0.0
        %4793 = vmatpush1.msra.mxu0 0.0
        %4794 = vmatprep.subr.mxu0 0.0
        %4795 = vmatpush1.msra.mxu0 0.0
        %4796 = vmatprep.subr.mxu0 0.0
        %4797 = vmatpush1.msra.mxu0 0.0
        %4798 = vmatprep.subr.mxu0 0.0
        %4799 = vmatpush1.msra.mxu0 0.0
        %4800 = vmatprep.subr.mxu0 0.0
        %4801 = vmatpush1.msra.mxu0 0.0
        %4802 = vmatprep.subr.mxu0 0.0
        %4803 = vmatpush1.msra.mxu0 0.0
        %4804 = vmatprep.subr.mxu0 0.0
        %4805 = vmatpush1.msra.mxu0 0.0
        %4806 = vmatprep.subr.mxu0 0.0
        %4807 = vmatpush1.msra.mxu0 0.0
        %4808 = vmatprep.subr.mxu0 0.0
        %4809 = vmatpush1.msra.mxu0 0.0
        %4810 = vmatprep.subr.mxu0 0.0
        %4811 = vmatpush1.msra.mxu0 0.0
        %4812 = vmatprep.subr.mxu0 0.0
        %4813 = vmatpush1.msra.mxu0 0.0
        %4814 = vmatprep.subr.mxu0 0.0
        %4815 = vmatpush1.msra.mxu0 0.0
        %4816 = vmatprep.subr.mxu0 0.0
        %4817 = vmatpush1.msra.mxu0 0.0
        %4818 = vmatprep.subr.mxu0 0.0
        %4819 = vmatpush1.msra.mxu0 %v4786
        %4820 = vmatprep.subr.mxu0 0.0
        %4821 = vmatpush1.msra.mxu0 %v4785
        %4822 = vmatprep.subr.mxu0 0.0
        %4823 = vmatpush2.msra.mxu0 0.0
        %4824 = vmatprep.subr.mxu0 0.0
        %4825 = vmatpush2.msra.mxu0 0.0
        %4826 = vmatprep.subr.mxu0 0.0
        %4827 = vmatpush2.msra.mxu0 0.0
        %4828 = vmatprep.subr.mxu0 0.0
        %4829 = vmatpush2.msra.mxu0 0.0
        %4830 = vmatprep.subr.mxu0 0.0
        %4831 = vmatpush2.msra.mxu0 0.0
        %4832 = vmatprep.subr.mxu0 0.0
        %4833 = vmatpush2.msra.mxu0 0.0
        %4834 = vmatprep.subr.mxu0 0.0
        %4835 = vmatpush2.msra.mxu0 0.0
        %4836 = vmatprep.subr.mxu0 0.0
        %4837 = vmatpush2.msra.mxu0 0.0
        %4838 = vmatprep.subr.mxu0 0.0
        %4839 = vmatpush2.msra.mxu0 0.0
        %4840 = vmatprep.subr.mxu0 0.0
        %4841 = vmatpush2.msra.mxu0 0.0
        %4842 = vmatprep.subr.mxu0 0.0
        %4843 = vmatpush2.msra.mxu0 0.0
        %4844 = vmatprep.subr.mxu0 0.0
        %4845 = vmatpush2.msra.mxu0 0.0
        %4846 = vmatprep.subr.mxu0 0.0
        %4847 = vmatpush2.msra.mxu0 0.0
        %4848 = vmatprep.subr.mxu0 0.0
        %4849 = vmatpush2.msra.mxu0 0.0
        %4850 = vmatprep.subr.mxu0 0.0
        %4851 = vmatpush2.msra.mxu0 0.0
        %4852 = vmatprep.subr.mxu0 0.0
        %4853 = vmatpush2.msra.mxu0 0.0
        %4854 = vmatprep.mubr.f32.mxu0 0.0
        %4855 = vmatmul.mubr.f32.gmra.mxu0 %v4788
        %v4856 = vpop.f32.mrf.mxu0
        %v4857 = vadd.f32 0.0, %v4856
        %v4858 = vpop.f32.mrf.mxu0
        %4859 = vdwg.mxu0
        %v4861 = vsel %vm1885, %v4559, 0
        %4863 = vmatprep.subr.mxu0 0.0
        %4864 = vmatpush1.msra.mxu0 0.0
        %4865 = vmatprep.subr.mxu0 0.0
        %4866 = vmatpush1.msra.mxu0 0.0
        %4867 = vmatprep.subr.mxu0 0.0
        %4868 = vmatpush1.msra.mxu0 0.0
        %4869 = vmatprep.subr.mxu0 0.0
        %4870 = vmatpush1.msra.mxu0 0.0
        %4871 = vmatprep.subr.mxu0 0.0
        %4872 = vmatpush1.msra.mxu0 0.0
        %4873 = vmatprep.subr.mxu0 0.0
        %4874 = vmatpush1.msra.mxu0 0.0
        %4875 = vmatprep.subr.mxu0 0.0
        %4876 = vmatpush1.msra.mxu0 0.0
        %4877 = vmatprep.subr.mxu0 0.0
        %4878 = vmatpush1.msra.mxu0 0.0
        %4879 = vmatprep.subr.mxu0 0.0
        %4880 = vmatpush1.msra.mxu0 0.0
        %4881 = vmatprep.subr.mxu0 0.0
        %4882 = vmatpush1.msra.mxu0 0.0
        %4883 = vmatprep.subr.mxu0 0.0
        %4884 = vmatpush1.msra.mxu0 0.0
        %4885 = vmatprep.subr.mxu0 0.0
        %4886 = vmatpush1.msra.mxu0 0.0
        %4887 = vmatprep.subr.mxu0 0.0
        %4888 = vmatpush1.msra.mxu0 0.0
        %4889 = vmatprep.subr.mxu0 0.0
        %4890 = vmatpush1.msra.mxu0 0.0
        %4891 = vmatprep.subr.mxu0 0.0
        %4892 = vmatpush1.msra.mxu0 %v4783
        %4893 = vmatprep.subr.mxu0 0.0
        %4894 = vmatpush1.msra.mxu0 %v4782
        %4895 = vmatprep.subr.mxu0 0.0
        %4896 = vmatpush2.msra.mxu0 0.0
        %4897 = vmatprep.subr.mxu0 0.0
        %4898 = vmatpush2.msra.mxu0 0.0
        %4899 = vmatprep.subr.mxu0 0.0
        %4900 = vmatpush2.msra.mxu0 0.0
        %4901 = vmatprep.subr.mxu0 0.0
        %4902 = vmatpush2.msra.mxu0 0.0
        %4903 = vmatprep.subr.mxu0 0.0
        %4904 = vmatpush2.msra.mxu0 0.0
        %4905 = vmatprep.subr.mxu0 0.0
        %4906 = vmatpush2.msra.mxu0 0.0
        %4907 = vmatprep.subr.mxu0 0.0
        %4908 = vmatpush2.msra.mxu0 0.0
        %4909 = vmatprep.subr.mxu0 0.0
        %4910 = vmatpush2.msra.mxu0 0.0
        %4911 = vmatprep.subr.mxu0 0.0
        %4912 = vmatpush2.msra.mxu0 0.0
        %4913 = vmatprep.subr.mxu0 0.0
        %4914 = vmatpush2.msra.mxu0 0.0
        %4915 = vmatprep.subr.mxu0 0.0
        %4916 = vmatpush2.msra.mxu0 0.0
        %4917 = vmatprep.subr.mxu0 0.0
        %4918 = vmatpush2.msra.mxu0 0.0
        %4919 = vmatprep.subr.mxu0 0.0
        %4920 = vmatpush2.msra.mxu0 0.0
        %4921 = vmatprep.subr.mxu0 0.0
        %4922 = vmatpush2.msra.mxu0 0.0
        %4923 = vmatprep.subr.mxu0 0.0
        %4924 = vmatpush2.msra.mxu0 0.0
        %4925 = vmatprep.subr.mxu0 0.0
        %4926 = vmatpush2.msra.mxu0 0.0
        %4927 = vmatprep.mubr.f32.mxu0 0.0
        %4928 = vmatmul.mubr.f32.gmra.mxu0 %v4861
        %v4929 = vpop.f32.mrf.mxu0
        %v4930 = vadd.f32 %v4857, %v4929
        %v4931 = vpop.f32.mrf.mxu0
        %4932 = vdwg.mxu0
        %s4933 = scalar_lea.vmem %s11, 96
        %v4934 = vld [vmem:[%s4933] sm:$0xff]
        %v4935 = vld [vmem:[%s4933 + $0x8] sm:$0xff]
        %v4937 = vsel %vm1885, %v4705, 0
        %4939 = vmatprep.subr.mxu0 0.0
        %4940 = vmatpush1.msra.mxu0 0.0
        %4941 = vmatprep.subr.mxu0 0.0
        %4942 = vmatpush1.msra.mxu0 0.0
        %4943 = vmatprep.subr.mxu0 0.0
        %4944 = vmatpush1.msra.mxu0 0.0
        %4945 = vmatprep.subr.mxu0 0.0
        %4946 = vmatpush1.msra.mxu0 0.0
        %4947 = vmatprep.subr.mxu0 0.0
        %4948 = vmatpush1.msra.mxu0 0.0
        %4949 = vmatprep.subr.mxu0 0.0
        %4950 = vmatpush1.msra.mxu0 0.0
        %4951 = vmatprep.subr.mxu0 0.0
        %4952 = vmatpush1.msra.mxu0 0.0
        %4953 = vmatprep.subr.mxu0 0.0
        %4954 = vmatpush1.msra.mxu0 0.0
        %4955 = vmatprep.subr.mxu0 0.0
        %4956 = vmatpush1.msra.mxu0 0.0
        %4957 = vmatprep.subr.mxu0 0.0
        %4958 = vmatpush1.msra.mxu0 0.0
        %4959 = vmatprep.subr.mxu0 0.0
        %4960 = vmatpush1.msra.mxu0 0.0
        %4961 = vmatprep.subr.mxu0 0.0
        %4962 = vmatpush1.msra.mxu0 0.0
        %4963 = vmatprep.subr.mxu0 0.0
        %4964 = vmatpush1.msra.mxu0 0.0
        %4965 = vmatprep.subr.mxu0 0.0
        %4966 = vmatpush1.msra.mxu0 0.0
        %4967 = vmatprep.subr.mxu0 0.0
        %4968 = vmatpush1.msra.mxu0 %v4935
        %4969 = vmatprep.subr.mxu0 0.0
        %4970 = vmatpush1.msra.mxu0 %v4934
        %4971 = vmatprep.subr.mxu0 0.0
        %4972 = vmatpush2.msra.mxu0 0.0
        %4973 = vmatprep.subr.mxu0 0.0
        %4974 = vmatpush2.msra.mxu0 0.0
        %4975 = vmatprep.subr.mxu0 0.0
        %4976 = vmatpush2.msra.mxu0 0.0
        %4977 = vmatprep.subr.mxu0 0.0
        %4978 = vmatpush2.msra.mxu0 0.0
        %4979 = vmatprep.subr.mxu0 0.0
        %4980 = vmatpush2.msra.mxu0 0.0
        %4981 = vmatprep.subr.mxu0 0.0
        %4982 = vmatpush2.msra.mxu0 0.0
        %4983 = vmatprep.subr.mxu0 0.0
        %4984 = vmatpush2.msra.mxu0 0.0
        %4985 = vmatprep.subr.mxu0 0.0
        %4986 = vmatpush2.msra.mxu0 0.0
        %4987 = vmatprep.subr.mxu0 0.0
        %4988 = vmatpush2.msra.mxu0 0.0
        %4989 = vmatprep.subr.mxu0 0.0
        %4990 = vmatpush2.msra.mxu0 0.0
        %4991 = vmatprep.subr.mxu0 0.0
        %4992 = vmatpush2.msra.mxu0 0.0
        %4993 = vmatprep.subr.mxu0 0.0
        %4994 = vmatpush2.msra.mxu0 0.0
        %4995 = vmatprep.subr.mxu0 0.0
        %4996 = vmatpush2.msra.mxu0 0.0
        %4997 = vmatprep.subr.mxu0 0.0
        %4998 = vmatpush2.msra.mxu0 0.0
        %4999 = vmatprep.subr.mxu0 0.0
        %5000 = vmatpush2.msra.mxu0 0.0
        %5001 = vmatprep.subr.mxu0 0.0
        %5002 = vmatpush2.msra.mxu0 0.0
        %5003 = vmatprep.mubr.f32.mxu0 0.0
        %5004 = vmatmul.mubr.f32.gmra.mxu0 %v4937
        %v5005 = vpop.f32.mrf.mxu0
        %v5006 = vadd.f32 0.0, %v5005
        %v5007 = vpop.f32.mrf.mxu0
        %5008 = vdwg.mxu0
        %v5009 = vadd.f32 %v4930, %v5006
        %s5010 = scalar_lea.vmem %s11, 112
        %v5011 = vld [vmem:[%s5010] sm:$0xff]
        %v5012 = vld [vmem:[%s5010 + $0x8] sm:$0xff]
        %v5014 = vsel %vm1885, %v4778, 0
        %5016 = vmatprep.subr.mxu0 0.0
        %5017 = vmatpush1.msra.mxu0 0.0
        %5018 = vmatprep.subr.mxu0 0.0
        %5019 = vmatpush1.msra.mxu0 0.0
        %5020 = vmatprep.subr.mxu0 0.0
        %5021 = vmatpush1.msra.mxu0 0.0
        %5022 = vmatprep.subr.mxu0 0.0
        %5023 = vmatpush1.msra.mxu0 0.0
        %5024 = vmatprep.subr.mxu0 0.0
        %5025 = vmatpush1.msra.mxu0 0.0
        %5026 = vmatprep.subr.mxu0 0.0
        %5027 = vmatpush1.msra.mxu0 0.0
        %5028 = vmatprep.subr.mxu0 0.0
        %5029 = vmatpush1.msra.mxu0 0.0
        %5030 = vmatprep.subr.mxu0 0.0
        %5031 = vmatpush1.msra.mxu0 0.0
        %5032 = vmatprep.subr.mxu0 0.0
        %5033 = vmatpush1.msra.mxu0 0.0
        %5034 = vmatprep.subr.mxu0 0.0
        %5035 = vmatpush1.msra.mxu0 0.0
        %5036 = vmatprep.subr.mxu0 0.0
        %5037 = vmatpush1.msra.mxu0 0.0
        %5038 = vmatprep.subr.mxu0 0.0
        %5039 = vmatpush1.msra.mxu0 0.0
        %5040 = vmatprep.subr.mxu0 0.0
        %5041 = vmatpush1.msra.mxu0 0.0
        %5042 = vmatprep.subr.mxu0 0.0
        %5043 = vmatpush1.msra.mxu0 0.0
        %5044 = vmatprep.subr.mxu0 0.0
        %5045 = vmatpush1.msra.mxu0 %v5012
        %5046 = vmatprep.subr.mxu0 0.0
        %5047 = vmatpush1.msra.mxu0 %v5011
        %5048 = vmatprep.subr.mxu0 0.0
        %5049 = vmatpush2.msra.mxu0 0.0
        %5050 = vmatprep.subr.mxu0 0.0
        %5051 = vmatpush2.msra.mxu0 0.0
        %5052 = vmatprep.subr.mxu0 0.0
        %5053 = vmatpush2.msra.mxu0 0.0
        %5054 = vmatprep.subr.mxu0 0.0
        %5055 = vmatpush2.msra.mxu0 0.0
        %5056 = vmatprep.subr.mxu0 0.0
        %5057 = vmatpush2.msra.mxu0 0.0
        %5058 = vmatprep.subr.mxu0 0.0
        %5059 = vmatpush2.msra.mxu0 0.0
        %5060 = vmatprep.subr.mxu0 0.0
        %5061 = vmatpush2.msra.mxu0 0.0
        %5062 = vmatprep.subr.mxu0 0.0
        %5063 = vmatpush2.msra.mxu0 0.0
        %5064 = vmatprep.subr.mxu0 0.0
        %5065 = vmatpush2.msra.mxu0 0.0
        %5066 = vmatprep.subr.mxu0 0.0
        %5067 = vmatpush2.msra.mxu0 0.0
        %5068 = vmatprep.subr.mxu0 0.0
        %5069 = vmatpush2.msra.mxu0 0.0
        %5070 = vmatprep.subr.mxu0 0.0
        %5071 = vmatpush2.msra.mxu0 0.0
        %5072 = vmatprep.subr.mxu0 0.0
        %5073 = vmatpush2.msra.mxu0 0.0
        %5074 = vmatprep.subr.mxu0 0.0
        %5075 = vmatpush2.msra.mxu0 0.0
        %5076 = vmatprep.subr.mxu0 0.0
        %5077 = vmatpush2.msra.mxu0 0.0
        %5078 = vmatprep.subr.mxu0 0.0
        %5079 = vmatpush2.msra.mxu0 0.0
        %5080 = vmatprep.mubr.f32.mxu0 0.0
        %5081 = vmatmul.mubr.f32.gmra.mxu0 %v5014
        %v5082 = vpop.f32.mrf.mxu0
        %v5083 = vadd.f32 0.0, %v5082
        %v5084 = vpop.f32.mrf.mxu0
        %5085 = vdwg.mxu0
        %v5086 = vadd.f32 %v5009, %v5083
        %s5087 = scalar_lea.vmem %s12, 1
        %v5088 = vld [vmem:[%s5087] sm:$0x1]
        %v5090 = vlaneseq
        %v5091 = vshrl.u32 %v5090, 7
        %v5092 = vsub.s32 0, %v5091
        %v5093 = vrot.slane %v5088, %v5092
        %v5095 = vadd.f32 %v5086, %v5093
        %v5096 = vadd.f32 %v5095, %v3103
        %s5097 = scalar_lea.vmem %s13, 1
        %v5098 = vld [vmem:[%s5097] sm:$0x1]
        %s5099 = scalar_lea.vmem %s14, 1
        %v5100 = vld [vmem:[%s5099] sm:$0x1]
        %v5101 = vsel %vm832, %v5096, 0.0
        %5102 = vadd.xlane.f32.xlu0 %v5101
        %v5103 = vpop.xlane.xlu0 %5102
        %v5104 = vmul.f32 %v5103, %v836
        %v5105 = vsub.f32 %v5096, %v5104
        %v5106 = vmul.f32 %v5105, %v5105
        %v5107 = vsel %vm832, %v5106, 0.0
        %5108 = vadd.xlane.f32.xlu0 %v5107
        %v5109 = vpop.xlane.xlu0 %5108
        %v5110 = vmul.f32 %v5109, %v836
        %v5111 = vadd.f32 %v5110, 1e-12
        %v5112 = vrsqrt.pop %v5111
        %v5113 = vmul.f32 %v5105, %v5112
        %v5115 = vlaneseq
        %v5116 = vshrl.u32 %v5115, 7
        %v5117 = vsub.s32 0, %v5116
        %v5118 = vrot.slane %v5098, %v5117
        %v5120 = vmul.f32 %v5113, %v5118
        %v5122 = vlaneseq
        %v5123 = vshrl.u32 %v5122, 7
        %v5124 = vsub.s32 0, %v5123
        %v5125 = vrot.slane %v5100, %v5124
        %v5127 = vadd.f32 %v5120, %v5125
        %s5128 = scalar_lea.vmem %s15, 64
        %v5129 = vld [vmem:[%s5128] sm:$0xff]
        %v5130 = vld [vmem:[%s5128 + $0x8] sm:$0xff]
        %v5131 = vld [vmem:[%s5128 + $0x10] sm:$0xff]
        %v5132 = vld [vmem:[%s5128 + $0x18] sm:$0xff]
        %v5133 = vld [vmem:[%s5128 + $0x20] sm:$0xff]
        %v5134 = vld [vmem:[%s5128 + $0x28] sm:$0xff]
        %v5135 = vld [vmem:[%s5128 + $0x30] sm:$0xff]
        %v5136 = vld [vmem:[%s5128 + $0x38] sm:$0xff]
        %s5137 = scalar_lea.vmem %s16, 1
        %v5138 = vld [vmem:[%s5137] sm:$0x1]
        %v5140 = vlaneseq
        %v5141 = vshrl.u32 %v5140, 7
        %v5142 = vsub.s32 0, %v5141
        %v5143 = vrot.slane %v5138, %v5142
        %v5146 = vsel %vm832, %v5127, 0
        %5148 = vmatprep.subr.mxu0 0.0
        %5149 = vmatpush1.msra.mxu0 0.0
        %5150 = vmatprep.subr.mxu0 0.0
        %5151 = vmatpush1.msra.mxu0 0.0
        %5152 = vmatprep.subr.mxu0 0.0
        %5153 = vmatpush1.msra.mxu0 0.0
        %5154 = vmatprep.subr.mxu0 0.0
        %5155 = vmatpush1.msra.mxu0 0.0
        %5156 = vmatprep.subr.mxu0 0.0
        %5157 = vmatpush1.msra.mxu0 0.0
        %5158 = vmatprep.subr.mxu0 0.0
        %5159 = vmatpush1.msra.mxu0 0.0
        %5160 = vmatprep.subr.mxu0 0.0
        %5161 = vmatpush1.msra.mxu0 0.0
        %5162 = vmatprep.subr.mxu0 0.0
        %5163 = vmatpush1.msra.mxu0 0.0
        %5164 = vmatprep.subr.mxu0 0.0
        %5165 = vmatpush1.msra.mxu0 %v5136
        %5166 = vmatprep.subr.mxu0 0.0
        %5167 = vmatpush1.msra.mxu0 %v5135
        %5168 = vmatprep.subr.mxu0 0.0
        %5169 = vmatpush1.msra.mxu0 %v5134
        %5170 = vmatprep.subr.mxu0 0.0
        %5171 = vmatpush1.msra.mxu0 %v5133
        %5172 = vmatprep.subr.mxu0 0.0
        %5173 = vmatpush1.msra.mxu0 %v5132
        %5174 = vmatprep.subr.mxu0 0.0
        %5175 = vmatpush1.msra.mxu0 %v5131
        %5176 = vmatprep.subr.mxu0 0.0
        %5177 = vmatpush1.msra.mxu0 %v5130
        %5178 = vmatprep.subr.mxu0 0.0
        %5179 = vmatpush1.msra.mxu0 %v5129
        %5180 = vmatprep.subr.mxu0 0.0
        %5181 = vmatpush2.msra.mxu0 0.0
        %5182 = vmatprep.subr.mxu0 0.0
        %5183 = vmatpush2.msra.mxu0 0.0
        %5184 = vmatprep.subr.mxu0 0.0
        %5185 = vmatpush2.msra.mxu0 0.0
        %5186 = vmatprep.subr.mxu0 0.0
        %5187 = vmatpush2.msra.mxu0 0.0
        %5188 = vmatprep.subr.mxu0 0.0
        %5189 = vmatpush2.msra.mxu0 0.0
        %5190 = vmatprep.subr.mxu0 0.0
        %5191 = vmatpush2.msra.mxu0 0.0
        %5192 = vmatprep.subr.mxu0 0.0
        %5193 = vmatpush2.msra.mxu0 0.0
        %5194 = vmatprep.subr.mxu0 0.0
        %5195 = vmatpush2.msra.mxu0 0.0
        %5196 = vmatprep.subr.mxu0 0.0
        %5197 = vmatpush2.msra.mxu0 0.0
        %5198 = vmatprep.subr.mxu0 0.0
        %5199 = vmatpush2.msra.mxu0 0.0
        %5200 = vmatprep.subr.mxu0 0.0
        %5201 = vmatpush2.msra.mxu0 0.0
        %5202 = vmatprep.subr.mxu0 0.0
        %5203 = vmatpush2.msra.mxu0 0.0
        %5204 = vmatprep.subr.mxu0 0.0
        %5205 = vmatpush2.msra.mxu0 0.0
        %5206 = vmatprep.subr.mxu0 0.0
        %5207 = vmatpush2.msra.mxu0 0.0
        %5208 = vmatprep.subr.mxu0 0.0
        %5209 = vmatpush2.msra.mxu0 0.0
        %5210 = vmatprep.subr.mxu0 0.0
        %5211 = vmatpush2.msra.mxu0 0.0
        %5212 = vmatprep.mubr.f32.mxu0 0.0
        %5213 = vmatmul.mubr.f32.gmra.mxu0 %v5146
        %v5214 = vpop.f32.mrf.mxu0
        %v5215 = vadd.f32 %v5143, %v5214
        %v5216 = vpop.f32.mrf.mxu0
        %5217 = vdwg.mxu0
        %v5218 = vmul.f32 %v5215, 0.5
        %v5219 = vmul.f32 %v5215, 0.044715
        %v5220 = vmul.f32 %v5219, %v5215
        %v5221 = vmul.f32 %v5220, %v5215
        %v5222 = vadd.f32 %v5215, %v5221
        %v5223 = vmul.f32 %v5222, 0.7978846
        %v5224 = vtanh.pop %v5223
        %v5225 = vadd.f32 %v5224, 1.0
        %v5226 = vmul.f32 %v5218, %v5225
        %s5227 = scalar_lea.vmem %s17, 128
        %v5228 = vld [vmem:[%s5227] sm:$0xff]
        %v5229 = vld [vmem:[%s5227 + $0x8] sm:$0xff]
        %v5230 = vld [vmem:[%s5227 + $0x10] sm:$0xff]
        %v5231 = vld [vmem:[%s5227 + $0x18] sm:$0xff]
        %v5232 = vld [vmem:[%s5227 + $0x20] sm:$0xff]
        %v5233 = vld [vmem:[%s5227 + $0x28] sm:$0xff]
        %v5234 = vld [vmem:[%s5227 + $0x30] sm:$0xff]
        %v5235 = vld [vmem:[%s5227 + $0x38] sm:$0xff]
        %v5236 = vld [vmem:[%s5227 + $0x40] sm:$0xff]
        %v5237 = vld [vmem:[%s5227 + $0x48] sm:$0xff]
        %v5238 = vld [vmem:[%s5227 + $0x50] sm:$0xff]
        %v5239 = vld [vmem:[%s5227 + $0x58] sm:$0xff]
        %v5240 = vld [vmem:[%s5227 + $0x60] sm:$0xff]
        %v5241 = vld [vmem:[%s5227 + $0x68] sm:$0xff]
        %v5242 = vld [vmem:[%s5227 + $0x70] sm:$0xff]
        %v5243 = vld [vmem:[%s5227 + $0x78] sm:$0xff]
        %s5244 = scalar_lea.vmem %s18, 1
        %v5245 = vld [vmem:[%s5244] sm:$0x1]
        %v5247 = vlaneseq
        %v5248 = vshrl.u32 %v5247, 7
        %v5249 = vsub.s32 0, %v5248
        %v5250 = vrot.slane %v5245, %v5249
        %5252 = vmatprep.subr.mxu0 0.0
        %5253 = vmatpush1.msra.mxu0 %v5243
        %5254 = vmatprep.subr.mxu0 0.0
        %5255 = vmatpush1.msra.mxu0 %v5242
        %5256 = vmatprep.subr.mxu0 0.0
        %5257 = vmatpush1.msra.mxu0 %v5241
        %5258 = vmatprep.subr.mxu0 0.0
        %5259 = vmatpush1.msra.mxu0 %v5240
        %5260 = vmatprep.subr.mxu0 0.0
        %5261 = vmatpush1.msra.mxu0 %v5239
        %5262 = vmatprep.subr.mxu0 0.0
        %5263 = vmatpush1.msra.mxu0 %v5238
        %5264 = vmatprep.subr.mxu0 0.0
        %5265 = vmatpush1.msra.mxu0 %v5237
        %5266 = vmatprep.subr.mxu0 0.0
        %5267 = vmatpush1.msra.mxu0 %v5236
        %5268 = vmatprep.subr.mxu0 0.0
        %5269 = vmatpush1.msra.mxu0 %v5235
        %5270 = vmatprep.subr.mxu0 0.0
        %5271 = vmatpush1.msra.mxu0 %v5234
        %5272 = vmatprep.subr.mxu0 0.0
        %5273 = vmatpush1.msra.mxu0 %v5233
        %5274 = vmatprep.subr.mxu0 0.0
        %5275 = vmatpush1.msra.mxu0 %v5232
        %5276 = vmatprep.subr.mxu0 0.0
        %5277 = vmatpush1.msra.mxu0 %v5231
        %5278 = vmatprep.subr.mxu0 0.0
        %5279 = vmatpush1.msra.mxu0 %v5230
        %5280 = vmatprep.subr.mxu0 0.0
        %5281 = vmatpush1.msra.mxu0 %v5229
        %5282 = vmatprep.subr.mxu0 0.0
        %5283 = vmatpush1.msra.mxu0 %v5228
        %5284 = vmatprep.subr.mxu0 0.0
        %5285 = vmatpush2.msra.mxu0 0.0
        %5286 = vmatprep.subr.mxu0 0.0
        %5287 = vmatpush2.msra.mxu0 0.0
        %5288 = vmatprep.subr.mxu0 0.0
        %5289 = vmatpush2.msra.mxu0 0.0
        %5290 = vmatprep.subr.mxu0 0.0
        %5291 = vmatpush2.msra.mxu0 0.0
        %5292 = vmatprep.subr.mxu0 0.0
        %5293 = vmatpush2.msra.mxu0 0.0
        %5294 = vmatprep.subr.mxu0 0.0
        %5295 = vmatpush2.msra.mxu0 0.0
        %5296 = vmatprep.subr.mxu0 0.0
        %5297 = vmatpush2.msra.mxu0 0.0
        %5298 = vmatprep.subr.mxu0 0.0
        %5299 = vmatpush2.msra.mxu0 0.0
        %5300 = vmatprep.subr.mxu0 0.0
        %5301 = vmatpush2.msra.mxu0 0.0
        %5302 = vmatprep.subr.mxu0 0.0
        %5303 = vmatpush2.msra.mxu0 0.0
        %5304 = vmatprep.subr.mxu0 0.0
        %5305 = vmatpush2.msra.mxu0 0.0
        %5306 = vmatprep.subr.mxu0 0.0
        %5307 = vmatpush2.msra.mxu0 0.0
        %5308 = vmatprep.subr.mxu0 0.0
        %5309 = vmatpush2.msra.mxu0 0.0
        %5310 = vmatprep.subr.mxu0 0.0
        %5311 = vmatpush2.msra.mxu0 0.0
        %5312 = vmatprep.subr.mxu0 0.0
        %5313 = vmatpush2.msra.mxu0 0.0
        %5314 = vmatprep.subr.mxu0 0.0
        %5315 = vmatpush2.msra.mxu0 0.0
        %5316 = vmatprep.mubr.f32.mxu0 0.0
        %5317 = vmatmul.mubr.f32.gmra.mxu0 %v5226
        %v5318 = vpop.f32.mrf.mxu0
        %v5319 = vadd.f32 %v5250, %v5318
        %v5320 = vpop.f32.mrf.mxu0
        %5321 = vdwg.mxu0
        %v5322 = vadd.f32 %v5319, %v5127
        %s5323 = scalar_lea.vmem %s19, 1
        %v5324 = vld [vmem:[%s5323] sm:$0x1]
        %s5325 = scalar_lea.vmem %s20, 1
        %v5326 = vld [vmem:[%s5325] sm:$0x1]
        %v5327 = vsel %vm832, %v5322, 0.0
        %5328 = vadd.xlane.f32.xlu0 %v5327
        %v5329 = vpop.xlane.xlu0 %5328
        %v5330 = vmul.f32 %v5329, %v836
        %v5331 = vsub.f32 %v5322, %v5330
        %v5332 = vmul.f32 %v5331, %v5331
        %v5333 = vsel %vm832, %v5332, 0.0
        %5334 = vadd.xlane.f32.xlu0 %v5333
        %v5335 = vpop.xlane.xlu0 %5334
        %v5336 = vmul.f32 %v5335, %v836
        %v5337 = vadd.f32 %v5336, 1e-12
        %v5338 = vrsqrt.pop %v5337
        %v5339 = vmul.f32 %v5331, %v5338
        %v5341 = vlaneseq
        %v5342 = vshrl.u32 %v5341, 7
        %v5343 = vsub.s32 0, %v5342
        %v5344 = vrot.slane %v5324, %v5343
        %v5346 = vmul.f32 %v5339, %v5344
        %v5348 = vlaneseq
        %v5349 = vshrl.u32 %v5348, 7
        %v5350 = vsub.s32 0, %v5349
        %v5351 = vrot.slane %v5326, %v5350
        %v5353 = vadd.f32 %v5346, %v5351
        %v5354 = vld [vmem:[%s21] sm:$0xff]
        %v5355 = vld [vmem:[%s21 + $0x8] sm:$0xff]
        %v5356 = vld [vmem:[%s21 + $0x10] sm:$0xff]
        %v5357 = vld [vmem:[%s21 + $0x18] sm:$0xff]
        %v5358 = vld [vmem:[%s21 + $0x20] sm:$0xff]
        %v5359 = vld [vmem:[%s21 + $0x28] sm:$0xff]
        %v5360 = vld [vmem:[%s21 + $0x30] sm:$0xff]
        %v5361 = vld [vmem:[%s21 + $0x38] sm:$0xff]
        %v5362 = vld [vmem:[%s22] sm:$0x1]
        %v5364 = vsel %vm832, %v5353, 0
        %5366 = vmatprep.subr.mxu0 0.0
        %5367 = vmatpush1.msra.mxu0 0.0
        %5368 = vmatprep.subr.mxu0 0.0
        %5369 = vmatpush1.msra.mxu0 0.0
        %5370 = vmatprep.subr.mxu0 0.0
        %5371 = vmatpush1.msra.mxu0 0.0
        %5372 = vmatprep.subr.mxu0 0.0
        %5373 = vmatpush1.msra.mxu0 0.0
        %5374 = vmatprep.subr.mxu0 0.0
        %5375 = vmatpush1.msra.mxu0 0.0
        %5376 = vmatprep.subr.mxu0 0.0
        %5377 = vmatpush1.msra.mxu0 0.0
        %5378 = vmatprep.subr.mxu0 0.0
        %5379 = vmatpush1.msra.mxu0 0.0
        %5380 = vmatprep.subr.mxu0 0.0
        %5381 = vmatpush1.msra.mxu0 0.0
        %5382 = vmatprep.subr.mxu0 0.0
        %5383 = vmatpush1.msra.mxu0 %v5361
        %5384 = vmatprep.subr.mxu0 0.0
        %5385 = vmatpush1.msra.mxu0 %v5360
        %5386 = vmatprep.subr.mxu0 0.0
        %5387 = vmatpush1.msra.mxu0 %v5359
        %5388 = vmatprep.subr.mxu0 0.0
        %5389 = vmatpush1.msra.mxu0 %v5358
        %5390 = vmatprep.subr.mxu0 0.0
        %5391 = vmatpush1.msra.mxu0 %v5357
        %5392 = vmatprep.subr.mxu0 0.0
        %5393 = vmatpush1.msra.mxu0 %v5356
        %5394 = vmatprep.subr.mxu0 0.0
        %5395 = vmatpush1.msra.mxu0 %v5355
        %5396 = vmatprep.subr.mxu0 0.0
        %5397 = vmatpush1.msra.mxu0 %v5354
        %5398 = vmatprep.subr.mxu0 0.0
        %5399 = vmatpush2.msra.mxu0 0.0
        %5400 = vmatprep.subr.mxu0 0.0
        %5401 = vmatpush2.msra.mxu0 0.0
        %5402 = vmatprep.subr.mxu0 0.0
        %5403 = vmatpush2.msra.mxu0 0.0
        %5404 = vmatprep.subr.mxu0 0.0
        %5405 = vmatpush2.msra.mxu0 0.0
        %5406 = vmatprep.subr.mxu0 0.0
        %5407 = vmatpush2.msra.mxu0 0.0
        %5408 = vmatprep.subr.mxu0 0.0
        %5409 = vmatpush2.msra.mxu0 0.0
        %5410 = vmatprep.subr.mxu0 0.0
        %5411 = vmatpush2.msra.mxu0 0.0
        %5412 = vmatprep.subr.mxu0 0.0
        %5413 = vmatpush2.msra.mxu0 0.0
        %5414 = vmatprep.subr.mxu0 0.0
        %5415 = vmatpush2.msra.mxu0 0.0
        %5416 = vmatprep.subr.mxu0 0.0
        %5417 = vmatpush2.msra.mxu0 0.0
        %5418 = vmatprep.subr.mxu0 0.0
        %5419 = vmatpush2.msra.mxu0 0.0
        %5420 = vmatprep.subr.mxu0 0.0
        %5421 = vmatpush2.msra.mxu0 0.0
        %5422 = vmatprep.subr.mxu0 0.0
        %5423 = vmatpush2.msra.mxu0 0.0
        %5424 = vmatprep.subr.mxu0 0.0
        %5425 = vmatpush2.msra.mxu0 0.0
        %5426 = vmatprep.subr.mxu0 0.0
        %5427 = vmatpush2.msra.mxu0 0.0
        %5428 = vmatprep.subr.mxu0 0.0
        %5429 = vmatpush2.msra.mxu0 0.0
        %5430 = vmatprep.mubr.f32.mxu0 0.0
        %5431 = vmatmul.mubr.f32.gmra.mxu0 %v5364
        %v5432 = vpop.f32.mrf.mxu0
        %v5433 = vadd.f32 %v5362, %v5432
        %v5434 = vpop.f32.mrf.mxu0
        %5435 = vdwg.mxu0
        %v5436 = vtanh.pop %v5433
        %v5437 = vld [vmem:[%s23] sm:$0xff]
        %v5438 = vld [vmem:[%s23 + $0x8] sm:$0xff]
        %v5439 = vld [vmem:[%s23 + $0x10] sm:$0xff]
        %v5440 = vld [vmem:[%s23 + $0x18] sm:$0xff]
        %v5441 = vld [vmem:[%s23 + $0x20] sm:$0xff]
        %v5442 = vld [vmem:[%s23 + $0x28] sm:$0xff]
        %v5443 = vld [vmem:[%s23 + $0x30] sm:$0xff]
        %v5444 = vld [vmem:[%s23 + $0x38] sm:$0xff]
        %v5445 = vld [vmem:[%s23 + $0x40] sm:$0xff]
        %v5446 = vld [vmem:[%s23 + $0x48] sm:$0xff]
        %v5447 = vld [vmem:[%s23 + $0x50] sm:$0xff]
        %v5448 = vld [vmem:[%s23 + $0x58] sm:$0xff]
        %v5449 = vld [vmem:[%s23 + $0x60] sm:$0xff]
        %v5450 = vld [vmem:[%s23 + $0x68] sm:$0xff]
        %v5451 = vld [vmem:[%s23 + $0x70] sm:$0xff]
        %v5452 = vld [vmem:[%s23 + $0x78] sm:$0xff]
        %v5453 = vld [vmem:[%s24] sm:$0x1]
        %5454 = vmatprep.subr.mxu0 0.0
        %5455 = vmatpush1.msra.mxu0 %v5452
        %5456 = vmatprep.subr.mxu0 0.0
        %5457 = vmatpush1.msra.mxu0 %v5451
        %5458 = vmatprep.subr.mxu0 0.0
        %5459 = vmatpush1.msra.mxu0 %v5450
        %5460 = vmatprep.subr.mxu0 0.0
        %5461 = vmatpush1.msra.mxu0 %v5449
        %5462 = vmatprep.subr.mxu0 0.0
        %5463 = vmatpush1.msra.mxu0 %v5448
        %5464 = vmatprep.subr.mxu0 0.0
        %5465 = vmatpush1.msra.mxu0 %v5447
        %5466 = vmatprep.subr.mxu0 0.0
        %5467 = vmatpush1.msra.mxu0 %v5446
        %5468 = vmatprep.subr.mxu0 0.0
        %5469 = vmatpush1.msra.mxu0 %v5445
        %5470 = vmatprep.subr.mxu0 0.0
        %5471 = vmatpush1.msra.mxu0 %v5444
        %5472 = vmatprep.subr.mxu0 0.0
        %5473 = vmatpush1.msra.mxu0 %v5443
        %5474 = vmatprep.subr.mxu0 0.0
        %5475 = vmatpush1.msra.mxu0 %v5442
        %5476 = vmatprep.subr.mxu0 0.0
        %5477 = vmatpush1.msra.mxu0 %v5441
        %5478 = vmatprep.subr.mxu0 0.0
        %5479 = vmatpush1.msra.mxu0 %v5440
        %5480 = vmatprep.subr.mxu0 0.0
        %5481 = vmatpush1.msra.mxu0 %v5439
        %5482 = vmatprep.subr.mxu0 0.0
        %5483 = vmatpush1.msra.mxu0 %v5438
        %5484 = vmatprep.subr.mxu0 0.0
        %5485 = vmatpush1.msra.mxu0 %v5437
        %5486 = vmatprep.subr.mxu0 0.0
        %5487 = vmatpush2.msra.mxu0 0.0
        %5488 = vmatprep.subr.mxu0 0.0
        %5489 = vmatpush2.msra.mxu0 0.0
        %5490 = vmatprep.subr.mxu0 0.0
        %5491 = vmatpush2.msra.mxu0 0.0
        %5492 = vmatprep.subr.mxu0 0.0
        %5493 = vmatpush2.msra.mxu0 0.0
        %5494 = vmatprep.subr.mxu0 0.0
        %5495 = vmatpush2.msra.mxu0 0.0
        %5496 = vmatprep.subr.mxu0 0.0
        %5497 = vmatpush2.msra.mxu0 0.0
        %5498 = vmatprep.subr.mxu0 0.0
        %5499 = vmatpush2.msra.mxu0 0.0
        %5500 = vmatprep.subr.mxu0 0.0
        %5501 = vmatpush2.msra.mxu0 0.0
        %5502 = vmatprep.subr.mxu0 0.0
        %5503 = vmatpush2.msra.mxu0 0.0
        %5504 = vmatprep.subr.mxu0 0.0
        %5505 = vmatpush2.msra.mxu0 0.0
        %5506 = vmatprep.subr.mxu0 0.0
        %5507 = vmatpush2.msra.mxu0 0.0
        %5508 = vmatprep.subr.mxu0 0.0
        %5509 = vmatpush2.msra.mxu0 0.0
        %5510 = vmatprep.subr.mxu0 0.0
        %5511 = vmatpush2.msra.mxu0 0.0
        %5512 = vmatprep.subr.mxu0 0.0
        %5513 = vmatpush2.msra.mxu0 0.0
        %5514 = vmatprep.subr.mxu0 0.0
        %5515 = vmatpush2.msra.mxu0 0.0
        %5516 = vmatprep.subr.mxu0 0.0
        %5517 = vmatpush2.msra.mxu0 0.0
        %5518 = vmatprep.mubr.f32.mxu0 0.0
        %5519 = vmatmul.mubr.f32.gmra.mxu0 %v5436
        %v5520 = vpop.f32.mrf.mxu0
        %v5521 = vadd.f32 %v5453, %v5520
        %v5522 = vpop.f32.mrf.mxu0
        %5523 = vdwg.mxu0
        %v5524 = vtanh.pop %v5521
        %v5525 = vld [vmem:[%s25] sm:$0xff]
        %v5526 = vld [vmem:[%s25 + $0x8] sm:$0xff]
        %v5527 = vld [vmem:[%s25 + $0x10] sm:$0xff]
        %v5528 = vld [vmem:[%s25 + $0x18] sm:$0xff]
        %v5529 = vld [vmem:[%s25 + $0x20] sm:$0xff]
        %v5530 = vld [vmem:[%s25 + $0x28] sm:$0xff]
        %v5531 = vld [vmem:[%s25 + $0x30] sm:$0xff]
        %v5532 = vld [vmem:[%s25 + $0x38] sm:$0xff]
        %v5533 = vld [vmem:[%s25 + $0x40] sm:$0xff]
        %v5534 = vld [vmem:[%s25 + $0x48] sm:$0xff]
        %v5535 = vld [vmem:[%s25 + $0x50] sm:$0xff]
        %v5536 = vld [vmem:[%s25 + $0x58] sm:$0xff]
        %v5537 = vld [vmem:[%s25 + $0x60] sm:$0xff]
        %v5538 = vld [vmem:[%s25 + $0x68] sm:$0xff]
        %v5539 = vld [vmem:[%s25 + $0x70] sm:$0xff]
        %v5540 = vld [vmem:[%s25 + $0x78] sm:$0xff]
        %v5541 = vld [vmem:[%s26] sm:$0x1]
        %5542 = vmatprep.subr.mxu0 0.0
        %5543 = vmatpush1.msra.mxu0 %v5540
        %5544 = vmatprep.subr.mxu0 0.0
        %5545 = vmatpush1.msra.mxu0 %v5539
        %5546 = vmatprep.subr.mxu0 0.0
        %5547 = vmatpush1.msra.mxu0 %v5538
        %5548 = vmatprep.subr.mxu0 0.0
        %5549 = vmatpush1.msra.mxu0 %v5537
        %5550 = vmatprep.subr.mxu0 0.0
        %5551 = vmatpush1.msra.mxu0 %v5536
        %5552 = vmatprep.subr.mxu0 0.0
        %5553 = vmatpush1.msra.mxu0 %v5535
        %5554 = vmatprep.subr.mxu0 0.0
        %5555 = vmatpush1.msra.mxu0 %v5534
        %5556 = vmatprep.subr.mxu0 0.0
        %5557 = vmatpush1.msra.mxu0 %v5533
        %5558 = vmatprep.subr.mxu0 0.0
        %5559 = vmatpush1.msra.mxu0 %v5532
        %5560 = vmatprep.subr.mxu0 0.0
        %5561 = vmatpush1.msra.mxu0 %v5531
        %5562 = vmatprep.subr.mxu0 0.0
        %5563 = vmatpush1.msra.mxu0 %v5530
        %5564 = vmatprep.subr.mxu0 0.0
        %5565 = vmatpush1.msra.mxu0 %v5529
        %5566 = vmatprep.subr.mxu0 0.0
        %5567 = vmatpush1.msra.mxu0 %v5528
        %5568 = vmatprep.subr.mxu0 0.0
        %5569 = vmatpush1.msra.mxu0 %v5527
        %5570 = vmatprep.subr.mxu0 0.0
        %5571 = vmatpush1.msra.mxu0 %v5526
        %5572 = vmatprep.subr.mxu0 0.0
        %5573 = vmatpush1.msra.mxu0 %v5525
        %5574 = vmatprep.subr.mxu0 0.0
        %5575 = vmatpush2.msra.mxu0 0.0
        %5576 = vmatprep.subr.mxu0 0.0
        %5577 = vmatpush2.msra.mxu0 0.0
        %5578 = vmatprep.subr.mxu0 0.0
        %5579 = vmatpush2.msra.mxu0 0.0
        %5580 = vmatprep.subr.mxu0 0.0
        %5581 = vmatpush2.msra.mxu0 0.0
        %5582 = vmatprep.subr.mxu0 0.0
        %5583 = vmatpush2.msra.mxu0 0.0
        %5584 = vmatprep.subr.mxu0 0.0
        %5585 = vmatpush2.msra.mxu0 0.0
        %5586 = vmatprep.subr.mxu0 0.0
        %5587 = vmatpush2.msra.mxu0 0.0
        %5588 = vmatprep.subr.mxu0 0.0
        %5589 = vmatpush2.msra.mxu0 0.0
        %5590 = vmatprep.subr.mxu0 0.0
        %5591 = vmatpush2.msra.mxu0 0.0
        %5592 = vmatprep.subr.mxu0 0.0
        %5593 = vmatpush2.msra.mxu0 0.0
        %5594 = vmatprep.subr.mxu0 0.0
        %5595 = vmatpush2.msra.mxu0 0.0
        %5596 = vmatprep.subr.mxu0 0.0
        %5597 = vmatpush2.msra.mxu0 0.0
        %5598 = vmatprep.subr.mxu0 0.0
        %5599 = vmatpush2.msra.mxu0 0.0
        %5600 = vmatprep.subr.mxu0 0.0
        %5601 = vmatpush2.msra.mxu0 0.0
        %5602 = vmatprep.subr.mxu0 0.0
        %5603 = vmatpush2.msra.mxu0 0.0
        %5604 = vmatprep.subr.mxu0 0.0
        %5605 = vmatpush2.msra.mxu0 0.0
        %5606 = vmatprep.mubr.f32.mxu0 0.0
        %5607 = vmatmul.mubr.f32.gmra.mxu0 %v5524
        %v5608 = vpop.f32.mrf.mxu0
        %v5609 = vadd.f32 %v5541, %v5608
        %v5610 = vpop.f32.mrf.mxu0
        %5611 = vdwg.mxu0
        %5612 = vst [vmem:[%s819] sm:$0x1] %v5609
        %s5613 = sand.u32 %s626, 1
        %s5614 = scalar_lea.sflag [#allocation3], %s5613
        %s5615 = sand.u32 %s626, 1
        %s5616 = scalar_lea.vmem [#allocation2], %s5615
        // Predicated region
        $region129: #{ihd_forward.1} parent=127 // pred_check
          %p5617 = pneg %p636
        $region130: #{ihd_forward.1} parent=127 // pred_check_branch
          %5619 = sbr.rel (%p5617) target = $region132
        $region131: #{ihd_forward.1} parent=127 // pred_region
          %s5621 = ssub.s32 16, 16
          %5622 = vsyncadd %s5614, %s5621
          %s5623 = smul.addr %s41, 16
          %s5624 = scalar_lea.hbm %s27, %s5623
          %s5626 = sshll.u32 %s5616, 4
          %s5627 = int_to_ptr.vmem [resolvable:$true] %s5626
          %5629 = dma.vmem_to_hbm [thread:$0]  %s5627, 16, %s5624, %s5614
        $region132: #{ihd_forward.1} parent=127 // pred_fallthru
          _
      $region128: #{ihd_forward.1} parent=5 // pred_fallthru
        _
      %p5630 = scmp.le.s32.totalorder 2, %s36
      // Predicated region
      $region133: #{ihd_forward.1} parent=5 // pred_check
        %p5631 = pneg %p5630
      $region134: #{ihd_forward.1} parent=5 // pred_check_branch
        %5633 = sbr.rel (%p5631) target = $region136
      $region135: #{ihd_forward.1} parent=5 // pred_region
        %s5634 = ssub.s32 %s36, 2
        // Predicated region
        $region137: #{ihd_forward.1} parent=135 // pred_check
          %p5635 = pneg %p642
        $region138: #{ihd_forward.1} parent=135 // pred_check_branch
          %5637 = sbr.rel (%p5635) target = $region140
        $region139: #{ihd_forward.1} parent=135 // pred_region
          %s5638 = sand.u32 %s627, 1
          %s5639 = scalar_lea.sflag [#allocation3], %s5638
          %s5640 = sand.u32 %s627, 1
          %s5641 = scalar_lea.vmem [#allocation2], %s5640
          %5642 = dma.done %s5639, 16
        $region140: #{ihd_forward.1} parent=135 // pred_fallthru
          _
      $region136: #{ihd_forward.1} parent=5 // pred_fallthru
        _
    $region6: #{ihd_forward.1} parent=1 // loop_footer
      %s40 = sadd.s32 1, %s36
    $region7: #{ihd_forward.1} parent=1 // loop_footer_branch
      %35 = sbr.rel target = $region3
    $region8: #{ihd_forward.1} parent=1 // loop_exit
      _
    %5643 = vsyncpa [#allocation3], 1
    %s5644 = scalar_lea.sflag [#allocation3], 1
    %5645 = vsyncpa %s5644, 1

</llo_original>
